<compile_context>
chip_gen: v7x
topology: tpu7x:2x2x1
jax: 0.10.0
libtpu: 0.0.40
codegen_flags: <defaults>
</compile_context>

<pallas_src>
import math

import jax
import jax.numpy as jnp
from jax import lax
from jax.experimental import pallas as pl
from jax.experimental.pallas import tpu as pltpu

K_PHASES = 4       # number of simulated phase-shifted patterns (len(phi_list))
HIDDEN_C = 8       # hidden channels in the reconstruction Arch
FRINGE_FREQ = 1.0  # fringe frequency used by the Simulator

# 3x3 kernel offsets in row-major (ky, kx) order: t = (dy+1)*3 + (dx+1).
_OFFS = [(dy, dx) for dy in (-1, 0, 1) for dx in (-1, 0, 1)]


# ------------------------------ tap generation (roll + mask) ------------------------------
def _boundary_masks(h, w):
    """Validity mask per 3x3 tap offset (None for the centre tap). Built once per block."""
    row = lax.broadcasted_iota(jnp.int32, (h, w), 0)
    col = lax.broadcasted_iota(jnp.int32, (h, w), 1)
    row_ok = {-1: row >= 1, 0: None, 1: row < h - 1}
    col_ok = {-1: col >= 1, 0: None, 1: col < w - 1}
    masks = {}
    for dy, dx in _OFFS:
        r, c = row_ok[dy], col_ok[dx]
        if r is None:
            masks[(dy, dx)] = c
        elif c is None:
            masks[(dy, dx)] = r
        else:
            masks[(dy, dx)] = jnp.logical_and(r, c)
    return masks


def _taps_3x3(x, masks):
    """tap[(dy,dx)][y,x] = x[y+dy, x+dx], zero outside the plane (SAME conv halo).

    Shifted taps come from pltpu.roll (XLU) + a precomputed boundary mask.  The circularly
    wrapped rows/cols only ever land on masked positions, so the select turns them into
    exact zero padding; no padded scratch planes and no misaligned slices are needed.
    """
    h, w = x.shape
    rows = {
        0: x,
        -1: pltpu.roll(x, shift=1, axis=0),         # result[y] = x[y-1]
        1: pltpu.roll(x, shift=h - 1, axis=0),      # result[y] = x[y+1]
    }
    taps = {}
    for dy, dx in _OFFS:
        v = rows[dy]
        if dx == -1:
            v = pltpu.roll(v, shift=1, axis=1)      # result[x] = v[:, x-1]
        elif dx == 1:
            v = pltpu.roll(v, shift=w - 1, axis=1)  # result[x] = v[:, x+1]
        m = masks[(dy, dx)]
        taps[(dy, dx)] = v if m is None else jnp.where(m, v, 0.0)
    return taps


# --------------------------- shared conv stack (runs in-kernel) ---------------------------
def _arch_compute(phi_planes, w1_ref, b1_ref, w2_ref, b2_ref):
    """conv3x3(K->HIDDEN_C) -> ReLU -> conv3x3(HIDDEN_C->1), SAME padding, f32 accum.

    Only two read-modify-write accumulator planes (acc1, acc2) are live at any point:
    hidden channels are produced one at a time, ReLU'd, and immediately folded into the
    conv2 accumulator.  Weights/biases are scalar SMEM reads; biases folded into init.
    """
    h, w = phi_planes[0].shape
    masks = _boundary_masks(h, w)
    # conv1 taps are read-only -> hoist out of the hidden-channel loop (rolls run once).
    taps1 = [_taps_3x3(p, masks) for p in phi_planes]

    acc2 = jnp.full((h, w), b2_ref[0], jnp.float32)        # conv2 bias folded in
    for c in range(HIDDEN_C):
        acc1 = jnp.full((h, w), b1_ref[c], jnp.float32)    # conv1 bias folded in
        for t, off in enumerate(_OFFS):
            base = t * K_PHASES * HIDDEN_C + c
            for k in range(K_PHASES):
                acc1 = acc1 + w1_ref[base + k * HIDDEN_C] * taps1[k][off]
        hidden = jnp.maximum(acc1, 0.0)
        taps2 = _taps_3x3(hidden, masks)                   # consumed immediately
        for t, off in enumerate(_OFFS):
            acc2 = acc2 + w2_ref[t * HIDDEN_C + c] * taps2[off]
    return acc2


# ------------------------------- fused simulator + Arch kernel ----------------------------
def _fused_kernel(img_ref, depth_ref, cos_p_ref, sin_p_ref,
                  w1_ref, b1_ref, w2_ref, b2_ref, out_ref):
    # img_ref, depth_ref, out_ref: (H, W) f32 per-image plane, W on the 128-lane axis.
    img = img_ref[...]
    arg = (2.0 * math.pi * FRINGE_FREQ) * depth_ref[...]
    # Simulator (fused, on-chip): one cos + one sin per pixel; each phase pattern is then
    # two scalar FMAs via cos(arg + p) = cos(p)cos(arg) - sin(p)sin(arg).
    half = 0.5 * img
    hc = half * jnp.cos(arg)
    hs = half * jnp.sin(arg)
    phi_planes = [half + cos_p_ref[k] * hc - sin_p_ref[k] * hs
                  for k in range(K_PHASES)]
    out_ref[...] = _arch_compute(phi_planes, w1_ref, b1_ref, w2_ref, b2_ref)


# --------------------------------- Arch-only kernel (process_phi) -------------------------
def _arch_kernel(phi_ref, w1_ref, b1_ref, w2_ref, b2_ref, out_ref):
    # phi_ref: (K_PHASES, H, W) f32 per-batch block
    phi_planes = [phi_ref[k] for k in range(K_PHASES)]
    out_ref[...] = _arch_compute(phi_planes, w1_ref, b1_ref, w2_ref, b2_ref)


def _smem_spec():
    return pl.BlockSpec(memory_space=pltpu.MemorySpace.SMEM)


# ------------------------------------- host wrappers ---------------------------------------
def fused_forward(img_nhw, depth_nhw, w1, b1, w2, b2):
    n, h, w = img_nhw.shape
    phases = (2.0 * math.pi / K_PHASES) * jnp.arange(K_PHASES, dtype=jnp.float32)
    cos_p = jnp.cos(phases)
    sin_p = jnp.sin(phases)
    return pl.pallas_call(
        _fused_kernel,
        out_shape=jax.ShapeDtypeStruct((n, h, w), jnp.float32),
        grid_spec=pltpu.PrefetchScalarGridSpec(
            num_scalar_prefetch=0,
            grid=(n,),
            in_specs=[
                pl.BlockSpec((None, h, w), lambda b: (b, 0, 0)),   # img
                pl.BlockSpec((None, h, w), lambda b: (b, 0, 0)),   # depth
                _smem_spec(),  # cos(phase_k)      (K,)
                _smem_spec(),  # sin(phase_k)      (K,)
                _smem_spec(),  # w1 flat           (3*3*K*C,)
                _smem_spec(),  # b1                (C,)
                _smem_spec(),  # w2 flat           (3*3*C,)
                _smem_spec(),  # b2                (1,)
            ],
            out_specs=pl.BlockSpec((None, h, w), lambda b: (b, 0, 0)),
        ),
        compiler_params=pltpu.CompilerParams(dimension_semantics=("parallel",)),
    )(img_nhw, depth_nhw, cos_p, sin_p,
      w1.reshape(-1), b1.reshape(-1), w2.reshape(-1), b2.reshape(-1))


def arch_forward(phi_nkhw, w1, b1, w2, b2):
    n, k, h, w = phi_nkhw.shape
    assert k == K_PHASES
    return pl.pallas_call(
        _arch_kernel,
        out_shape=jax.ShapeDtypeStruct((n, h, w), jnp.float32),
        grid_spec=pltpu.PrefetchScalarGridSpec(
            num_scalar_prefetch=0,
            grid=(n,),
            in_specs=[
                pl.BlockSpec((None, K_PHASES, h, w), lambda b: (b, 0, 0, 0)),
                _smem_spec(), _smem_spec(), _smem_spec(), _smem_spec(),
            ],
            out_specs=pl.BlockSpec((None, h, w), lambda b: (b, 0, 0)),
        ),
        compiler_params=pltpu.CompilerParams(dimension_semantics=("parallel",)),
    )(phi_nkhw, w1.reshape(-1), b1.reshape(-1), w2.reshape(-1), b2.reshape(-1))


# --------------------------------- module wrapper ------------------------------------------
class PhaseToPhaseNet:
    """JAX/Pallas port.  forward(img, depth) -> recon, all NCHW at the boundary."""

    def __init__(self, key):
        k1, k2, k3, k4 = jax.random.split(key, 4)
        self.w1 = 0.1 * jax.random.normal(k1, (3, 3, K_PHASES, HIDDEN_C), jnp.float32)
        self.b1 = 0.1 * jax.random.normal(k2, (1, HIDDEN_C), jnp.float32)
        self.w2 = 0.1 * jax.random.normal(k3, (3, 3, HIDDEN_C, 1), jnp.float32)
        self.b2 = 0.1 * jax.random.normal(k4, (1, 1), jnp.float32)

    def forward(self, img_nchw, depth_nchw, val=False):
        img = img_nchw[:, 0]       # (N, H, W): W on the 128-lane axis
        depth = depth_nchw[:, 0]
        recon = fused_forward(img, depth, self.w1, self.b1, self.w2, self.b2)
        return recon[:, None, :, :]          # -> NCHW (N, 1, H, W)

    def process_phi(self, phi_nchw):          # phi stacked as (N, K_PHASES, H, W)
        recon = arch_forward(phi_nchw, self.w1, self.b1, self.w2, self.b2)
        return recon[:, None, :, :]


# ------------------------------- pure-JAX reference ----------------------------------------
def _ref_forward(img_nchw, depth_nchw, w1, b1, w2, b2):
    img = jnp.transpose(img_nchw, (0, 2, 3, 1))
    depth = jnp.transpose(depth_nchw, (0, 2, 3, 1))
    phases = (2.0 * math.pi * jnp.arange(K_PHASES, dtype=jnp.float32)
              / K_PHASES).reshape(1, 1, 1, K_PHASES)
    phi = img * (0.5 + 0.5 * jnp.cos(2.0 * math.pi * FRINGE_FREQ * depth + phases))
    dn = ('NHWC', 'HWIO', 'NHWC')
    h = lax.conv_general_dilated(phi, w1, (1, 1), 'SAME', dimension_numbers=dn)
    h = jnp.maximum(h + b1.reshape(1, 1, 1, -1), 0.0)
    o = lax.conv_general_dilated(h, w2, (1, 1), 'SAME', dimension_numbers=dn)
    o = o + b2.reshape(1, 1, 1, -1)
    return jnp.transpose(o, (0, 3, 1, 2))


if __name__ == "__main__":
    key = jax.random.PRNGKey(0)
    k_img, k_depth, k_net = jax.random.split(key, 3)

    N, H, W = 2, 16, 128   # W on the 128-lane axis -> lane-dense loads/stores & native rolls
    img = jax.random.uniform(k_img, (N, 1, H, W), jnp.float32)            # intensity
    depth = jax.random.uniform(k_depth, (N, 1, H, W), jnp.float32) * 2.0  # depth map

    net = PhaseToPhaseNet(k_net)

    # fused simulator + Arch forward
    recon = jax.block_until_ready(net.forward(img, depth))
    ref = jax.block_until_ready(_ref_forward(img, depth, net.w1, net.b1, net.w2, net.b2))
    assert recon.shape == (N, 1, H, W)
    assert jnp.allclose(recon, ref, atol=1e-4, rtol=1e-4), "forward mismatch vs reference"

    # Arch-only path (process_phi) on reference-simulated phases
    phases = (2.0 * math.pi / K_PHASES) * jnp.arange(K_PHASES, dtype=jnp.float32)
    phi = img * (0.5 + 0.5 * jnp.cos(2.0 * math.pi * FRINGE_FREQ * depth
                                     + phases.reshape(1, K_PHASES, 1, 1)))
    recon2 = jax.block_until_ready(net.process_phi(phi))
    assert jnp.allclose(recon2, ref, atol=1e-4, rtol=1e-4), "process_phi mismatch"

    print("KERNEL_OK")
</pallas_src>

<mosaic_0001>
module attributes {stable_mosaic.version = 11 : i64} {
  func.func @_fused_kernel(%arg0: i32, %arg1: memref<1x16x128xf32, #tpu.memory_space<vmem>>, %arg2: memref<1x16x128xf32, #tpu.memory_space<vmem>>, %arg3: memref<4xf32, #tpu.memory_space<smem>>, %arg4: memref<4xf32, #tpu.memory_space<smem>>, %arg5: memref<288xf32, #tpu.memory_space<smem>>, %arg6: memref<8xf32, #tpu.memory_space<smem>>, %arg7: memref<72xf32, #tpu.memory_space<smem>>, %arg8: memref<1xf32, #tpu.memory_space<smem>>, %arg9: memref<1x16x128xf32, #tpu.memory_space<vmem>>) attributes {dimension_semantics = [#tpu.dimension_semantics<parallel>], iteration_bounds = array<i64: 2>, scalar_prefetch = 0 : i64, scratch_operands = 0 : i64, tpu.core_type = #tpu.core_type<tc>, window_params = [{transform_indices = @transform_0, window_bounds = array<i64: 1, 16, 128>}, {transform_indices = @transform_1, window_bounds = array<i64: 1, 16, 128>}, {transform_indices = @transform_2, window_bounds = array<i64: 4>}, {transform_indices = @transform_3, window_bounds = array<i64: 4>}, {transform_indices = @transform_4, window_bounds = array<i64: 288>}, {transform_indices = @transform_5, window_bounds = array<i64: 8>}, {transform_indices = @transform_6, window_bounds = array<i64: 72>}, {transform_indices = @transform_7, window_bounds = array<i64: 1>}, {transform_indices = @transform_8, window_bounds = array<i64: 1, 16, 128>}]} {
    %c0 = arith.constant 0 : index
    %c0_0 = arith.constant 0 : index
    %c0_1 = arith.constant 0 : index
    %0 = vector.load %arg1[%c0, %c0_0, %c0_1] : memref<1x16x128xf32, #tpu.memory_space<vmem>>, vector<1x16x128xf32>
    %1 = vector.shape_cast %0 : vector<1x16x128xf32> to vector<16x128xf32>
    %c0_2 = arith.constant 0 : index
    %c0_3 = arith.constant 0 : index
    %c0_4 = arith.constant 0 : index
    %2 = vector.load %arg2[%c0_2, %c0_3, %c0_4] : memref<1x16x128xf32, #tpu.memory_space<vmem>>, vector<1x16x128xf32>
    %3 = vector.shape_cast %2 : vector<1x16x128xf32> to vector<16x128xf32>
    %cst = arith.constant 6.28318548 : f32
    %4 = vector.broadcast %cst : f32 to vector<16x128xf32>
    %5 = arith.mulf %4, %3 : vector<16x128xf32>
    %cst_5 = arith.constant 5.000000e-01 : f32
    %6 = vector.broadcast %cst_5 : f32 to vector<16x128xf32>
    %7 = arith.mulf %6, %1 : vector<16x128xf32>
    %8 = math.cos %5 : vector<16x128xf32>
    %9 = arith.mulf %7, %8 : vector<16x128xf32>
    %10 = math.sin %5 : vector<16x128xf32>
    %11 = arith.mulf %7, %10 : vector<16x128xf32>
    %c0_6 = arith.constant 0 : index
    %12 = memref.load %arg3[%c0_6] : memref<4xf32, #tpu.memory_space<smem>>
    %13 = vector.broadcast %12 : f32 to vector<16x128xf32>
    %14 = arith.mulf %13, %9 : vector<16x128xf32>
    %15 = arith.addf %7, %14 : vector<16x128xf32>
    %c0_7 = arith.constant 0 : index
    %16 = memref.load %arg4[%c0_7] : memref<4xf32, #tpu.memory_space<smem>>
    %17 = vector.broadcast %16 : f32 to vector<16x128xf32>
    %18 = arith.mulf %17, %11 : vector<16x128xf32>
    %19 = arith.subf %15, %18 : vector<16x128xf32>
    %c1 = arith.constant 1 : index
    %20 = memref.load %arg3[%c1] : memref<4xf32, #tpu.memory_space<smem>>
    %21 = vector.broadcast %20 : f32 to vector<16x128xf32>
    %22 = arith.mulf %21, %9 : vector<16x128xf32>
    %23 = arith.addf %7, %22 : vector<16x128xf32>
    %c1_8 = arith.constant 1 : index
    %24 = memref.load %arg4[%c1_8] : memref<4xf32, #tpu.memory_space<smem>>
    %25 = vector.broadcast %24 : f32 to vector<16x128xf32>
    %26 = arith.mulf %25, %11 : vector<16x128xf32>
    %27 = arith.subf %23, %26 : vector<16x128xf32>
    %c2 = arith.constant 2 : index
    %28 = memref.load %arg3[%c2] : memref<4xf32, #tpu.memory_space<smem>>
    %29 = vector.broadcast %28 : f32 to vector<16x128xf32>
    %30 = arith.mulf %29, %9 : vector<16x128xf32>
    %31 = arith.addf %7, %30 : vector<16x128xf32>
    %c2_9 = arith.constant 2 : index
    %32 = memref.load %arg4[%c2_9] : memref<4xf32, #tpu.memory_space<smem>>
    %33 = vector.broadcast %32 : f32 to vector<16x128xf32>
    %34 = arith.mulf %33, %11 : vector<16x128xf32>
    %35 = arith.subf %31, %34 : vector<16x128xf32>
    %c3 = arith.constant 3 : index
    %36 = memref.load %arg3[%c3] : memref<4xf32, #tpu.memory_space<smem>>
    %37 = vector.broadcast %36 : f32 to vector<16x128xf32>
    %38 = arith.mulf %37, %9 : vector<16x128xf32>
    %39 = arith.addf %7, %38 : vector<16x128xf32>
    %c3_10 = arith.constant 3 : index
    %40 = memref.load %arg4[%c3_10] : memref<4xf32, #tpu.memory_space<smem>>
    %41 = vector.broadcast %40 : f32 to vector<16x128xf32>
    %42 = arith.mulf %41, %11 : vector<16x128xf32>
    %43 = arith.subf %39, %42 : vector<16x128xf32>
    %44 = tpu.iota {dimensions = array<i32: 0>} : vector<16x128xi32>
    %45 = tpu.iota {dimensions = array<i32: 1>} : vector<16x128xi32>
    %c1_i32 = arith.constant 1 : i32
    %46 = vector.broadcast %c1_i32 : i32 to vector<16x128xi32>
    %47 = arith.cmpi sge, %44, %46 : vector<16x128xi32>
    %c15_i32 = arith.constant 15 : i32
    %48 = vector.broadcast %c15_i32 : i32 to vector<16x128xi32>
    %49 = arith.cmpi slt, %44, %48 : vector<16x128xi32>
    %c1_i32_11 = arith.constant 1 : i32
    %50 = vector.broadcast %c1_i32_11 : i32 to vector<16x128xi32>
    %51 = arith.cmpi sge, %45, %50 : vector<16x128xi32>
    %c127_i32 = arith.constant 127 : i32
    %52 = vector.broadcast %c127_i32 : i32 to vector<16x128xi32>
    %53 = arith.cmpi slt, %45, %52 : vector<16x128xi32>
    %54 = arith.andi %47, %51 : vector<16x128xi1>
    %55 = arith.andi %47, %53 : vector<16x128xi1>
    %56 = arith.andi %49, %51 : vector<16x128xi1>
    %57 = arith.andi %49, %53 : vector<16x128xi1>
    %c1_i32_12 = arith.constant 1 : i32
    %58 = tpu.dynamic_rotate %19 by %c1_i32_12 dim 0 : vector<16x128xf32>, i32 -> vector<16x128xf32>
    %c15_i32_13 = arith.constant 15 : i32
    %59 = tpu.dynamic_rotate %19 by %c15_i32_13 dim 0 : vector<16x128xf32>, i32 -> vector<16x128xf32>
    %c1_i32_14 = arith.constant 1 : i32
    %60 = tpu.dynamic_rotate %58 by %c1_i32_14 dim 1 : vector<16x128xf32>, i32 -> vector<16x128xf32>
    %cst_15 = arith.constant 0.000000e+00 : f32
    %61 = vector.broadcast %cst_15 : f32 to vector<16x128xf32>
    %62 = arith.select %54, %60, %61 : vector<16x128xi1>, vector<16x128xf32>
    %cst_16 = arith.constant 0.000000e+00 : f32
    %63 = vector.broadcast %cst_16 : f32 to vector<16x128xf32>
    %64 = arith.select %47, %58, %63 : vector<16x128xi1>, vector<16x128xf32>
    %c127_i32_17 = arith.constant 127 : i32
    %65 = tpu.dynamic_rotate %58 by %c127_i32_17 dim 1 : vector<16x128xf32>, i32 -> vector<16x128xf32>
    %cst_18 = arith.constant 0.000000e+00 : f32
    %66 = vector.broadcast %cst_18 : f32 to vector<16x128xf32>
    %67 = arith.select %55, %65, %66 : vector<16x128xi1>, vector<16x128xf32>
    %c1_i32_19 = arith.constant 1 : i32
    %68 = tpu.dynamic_rotate %19 by %c1_i32_19 dim 1 : vector<16x128xf32>, i32 -> vector<16x128xf32>
    %cst_20 = arith.constant 0.000000e+00 : f32
    %69 = vector.broadcast %cst_20 : f32 to vector<16x128xf32>
    %70 = arith.select %51, %68, %69 : vector<16x128xi1>, vector<16x128xf32>
    %c127_i32_21 = arith.constant 127 : i32
    %71 = tpu.dynamic_rotate %19 by %c127_i32_21 dim 1 : vector<16x128xf32>, i32 -> vector<16x128xf32>
    %cst_22 = arith.constant 0.000000e+00 : f32
    %72 = vector.broadcast %cst_22 : f32 to vector<16x128xf32>
    %73 = arith.select %53, %71, %72 : vector<16x128xi1>, vector<16x128xf32>
    %c1_i32_23 = arith.constant 1 : i32
    %74 = tpu.dynamic_rotate %59 by %c1_i32_23 dim 1 : vector<16x128xf32>, i32 -> vector<16x128xf32>
    %cst_24 = arith.constant 0.000000e+00 : f32
    %75 = vector.broadcast %cst_24 : f32 to vector<16x128xf32>
    %76 = arith.select %56, %74, %75 : vector<16x128xi1>, vector<16x128xf32>
    %cst_25 = arith.constant 0.000000e+00 : f32
    %77 = vector.broadcast %cst_25 : f32 to vector<16x128xf32>
    %78 = arith.select %49, %59, %77 : vector<16x128xi1>, vector<16x128xf32>
    %c127_i32_26 = arith.constant 127 : i32
    %79 = tpu.dynamic_rotate %59 by %c127_i32_26 dim 1 : vector<16x128xf32>, i32 -> vector<16x128xf32>
    %cst_27 = arith.constant 0.000000e+00 : f32
    %80 = vector.broadcast %cst_27 : f32 to vector<16x128xf32>
    %81 = arith.select %57, %79, %80 : vector<16x128xi1>, vector<16x128xf32>
    %c1_i32_28 = arith.constant 1 : i32
    %82 = tpu.dynamic_rotate %27 by %c1_i32_28 dim 0 : vector<16x128xf32>, i32 -> vector<16x128xf32>
    %c15_i32_29 = arith.constant 15 : i32
    %83 = tpu.dynamic_rotate %27 by %c15_i32_29 dim 0 : vector<16x128xf32>, i32 -> vector<16x128xf32>
    %c1_i32_30 = arith.constant 1 : i32
    %84 = tpu.dynamic_rotate %82 by %c1_i32_30 dim 1 : vector<16x128xf32>, i32 -> vector<16x128xf32>
    %cst_31 = arith.constant 0.000000e+00 : f32
    %85 = vector.broadcast %cst_31 : f32 to vector<16x128xf32>
    %86 = arith.select %54, %84, %85 : vector<16x128xi1>, vector<16x128xf32>
    %cst_32 = arith.constant 0.000000e+00 : f32
    %87 = vector.broadcast %cst_32 : f32 to vector<16x128xf32>
    %88 = arith.select %47, %82, %87 : vector<16x128xi1>, vector<16x128xf32>
    %c127_i32_33 = arith.constant 127 : i32
    %89 = tpu.dynamic_rotate %82 by %c127_i32_33 dim 1 : vector<16x128xf32>, i32 -> vector<16x128xf32>
    %cst_34 = arith.constant 0.000000e+00 : f32
    %90 = vector.broadcast %cst_34 : f32 to vector<16x128xf32>
    %91 = arith.select %55, %89, %90 : vector<16x128xi1>, vector<16x128xf32>
    %c1_i32_35 = arith.constant 1 : i32
    %92 = tpu.dynamic_rotate %27 by %c1_i32_35 dim 1 : vector<16x128xf32>, i32 -> vector<16x128xf32>
    %cst_36 = arith.constant 0.000000e+00 : f32
    %93 = vector.broadcast %cst_36 : f32 to vector<16x128xf32>
    %94 = arith.select %51, %92, %93 : vector<16x128xi1>, vector<16x128xf32>
    %c127_i32_37 = arith.constant 127 : i32
    %95 = tpu.dynamic_rotate %27 by %c127_i32_37 dim 1 : vector<16x128xf32>, i32 -> vector<16x128xf32>
    %cst_38 = arith.constant 0.000000e+00 : f32
    %96 = vector.broadcast %cst_38 : f32 to vector<16x128xf32>
    %97 = arith.select %53, %95, %96 : vector<16x128xi1>, vector<16x128xf32>
    %c1_i32_39 = arith.constant 1 : i32
    %98 = tpu.dynamic_rotate %83 by %c1_i32_39 dim 1 : vector<16x128xf32>, i32 -> vector<16x128xf32>
    %cst_40 = arith.constant 0.000000e+00 : f32
    %99 = vector.broadcast %cst_40 : f32 to vector<16x128xf32>
    %100 = arith.select %56, %98, %99 : vector<16x128xi1>, vector<16x128xf32>
    %cst_41 = arith.constant 0.000000e+00 : f32
    %101 = vector.broadcast %cst_41 : f32 to vector<16x128xf32>
    %102 = arith.select %49, %83, %101 : vector<16x128xi1>, vector<16x128xf32>
    %c127_i32_42 = arith.constant 127 : i32
    %103 = tpu.dynamic_rotate %83 by %c127_i32_42 dim 1 : vector<16x128xf32>, i32 -> vector<16x128xf32>
    %cst_43 = arith.constant 0.000000e+00 : f32
    %104 = vector.broadcast %cst_43 : f32 to vector<16x128xf32>
    %105 = arith.select %57, %103, %104 : vector<16x128xi1>, vector<16x128xf32>
    %c1_i32_44 = arith.constant 1 : i32
    %106 = tpu.dynamic_rotate %35 by %c1_i32_44 dim 0 : vector<16x128xf32>, i32 -> vector<16x128xf32>
    %c15_i32_45 = arith.constant 15 : i32
    %107 = tpu.dynamic_rotate %35 by %c15_i32_45 dim 0 : vector<16x128xf32>, i32 -> vector<16x128xf32>
    %c1_i32_46 = arith.constant 1 : i32
    %108 = tpu.dynamic_rotate %106 by %c1_i32_46 dim 1 : vector<16x128xf32>, i32 -> vector<16x128xf32>
    %cst_47 = arith.constant 0.000000e+00 : f32
    %109 = vector.broadcast %cst_47 : f32 to vector<16x128xf32>
    %110 = arith.select %54, %108, %109 : vector<16x128xi1>, vector<16x128xf32>
    %cst_48 = arith.constant 0.000000e+00 : f32
    %111 = vector.broadcast %cst_48 : f32 to vector<16x128xf32>
    %112 = arith.select %47, %106, %111 : vector<16x128xi1>, vector<16x128xf32>
    %c127_i32_49 = arith.constant 127 : i32
    %113 = tpu.dynamic_rotate %106 by %c127_i32_49 dim 1 : vector<16x128xf32>, i32 -> vector<16x128xf32>
    %cst_50 = arith.constant 0.000000e+00 : f32
    %114 = vector.broadcast %cst_50 : f32 to vector<16x128xf32>
    %115 = arith.select %55, %113, %114 : vector<16x128xi1>, vector<16x128xf32>
    %c1_i32_51 = arith.constant 1 : i32
    %116 = tpu.dynamic_rotate %35 by %c1_i32_51 dim 1 : vector<16x128xf32>, i32 -> vector<16x128xf32>
    %cst_52 = arith.constant 0.000000e+00 : f32
    %117 = vector.broadcast %cst_52 : f32 to vector<16x128xf32>
    %118 = arith.select %51, %116, %117 : vector<16x128xi1>, vector<16x128xf32>
    %c127_i32_53 = arith.constant 127 : i32
    %119 = tpu.dynamic_rotate %35 by %c127_i32_53 dim 1 : vector<16x128xf32>, i32 -> vector<16x128xf32>
    %cst_54 = arith.constant 0.000000e+00 : f32
    %120 = vector.broadcast %cst_54 : f32 to vector<16x128xf32>
    %121 = arith.select %53, %119, %120 : vector<16x128xi1>, vector<16x128xf32>
    %c1_i32_55 = arith.constant 1 : i32
    %122 = tpu.dynamic_rotate %107 by %c1_i32_55 dim 1 : vector<16x128xf32>, i32 -> vector<16x128xf32>
    %cst_56 = arith.constant 0.000000e+00 : f32
    %123 = vector.broadcast %cst_56 : f32 to vector<16x128xf32>
    %124 = arith.select %56, %122, %123 : vector<16x128xi1>, vector<16x128xf32>
    %cst_57 = arith.constant 0.000000e+00 : f32
    %125 = vector.broadcast %cst_57 : f32 to vector<16x128xf32>
    %126 = arith.select %49, %107, %125 : vector<16x128xi1>, vector<16x128xf32>
    %c127_i32_58 = arith.constant 127 : i32
    %127 = tpu.dynamic_rotate %107 by %c127_i32_58 dim 1 : vector<16x128xf32>, i32 -> vector<16x128xf32>
    %cst_59 = arith.constant 0.000000e+00 : f32
    %128 = vector.broadcast %cst_59 : f32 to vector<16x128xf32>
    %129 = arith.select %57, %127, %128 : vector<16x128xi1>, vector<16x128xf32>
    %c1_i32_60 = arith.constant 1 : i32
    %130 = tpu.dynamic_rotate %43 by %c1_i32_60 dim 0 : vector<16x128xf32>, i32 -> vector<16x128xf32>
    %c15_i32_61 = arith.constant 15 : i32
    %131 = tpu.dynamic_rotate %43 by %c15_i32_61 dim 0 : vector<16x128xf32>, i32 -> vector<16x128xf32>
    %c1_i32_62 = arith.constant 1 : i32
    %132 = tpu.dynamic_rotate %130 by %c1_i32_62 dim 1 : vector<16x128xf32>, i32 -> vector<16x128xf32>
    %cst_63 = arith.constant 0.000000e+00 : f32
    %133 = vector.broadcast %cst_63 : f32 to vector<16x128xf32>
    %134 = arith.select %54, %132, %133 : vector<16x128xi1>, vector<16x128xf32>
    %cst_64 = arith.constant 0.000000e+00 : f32
    %135 = vector.broadcast %cst_64 : f32 to vector<16x128xf32>
    %136 = arith.select %47, %130, %135 : vector<16x128xi1>, vector<16x128xf32>
    %c127_i32_65 = arith.constant 127 : i32
    %137 = tpu.dynamic_rotate %130 by %c127_i32_65 dim 1 : vector<16x128xf32>, i32 -> vector<16x128xf32>
    %cst_66 = arith.constant 0.000000e+00 : f32
    %138 = vector.broadcast %cst_66 : f32 to vector<16x128xf32>
    %139 = arith.select %55, %137, %138 : vector<16x128xi1>, vector<16x128xf32>
    %c1_i32_67 = arith.constant 1 : i32
    %140 = tpu.dynamic_rotate %43 by %c1_i32_67 dim 1 : vector<16x128xf32>, i32 -> vector<16x128xf32>
    %cst_68 = arith.constant 0.000000e+00 : f32
    %141 = vector.broadcast %cst_68 : f32 to vector<16x128xf32>
    %142 = arith.select %51, %140, %141 : vector<16x128xi1>, vector<16x128xf32>
    %c127_i32_69 = arith.constant 127 : i32
    %143 = tpu.dynamic_rotate %43 by %c127_i32_69 dim 1 : vector<16x128xf32>, i32 -> vector<16x128xf32>
    %cst_70 = arith.constant 0.000000e+00 : f32
    %144 = vector.broadcast %cst_70 : f32 to vector<16x128xf32>
    %145 = arith.select %53, %143, %144 : vector<16x128xi1>, vector<16x128xf32>
    %c1_i32_71 = arith.constant 1 : i32
    %146 = tpu.dynamic_rotate %131 by %c1_i32_71 dim 1 : vector<16x128xf32>, i32 -> vector<16x128xf32>
    %cst_72 = arith.constant 0.000000e+00 : f32
    %147 = vector.broadcast %cst_72 : f32 to vector<16x128xf32>
    %148 = arith.select %56, %146, %147 : vector<16x128xi1>, vector<16x128xf32>
    %cst_73 = arith.constant 0.000000e+00 : f32
    %149 = vector.broadcast %cst_73 : f32 to vector<16x128xf32>
    %150 = arith.select %49, %131, %149 : vector<16x128xi1>, vector<16x128xf32>
    %c127_i32_74 = arith.constant 127 : i32
    %151 = tpu.dynamic_rotate %131 by %c127_i32_74 dim 1 : vector<16x128xf32>, i32 -> vector<16x128xf32>
    %cst_75 = arith.constant 0.000000e+00 : f32
    %152 = vector.broadcast %cst_75 : f32 to vector<16x128xf32>
    %153 = arith.select %57, %151, %152 : vector<16x128xi1>, vector<16x128xf32>
    %c0_76 = arith.constant 0 : index
    %154 = memref.load %arg8[%c0_76] : memref<1xf32, #tpu.memory_space<smem>>
    %155 = vector.broadcast %154 : f32 to vector<16x128xf32>
    %c0_77 = arith.constant 0 : index
    %156 = memref.load %arg6[%c0_77] : memref<8xf32, #tpu.memory_space<smem>>
    %157 = vector.broadcast %156 : f32 to vector<16x128xf32>
    %c0_78 = arith.constant 0 : index
    %158 = memref.load %arg5[%c0_78] : memref<288xf32, #tpu.memory_space<smem>>
    %159 = vector.broadcast %158 : f32 to vector<16x128xf32>
    %160 = arith.mulf %159, %62 : vector<16x128xf32>
    %161 = arith.addf %157, %160 : vector<16x128xf32>
    %c8 = arith.constant 8 : index
    %162 = memref.load %arg5[%c8] : memref<288xf32, #tpu.memory_space<smem>>
    %163 = vector.broadcast %162 : f32 to vector<16x128xf32>
    %164 = arith.mulf %163, %86 : vector<16x128xf32>
    %165 = arith.addf %161, %164 : vector<16x128xf32>
    %c16 = arith.constant 16 : index
    %166 = memref.load %arg5[%c16] : memref<288xf32, #tpu.memory_space<smem>>
    %167 = vector.broadcast %166 : f32 to vector<16x128xf32>
    %168 = arith.mulf %167, %110 : vector<16x128xf32>
    %169 = arith.addf %165, %168 : vector<16x128xf32>
    %c24 = arith.constant 24 : index
    %170 = memref.load %arg5[%c24] : memref<288xf32, #tpu.memory_space<smem>>
    %171 = vector.broadcast %170 : f32 to vector<16x128xf32>
    %172 = arith.mulf %171, %134 : vector<16x128xf32>
    %173 = arith.addf %169, %172 : vector<16x128xf32>
    %c32 = arith.constant 32 : index
    %174 = memref.load %arg5[%c32] : memref<288xf32, #tpu.memory_space<smem>>
    %175 = vector.broadcast %174 : f32 to vector<16x128xf32>
    %176 = arith.mulf %175, %64 : vector<16x128xf32>
    %177 = arith.addf %173, %176 : vector<16x128xf32>
    %c40 = arith.constant 40 : index
    %178 = memref.load %arg5[%c40] : memref<288xf32, #tpu.memory_space<smem>>
    %179 = vector.broadcast %178 : f32 to vector<16x128xf32>
    %180 = arith.mulf %179, %88 : vector<16x128xf32>
    %181 = arith.addf %177, %180 : vector<16x128xf32>
    %c48 = arith.constant 48 : index
    %182 = memref.load %arg5[%c48] : memref<288xf32, #tpu.memory_space<smem>>
    %183 = vector.broadcast %182 : f32 to vector<16x128xf32>
    %184 = arith.mulf %183, %112 : vector<16x128xf32>
    %185 = arith.addf %181, %184 : vector<16x128xf32>
    %c56 = arith.constant 56 : index
    %186 = memref.load %arg5[%c56] : memref<288xf32, #tpu.memory_space<smem>>
    %187 = vector.broadcast %186 : f32 to vector<16x128xf32>
    %188 = arith.mulf %187, %136 : vector<16x128xf32>
    %189 = arith.addf %185, %188 : vector<16x128xf32>
    %c64 = arith.constant 64 : index
    %190 = memref.load %arg5[%c64] : memref<288xf32, #tpu.memory_space<smem>>
    %191 = vector.broadcast %190 : f32 to vector<16x128xf32>
    %192 = arith.mulf %191, %67 : vector<16x128xf32>
    %193 = arith.addf %189, %192 : vector<16x128xf32>
    %c72 = arith.constant 72 : index
    %194 = memref.load %arg5[%c72] : memref<288xf32, #tpu.memory_space<smem>>
    %195 = vector.broadcast %194 : f32 to vector<16x128xf32>
    %196 = arith.mulf %195, %91 : vector<16x128xf32>
    %197 = arith.addf %193, %196 : vector<16x128xf32>
    %c80 = arith.constant 80 : index
    %198 = memref.load %arg5[%c80] : memref<288xf32, #tpu.memory_space<smem>>
    %199 = vector.broadcast %198 : f32 to vector<16x128xf32>
    %200 = arith.mulf %199, %115 : vector<16x128xf32>
    %201 = arith.addf %197, %200 : vector<16x128xf32>
    %c88 = arith.constant 88 : index
    %202 = memref.load %arg5[%c88] : memref<288xf32, #tpu.memory_space<smem>>
    %203 = vector.broadcast %202 : f32 to vector<16x128xf32>
    %204 = arith.mulf %203, %139 : vector<16x128xf32>
    %205 = arith.addf %201, %204 : vector<16x128xf32>
    %c96 = arith.constant 96 : index
    %206 = memref.load %arg5[%c96] : memref<288xf32, #tpu.memory_space<smem>>
    %207 = vector.broadcast %206 : f32 to vector<16x128xf32>
    %208 = arith.mulf %207, %70 : vector<16x128xf32>
    %209 = arith.addf %205, %208 : vector<16x128xf32>
    %c104 = arith.constant 104 : index
    %210 = memref.load %arg5[%c104] : memref<288xf32, #tpu.memory_space<smem>>
    %211 = vector.broadcast %210 : f32 to vector<16x128xf32>
    %212 = arith.mulf %211, %94 : vector<16x128xf32>
    %213 = arith.addf %209, %212 : vector<16x128xf32>
    %c112 = arith.constant 112 : index
    %214 = memref.load %arg5[%c112] : memref<288xf32, #tpu.memory_space<smem>>
    %215 = vector.broadcast %214 : f32 to vector<16x128xf32>
    %216 = arith.mulf %215, %118 : vector<16x128xf32>
    %217 = arith.addf %213, %216 : vector<16x128xf32>
    %c120 = arith.constant 120 : index
    %218 = memref.load %arg5[%c120] : memref<288xf32, #tpu.memory_space<smem>>
    %219 = vector.broadcast %218 : f32 to vector<16x128xf32>
    %220 = arith.mulf %219, %142 : vector<16x128xf32>
    %221 = arith.addf %217, %220 : vector<16x128xf32>
    %c128 = arith.constant 128 : index
    %222 = memref.load %arg5[%c128] : memref<288xf32, #tpu.memory_space<smem>>
    %223 = vector.broadcast %222 : f32 to vector<16x128xf32>
    %224 = arith.mulf %223, %19 : vector<16x128xf32>
    %225 = arith.addf %221, %224 : vector<16x128xf32>
    %c136 = arith.constant 136 : index
    %226 = memref.load %arg5[%c136] : memref<288xf32, #tpu.memory_space<smem>>
    %227 = vector.broadcast %226 : f32 to vector<16x128xf32>
    %228 = arith.mulf %227, %27 : vector<16x128xf32>
    %229 = arith.addf %225, %228 : vector<16x128xf32>
    %c144 = arith.constant 144 : index
    %230 = memref.load %arg5[%c144] : memref<288xf32, #tpu.memory_space<smem>>
    %231 = vector.broadcast %230 : f32 to vector<16x128xf32>
    %232 = arith.mulf %231, %35 : vector<16x128xf32>
    %233 = arith.addf %229, %232 : vector<16x128xf32>
    %c152 = arith.constant 152 : index
    %234 = memref.load %arg5[%c152] : memref<288xf32, #tpu.memory_space<smem>>
    %235 = vector.broadcast %234 : f32 to vector<16x128xf32>
    %236 = arith.mulf %235, %43 : vector<16x128xf32>
    %237 = arith.addf %233, %236 : vector<16x128xf32>
    %c160 = arith.constant 160 : index
    %238 = memref.load %arg5[%c160] : memref<288xf32, #tpu.memory_space<smem>>
    %239 = vector.broadcast %238 : f32 to vector<16x128xf32>
    %240 = arith.mulf %239, %73 : vector<16x128xf32>
    %241 = arith.addf %237, %240 : vector<16x128xf32>
    %c168 = arith.constant 168 : index
    %242 = memref.load %arg5[%c168] : memref<288xf32, #tpu.memory_space<smem>>
    %243 = vector.broadcast %242 : f32 to vector<16x128xf32>
    %244 = arith.mulf %243, %97 : vector<16x128xf32>
    %245 = arith.addf %241, %244 : vector<16x128xf32>
    %c176 = arith.constant 176 : index
    %246 = memref.load %arg5[%c176] : memref<288xf32, #tpu.memory_space<smem>>
    %247 = vector.broadcast %246 : f32 to vector<16x128xf32>
    %248 = arith.mulf %247, %121 : vector<16x128xf32>
    %249 = arith.addf %245, %248 : vector<16x128xf32>
    %c184 = arith.constant 184 : index
    %250 = memref.load %arg5[%c184] : memref<288xf32, #tpu.memory_space<smem>>
    %251 = vector.broadcast %250 : f32 to vector<16x128xf32>
    %252 = arith.mulf %251, %145 : vector<16x128xf32>
    %253 = arith.addf %249, %252 : vector<16x128xf32>
    %c192 = arith.constant 192 : index
    %254 = memref.load %arg5[%c192] : memref<288xf32, #tpu.memory_space<smem>>
    %255 = vector.broadcast %254 : f32 to vector<16x128xf32>
    %256 = arith.mulf %255, %76 : vector<16x128xf32>
    %257 = arith.addf %253, %256 : vector<16x128xf32>
    %c200 = arith.constant 200 : index
    %258 = memref.load %arg5[%c200] : memref<288xf32, #tpu.memory_space<smem>>
    %259 = vector.broadcast %258 : f32 to vector<16x128xf32>
    %260 = arith.mulf %259, %100 : vector<16x128xf32>
    %261 = arith.addf %257, %260 : vector<16x128xf32>
    %c208 = arith.constant 208 : index
    %262 = memref.load %arg5[%c208] : memref<288xf32, #tpu.memory_space<smem>>
    %263 = vector.broadcast %262 : f32 to vector<16x128xf32>
    %264 = arith.mulf %263, %124 : vector<16x128xf32>
    %265 = arith.addf %261, %264 : vector<16x128xf32>
    %c216 = arith.constant 216 : index
    %266 = memref.load %arg5[%c216] : memref<288xf32, #tpu.memory_space<smem>>
    %267 = vector.broadcast %266 : f32 to vector<16x128xf32>
    %268 = arith.mulf %267, %148 : vector<16x128xf32>
    %269 = arith.addf %265, %268 : vector<16x128xf32>
    %c224 = arith.constant 224 : index
    %270 = memref.load %arg5[%c224] : memref<288xf32, #tpu.memory_space<smem>>
    %271 = vector.broadcast %270 : f32 to vector<16x128xf32>
    %272 = arith.mulf %271, %78 : vector<16x128xf32>
    %273 = arith.addf %269, %272 : vector<16x128xf32>
    %c232 = arith.constant 232 : index
    %274 = memref.load %arg5[%c232] : memref<288xf32, #tpu.memory_space<smem>>
    %275 = vector.broadcast %274 : f32 to vector<16x128xf32>
    %276 = arith.mulf %275, %102 : vector<16x128xf32>
    %277 = arith.addf %273, %276 : vector<16x128xf32>
    %c240 = arith.constant 240 : index
    %278 = memref.load %arg5[%c240] : memref<288xf32, #tpu.memory_space<smem>>
    %279 = vector.broadcast %278 : f32 to vector<16x128xf32>
    %280 = arith.mulf %279, %126 : vector<16x128xf32>
    %281 = arith.addf %277, %280 : vector<16x128xf32>
    %c248 = arith.constant 248 : index
    %282 = memref.load %arg5[%c248] : memref<288xf32, #tpu.memory_space<smem>>
    %283 = vector.broadcast %282 : f32 to vector<16x128xf32>
    %284 = arith.mulf %283, %150 : vector<16x128xf32>
    %285 = arith.addf %281, %284 : vector<16x128xf32>
    %c256 = arith.constant 256 : index
    %286 = memref.load %arg5[%c256] : memref<288xf32, #tpu.memory_space<smem>>
    %287 = vector.broadcast %286 : f32 to vector<16x128xf32>
    %288 = arith.mulf %287, %81 : vector<16x128xf32>
    %289 = arith.addf %285, %288 : vector<16x128xf32>
    %c264 = arith.constant 264 : index
    %290 = memref.load %arg5[%c264] : memref<288xf32, #tpu.memory_space<smem>>
    %291 = vector.broadcast %290 : f32 to vector<16x128xf32>
    %292 = arith.mulf %291, %105 : vector<16x128xf32>
    %293 = arith.addf %289, %292 : vector<16x128xf32>
    %c272 = arith.constant 272 : index
    %294 = memref.load %arg5[%c272] : memref<288xf32, #tpu.memory_space<smem>>
    %295 = vector.broadcast %294 : f32 to vector<16x128xf32>
    %296 = arith.mulf %295, %129 : vector<16x128xf32>
    %297 = arith.addf %293, %296 : vector<16x128xf32>
    %c280 = arith.constant 280 : index
    %298 = memref.load %arg5[%c280] : memref<288xf32, #tpu.memory_space<smem>>
    %299 = vector.broadcast %298 : f32 to vector<16x128xf32>
    %300 = arith.mulf %299, %153 : vector<16x128xf32>
    %301 = arith.addf %297, %300 : vector<16x128xf32>
    %cst_79 = arith.constant 0.000000e+00 : f32
    %302 = vector.broadcast %cst_79 : f32 to vector<16x128xf32>
    %303 = arith.maximumf %301, %302 : vector<16x128xf32>
    %c1_i32_80 = arith.constant 1 : i32
    %304 = tpu.dynamic_rotate %303 by %c1_i32_80 dim 0 : vector<16x128xf32>, i32 -> vector<16x128xf32>
    %c15_i32_81 = arith.constant 15 : i32
    %305 = tpu.dynamic_rotate %303 by %c15_i32_81 dim 0 : vector<16x128xf32>, i32 -> vector<16x128xf32>
    %c1_i32_82 = arith.constant 1 : i32
    %306 = tpu.dynamic_rotate %304 by %c1_i32_82 dim 1 : vector<16x128xf32>, i32 -> vector<16x128xf32>
    %cst_83 = arith.constant 0.000000e+00 : f32
    %307 = vector.broadcast %cst_83 : f32 to vector<16x128xf32>
    %308 = arith.select %54, %306, %307 : vector<16x128xi1>, vector<16x128xf32>
    %cst_84 = arith.constant 0.000000e+00 : f32
    %309 = vector.broadcast %cst_84 : f32 to vector<16x128xf32>
    %310 = arith.select %47, %304, %309 : vector<16x128xi1>, vector<16x128xf32>
    %c127_i32_85 = arith.constant 127 : i32
    %311 = tpu.dynamic_rotate %304 by %c127_i32_85 dim 1 : vector<16x128xf32>, i32 -> vector<16x128xf32>
    %cst_86 = arith.constant 0.000000e+00 : f32
    %312 = vector.broadcast %cst_86 : f32 to vector<16x128xf32>
    %313 = arith.select %55, %311, %312 : vector<16x128xi1>, vector<16x128xf32>
    %c1_i32_87 = arith.constant 1 : i32
    %314 = tpu.dynamic_rotate %303 by %c1_i32_87 dim 1 : vector<16x128xf32>, i32 -> vector<16x128xf32>
    %cst_88 = arith.constant 0.000000e+00 : f32
    %315 = vector.broadcast %cst_88 : f32 to vector<16x128xf32>
    %316 = arith.select %51, %314, %315 : vector<16x128xi1>, vector<16x128xf32>
    %c127_i32_89 = arith.constant 127 : i32
    %317 = tpu.dynamic_rotate %303 by %c127_i32_89 dim 1 : vector<16x128xf32>, i32 -> vector<16x128xf32>
    %cst_90 = arith.constant 0.000000e+00 : f32
    %318 = vector.broadcast %cst_90 : f32 to vector<16x128xf32>
    %319 = arith.select %53, %317, %318 : vector<16x128xi1>, vector<16x128xf32>
    %c1_i32_91 = arith.constant 1 : i32
    %320 = tpu.dynamic_rotate %305 by %c1_i32_91 dim 1 : vector<16x128xf32>, i32 -> vector<16x128xf32>
    %cst_92 = arith.constant 0.000000e+00 : f32
    %321 = vector.broadcast %cst_92 : f32 to vector<16x128xf32>
    %322 = arith.select %56, %320, %321 : vector<16x128xi1>, vector<16x128xf32>
    %cst_93 = arith.constant 0.000000e+00 : f32
    %323 = vector.broadcast %cst_93 : f32 to vector<16x128xf32>
    %324 = arith.select %49, %305, %323 : vector<16x128xi1>, vector<16x128xf32>
    %c127_i32_94 = arith.constant 127 : i32
    %325 = tpu.dynamic_rotate %305 by %c127_i32_94 dim 1 : vector<16x128xf32>, i32 -> vector<16x128xf32>
    %cst_95 = arith.constant 0.000000e+00 : f32
    %326 = vector.broadcast %cst_95 : f32 to vector<16x128xf32>
    %327 = arith.select %57, %325, %326 : vector<16x128xi1>, vector<16x128xf32>
    %c0_96 = arith.constant 0 : index
    %328 = memref.load %arg7[%c0_96] : memref<72xf32, #tpu.memory_space<smem>>
    %329 = vector.broadcast %328 : f32 to vector<16x128xf32>
    %330 = arith.mulf %329, %308 : vector<16x128xf32>
    %331 = arith.addf %155, %330 : vector<16x128xf32>
    %c8_97 = arith.constant 8 : index
    %332 = memref.load %arg7[%c8_97] : memref<72xf32, #tpu.memory_space<smem>>
    %333 = vector.broadcast %332 : f32 to vector<16x128xf32>
    %334 = arith.mulf %333, %310 : vector<16x128xf32>
    %335 = arith.addf %331, %334 : vector<16x128xf32>
    %c16_98 = arith.constant 16 : index
    %336 = memref.load %arg7[%c16_98] : memref<72xf32, #tpu.memory_space<smem>>
    %337 = vector.broadcast %336 : f32 to vector<16x128xf32>
    %338 = arith.mulf %337, %313 : vector<16x128xf32>
    %339 = arith.addf %335, %338 : vector<16x128xf32>
    %c24_99 = arith.constant 24 : index
    %340 = memref.load %arg7[%c24_99] : memref<72xf32, #tpu.memory_space<smem>>
    %341 = vector.broadcast %340 : f32 to vector<16x128xf32>
    %342 = arith.mulf %341, %316 : vector<16x128xf32>
    %343 = arith.addf %339, %342 : vector<16x128xf32>
    %c32_100 = arith.constant 32 : index
    %344 = memref.load %arg7[%c32_100] : memref<72xf32, #tpu.memory_space<smem>>
    %345 = vector.broadcast %344 : f32 to vector<16x128xf32>
    %346 = arith.mulf %345, %303 : vector<16x128xf32>
    %347 = arith.addf %343, %346 : vector<16x128xf32>
    %c40_101 = arith.constant 40 : index
    %348 = memref.load %arg7[%c40_101] : memref<72xf32, #tpu.memory_space<smem>>
    %349 = vector.broadcast %348 : f32 to vector<16x128xf32>
    %350 = arith.mulf %349, %319 : vector<16x128xf32>
    %351 = arith.addf %347, %350 : vector<16x128xf32>
    %c48_102 = arith.constant 48 : index
    %352 = memref.load %arg7[%c48_102] : memref<72xf32, #tpu.memory_space<smem>>
    %353 = vector.broadcast %352 : f32 to vector<16x128xf32>
    %354 = arith.mulf %353, %322 : vector<16x128xf32>
    %355 = arith.addf %351, %354 : vector<16x128xf32>
    %c56_103 = arith.constant 56 : index
    %356 = memref.load %arg7[%c56_103] : memref<72xf32, #tpu.memory_space<smem>>
    %357 = vector.broadcast %356 : f32 to vector<16x128xf32>
    %358 = arith.mulf %357, %324 : vector<16x128xf32>
    %359 = arith.addf %355, %358 : vector<16x128xf32>
    %c64_104 = arith.constant 64 : index
    %360 = memref.load %arg7[%c64_104] : memref<72xf32, #tpu.memory_space<smem>>
    %361 = vector.broadcast %360 : f32 to vector<16x128xf32>
    %362 = arith.mulf %361, %327 : vector<16x128xf32>
    %363 = arith.addf %359, %362 : vector<16x128xf32>
    %c1_105 = arith.constant 1 : index
    %364 = memref.load %arg6[%c1_105] : memref<8xf32, #tpu.memory_space<smem>>
    %365 = vector.broadcast %364 : f32 to vector<16x128xf32>
    %c1_106 = arith.constant 1 : index
    %366 = memref.load %arg5[%c1_106] : memref<288xf32, #tpu.memory_space<smem>>
    %367 = vector.broadcast %366 : f32 to vector<16x128xf32>
    %368 = arith.mulf %367, %62 : vector<16x128xf32>
    %369 = arith.addf %365, %368 : vector<16x128xf32>
    %c9 = arith.constant 9 : index
    %370 = memref.load %arg5[%c9] : memref<288xf32, #tpu.memory_space<smem>>
    %371 = vector.broadcast %370 : f32 to vector<16x128xf32>
    %372 = arith.mulf %371, %86 : vector<16x128xf32>
    %373 = arith.addf %369, %372 : vector<16x128xf32>
    %c17 = arith.constant 17 : index
    %374 = memref.load %arg5[%c17] : memref<288xf32, #tpu.memory_space<smem>>
    %375 = vector.broadcast %374 : f32 to vector<16x128xf32>
    %376 = arith.mulf %375, %110 : vector<16x128xf32>
    %377 = arith.addf %373, %376 : vector<16x128xf32>
    %c25 = arith.constant 25 : index
    %378 = memref.load %arg5[%c25] : memref<288xf32, #tpu.memory_space<smem>>
    %379 = vector.broadcast %378 : f32 to vector<16x128xf32>
    %380 = arith.mulf %379, %134 : vector<16x128xf32>
    %381 = arith.addf %377, %380 : vector<16x128xf32>
    %c33 = arith.constant 33 : index
    %382 = memref.load %arg5[%c33] : memref<288xf32, #tpu.memory_space<smem>>
    %383 = vector.broadcast %382 : f32 to vector<16x128xf32>
    %384 = arith.mulf %383, %64 : vector<16x128xf32>
    %385 = arith.addf %381, %384 : vector<16x128xf32>
    %c41 = arith.constant 41 : index
    %386 = memref.load %arg5[%c41] : memref<288xf32, #tpu.memory_space<smem>>
    %387 = vector.broadcast %386 : f32 to vector<16x128xf32>
    %388 = arith.mulf %387, %88 : vector<16x128xf32>
    %389 = arith.addf %385, %388 : vector<16x128xf32>
    %c49 = arith.constant 49 : index
    %390 = memref.load %arg5[%c49] : memref<288xf32, #tpu.memory_space<smem>>
    %391 = vector.broadcast %390 : f32 to vector<16x128xf32>
    %392 = arith.mulf %391, %112 : vector<16x128xf32>
    %393 = arith.addf %389, %392 : vector<16x128xf32>
    %c57 = arith.constant 57 : index
    %394 = memref.load %arg5[%c57] : memref<288xf32, #tpu.memory_space<smem>>
    %395 = vector.broadcast %394 : f32 to vector<16x128xf32>
    %396 = arith.mulf %395, %136 : vector<16x128xf32>
    %397 = arith.addf %393, %396 : vector<16x128xf32>
    %c65 = arith.constant 65 : index
    %398 = memref.load %arg5[%c65] : memref<288xf32, #tpu.memory_space<smem>>
    %399 = vector.broadcast %398 : f32 to vector<16x128xf32>
    %400 = arith.mulf %399, %67 : vector<16x128xf32>
    %401 = arith.addf %397, %400 : vector<16x128xf32>
    %c73 = arith.constant 73 : index
    %402 = memref.load %arg5[%c73] : memref<288xf32, #tpu.memory_space<smem>>
    %403 = vector.broadcast %402 : f32 to vector<16x128xf32>
    %404 = arith.mulf %403, %91 : vector<16x128xf32>
    %405 = arith.addf %401, %404 : vector<16x128xf32>
    %c81 = arith.constant 81 : index
    %406 = memref.load %arg5[%c81] : memref<288xf32, #tpu.memory_space<smem>>
    %407 = vector.broadcast %406 : f32 to vector<16x128xf32>
    %408 = arith.mulf %407, %115 : vector<16x128xf32>
    %409 = arith.addf %405, %408 : vector<16x128xf32>
    %c89 = arith.constant 89 : index
    %410 = memref.load %arg5[%c89] : memref<288xf32, #tpu.memory_space<smem>>
    %411 = vector.broadcast %410 : f32 to vector<16x128xf32>
    %412 = arith.mulf %411, %139 : vector<16x128xf32>
    %413 = arith.addf %409, %412 : vector<16x128xf32>
    %c97 = arith.constant 97 : index
    %414 = memref.load %arg5[%c97] : memref<288xf32, #tpu.memory_space<smem>>
    %415 = vector.broadcast %414 : f32 to vector<16x128xf32>
    %416 = arith.mulf %415, %70 : vector<16x128xf32>
    %417 = arith.addf %413, %416 : vector<16x128xf32>
    %c105 = arith.constant 105 : index
    %418 = memref.load %arg5[%c105] : memref<288xf32, #tpu.memory_space<smem>>
    %419 = vector.broadcast %418 : f32 to vector<16x128xf32>
    %420 = arith.mulf %419, %94 : vector<16x128xf32>
    %421 = arith.addf %417, %420 : vector<16x128xf32>
    %c113 = arith.constant 113 : index
    %422 = memref.load %arg5[%c113] : memref<288xf32, #tpu.memory_space<smem>>
    %423 = vector.broadcast %422 : f32 to vector<16x128xf32>
    %424 = arith.mulf %423, %118 : vector<16x128xf32>
    %425 = arith.addf %421, %424 : vector<16x128xf32>
    %c121 = arith.constant 121 : index
    %426 = memref.load %arg5[%c121] : memref<288xf32, #tpu.memory_space<smem>>
    %427 = vector.broadcast %426 : f32 to vector<16x128xf32>
    %428 = arith.mulf %427, %142 : vector<16x128xf32>
    %429 = arith.addf %425, %428 : vector<16x128xf32>
    %c129 = arith.constant 129 : index
    %430 = memref.load %arg5[%c129] : memref<288xf32, #tpu.memory_space<smem>>
    %431 = vector.broadcast %430 : f32 to vector<16x128xf32>
    %432 = arith.mulf %431, %19 : vector<16x128xf32>
    %433 = arith.addf %429, %432 : vector<16x128xf32>
    %c137 = arith.constant 137 : index
    %434 = memref.load %arg5[%c137] : memref<288xf32, #tpu.memory_space<smem>>
    %435 = vector.broadcast %434 : f32 to vector<16x128xf32>
    %436 = arith.mulf %435, %27 : vector<16x128xf32>
    %437 = arith.addf %433, %436 : vector<16x128xf32>
    %c145 = arith.constant 145 : index
    %438 = memref.load %arg5[%c145] : memref<288xf32, #tpu.memory_space<smem>>
    %439 = vector.broadcast %438 : f32 to vector<16x128xf32>
    %440 = arith.mulf %439, %35 : vector<16x128xf32>
    %441 = arith.addf %437, %440 : vector<16x128xf32>
    %c153 = arith.constant 153 : index
    %442 = memref.load %arg5[%c153] : memref<288xf32, #tpu.memory_space<smem>>
    %443 = vector.broadcast %442 : f32 to vector<16x128xf32>
    %444 = arith.mulf %443, %43 : vector<16x128xf32>
    %445 = arith.addf %441, %444 : vector<16x128xf32>
    %c161 = arith.constant 161 : index
    %446 = memref.load %arg5[%c161] : memref<288xf32, #tpu.memory_space<smem>>
    %447 = vector.broadcast %446 : f32 to vector<16x128xf32>
    %448 = arith.mulf %447, %73 : vector<16x128xf32>
    %449 = arith.addf %445, %448 : vector<16x128xf32>
    %c169 = arith.constant 169 : index
    %450 = memref.load %arg5[%c169] : memref<288xf32, #tpu.memory_space<smem>>
    %451 = vector.broadcast %450 : f32 to vector<16x128xf32>
    %452 = arith.mulf %451, %97 : vector<16x128xf32>
    %453 = arith.addf %449, %452 : vector<16x128xf32>
    %c177 = arith.constant 177 : index
    %454 = memref.load %arg5[%c177] : memref<288xf32, #tpu.memory_space<smem>>
    %455 = vector.broadcast %454 : f32 to vector<16x128xf32>
    %456 = arith.mulf %455, %121 : vector<16x128xf32>
    %457 = arith.addf %453, %456 : vector<16x128xf32>
    %c185 = arith.constant 185 : index
    %458 = memref.load %arg5[%c185] : memref<288xf32, #tpu.memory_space<smem>>
    %459 = vector.broadcast %458 : f32 to vector<16x128xf32>
    %460 = arith.mulf %459, %145 : vector<16x128xf32>
    %461 = arith.addf %457, %460 : vector<16x128xf32>
    %c193 = arith.constant 193 : index
    %462 = memref.load %arg5[%c193] : memref<288xf32, #tpu.memory_space<smem>>
    %463 = vector.broadcast %462 : f32 to vector<16x128xf32>
    %464 = arith.mulf %463, %76 : vector<16x128xf32>
    %465 = arith.addf %461, %464 : vector<16x128xf32>
    %c201 = arith.constant 201 : index
    %466 = memref.load %arg5[%c201] : memref<288xf32, #tpu.memory_space<smem>>
    %467 = vector.broadcast %466 : f32 to vector<16x128xf32>
    %468 = arith.mulf %467, %100 : vector<16x128xf32>
    %469 = arith.addf %465, %468 : vector<16x128xf32>
    %c209 = arith.constant 209 : index
    %470 = memref.load %arg5[%c209] : memref<288xf32, #tpu.memory_space<smem>>
    %471 = vector.broadcast %470 : f32 to vector<16x128xf32>
    %472 = arith.mulf %471, %124 : vector<16x128xf32>
    %473 = arith.addf %469, %472 : vector<16x128xf32>
    %c217 = arith.constant 217 : index
    %474 = memref.load %arg5[%c217] : memref<288xf32, #tpu.memory_space<smem>>
    %475 = vector.broadcast %474 : f32 to vector<16x128xf32>
    %476 = arith.mulf %475, %148 : vector<16x128xf32>
    %477 = arith.addf %473, %476 : vector<16x128xf32>
    %c225 = arith.constant 225 : index
    %478 = memref.load %arg5[%c225] : memref<288xf32, #tpu.memory_space<smem>>
    %479 = vector.broadcast %478 : f32 to vector<16x128xf32>
    %480 = arith.mulf %479, %78 : vector<16x128xf32>
    %481 = arith.addf %477, %480 : vector<16x128xf32>
    %c233 = arith.constant 233 : index
    %482 = memref.load %arg5[%c233] : memref<288xf32, #tpu.memory_space<smem>>
    %483 = vector.broadcast %482 : f32 to vector<16x128xf32>
    %484 = arith.mulf %483, %102 : vector<16x128xf32>
    %485 = arith.addf %481, %484 : vector<16x128xf32>
    %c241 = arith.constant 241 : index
    %486 = memref.load %arg5[%c241] : memref<288xf32, #tpu.memory_space<smem>>
    %487 = vector.broadcast %486 : f32 to vector<16x128xf32>
    %488 = arith.mulf %487, %126 : vector<16x128xf32>
    %489 = arith.addf %485, %488 : vector<16x128xf32>
    %c249 = arith.constant 249 : index
    %490 = memref.load %arg5[%c249] : memref<288xf32, #tpu.memory_space<smem>>
    %491 = vector.broadcast %490 : f32 to vector<16x128xf32>
    %492 = arith.mulf %491, %150 : vector<16x128xf32>
    %493 = arith.addf %489, %492 : vector<16x128xf32>
    %c257 = arith.constant 257 : index
    %494 = memref.load %arg5[%c257] : memref<288xf32, #tpu.memory_space<smem>>
    %495 = vector.broadcast %494 : f32 to vector<16x128xf32>
    %496 = arith.mulf %495, %81 : vector<16x128xf32>
    %497 = arith.addf %493, %496 : vector<16x128xf32>
    %c265 = arith.constant 265 : index
    %498 = memref.load %arg5[%c265] : memref<288xf32, #tpu.memory_space<smem>>
    %499 = vector.broadcast %498 : f32 to vector<16x128xf32>
    %500 = arith.mulf %499, %105 : vector<16x128xf32>
    %501 = arith.addf %497, %500 : vector<16x128xf32>
    %c273 = arith.constant 273 : index
    %502 = memref.load %arg5[%c273] : memref<288xf32, #tpu.memory_space<smem>>
    %503 = vector.broadcast %502 : f32 to vector<16x128xf32>
    %504 = arith.mulf %503, %129 : vector<16x128xf32>
    %505 = arith.addf %501, %504 : vector<16x128xf32>
    %c281 = arith.constant 281 : index
    %506 = memref.load %arg5[%c281] : memref<288xf32, #tpu.memory_space<smem>>
    %507 = vector.broadcast %506 : f32 to vector<16x128xf32>
    %508 = arith.mulf %507, %153 : vector<16x128xf32>
    %509 = arith.addf %505, %508 : vector<16x128xf32>
    %cst_107 = arith.constant 0.000000e+00 : f32
    %510 = vector.broadcast %cst_107 : f32 to vector<16x128xf32>
    %511 = arith.maximumf %509, %510 : vector<16x128xf32>
    %c1_i32_108 = arith.constant 1 : i32
    %512 = tpu.dynamic_rotate %511 by %c1_i32_108 dim 0 : vector<16x128xf32>, i32 -> vector<16x128xf32>
    %c15_i32_109 = arith.constant 15 : i32
    %513 = tpu.dynamic_rotate %511 by %c15_i32_109 dim 0 : vector<16x128xf32>, i32 -> vector<16x128xf32>
    %c1_i32_110 = arith.constant 1 : i32
    %514 = tpu.dynamic_rotate %512 by %c1_i32_110 dim 1 : vector<16x128xf32>, i32 -> vector<16x128xf32>
    %cst_111 = arith.constant 0.000000e+00 : f32
    %515 = vector.broadcast %cst_111 : f32 to vector<16x128xf32>
    %516 = arith.select %54, %514, %515 : vector<16x128xi1>, vector<16x128xf32>
    %cst_112 = arith.constant 0.000000e+00 : f32
    %517 = vector.broadcast %cst_112 : f32 to vector<16x128xf32>
    %518 = arith.select %47, %512, %517 : vector<16x128xi1>, vector<16x128xf32>
    %c127_i32_113 = arith.constant 127 : i32
    %519 = tpu.dynamic_rotate %512 by %c127_i32_113 dim 1 : vector<16x128xf32>, i32 -> vector<16x128xf32>
    %cst_114 = arith.constant 0.000000e+00 : f32
    %520 = vector.broadcast %cst_114 : f32 to vector<16x128xf32>
    %521 = arith.select %55, %519, %520 : vector<16x128xi1>, vector<16x128xf32>
    %c1_i32_115 = arith.constant 1 : i32
    %522 = tpu.dynamic_rotate %511 by %c1_i32_115 dim 1 : vector<16x128xf32>, i32 -> vector<16x128xf32>
    %cst_116 = arith.constant 0.000000e+00 : f32
    %523 = vector.broadcast %cst_116 : f32 to vector<16x128xf32>
    %524 = arith.select %51, %522, %523 : vector<16x128xi1>, vector<16x128xf32>
    %c127_i32_117 = arith.constant 127 : i32
    %525 = tpu.dynamic_rotate %511 by %c127_i32_117 dim 1 : vector<16x128xf32>, i32 -> vector<16x128xf32>
    %cst_118 = arith.constant 0.000000e+00 : f32
    %526 = vector.broadcast %cst_118 : f32 to vector<16x128xf32>
    %527 = arith.select %53, %525, %526 : vector<16x128xi1>, vector<16x128xf32>
    %c1_i32_119 = arith.constant 1 : i32
    %528 = tpu.dynamic_rotate %513 by %c1_i32_119 dim 1 : vector<16x128xf32>, i32 -> vector<16x128xf32>
    %cst_120 = arith.constant 0.000000e+00 : f32
    %529 = vector.broadcast %cst_120 : f32 to vector<16x128xf32>
    %530 = arith.select %56, %528, %529 : vector<16x128xi1>, vector<16x128xf32>
    %cst_121 = arith.constant 0.000000e+00 : f32
    %531 = vector.broadcast %cst_121 : f32 to vector<16x128xf32>
    %532 = arith.select %49, %513, %531 : vector<16x128xi1>, vector<16x128xf32>
    %c127_i32_122 = arith.constant 127 : i32
    %533 = tpu.dynamic_rotate %513 by %c127_i32_122 dim 1 : vector<16x128xf32>, i32 -> vector<16x128xf32>
    %cst_123 = arith.constant 0.000000e+00 : f32
    %534 = vector.broadcast %cst_123 : f32 to vector<16x128xf32>
    %535 = arith.select %57, %533, %534 : vector<16x128xi1>, vector<16x128xf32>
    %c1_124 = arith.constant 1 : index
    %536 = memref.load %arg7[%c1_124] : memref<72xf32, #tpu.memory_space<smem>>
    %537 = vector.broadcast %536 : f32 to vector<16x128xf32>
    %538 = arith.mulf %537, %516 : vector<16x128xf32>
    %539 = arith.addf %363, %538 : vector<16x128xf32>
    %c9_125 = arith.constant 9 : index
    %540 = memref.load %arg7[%c9_125] : memref<72xf32, #tpu.memory_space<smem>>
    %541 = vector.broadcast %540 : f32 to vector<16x128xf32>
    %542 = arith.mulf %541, %518 : vector<16x128xf32>
    %543 = arith.addf %539, %542 : vector<16x128xf32>
    %c17_126 = arith.constant 17 : index
    %544 = memref.load %arg7[%c17_126] : memref<72xf32, #tpu.memory_space<smem>>
    %545 = vector.broadcast %544 : f32 to vector<16x128xf32>
    %546 = arith.mulf %545, %521 : vector<16x128xf32>
    %547 = arith.addf %543, %546 : vector<16x128xf32>
    %c25_127 = arith.constant 25 : index
    %548 = memref.load %arg7[%c25_127] : memref<72xf32, #tpu.memory_space<smem>>
    %549 = vector.broadcast %548 : f32 to vector<16x128xf32>
    %550 = arith.mulf %549, %524 : vector<16x128xf32>
    %551 = arith.addf %547, %550 : vector<16x128xf32>
    %c33_128 = arith.constant 33 : index
    %552 = memref.load %arg7[%c33_128] : memref<72xf32, #tpu.memory_space<smem>>
    %553 = vector.broadcast %552 : f32 to vector<16x128xf32>
    %554 = arith.mulf %553, %511 : vector<16x128xf32>
    %555 = arith.addf %551, %554 : vector<16x128xf32>
    %c41_129 = arith.constant 41 : index
    %556 = memref.load %arg7[%c41_129] : memref<72xf32, #tpu.memory_space<smem>>
    %557 = vector.broadcast %556 : f32 to vector<16x128xf32>
    %558 = arith.mulf %557, %527 : vector<16x128xf32>
    %559 = arith.addf %555, %558 : vector<16x128xf32>
    %c49_130 = arith.constant 49 : index
    %560 = memref.load %arg7[%c49_130] : memref<72xf32, #tpu.memory_space<smem>>
    %561 = vector.broadcast %560 : f32 to vector<16x128xf32>
    %562 = arith.mulf %561, %530 : vector<16x128xf32>
    %563 = arith.addf %559, %562 : vector<16x128xf32>
    %c57_131 = arith.constant 57 : index
    %564 = memref.load %arg7[%c57_131] : memref<72xf32, #tpu.memory_space<smem>>
    %565 = vector.broadcast %564 : f32 to vector<16x128xf32>
    %566 = arith.mulf %565, %532 : vector<16x128xf32>
    %567 = arith.addf %563, %566 : vector<16x128xf32>
    %c65_132 = arith.constant 65 : index
    %568 = memref.load %arg7[%c65_132] : memref<72xf32, #tpu.memory_space<smem>>
    %569 = vector.broadcast %568 : f32 to vector<16x128xf32>
    %570 = arith.mulf %569, %535 : vector<16x128xf32>
    %571 = arith.addf %567, %570 : vector<16x128xf32>
    %c2_133 = arith.constant 2 : index
    %572 = memref.load %arg6[%c2_133] : memref<8xf32, #tpu.memory_space<smem>>
    %573 = vector.broadcast %572 : f32 to vector<16x128xf32>
    %c2_134 = arith.constant 2 : index
    %574 = memref.load %arg5[%c2_134] : memref<288xf32, #tpu.memory_space<smem>>
    %575 = vector.broadcast %574 : f32 to vector<16x128xf32>
    %576 = arith.mulf %575, %62 : vector<16x128xf32>
    %577 = arith.addf %573, %576 : vector<16x128xf32>
    %c10 = arith.constant 10 : index
    %578 = memref.load %arg5[%c10] : memref<288xf32, #tpu.memory_space<smem>>
    %579 = vector.broadcast %578 : f32 to vector<16x128xf32>
    %580 = arith.mulf %579, %86 : vector<16x128xf32>
    %581 = arith.addf %577, %580 : vector<16x128xf32>
    %c18 = arith.constant 18 : index
    %582 = memref.load %arg5[%c18] : memref<288xf32, #tpu.memory_space<smem>>
    %583 = vector.broadcast %582 : f32 to vector<16x128xf32>
    %584 = arith.mulf %583, %110 : vector<16x128xf32>
    %585 = arith.addf %581, %584 : vector<16x128xf32>
    %c26 = arith.constant 26 : index
    %586 = memref.load %arg5[%c26] : memref<288xf32, #tpu.memory_space<smem>>
    %587 = vector.broadcast %586 : f32 to vector<16x128xf32>
    %588 = arith.mulf %587, %134 : vector<16x128xf32>
    %589 = arith.addf %585, %588 : vector<16x128xf32>
    %c34 = arith.constant 34 : index
    %590 = memref.load %arg5[%c34] : memref<288xf32, #tpu.memory_space<smem>>
    %591 = vector.broadcast %590 : f32 to vector<16x128xf32>
    %592 = arith.mulf %591, %64 : vector<16x128xf32>
    %593 = arith.addf %589, %592 : vector<16x128xf32>
    %c42 = arith.constant 42 : index
    %594 = memref.load %arg5[%c42] : memref<288xf32, #tpu.memory_space<smem>>
    %595 = vector.broadcast %594 : f32 to vector<16x128xf32>
    %596 = arith.mulf %595, %88 : vector<16x128xf32>
    %597 = arith.addf %593, %596 : vector<16x128xf32>
    %c50 = arith.constant 50 : index
    %598 = memref.load %arg5[%c50] : memref<288xf32, #tpu.memory_space<smem>>
    %599 = vector.broadcast %598 : f32 to vector<16x128xf32>
    %600 = arith.mulf %599, %112 : vector<16x128xf32>
    %601 = arith.addf %597, %600 : vector<16x128xf32>
    %c58 = arith.constant 58 : index
    %602 = memref.load %arg5[%c58] : memref<288xf32, #tpu.memory_space<smem>>
    %603 = vector.broadcast %602 : f32 to vector<16x128xf32>
    %604 = arith.mulf %603, %136 : vector<16x128xf32>
    %605 = arith.addf %601, %604 : vector<16x128xf32>
    %c66 = arith.constant 66 : index
    %606 = memref.load %arg5[%c66] : memref<288xf32, #tpu.memory_space<smem>>
    %607 = vector.broadcast %606 : f32 to vector<16x128xf32>
    %608 = arith.mulf %607, %67 : vector<16x128xf32>
    %609 = arith.addf %605, %608 : vector<16x128xf32>
    %c74 = arith.constant 74 : index
    %610 = memref.load %arg5[%c74] : memref<288xf32, #tpu.memory_space<smem>>
    %611 = vector.broadcast %610 : f32 to vector<16x128xf32>
    %612 = arith.mulf %611, %91 : vector<16x128xf32>
    %613 = arith.addf %609, %612 : vector<16x128xf32>
    %c82 = arith.constant 82 : index
    %614 = memref.load %arg5[%c82] : memref<288xf32, #tpu.memory_space<smem>>
    %615 = vector.broadcast %614 : f32 to vector<16x128xf32>
    %616 = arith.mulf %615, %115 : vector<16x128xf32>
    %617 = arith.addf %613, %616 : vector<16x128xf32>
    %c90 = arith.constant 90 : index
    %618 = memref.load %arg5[%c90] : memref<288xf32, #tpu.memory_space<smem>>
    %619 = vector.broadcast %618 : f32 to vector<16x128xf32>
    %620 = arith.mulf %619, %139 : vector<16x128xf32>
    %621 = arith.addf %617, %620 : vector<16x128xf32>
    %c98 = arith.constant 98 : index
    %622 = memref.load %arg5[%c98] : memref<288xf32, #tpu.memory_space<smem>>
    %623 = vector.broadcast %622 : f32 to vector<16x128xf32>
    %624 = arith.mulf %623, %70 : vector<16x128xf32>
    %625 = arith.addf %621, %624 : vector<16x128xf32>
    %c106 = arith.constant 106 : index
    %626 = memref.load %arg5[%c106] : memref<288xf32, #tpu.memory_space<smem>>
    %627 = vector.broadcast %626 : f32 to vector<16x128xf32>
    %628 = arith.mulf %627, %94 : vector<16x128xf32>
    %629 = arith.addf %625, %628 : vector<16x128xf32>
    %c114 = arith.constant 114 : index
    %630 = memref.load %arg5[%c114] : memref<288xf32, #tpu.memory_space<smem>>
    %631 = vector.broadcast %630 : f32 to vector<16x128xf32>
    %632 = arith.mulf %631, %118 : vector<16x128xf32>
    %633 = arith.addf %629, %632 : vector<16x128xf32>
    %c122 = arith.constant 122 : index
    %634 = memref.load %arg5[%c122] : memref<288xf32, #tpu.memory_space<smem>>
    %635 = vector.broadcast %634 : f32 to vector<16x128xf32>
    %636 = arith.mulf %635, %142 : vector<16x128xf32>
    %637 = arith.addf %633, %636 : vector<16x128xf32>
    %c130 = arith.constant 130 : index
    %638 = memref.load %arg5[%c130] : memref<288xf32, #tpu.memory_space<smem>>
    %639 = vector.broadcast %638 : f32 to vector<16x128xf32>
    %640 = arith.mulf %639, %19 : vector<16x128xf32>
    %641 = arith.addf %637, %640 : vector<16x128xf32>
    %c138 = arith.constant 138 : index
    %642 = memref.load %arg5[%c138] : memref<288xf32, #tpu.memory_space<smem>>
    %643 = vector.broadcast %642 : f32 to vector<16x128xf32>
    %644 = arith.mulf %643, %27 : vector<16x128xf32>
    %645 = arith.addf %641, %644 : vector<16x128xf32>
    %c146 = arith.constant 146 : index
    %646 = memref.load %arg5[%c146] : memref<288xf32, #tpu.memory_space<smem>>
    %647 = vector.broadcast %646 : f32 to vector<16x128xf32>
    %648 = arith.mulf %647, %35 : vector<16x128xf32>
    %649 = arith.addf %645, %648 : vector<16x128xf32>
    %c154 = arith.constant 154 : index
    %650 = memref.load %arg5[%c154] : memref<288xf32, #tpu.memory_space<smem>>
    %651 = vector.broadcast %650 : f32 to vector<16x128xf32>
    %652 = arith.mulf %651, %43 : vector<16x128xf32>
    %653 = arith.addf %649, %652 : vector<16x128xf32>
    %c162 = arith.constant 162 : index
    %654 = memref.load %arg5[%c162] : memref<288xf32, #tpu.memory_space<smem>>
    %655 = vector.broadcast %654 : f32 to vector<16x128xf32>
    %656 = arith.mulf %655, %73 : vector<16x128xf32>
    %657 = arith.addf %653, %656 : vector<16x128xf32>
    %c170 = arith.constant 170 : index
    %658 = memref.load %arg5[%c170] : memref<288xf32, #tpu.memory_space<smem>>
    %659 = vector.broadcast %658 : f32 to vector<16x128xf32>
    %660 = arith.mulf %659, %97 : vector<16x128xf32>
    %661 = arith.addf %657, %660 : vector<16x128xf32>
    %c178 = arith.constant 178 : index
    %662 = memref.load %arg5[%c178] : memref<288xf32, #tpu.memory_space<smem>>
    %663 = vector.broadcast %662 : f32 to vector<16x128xf32>
    %664 = arith.mulf %663, %121 : vector<16x128xf32>
    %665 = arith.addf %661, %664 : vector<16x128xf32>
    %c186 = arith.constant 186 : index
    %666 = memref.load %arg5[%c186] : memref<288xf32, #tpu.memory_space<smem>>
    %667 = vector.broadcast %666 : f32 to vector<16x128xf32>
    %668 = arith.mulf %667, %145 : vector<16x128xf32>
    %669 = arith.addf %665, %668 : vector<16x128xf32>
    %c194 = arith.constant 194 : index
    %670 = memref.load %arg5[%c194] : memref<288xf32, #tpu.memory_space<smem>>
    %671 = vector.broadcast %670 : f32 to vector<16x128xf32>
    %672 = arith.mulf %671, %76 : vector<16x128xf32>
    %673 = arith.addf %669, %672 : vector<16x128xf32>
    %c202 = arith.constant 202 : index
    %674 = memref.load %arg5[%c202] : memref<288xf32, #tpu.memory_space<smem>>
    %675 = vector.broadcast %674 : f32 to vector<16x128xf32>
    %676 = arith.mulf %675, %100 : vector<16x128xf32>
    %677 = arith.addf %673, %676 : vector<16x128xf32>
    %c210 = arith.constant 210 : index
    %678 = memref.load %arg5[%c210] : memref<288xf32, #tpu.memory_space<smem>>
    %679 = vector.broadcast %678 : f32 to vector<16x128xf32>
    %680 = arith.mulf %679, %124 : vector<16x128xf32>
    %681 = arith.addf %677, %680 : vector<16x128xf32>
    %c218 = arith.constant 218 : index
    %682 = memref.load %arg5[%c218] : memref<288xf32, #tpu.memory_space<smem>>
    %683 = vector.broadcast %682 : f32 to vector<16x128xf32>
    %684 = arith.mulf %683, %148 : vector<16x128xf32>
    %685 = arith.addf %681, %684 : vector<16x128xf32>
    %c226 = arith.constant 226 : index
    %686 = memref.load %arg5[%c226] : memref<288xf32, #tpu.memory_space<smem>>
    %687 = vector.broadcast %686 : f32 to vector<16x128xf32>
    %688 = arith.mulf %687, %78 : vector<16x128xf32>
    %689 = arith.addf %685, %688 : vector<16x128xf32>
    %c234 = arith.constant 234 : index
    %690 = memref.load %arg5[%c234] : memref<288xf32, #tpu.memory_space<smem>>
    %691 = vector.broadcast %690 : f32 to vector<16x128xf32>
    %692 = arith.mulf %691, %102 : vector<16x128xf32>
    %693 = arith.addf %689, %692 : vector<16x128xf32>
    %c242 = arith.constant 242 : index
    %694 = memref.load %arg5[%c242] : memref<288xf32, #tpu.memory_space<smem>>
    %695 = vector.broadcast %694 : f32 to vector<16x128xf32>
    %696 = arith.mulf %695, %126 : vector<16x128xf32>
    %697 = arith.addf %693, %696 : vector<16x128xf32>
    %c250 = arith.constant 250 : index
    %698 = memref.load %arg5[%c250] : memref<288xf32, #tpu.memory_space<smem>>
    %699 = vector.broadcast %698 : f32 to vector<16x128xf32>
    %700 = arith.mulf %699, %150 : vector<16x128xf32>
    %701 = arith.addf %697, %700 : vector<16x128xf32>
    %c258 = arith.constant 258 : index
    %702 = memref.load %arg5[%c258] : memref<288xf32, #tpu.memory_space<smem>>
    %703 = vector.broadcast %702 : f32 to vector<16x128xf32>
    %704 = arith.mulf %703, %81 : vector<16x128xf32>
    %705 = arith.addf %701, %704 : vector<16x128xf32>
    %c266 = arith.constant 266 : index
    %706 = memref.load %arg5[%c266] : memref<288xf32, #tpu.memory_space<smem>>
    %707 = vector.broadcast %706 : f32 to vector<16x128xf32>
    %708 = arith.mulf %707, %105 : vector<16x128xf32>
    %709 = arith.addf %705, %708 : vector<16x128xf32>
    %c274 = arith.constant 274 : index
    %710 = memref.load %arg5[%c274] : memref<288xf32, #tpu.memory_space<smem>>
    %711 = vector.broadcast %710 : f32 to vector<16x128xf32>
    %712 = arith.mulf %711, %129 : vector<16x128xf32>
    %713 = arith.addf %709, %712 : vector<16x128xf32>
    %c282 = arith.constant 282 : index
    %714 = memref.load %arg5[%c282] : memref<288xf32, #tpu.memory_space<smem>>
    %715 = vector.broadcast %714 : f32 to vector<16x128xf32>
    %716 = arith.mulf %715, %153 : vector<16x128xf32>
    %717 = arith.addf %713, %716 : vector<16x128xf32>
    %cst_135 = arith.constant 0.000000e+00 : f32
    %718 = vector.broadcast %cst_135 : f32 to vector<16x128xf32>
    %719 = arith.maximumf %717, %718 : vector<16x128xf32>
    %c1_i32_136 = arith.constant 1 : i32
    %720 = tpu.dynamic_rotate %719 by %c1_i32_136 dim 0 : vector<16x128xf32>, i32 -> vector<16x128xf32>
    %c15_i32_137 = arith.constant 15 : i32
    %721 = tpu.dynamic_rotate %719 by %c15_i32_137 dim 0 : vector<16x128xf32>, i32 -> vector<16x128xf32>
    %c1_i32_138 = arith.constant 1 : i32
    %722 = tpu.dynamic_rotate %720 by %c1_i32_138 dim 1 : vector<16x128xf32>, i32 -> vector<16x128xf32>
    %cst_139 = arith.constant 0.000000e+00 : f32
    %723 = vector.broadcast %cst_139 : f32 to vector<16x128xf32>
    %724 = arith.select %54, %722, %723 : vector<16x128xi1>, vector<16x128xf32>
    %cst_140 = arith.constant 0.000000e+00 : f32
    %725 = vector.broadcast %cst_140 : f32 to vector<16x128xf32>
    %726 = arith.select %47, %720, %725 : vector<16x128xi1>, vector<16x128xf32>
    %c127_i32_141 = arith.constant 127 : i32
    %727 = tpu.dynamic_rotate %720 by %c127_i32_141 dim 1 : vector<16x128xf32>, i32 -> vector<16x128xf32>
    %cst_142 = arith.constant 0.000000e+00 : f32
    %728 = vector.broadcast %cst_142 : f32 to vector<16x128xf32>
    %729 = arith.select %55, %727, %728 : vector<16x128xi1>, vector<16x128xf32>
    %c1_i32_143 = arith.constant 1 : i32
    %730 = tpu.dynamic_rotate %719 by %c1_i32_143 dim 1 : vector<16x128xf32>, i32 -> vector<16x128xf32>
    %cst_144 = arith.constant 0.000000e+00 : f32
    %731 = vector.broadcast %cst_144 : f32 to vector<16x128xf32>
    %732 = arith.select %51, %730, %731 : vector<16x128xi1>, vector<16x128xf32>
    %c127_i32_145 = arith.constant 127 : i32
    %733 = tpu.dynamic_rotate %719 by %c127_i32_145 dim 1 : vector<16x128xf32>, i32 -> vector<16x128xf32>
    %cst_146 = arith.constant 0.000000e+00 : f32
    %734 = vector.broadcast %cst_146 : f32 to vector<16x128xf32>
    %735 = arith.select %53, %733, %734 : vector<16x128xi1>, vector<16x128xf32>
    %c1_i32_147 = arith.constant 1 : i32
    %736 = tpu.dynamic_rotate %721 by %c1_i32_147 dim 1 : vector<16x128xf32>, i32 -> vector<16x128xf32>
    %cst_148 = arith.constant 0.000000e+00 : f32
    %737 = vector.broadcast %cst_148 : f32 to vector<16x128xf32>
    %738 = arith.select %56, %736, %737 : vector<16x128xi1>, vector<16x128xf32>
    %cst_149 = arith.constant 0.000000e+00 : f32
    %739 = vector.broadcast %cst_149 : f32 to vector<16x128xf32>
    %740 = arith.select %49, %721, %739 : vector<16x128xi1>, vector<16x128xf32>
    %c127_i32_150 = arith.constant 127 : i32
    %741 = tpu.dynamic_rotate %721 by %c127_i32_150 dim 1 : vector<16x128xf32>, i32 -> vector<16x128xf32>
    %cst_151 = arith.constant 0.000000e+00 : f32
    %742 = vector.broadcast %cst_151 : f32 to vector<16x128xf32>
    %743 = arith.select %57, %741, %742 : vector<16x128xi1>, vector<16x128xf32>
    %c2_152 = arith.constant 2 : index
    %744 = memref.load %arg7[%c2_152] : memref<72xf32, #tpu.memory_space<smem>>
    %745 = vector.broadcast %744 : f32 to vector<16x128xf32>
    %746 = arith.mulf %745, %724 : vector<16x128xf32>
    %747 = arith.addf %571, %746 : vector<16x128xf32>
    %c10_153 = arith.constant 10 : index
    %748 = memref.load %arg7[%c10_153] : memref<72xf32, #tpu.memory_space<smem>>
    %749 = vector.broadcast %748 : f32 to vector<16x128xf32>
    %750 = arith.mulf %749, %726 : vector<16x128xf32>
    %751 = arith.addf %747, %750 : vector<16x128xf32>
    %c18_154 = arith.constant 18 : index
    %752 = memref.load %arg7[%c18_154] : memref<72xf32, #tpu.memory_space<smem>>
    %753 = vector.broadcast %752 : f32 to vector<16x128xf32>
    %754 = arith.mulf %753, %729 : vector<16x128xf32>
    %755 = arith.addf %751, %754 : vector<16x128xf32>
    %c26_155 = arith.constant 26 : index
    %756 = memref.load %arg7[%c26_155] : memref<72xf32, #tpu.memory_space<smem>>
    %757 = vector.broadcast %756 : f32 to vector<16x128xf32>
    %758 = arith.mulf %757, %732 : vector<16x128xf32>
    %759 = arith.addf %755, %758 : vector<16x128xf32>
    %c34_156 = arith.constant 34 : index
    %760 = memref.load %arg7[%c34_156] : memref<72xf32, #tpu.memory_space<smem>>
    %761 = vector.broadcast %760 : f32 to vector<16x128xf32>
    %762 = arith.mulf %761, %719 : vector<16x128xf32>
    %763 = arith.addf %759, %762 : vector<16x128xf32>
    %c42_157 = arith.constant 42 : index
    %764 = memref.load %arg7[%c42_157] : memref<72xf32, #tpu.memory_space<smem>>
    %765 = vector.broadcast %764 : f32 to vector<16x128xf32>
    %766 = arith.mulf %765, %735 : vector<16x128xf32>
    %767 = arith.addf %763, %766 : vector<16x128xf32>
    %c50_158 = arith.constant 50 : index
    %768 = memref.load %arg7[%c50_158] : memref<72xf32, #tpu.memory_space<smem>>
    %769 = vector.broadcast %768 : f32 to vector<16x128xf32>
    %770 = arith.mulf %769, %738 : vector<16x128xf32>
    %771 = arith.addf %767, %770 : vector<16x128xf32>
    %c58_159 = arith.constant 58 : index
    %772 = memref.load %arg7[%c58_159] : memref<72xf32, #tpu.memory_space<smem>>
    %773 = vector.broadcast %772 : f32 to vector<16x128xf32>
    %774 = arith.mulf %773, %740 : vector<16x128xf32>
    %775 = arith.addf %771, %774 : vector<16x128xf32>
    %c66_160 = arith.constant 66 : index
    %776 = memref.load %arg7[%c66_160] : memref<72xf32, #tpu.memory_space<smem>>
    %777 = vector.broadcast %776 : f32 to vector<16x128xf32>
    %778 = arith.mulf %777, %743 : vector<16x128xf32>
    %779 = arith.addf %775, %778 : vector<16x128xf32>
    %c3_161 = arith.constant 3 : index
    %780 = memref.load %arg6[%c3_161] : memref<8xf32, #tpu.memory_space<smem>>
    %781 = vector.broadcast %780 : f32 to vector<16x128xf32>
    %c3_162 = arith.constant 3 : index
    %782 = memref.load %arg5[%c3_162] : memref<288xf32, #tpu.memory_space<smem>>
    %783 = vector.broadcast %782 : f32 to vector<16x128xf32>
    %784 = arith.mulf %783, %62 : vector<16x128xf32>
    %785 = arith.addf %781, %784 : vector<16x128xf32>
    %c11 = arith.constant 11 : index
    %786 = memref.load %arg5[%c11] : memref<288xf32, #tpu.memory_space<smem>>
    %787 = vector.broadcast %786 : f32 to vector<16x128xf32>
    %788 = arith.mulf %787, %86 : vector<16x128xf32>
    %789 = arith.addf %785, %788 : vector<16x128xf32>
    %c19 = arith.constant 19 : index
    %790 = memref.load %arg5[%c19] : memref<288xf32, #tpu.memory_space<smem>>
    %791 = vector.broadcast %790 : f32 to vector<16x128xf32>
    %792 = arith.mulf %791, %110 : vector<16x128xf32>
    %793 = arith.addf %789, %792 : vector<16x128xf32>
    %c27 = arith.constant 27 : index
    %794 = memref.load %arg5[%c27] : memref<288xf32, #tpu.memory_space<smem>>
    %795 = vector.broadcast %794 : f32 to vector<16x128xf32>
    %796 = arith.mulf %795, %134 : vector<16x128xf32>
    %797 = arith.addf %793, %796 : vector<16x128xf32>
    %c35 = arith.constant 35 : index
    %798 = memref.load %arg5[%c35] : memref<288xf32, #tpu.memory_space<smem>>
    %799 = vector.broadcast %798 : f32 to vector<16x128xf32>
    %800 = arith.mulf %799, %64 : vector<16x128xf32>
    %801 = arith.addf %797, %800 : vector<16x128xf32>
    %c43 = arith.constant 43 : index
    %802 = memref.load %arg5[%c43] : memref<288xf32, #tpu.memory_space<smem>>
    %803 = vector.broadcast %802 : f32 to vector<16x128xf32>
    %804 = arith.mulf %803, %88 : vector<16x128xf32>
    %805 = arith.addf %801, %804 : vector<16x128xf32>
    %c51 = arith.constant 51 : index
    %806 = memref.load %arg5[%c51] : memref<288xf32, #tpu.memory_space<smem>>
    %807 = vector.broadcast %806 : f32 to vector<16x128xf32>
    %808 = arith.mulf %807, %112 : vector<16x128xf32>
    %809 = arith.addf %805, %808 : vector<16x128xf32>
    %c59 = arith.constant 59 : index
    %810 = memref.load %arg5[%c59] : memref<288xf32, #tpu.memory_space<smem>>
    %811 = vector.broadcast %810 : f32 to vector<16x128xf32>
    %812 = arith.mulf %811, %136 : vector<16x128xf32>
    %813 = arith.addf %809, %812 : vector<16x128xf32>
    %c67 = arith.constant 67 : index
    %814 = memref.load %arg5[%c67] : memref<288xf32, #tpu.memory_space<smem>>
    %815 = vector.broadcast %814 : f32 to vector<16x128xf32>
    %816 = arith.mulf %815, %67 : vector<16x128xf32>
    %817 = arith.addf %813, %816 : vector<16x128xf32>
    %c75 = arith.constant 75 : index
    %818 = memref.load %arg5[%c75] : memref<288xf32, #tpu.memory_space<smem>>
    %819 = vector.broadcast %818 : f32 to vector<16x128xf32>
    %820 = arith.mulf %819, %91 : vector<16x128xf32>
    %821 = arith.addf %817, %820 : vector<16x128xf32>
    %c83 = arith.constant 83 : index
    %822 = memref.load %arg5[%c83] : memref<288xf32, #tpu.memory_space<smem>>
    %823 = vector.broadcast %822 : f32 to vector<16x128xf32>
    %824 = arith.mulf %823, %115 : vector<16x128xf32>
    %825 = arith.addf %821, %824 : vector<16x128xf32>
    %c91 = arith.constant 91 : index
    %826 = memref.load %arg5[%c91] : memref<288xf32, #tpu.memory_space<smem>>
    %827 = vector.broadcast %826 : f32 to vector<16x128xf32>
    %828 = arith.mulf %827, %139 : vector<16x128xf32>
    %829 = arith.addf %825, %828 : vector<16x128xf32>
    %c99 = arith.constant 99 : index
    %830 = memref.load %arg5[%c99] : memref<288xf32, #tpu.memory_space<smem>>
    %831 = vector.broadcast %830 : f32 to vector<16x128xf32>
    %832 = arith.mulf %831, %70 : vector<16x128xf32>
    %833 = arith.addf %829, %832 : vector<16x128xf32>
    %c107 = arith.constant 107 : index
    %834 = memref.load %arg5[%c107] : memref<288xf32, #tpu.memory_space<smem>>
    %835 = vector.broadcast %834 : f32 to vector<16x128xf32>
    %836 = arith.mulf %835, %94 : vector<16x128xf32>
    %837 = arith.addf %833, %836 : vector<16x128xf32>
    %c115 = arith.constant 115 : index
    %838 = memref.load %arg5[%c115] : memref<288xf32, #tpu.memory_space<smem>>
    %839 = vector.broadcast %838 : f32 to vector<16x128xf32>
    %840 = arith.mulf %839, %118 : vector<16x128xf32>
    %841 = arith.addf %837, %840 : vector<16x128xf32>
    %c123 = arith.constant 123 : index
    %842 = memref.load %arg5[%c123] : memref<288xf32, #tpu.memory_space<smem>>
    %843 = vector.broadcast %842 : f32 to vector<16x128xf32>
    %844 = arith.mulf %843, %142 : vector<16x128xf32>
    %845 = arith.addf %841, %844 : vector<16x128xf32>
    %c131 = arith.constant 131 : index
    %846 = memref.load %arg5[%c131] : memref<288xf32, #tpu.memory_space<smem>>
    %847 = vector.broadcast %846 : f32 to vector<16x128xf32>
    %848 = arith.mulf %847, %19 : vector<16x128xf32>
    %849 = arith.addf %845, %848 : vector<16x128xf32>
    %c139 = arith.constant 139 : index
    %850 = memref.load %arg5[%c139] : memref<288xf32, #tpu.memory_space<smem>>
    %851 = vector.broadcast %850 : f32 to vector<16x128xf32>
    %852 = arith.mulf %851, %27 : vector<16x128xf32>
    %853 = arith.addf %849, %852 : vector<16x128xf32>
    %c147 = arith.constant 147 : index
    %854 = memref.load %arg5[%c147] : memref<288xf32, #tpu.memory_space<smem>>
    %855 = vector.broadcast %854 : f32 to vector<16x128xf32>
    %856 = arith.mulf %855, %35 : vector<16x128xf32>
    %857 = arith.addf %853, %856 : vector<16x128xf32>
    %c155 = arith.constant 155 : index
    %858 = memref.load %arg5[%c155] : memref<288xf32, #tpu.memory_space<smem>>
    %859 = vector.broadcast %858 : f32 to vector<16x128xf32>
    %860 = arith.mulf %859, %43 : vector<16x128xf32>
    %861 = arith.addf %857, %860 : vector<16x128xf32>
    %c163 = arith.constant 163 : index
    %862 = memref.load %arg5[%c163] : memref<288xf32, #tpu.memory_space<smem>>
    %863 = vector.broadcast %862 : f32 to vector<16x128xf32>
    %864 = arith.mulf %863, %73 : vector<16x128xf32>
    %865 = arith.addf %861, %864 : vector<16x128xf32>
    %c171 = arith.constant 171 : index
    %866 = memref.load %arg5[%c171] : memref<288xf32, #tpu.memory_space<smem>>
    %867 = vector.broadcast %866 : f32 to vector<16x128xf32>
    %868 = arith.mulf %867, %97 : vector<16x128xf32>
    %869 = arith.addf %865, %868 : vector<16x128xf32>
    %c179 = arith.constant 179 : index
    %870 = memref.load %arg5[%c179] : memref<288xf32, #tpu.memory_space<smem>>
    %871 = vector.broadcast %870 : f32 to vector<16x128xf32>
    %872 = arith.mulf %871, %121 : vector<16x128xf32>
    %873 = arith.addf %869, %872 : vector<16x128xf32>
    %c187 = arith.constant 187 : index
    %874 = memref.load %arg5[%c187] : memref<288xf32, #tpu.memory_space<smem>>
    %875 = vector.broadcast %874 : f32 to vector<16x128xf32>
    %876 = arith.mulf %875, %145 : vector<16x128xf32>
    %877 = arith.addf %873, %876 : vector<16x128xf32>
    %c195 = arith.constant 195 : index
    %878 = memref.load %arg5[%c195] : memref<288xf32, #tpu.memory_space<smem>>
    %879 = vector.broadcast %878 : f32 to vector<16x128xf32>
    %880 = arith.mulf %879, %76 : vector<16x128xf32>
    %881 = arith.addf %877, %880 : vector<16x128xf32>
    %c203 = arith.constant 203 : index
    %882 = memref.load %arg5[%c203] : memref<288xf32, #tpu.memory_space<smem>>
    %883 = vector.broadcast %882 : f32 to vector<16x128xf32>
    %884 = arith.mulf %883, %100 : vector<16x128xf32>
    %885 = arith.addf %881, %884 : vector<16x128xf32>
    %c211 = arith.constant 211 : index
    %886 = memref.load %arg5[%c211] : memref<288xf32, #tpu.memory_space<smem>>
    %887 = vector.broadcast %886 : f32 to vector<16x128xf32>
    %888 = arith.mulf %887, %124 : vector<16x128xf32>
    %889 = arith.addf %885, %888 : vector<16x128xf32>
    %c219 = arith.constant 219 : index
    %890 = memref.load %arg5[%c219] : memref<288xf32, #tpu.memory_space<smem>>
    %891 = vector.broadcast %890 : f32 to vector<16x128xf32>
    %892 = arith.mulf %891, %148 : vector<16x128xf32>
    %893 = arith.addf %889, %892 : vector<16x128xf32>
    %c227 = arith.constant 227 : index
    %894 = memref.load %arg5[%c227] : memref<288xf32, #tpu.memory_space<smem>>
    %895 = vector.broadcast %894 : f32 to vector<16x128xf32>
    %896 = arith.mulf %895, %78 : vector<16x128xf32>
    %897 = arith.addf %893, %896 : vector<16x128xf32>
    %c235 = arith.constant 235 : index
    %898 = memref.load %arg5[%c235] : memref<288xf32, #tpu.memory_space<smem>>
    %899 = vector.broadcast %898 : f32 to vector<16x128xf32>
    %900 = arith.mulf %899, %102 : vector<16x128xf32>
    %901 = arith.addf %897, %900 : vector<16x128xf32>
    %c243 = arith.constant 243 : index
    %902 = memref.load %arg5[%c243] : memref<288xf32, #tpu.memory_space<smem>>
    %903 = vector.broadcast %902 : f32 to vector<16x128xf32>
    %904 = arith.mulf %903, %126 : vector<16x128xf32>
    %905 = arith.addf %901, %904 : vector<16x128xf32>
    %c251 = arith.constant 251 : index
    %906 = memref.load %arg5[%c251] : memref<288xf32, #tpu.memory_space<smem>>
    %907 = vector.broadcast %906 : f32 to vector<16x128xf32>
    %908 = arith.mulf %907, %150 : vector<16x128xf32>
    %909 = arith.addf %905, %908 : vector<16x128xf32>
    %c259 = arith.constant 259 : index
    %910 = memref.load %arg5[%c259] : memref<288xf32, #tpu.memory_space<smem>>
    %911 = vector.broadcast %910 : f32 to vector<16x128xf32>
    %912 = arith.mulf %911, %81 : vector<16x128xf32>
    %913 = arith.addf %909, %912 : vector<16x128xf32>
    %c267 = arith.constant 267 : index
    %914 = memref.load %arg5[%c267] : memref<288xf32, #tpu.memory_space<smem>>
    %915 = vector.broadcast %914 : f32 to vector<16x128xf32>
    %916 = arith.mulf %915, %105 : vector<16x128xf32>
    %917 = arith.addf %913, %916 : vector<16x128xf32>
    %c275 = arith.constant 275 : index
    %918 = memref.load %arg5[%c275] : memref<288xf32, #tpu.memory_space<smem>>
    %919 = vector.broadcast %918 : f32 to vector<16x128xf32>
    %920 = arith.mulf %919, %129 : vector<16x128xf32>
    %921 = arith.addf %917, %920 : vector<16x128xf32>
    %c283 = arith.constant 283 : index
    %922 = memref.load %arg5[%c283] : memref<288xf32, #tpu.memory_space<smem>>
    %923 = vector.broadcast %922 : f32 to vector<16x128xf32>
    %924 = arith.mulf %923, %153 : vector<16x128xf32>
    %925 = arith.addf %921, %924 : vector<16x128xf32>
    %cst_163 = arith.constant 0.000000e+00 : f32
    %926 = vector.broadcast %cst_163 : f32 to vector<16x128xf32>
    %927 = arith.maximumf %925, %926 : vector<16x128xf32>
    %c1_i32_164 = arith.constant 1 : i32
    %928 = tpu.dynamic_rotate %927 by %c1_i32_164 dim 0 : vector<16x128xf32>, i32 -> vector<16x128xf32>
    %c15_i32_165 = arith.constant 15 : i32
    %929 = tpu.dynamic_rotate %927 by %c15_i32_165 dim 0 : vector<16x128xf32>, i32 -> vector<16x128xf32>
    %c1_i32_166 = arith.constant 1 : i32
    %930 = tpu.dynamic_rotate %928 by %c1_i32_166 dim 1 : vector<16x128xf32>, i32 -> vector<16x128xf32>
    %cst_167 = arith.constant 0.000000e+00 : f32
    %931 = vector.broadcast %cst_167 : f32 to vector<16x128xf32>
    %932 = arith.select %54, %930, %931 : vector<16x128xi1>, vector<16x128xf32>
    %cst_168 = arith.constant 0.000000e+00 : f32
    %933 = vector.broadcast %cst_168 : f32 to vector<16x128xf32>
    %934 = arith.select %47, %928, %933 : vector<16x128xi1>, vector<16x128xf32>
    %c127_i32_169 = arith.constant 127 : i32
    %935 = tpu.dynamic_rotate %928 by %c127_i32_169 dim 1 : vector<16x128xf32>, i32 -> vector<16x128xf32>
    %cst_170 = arith.constant 0.000000e+00 : f32
    %936 = vector.broadcast %cst_170 : f32 to vector<16x128xf32>
    %937 = arith.select %55, %935, %936 : vector<16x128xi1>, vector<16x128xf32>
    %c1_i32_171 = arith.constant 1 : i32
    %938 = tpu.dynamic_rotate %927 by %c1_i32_171 dim 1 : vector<16x128xf32>, i32 -> vector<16x128xf32>
    %cst_172 = arith.constant 0.000000e+00 : f32
    %939 = vector.broadcast %cst_172 : f32 to vector<16x128xf32>
    %940 = arith.select %51, %938, %939 : vector<16x128xi1>, vector<16x128xf32>
    %c127_i32_173 = arith.constant 127 : i32
    %941 = tpu.dynamic_rotate %927 by %c127_i32_173 dim 1 : vector<16x128xf32>, i32 -> vector<16x128xf32>
    %cst_174 = arith.constant 0.000000e+00 : f32
    %942 = vector.broadcast %cst_174 : f32 to vector<16x128xf32>
    %943 = arith.select %53, %941, %942 : vector<16x128xi1>, vector<16x128xf32>
    %c1_i32_175 = arith.constant 1 : i32
    %944 = tpu.dynamic_rotate %929 by %c1_i32_175 dim 1 : vector<16x128xf32>, i32 -> vector<16x128xf32>
    %cst_176 = arith.constant 0.000000e+00 : f32
    %945 = vector.broadcast %cst_176 : f32 to vector<16x128xf32>
    %946 = arith.select %56, %944, %945 : vector<16x128xi1>, vector<16x128xf32>
    %cst_177 = arith.constant 0.000000e+00 : f32
    %947 = vector.broadcast %cst_177 : f32 to vector<16x128xf32>
    %948 = arith.select %49, %929, %947 : vector<16x128xi1>, vector<16x128xf32>
    %c127_i32_178 = arith.constant 127 : i32
    %949 = tpu.dynamic_rotate %929 by %c127_i32_178 dim 1 : vector<16x128xf32>, i32 -> vector<16x128xf32>
    %cst_179 = arith.constant 0.000000e+00 : f32
    %950 = vector.broadcast %cst_179 : f32 to vector<16x128xf32>
    %951 = arith.select %57, %949, %950 : vector<16x128xi1>, vector<16x128xf32>
    %c3_180 = arith.constant 3 : index
    %952 = memref.load %arg7[%c3_180] : memref<72xf32, #tpu.memory_space<smem>>
    %953 = vector.broadcast %952 : f32 to vector<16x128xf32>
    %954 = arith.mulf %953, %932 : vector<16x128xf32>
    %955 = arith.addf %779, %954 : vector<16x128xf32>
    %c11_181 = arith.constant 11 : index
    %956 = memref.load %arg7[%c11_181] : memref<72xf32, #tpu.memory_space<smem>>
    %957 = vector.broadcast %956 : f32 to vector<16x128xf32>
    %958 = arith.mulf %957, %934 : vector<16x128xf32>
    %959 = arith.addf %955, %958 : vector<16x128xf32>
    %c19_182 = arith.constant 19 : index
    %960 = memref.load %arg7[%c19_182] : memref<72xf32, #tpu.memory_space<smem>>
    %961 = vector.broadcast %960 : f32 to vector<16x128xf32>
    %962 = arith.mulf %961, %937 : vector<16x128xf32>
    %963 = arith.addf %959, %962 : vector<16x128xf32>
    %c27_183 = arith.constant 27 : index
    %964 = memref.load %arg7[%c27_183] : memref<72xf32, #tpu.memory_space<smem>>
    %965 = vector.broadcast %964 : f32 to vector<16x128xf32>
    %966 = arith.mulf %965, %940 : vector<16x128xf32>
    %967 = arith.addf %963, %966 : vector<16x128xf32>
    %c35_184 = arith.constant 35 : index
    %968 = memref.load %arg7[%c35_184] : memref<72xf32, #tpu.memory_space<smem>>
    %969 = vector.broadcast %968 : f32 to vector<16x128xf32>
    %970 = arith.mulf %969, %927 : vector<16x128xf32>
    %971 = arith.addf %967, %970 : vector<16x128xf32>
    %c43_185 = arith.constant 43 : index
    %972 = memref.load %arg7[%c43_185] : memref<72xf32, #tpu.memory_space<smem>>
    %973 = vector.broadcast %972 : f32 to vector<16x128xf32>
    %974 = arith.mulf %973, %943 : vector<16x128xf32>
    %975 = arith.addf %971, %974 : vector<16x128xf32>
    %c51_186 = arith.constant 51 : index
    %976 = memref.load %arg7[%c51_186] : memref<72xf32, #tpu.memory_space<smem>>
    %977 = vector.broadcast %976 : f32 to vector<16x128xf32>
    %978 = arith.mulf %977, %946 : vector<16x128xf32>
    %979 = arith.addf %975, %978 : vector<16x128xf32>
    %c59_187 = arith.constant 59 : index
    %980 = memref.load %arg7[%c59_187] : memref<72xf32, #tpu.memory_space<smem>>
    %981 = vector.broadcast %980 : f32 to vector<16x128xf32>
    %982 = arith.mulf %981, %948 : vector<16x128xf32>
    %983 = arith.addf %979, %982 : vector<16x128xf32>
    %c67_188 = arith.constant 67 : index
    %984 = memref.load %arg7[%c67_188] : memref<72xf32, #tpu.memory_space<smem>>
    %985 = vector.broadcast %984 : f32 to vector<16x128xf32>
    %986 = arith.mulf %985, %951 : vector<16x128xf32>
    %987 = arith.addf %983, %986 : vector<16x128xf32>
    %c4 = arith.constant 4 : index
    %988 = memref.load %arg6[%c4] : memref<8xf32, #tpu.memory_space<smem>>
    %989 = vector.broadcast %988 : f32 to vector<16x128xf32>
    %c4_189 = arith.constant 4 : index
    %990 = memref.load %arg5[%c4_189] : memref<288xf32, #tpu.memory_space<smem>>
    %991 = vector.broadcast %990 : f32 to vector<16x128xf32>
    %992 = arith.mulf %991, %62 : vector<16x128xf32>
    %993 = arith.addf %989, %992 : vector<16x128xf32>
    %c12 = arith.constant 12 : index
    %994 = memref.load %arg5[%c12] : memref<288xf32, #tpu.memory_space<smem>>
    %995 = vector.broadcast %994 : f32 to vector<16x128xf32>
    %996 = arith.mulf %995, %86 : vector<16x128xf32>
    %997 = arith.addf %993, %996 : vector<16x128xf32>
    %c20 = arith.constant 20 : index
    %998 = memref.load %arg5[%c20] : memref<288xf32, #tpu.memory_space<smem>>
    %999 = vector.broadcast %998 : f32 to vector<16x128xf32>
    %1000 = arith.mulf %999, %110 : vector<16x128xf32>
    %1001 = arith.addf %997, %1000 : vector<16x128xf32>
    %c28 = arith.constant 28 : index
    %1002 = memref.load %arg5[%c28] : memref<288xf32, #tpu.memory_space<smem>>
    %1003 = vector.broadcast %1002 : f32 to vector<16x128xf32>
    %1004 = arith.mulf %1003, %134 : vector<16x128xf32>
    %1005 = arith.addf %1001, %1004 : vector<16x128xf32>
    %c36 = arith.constant 36 : index
    %1006 = memref.load %arg5[%c36] : memref<288xf32, #tpu.memory_space<smem>>
    %1007 = vector.broadcast %1006 : f32 to vector<16x128xf32>
    %1008 = arith.mulf %1007, %64 : vector<16x128xf32>
    %1009 = arith.addf %1005, %1008 : vector<16x128xf32>
    %c44 = arith.constant 44 : index
    %1010 = memref.load %arg5[%c44] : memref<288xf32, #tpu.memory_space<smem>>
    %1011 = vector.broadcast %1010 : f32 to vector<16x128xf32>
    %1012 = arith.mulf %1011, %88 : vector<16x128xf32>
    %1013 = arith.addf %1009, %1012 : vector<16x128xf32>
    %c52 = arith.constant 52 : index
    %1014 = memref.load %arg5[%c52] : memref<288xf32, #tpu.memory_space<smem>>
    %1015 = vector.broadcast %1014 : f32 to vector<16x128xf32>
    %1016 = arith.mulf %1015, %112 : vector<16x128xf32>
    %1017 = arith.addf %1013, %1016 : vector<16x128xf32>
    %c60 = arith.constant 60 : index
    %1018 = memref.load %arg5[%c60] : memref<288xf32, #tpu.memory_space<smem>>
    %1019 = vector.broadcast %1018 : f32 to vector<16x128xf32>
    %1020 = arith.mulf %1019, %136 : vector<16x128xf32>
    %1021 = arith.addf %1017, %1020 : vector<16x128xf32>
    %c68 = arith.constant 68 : index
    %1022 = memref.load %arg5[%c68] : memref<288xf32, #tpu.memory_space<smem>>
    %1023 = vector.broadcast %1022 : f32 to vector<16x128xf32>
    %1024 = arith.mulf %1023, %67 : vector<16x128xf32>
    %1025 = arith.addf %1021, %1024 : vector<16x128xf32>
    %c76 = arith.constant 76 : index
    %1026 = memref.load %arg5[%c76] : memref<288xf32, #tpu.memory_space<smem>>
    %1027 = vector.broadcast %1026 : f32 to vector<16x128xf32>
    %1028 = arith.mulf %1027, %91 : vector<16x128xf32>
    %1029 = arith.addf %1025, %1028 : vector<16x128xf32>
    %c84 = arith.constant 84 : index
    %1030 = memref.load %arg5[%c84] : memref<288xf32, #tpu.memory_space<smem>>
    %1031 = vector.broadcast %1030 : f32 to vector<16x128xf32>
    %1032 = arith.mulf %1031, %115 : vector<16x128xf32>
    %1033 = arith.addf %1029, %1032 : vector<16x128xf32>
    %c92 = arith.constant 92 : index
    %1034 = memref.load %arg5[%c92] : memref<288xf32, #tpu.memory_space<smem>>
    %1035 = vector.broadcast %1034 : f32 to vector<16x128xf32>
    %1036 = arith.mulf %1035, %139 : vector<16x128xf32>
    %1037 = arith.addf %1033, %1036 : vector<16x128xf32>
    %c100 = arith.constant 100 : index
    %1038 = memref.load %arg5[%c100] : memref<288xf32, #tpu.memory_space<smem>>
    %1039 = vector.broadcast %1038 : f32 to vector<16x128xf32>
    %1040 = arith.mulf %1039, %70 : vector<16x128xf32>
    %1041 = arith.addf %1037, %1040 : vector<16x128xf32>
    %c108 = arith.constant 108 : index
    %1042 = memref.load %arg5[%c108] : memref<288xf32, #tpu.memory_space<smem>>
    %1043 = vector.broadcast %1042 : f32 to vector<16x128xf32>
    %1044 = arith.mulf %1043, %94 : vector<16x128xf32>
    %1045 = arith.addf %1041, %1044 : vector<16x128xf32>
    %c116 = arith.constant 116 : index
    %1046 = memref.load %arg5[%c116] : memref<288xf32, #tpu.memory_space<smem>>
    %1047 = vector.broadcast %1046 : f32 to vector<16x128xf32>
    %1048 = arith.mulf %1047, %118 : vector<16x128xf32>
    %1049 = arith.addf %1045, %1048 : vector<16x128xf32>
    %c124 = arith.constant 124 : index
    %1050 = memref.load %arg5[%c124] : memref<288xf32, #tpu.memory_space<smem>>
    %1051 = vector.broadcast %1050 : f32 to vector<16x128xf32>
    %1052 = arith.mulf %1051, %142 : vector<16x128xf32>
    %1053 = arith.addf %1049, %1052 : vector<16x128xf32>
    %c132 = arith.constant 132 : index
    %1054 = memref.load %arg5[%c132] : memref<288xf32, #tpu.memory_space<smem>>
    %1055 = vector.broadcast %1054 : f32 to vector<16x128xf32>
    %1056 = arith.mulf %1055, %19 : vector<16x128xf32>
    %1057 = arith.addf %1053, %1056 : vector<16x128xf32>
    %c140 = arith.constant 140 : index
    %1058 = memref.load %arg5[%c140] : memref<288xf32, #tpu.memory_space<smem>>
    %1059 = vector.broadcast %1058 : f32 to vector<16x128xf32>
    %1060 = arith.mulf %1059, %27 : vector<16x128xf32>
    %1061 = arith.addf %1057, %1060 : vector<16x128xf32>
    %c148 = arith.constant 148 : index
    %1062 = memref.load %arg5[%c148] : memref<288xf32, #tpu.memory_space<smem>>
    %1063 = vector.broadcast %1062 : f32 to vector<16x128xf32>
    %1064 = arith.mulf %1063, %35 : vector<16x128xf32>
    %1065 = arith.addf %1061, %1064 : vector<16x128xf32>
    %c156 = arith.constant 156 : index
    %1066 = memref.load %arg5[%c156] : memref<288xf32, #tpu.memory_space<smem>>
    %1067 = vector.broadcast %1066 : f32 to vector<16x128xf32>
    %1068 = arith.mulf %1067, %43 : vector<16x128xf32>
    %1069 = arith.addf %1065, %1068 : vector<16x128xf32>
    %c164 = arith.constant 164 : index
    %1070 = memref.load %arg5[%c164] : memref<288xf32, #tpu.memory_space<smem>>
    %1071 = vector.broadcast %1070 : f32 to vector<16x128xf32>
    %1072 = arith.mulf %1071, %73 : vector<16x128xf32>
    %1073 = arith.addf %1069, %1072 : vector<16x128xf32>
    %c172 = arith.constant 172 : index
    %1074 = memref.load %arg5[%c172] : memref<288xf32, #tpu.memory_space<smem>>
    %1075 = vector.broadcast %1074 : f32 to vector<16x128xf32>
    %1076 = arith.mulf %1075, %97 : vector<16x128xf32>
    %1077 = arith.addf %1073, %1076 : vector<16x128xf32>
    %c180 = arith.constant 180 : index
    %1078 = memref.load %arg5[%c180] : memref<288xf32, #tpu.memory_space<smem>>
    %1079 = vector.broadcast %1078 : f32 to vector<16x128xf32>
    %1080 = arith.mulf %1079, %121 : vector<16x128xf32>
    %1081 = arith.addf %1077, %1080 : vector<16x128xf32>
    %c188 = arith.constant 188 : index
    %1082 = memref.load %arg5[%c188] : memref<288xf32, #tpu.memory_space<smem>>
    %1083 = vector.broadcast %1082 : f32 to vector<16x128xf32>
    %1084 = arith.mulf %1083, %145 : vector<16x128xf32>
    %1085 = arith.addf %1081, %1084 : vector<16x128xf32>
    %c196 = arith.constant 196 : index
    %1086 = memref.load %arg5[%c196] : memref<288xf32, #tpu.memory_space<smem>>
    %1087 = vector.broadcast %1086 : f32 to vector<16x128xf32>
    %1088 = arith.mulf %1087, %76 : vector<16x128xf32>
    %1089 = arith.addf %1085, %1088 : vector<16x128xf32>
    %c204 = arith.constant 204 : index
    %1090 = memref.load %arg5[%c204] : memref<288xf32, #tpu.memory_space<smem>>
    %1091 = vector.broadcast %1090 : f32 to vector<16x128xf32>
    %1092 = arith.mulf %1091, %100 : vector<16x128xf32>
    %1093 = arith.addf %1089, %1092 : vector<16x128xf32>
    %c212 = arith.constant 212 : index
    %1094 = memref.load %arg5[%c212] : memref<288xf32, #tpu.memory_space<smem>>
    %1095 = vector.broadcast %1094 : f32 to vector<16x128xf32>
    %1096 = arith.mulf %1095, %124 : vector<16x128xf32>
    %1097 = arith.addf %1093, %1096 : vector<16x128xf32>
    %c220 = arith.constant 220 : index
    %1098 = memref.load %arg5[%c220] : memref<288xf32, #tpu.memory_space<smem>>
    %1099 = vector.broadcast %1098 : f32 to vector<16x128xf32>
    %1100 = arith.mulf %1099, %148 : vector<16x128xf32>
    %1101 = arith.addf %1097, %1100 : vector<16x128xf32>
    %c228 = arith.constant 228 : index
    %1102 = memref.load %arg5[%c228] : memref<288xf32, #tpu.memory_space<smem>>
    %1103 = vector.broadcast %1102 : f32 to vector<16x128xf32>
    %1104 = arith.mulf %1103, %78 : vector<16x128xf32>
    %1105 = arith.addf %1101, %1104 : vector<16x128xf32>
    %c236 = arith.constant 236 : index
    %1106 = memref.load %arg5[%c236] : memref<288xf32, #tpu.memory_space<smem>>
    %1107 = vector.broadcast %1106 : f32 to vector<16x128xf32>
    %1108 = arith.mulf %1107, %102 : vector<16x128xf32>
    %1109 = arith.addf %1105, %1108 : vector<16x128xf32>
    %c244 = arith.constant 244 : index
    %1110 = memref.load %arg5[%c244] : memref<288xf32, #tpu.memory_space<smem>>
    %1111 = vector.broadcast %1110 : f32 to vector<16x128xf32>
    %1112 = arith.mulf %1111, %126 : vector<16x128xf32>
    %1113 = arith.addf %1109, %1112 : vector<16x128xf32>
    %c252 = arith.constant 252 : index
    %1114 = memref.load %arg5[%c252] : memref<288xf32, #tpu.memory_space<smem>>
    %1115 = vector.broadcast %1114 : f32 to vector<16x128xf32>
    %1116 = arith.mulf %1115, %150 : vector<16x128xf32>
    %1117 = arith.addf %1113, %1116 : vector<16x128xf32>
    %c260 = arith.constant 260 : index
    %1118 = memref.load %arg5[%c260] : memref<288xf32, #tpu.memory_space<smem>>
    %1119 = vector.broadcast %1118 : f32 to vector<16x128xf32>
    %1120 = arith.mulf %1119, %81 : vector<16x128xf32>
    %1121 = arith.addf %1117, %1120 : vector<16x128xf32>
    %c268 = arith.constant 268 : index
    %1122 = memref.load %arg5[%c268] : memref<288xf32, #tpu.memory_space<smem>>
    %1123 = vector.broadcast %1122 : f32 to vector<16x128xf32>
    %1124 = arith.mulf %1123, %105 : vector<16x128xf32>
    %1125 = arith.addf %1121, %1124 : vector<16x128xf32>
    %c276 = arith.constant 276 : index
    %1126 = memref.load %arg5[%c276] : memref<288xf32, #tpu.memory_space<smem>>
    %1127 = vector.broadcast %1126 : f32 to vector<16x128xf32>
    %1128 = arith.mulf %1127, %129 : vector<16x128xf32>
    %1129 = arith.addf %1125, %1128 : vector<16x128xf32>
    %c284 = arith.constant 284 : index
    %1130 = memref.load %arg5[%c284] : memref<288xf32, #tpu.memory_space<smem>>
    %1131 = vector.broadcast %1130 : f32 to vector<16x128xf32>
    %1132 = arith.mulf %1131, %153 : vector<16x128xf32>
    %1133 = arith.addf %1129, %1132 : vector<16x128xf32>
    %cst_190 = arith.constant 0.000000e+00 : f32
    %1134 = vector.broadcast %cst_190 : f32 to vector<16x128xf32>
    %1135 = arith.maximumf %1133, %1134 : vector<16x128xf32>
    %c1_i32_191 = arith.constant 1 : i32
    %1136 = tpu.dynamic_rotate %1135 by %c1_i32_191 dim 0 : vector<16x128xf32>, i32 -> vector<16x128xf32>
    %c15_i32_192 = arith.constant 15 : i32
    %1137 = tpu.dynamic_rotate %1135 by %c15_i32_192 dim 0 : vector<16x128xf32>, i32 -> vector<16x128xf32>
    %c1_i32_193 = arith.constant 1 : i32
    %1138 = tpu.dynamic_rotate %1136 by %c1_i32_193 dim 1 : vector<16x128xf32>, i32 -> vector<16x128xf32>
    %cst_194 = arith.constant 0.000000e+00 : f32
    %1139 = vector.broadcast %cst_194 : f32 to vector<16x128xf32>
    %1140 = arith.select %54, %1138, %1139 : vector<16x128xi1>, vector<16x128xf32>
    %cst_195 = arith.constant 0.000000e+00 : f32
    %1141 = vector.broadcast %cst_195 : f32 to vector<16x128xf32>
    %1142 = arith.select %47, %1136, %1141 : vector<16x128xi1>, vector<16x128xf32>
    %c127_i32_196 = arith.constant 127 : i32
    %1143 = tpu.dynamic_rotate %1136 by %c127_i32_196 dim 1 : vector<16x128xf32>, i32 -> vector<16x128xf32>
    %cst_197 = arith.constant 0.000000e+00 : f32
    %1144 = vector.broadcast %cst_197 : f32 to vector<16x128xf32>
    %1145 = arith.select %55, %1143, %1144 : vector<16x128xi1>, vector<16x128xf32>
    %c1_i32_198 = arith.constant 1 : i32
    %1146 = tpu.dynamic_rotate %1135 by %c1_i32_198 dim 1 : vector<16x128xf32>, i32 -> vector<16x128xf32>
    %cst_199 = arith.constant 0.000000e+00 : f32
    %1147 = vector.broadcast %cst_199 : f32 to vector<16x128xf32>
    %1148 = arith.select %51, %1146, %1147 : vector<16x128xi1>, vector<16x128xf32>
    %c127_i32_200 = arith.constant 127 : i32
    %1149 = tpu.dynamic_rotate %1135 by %c127_i32_200 dim 1 : vector<16x128xf32>, i32 -> vector<16x128xf32>
    %cst_201 = arith.constant 0.000000e+00 : f32
    %1150 = vector.broadcast %cst_201 : f32 to vector<16x128xf32>
    %1151 = arith.select %53, %1149, %1150 : vector<16x128xi1>, vector<16x128xf32>
    %c1_i32_202 = arith.constant 1 : i32
    %1152 = tpu.dynamic_rotate %1137 by %c1_i32_202 dim 1 : vector<16x128xf32>, i32 -> vector<16x128xf32>
    %cst_203 = arith.constant 0.000000e+00 : f32
    %1153 = vector.broadcast %cst_203 : f32 to vector<16x128xf32>
    %1154 = arith.select %56, %1152, %1153 : vector<16x128xi1>, vector<16x128xf32>
    %cst_204 = arith.constant 0.000000e+00 : f32
    %1155 = vector.broadcast %cst_204 : f32 to vector<16x128xf32>
    %1156 = arith.select %49, %1137, %1155 : vector<16x128xi1>, vector<16x128xf32>
    %c127_i32_205 = arith.constant 127 : i32
    %1157 = tpu.dynamic_rotate %1137 by %c127_i32_205 dim 1 : vector<16x128xf32>, i32 -> vector<16x128xf32>
    %cst_206 = arith.constant 0.000000e+00 : f32
    %1158 = vector.broadcast %cst_206 : f32 to vector<16x128xf32>
    %1159 = arith.select %57, %1157, %1158 : vector<16x128xi1>, vector<16x128xf32>
    %c4_207 = arith.constant 4 : index
    %1160 = memref.load %arg7[%c4_207] : memref<72xf32, #tpu.memory_space<smem>>
    %1161 = vector.broadcast %1160 : f32 to vector<16x128xf32>
    %1162 = arith.mulf %1161, %1140 : vector<16x128xf32>
    %1163 = arith.addf %987, %1162 : vector<16x128xf32>
    %c12_208 = arith.constant 12 : index
    %1164 = memref.load %arg7[%c12_208] : memref<72xf32, #tpu.memory_space<smem>>
    %1165 = vector.broadcast %1164 : f32 to vector<16x128xf32>
    %1166 = arith.mulf %1165, %1142 : vector<16x128xf32>
    %1167 = arith.addf %1163, %1166 : vector<16x128xf32>
    %c20_209 = arith.constant 20 : index
    %1168 = memref.load %arg7[%c20_209] : memref<72xf32, #tpu.memory_space<smem>>
    %1169 = vector.broadcast %1168 : f32 to vector<16x128xf32>
    %1170 = arith.mulf %1169, %1145 : vector<16x128xf32>
    %1171 = arith.addf %1167, %1170 : vector<16x128xf32>
    %c28_210 = arith.constant 28 : index
    %1172 = memref.load %arg7[%c28_210] : memref<72xf32, #tpu.memory_space<smem>>
    %1173 = vector.broadcast %1172 : f32 to vector<16x128xf32>
    %1174 = arith.mulf %1173, %1148 : vector<16x128xf32>
    %1175 = arith.addf %1171, %1174 : vector<16x128xf32>
    %c36_211 = arith.constant 36 : index
    %1176 = memref.load %arg7[%c36_211] : memref<72xf32, #tpu.memory_space<smem>>
    %1177 = vector.broadcast %1176 : f32 to vector<16x128xf32>
    %1178 = arith.mulf %1177, %1135 : vector<16x128xf32>
    %1179 = arith.addf %1175, %1178 : vector<16x128xf32>
    %c44_212 = arith.constant 44 : index
    %1180 = memref.load %arg7[%c44_212] : memref<72xf32, #tpu.memory_space<smem>>
    %1181 = vector.broadcast %1180 : f32 to vector<16x128xf32>
    %1182 = arith.mulf %1181, %1151 : vector<16x128xf32>
    %1183 = arith.addf %1179, %1182 : vector<16x128xf32>
    %c52_213 = arith.constant 52 : index
    %1184 = memref.load %arg7[%c52_213] : memref<72xf32, #tpu.memory_space<smem>>
    %1185 = vector.broadcast %1184 : f32 to vector<16x128xf32>
    %1186 = arith.mulf %1185, %1154 : vector<16x128xf32>
    %1187 = arith.addf %1183, %1186 : vector<16x128xf32>
    %c60_214 = arith.constant 60 : index
    %1188 = memref.load %arg7[%c60_214] : memref<72xf32, #tpu.memory_space<smem>>
    %1189 = vector.broadcast %1188 : f32 to vector<16x128xf32>
    %1190 = arith.mulf %1189, %1156 : vector<16x128xf32>
    %1191 = arith.addf %1187, %1190 : vector<16x128xf32>
    %c68_215 = arith.constant 68 : index
    %1192 = memref.load %arg7[%c68_215] : memref<72xf32, #tpu.memory_space<smem>>
    %1193 = vector.broadcast %1192 : f32 to vector<16x128xf32>
    %1194 = arith.mulf %1193, %1159 : vector<16x128xf32>
    %1195 = arith.addf %1191, %1194 : vector<16x128xf32>
    %c5 = arith.constant 5 : index
    %1196 = memref.load %arg6[%c5] : memref<8xf32, #tpu.memory_space<smem>>
    %1197 = vector.broadcast %1196 : f32 to vector<16x128xf32>
    %c5_216 = arith.constant 5 : index
    %1198 = memref.load %arg5[%c5_216] : memref<288xf32, #tpu.memory_space<smem>>
    %1199 = vector.broadcast %1198 : f32 to vector<16x128xf32>
    %1200 = arith.mulf %1199, %62 : vector<16x128xf32>
    %1201 = arith.addf %1197, %1200 : vector<16x128xf32>
    %c13 = arith.constant 13 : index
    %1202 = memref.load %arg5[%c13] : memref<288xf32, #tpu.memory_space<smem>>
    %1203 = vector.broadcast %1202 : f32 to vector<16x128xf32>
    %1204 = arith.mulf %1203, %86 : vector<16x128xf32>
    %1205 = arith.addf %1201, %1204 : vector<16x128xf32>
    %c21 = arith.constant 21 : index
    %1206 = memref.load %arg5[%c21] : memref<288xf32, #tpu.memory_space<smem>>
    %1207 = vector.broadcast %1206 : f32 to vector<16x128xf32>
    %1208 = arith.mulf %1207, %110 : vector<16x128xf32>
    %1209 = arith.addf %1205, %1208 : vector<16x128xf32>
    %c29 = arith.constant 29 : index
    %1210 = memref.load %arg5[%c29] : memref<288xf32, #tpu.memory_space<smem>>
    %1211 = vector.broadcast %1210 : f32 to vector<16x128xf32>
    %1212 = arith.mulf %1211, %134 : vector<16x128xf32>
    %1213 = arith.addf %1209, %1212 : vector<16x128xf32>
    %c37 = arith.constant 37 : index
    %1214 = memref.load %arg5[%c37] : memref<288xf32, #tpu.memory_space<smem>>
    %1215 = vector.broadcast %1214 : f32 to vector<16x128xf32>
    %1216 = arith.mulf %1215, %64 : vector<16x128xf32>
    %1217 = arith.addf %1213, %1216 : vector<16x128xf32>
    %c45 = arith.constant 45 : index
    %1218 = memref.load %arg5[%c45] : memref<288xf32, #tpu.memory_space<smem>>
    %1219 = vector.broadcast %1218 : f32 to vector<16x128xf32>
    %1220 = arith.mulf %1219, %88 : vector<16x128xf32>
    %1221 = arith.addf %1217, %1220 : vector<16x128xf32>
    %c53 = arith.constant 53 : index
    %1222 = memref.load %arg5[%c53] : memref<288xf32, #tpu.memory_space<smem>>
    %1223 = vector.broadcast %1222 : f32 to vector<16x128xf32>
    %1224 = arith.mulf %1223, %112 : vector<16x128xf32>
    %1225 = arith.addf %1221, %1224 : vector<16x128xf32>
    %c61 = arith.constant 61 : index
    %1226 = memref.load %arg5[%c61] : memref<288xf32, #tpu.memory_space<smem>>
    %1227 = vector.broadcast %1226 : f32 to vector<16x128xf32>
    %1228 = arith.mulf %1227, %136 : vector<16x128xf32>
    %1229 = arith.addf %1225, %1228 : vector<16x128xf32>
    %c69 = arith.constant 69 : index
    %1230 = memref.load %arg5[%c69] : memref<288xf32, #tpu.memory_space<smem>>
    %1231 = vector.broadcast %1230 : f32 to vector<16x128xf32>
    %1232 = arith.mulf %1231, %67 : vector<16x128xf32>
    %1233 = arith.addf %1229, %1232 : vector<16x128xf32>
    %c77 = arith.constant 77 : index
    %1234 = memref.load %arg5[%c77] : memref<288xf32, #tpu.memory_space<smem>>
    %1235 = vector.broadcast %1234 : f32 to vector<16x128xf32>
    %1236 = arith.mulf %1235, %91 : vector<16x128xf32>
    %1237 = arith.addf %1233, %1236 : vector<16x128xf32>
    %c85 = arith.constant 85 : index
    %1238 = memref.load %arg5[%c85] : memref<288xf32, #tpu.memory_space<smem>>
    %1239 = vector.broadcast %1238 : f32 to vector<16x128xf32>
    %1240 = arith.mulf %1239, %115 : vector<16x128xf32>
    %1241 = arith.addf %1237, %1240 : vector<16x128xf32>
    %c93 = arith.constant 93 : index
    %1242 = memref.load %arg5[%c93] : memref<288xf32, #tpu.memory_space<smem>>
    %1243 = vector.broadcast %1242 : f32 to vector<16x128xf32>
    %1244 = arith.mulf %1243, %139 : vector<16x128xf32>
    %1245 = arith.addf %1241, %1244 : vector<16x128xf32>
    %c101 = arith.constant 101 : index
    %1246 = memref.load %arg5[%c101] : memref<288xf32, #tpu.memory_space<smem>>
    %1247 = vector.broadcast %1246 : f32 to vector<16x128xf32>
    %1248 = arith.mulf %1247, %70 : vector<16x128xf32>
    %1249 = arith.addf %1245, %1248 : vector<16x128xf32>
    %c109 = arith.constant 109 : index
    %1250 = memref.load %arg5[%c109] : memref<288xf32, #tpu.memory_space<smem>>
    %1251 = vector.broadcast %1250 : f32 to vector<16x128xf32>
    %1252 = arith.mulf %1251, %94 : vector<16x128xf32>
    %1253 = arith.addf %1249, %1252 : vector<16x128xf32>
    %c117 = arith.constant 117 : index
    %1254 = memref.load %arg5[%c117] : memref<288xf32, #tpu.memory_space<smem>>
    %1255 = vector.broadcast %1254 : f32 to vector<16x128xf32>
    %1256 = arith.mulf %1255, %118 : vector<16x128xf32>
    %1257 = arith.addf %1253, %1256 : vector<16x128xf32>
    %c125 = arith.constant 125 : index
    %1258 = memref.load %arg5[%c125] : memref<288xf32, #tpu.memory_space<smem>>
    %1259 = vector.broadcast %1258 : f32 to vector<16x128xf32>
    %1260 = arith.mulf %1259, %142 : vector<16x128xf32>
    %1261 = arith.addf %1257, %1260 : vector<16x128xf32>
    %c133 = arith.constant 133 : index
    %1262 = memref.load %arg5[%c133] : memref<288xf32, #tpu.memory_space<smem>>
    %1263 = vector.broadcast %1262 : f32 to vector<16x128xf32>
    %1264 = arith.mulf %1263, %19 : vector<16x128xf32>
    %1265 = arith.addf %1261, %1264 : vector<16x128xf32>
    %c141 = arith.constant 141 : index
    %1266 = memref.load %arg5[%c141] : memref<288xf32, #tpu.memory_space<smem>>
    %1267 = vector.broadcast %1266 : f32 to vector<16x128xf32>
    %1268 = arith.mulf %1267, %27 : vector<16x128xf32>
    %1269 = arith.addf %1265, %1268 : vector<16x128xf32>
    %c149 = arith.constant 149 : index
    %1270 = memref.load %arg5[%c149] : memref<288xf32, #tpu.memory_space<smem>>
    %1271 = vector.broadcast %1270 : f32 to vector<16x128xf32>
    %1272 = arith.mulf %1271, %35 : vector<16x128xf32>
    %1273 = arith.addf %1269, %1272 : vector<16x128xf32>
    %c157 = arith.constant 157 : index
    %1274 = memref.load %arg5[%c157] : memref<288xf32, #tpu.memory_space<smem>>
    %1275 = vector.broadcast %1274 : f32 to vector<16x128xf32>
    %1276 = arith.mulf %1275, %43 : vector<16x128xf32>
    %1277 = arith.addf %1273, %1276 : vector<16x128xf32>
    %c165 = arith.constant 165 : index
    %1278 = memref.load %arg5[%c165] : memref<288xf32, #tpu.memory_space<smem>>
    %1279 = vector.broadcast %1278 : f32 to vector<16x128xf32>
    %1280 = arith.mulf %1279, %73 : vector<16x128xf32>
    %1281 = arith.addf %1277, %1280 : vector<16x128xf32>
    %c173 = arith.constant 173 : index
    %1282 = memref.load %arg5[%c173] : memref<288xf32, #tpu.memory_space<smem>>
    %1283 = vector.broadcast %1282 : f32 to vector<16x128xf32>
    %1284 = arith.mulf %1283, %97 : vector<16x128xf32>
    %1285 = arith.addf %1281, %1284 : vector<16x128xf32>
    %c181 = arith.constant 181 : index
    %1286 = memref.load %arg5[%c181] : memref<288xf32, #tpu.memory_space<smem>>
    %1287 = vector.broadcast %1286 : f32 to vector<16x128xf32>
    %1288 = arith.mulf %1287, %121 : vector<16x128xf32>
    %1289 = arith.addf %1285, %1288 : vector<16x128xf32>
    %c189 = arith.constant 189 : index
    %1290 = memref.load %arg5[%c189] : memref<288xf32, #tpu.memory_space<smem>>
    %1291 = vector.broadcast %1290 : f32 to vector<16x128xf32>
    %1292 = arith.mulf %1291, %145 : vector<16x128xf32>
    %1293 = arith.addf %1289, %1292 : vector<16x128xf32>
    %c197 = arith.constant 197 : index
    %1294 = memref.load %arg5[%c197] : memref<288xf32, #tpu.memory_space<smem>>
    %1295 = vector.broadcast %1294 : f32 to vector<16x128xf32>
    %1296 = arith.mulf %1295, %76 : vector<16x128xf32>
    %1297 = arith.addf %1293, %1296 : vector<16x128xf32>
    %c205 = arith.constant 205 : index
    %1298 = memref.load %arg5[%c205] : memref<288xf32, #tpu.memory_space<smem>>
    %1299 = vector.broadcast %1298 : f32 to vector<16x128xf32>
    %1300 = arith.mulf %1299, %100 : vector<16x128xf32>
    %1301 = arith.addf %1297, %1300 : vector<16x128xf32>
    %c213 = arith.constant 213 : index
    %1302 = memref.load %arg5[%c213] : memref<288xf32, #tpu.memory_space<smem>>
    %1303 = vector.broadcast %1302 : f32 to vector<16x128xf32>
    %1304 = arith.mulf %1303, %124 : vector<16x128xf32>
    %1305 = arith.addf %1301, %1304 : vector<16x128xf32>
    %c221 = arith.constant 221 : index
    %1306 = memref.load %arg5[%c221] : memref<288xf32, #tpu.memory_space<smem>>
    %1307 = vector.broadcast %1306 : f32 to vector<16x128xf32>
    %1308 = arith.mulf %1307, %148 : vector<16x128xf32>
    %1309 = arith.addf %1305, %1308 : vector<16x128xf32>
    %c229 = arith.constant 229 : index
    %1310 = memref.load %arg5[%c229] : memref<288xf32, #tpu.memory_space<smem>>
    %1311 = vector.broadcast %1310 : f32 to vector<16x128xf32>
    %1312 = arith.mulf %1311, %78 : vector<16x128xf32>
    %1313 = arith.addf %1309, %1312 : vector<16x128xf32>
    %c237 = arith.constant 237 : index
    %1314 = memref.load %arg5[%c237] : memref<288xf32, #tpu.memory_space<smem>>
    %1315 = vector.broadcast %1314 : f32 to vector<16x128xf32>
    %1316 = arith.mulf %1315, %102 : vector<16x128xf32>
    %1317 = arith.addf %1313, %1316 : vector<16x128xf32>
    %c245 = arith.constant 245 : index
    %1318 = memref.load %arg5[%c245] : memref<288xf32, #tpu.memory_space<smem>>
    %1319 = vector.broadcast %1318 : f32 to vector<16x128xf32>
    %1320 = arith.mulf %1319, %126 : vector<16x128xf32>
    %1321 = arith.addf %1317, %1320 : vector<16x128xf32>
    %c253 = arith.constant 253 : index
    %1322 = memref.load %arg5[%c253] : memref<288xf32, #tpu.memory_space<smem>>
    %1323 = vector.broadcast %1322 : f32 to vector<16x128xf32>
    %1324 = arith.mulf %1323, %150 : vector<16x128xf32>
    %1325 = arith.addf %1321, %1324 : vector<16x128xf32>
    %c261 = arith.constant 261 : index
    %1326 = memref.load %arg5[%c261] : memref<288xf32, #tpu.memory_space<smem>>
    %1327 = vector.broadcast %1326 : f32 to vector<16x128xf32>
    %1328 = arith.mulf %1327, %81 : vector<16x128xf32>
    %1329 = arith.addf %1325, %1328 : vector<16x128xf32>
    %c269 = arith.constant 269 : index
    %1330 = memref.load %arg5[%c269] : memref<288xf32, #tpu.memory_space<smem>>
    %1331 = vector.broadcast %1330 : f32 to vector<16x128xf32>
    %1332 = arith.mulf %1331, %105 : vector<16x128xf32>
    %1333 = arith.addf %1329, %1332 : vector<16x128xf32>
    %c277 = arith.constant 277 : index
    %1334 = memref.load %arg5[%c277] : memref<288xf32, #tpu.memory_space<smem>>
    %1335 = vector.broadcast %1334 : f32 to vector<16x128xf32>
    %1336 = arith.mulf %1335, %129 : vector<16x128xf32>
    %1337 = arith.addf %1333, %1336 : vector<16x128xf32>
    %c285 = arith.constant 285 : index
    %1338 = memref.load %arg5[%c285] : memref<288xf32, #tpu.memory_space<smem>>
    %1339 = vector.broadcast %1338 : f32 to vector<16x128xf32>
    %1340 = arith.mulf %1339, %153 : vector<16x128xf32>
    %1341 = arith.addf %1337, %1340 : vector<16x128xf32>
    %cst_217 = arith.constant 0.000000e+00 : f32
    %1342 = vector.broadcast %cst_217 : f32 to vector<16x128xf32>
    %1343 = arith.maximumf %1341, %1342 : vector<16x128xf32>
    %c1_i32_218 = arith.constant 1 : i32
    %1344 = tpu.dynamic_rotate %1343 by %c1_i32_218 dim 0 : vector<16x128xf32>, i32 -> vector<16x128xf32>
    %c15_i32_219 = arith.constant 15 : i32
    %1345 = tpu.dynamic_rotate %1343 by %c15_i32_219 dim 0 : vector<16x128xf32>, i32 -> vector<16x128xf32>
    %c1_i32_220 = arith.constant 1 : i32
    %1346 = tpu.dynamic_rotate %1344 by %c1_i32_220 dim 1 : vector<16x128xf32>, i32 -> vector<16x128xf32>
    %cst_221 = arith.constant 0.000000e+00 : f32
    %1347 = vector.broadcast %cst_221 : f32 to vector<16x128xf32>
    %1348 = arith.select %54, %1346, %1347 : vector<16x128xi1>, vector<16x128xf32>
    %cst_222 = arith.constant 0.000000e+00 : f32
    %1349 = vector.broadcast %cst_222 : f32 to vector<16x128xf32>
    %1350 = arith.select %47, %1344, %1349 : vector<16x128xi1>, vector<16x128xf32>
    %c127_i32_223 = arith.constant 127 : i32
    %1351 = tpu.dynamic_rotate %1344 by %c127_i32_223 dim 1 : vector<16x128xf32>, i32 -> vector<16x128xf32>
    %cst_224 = arith.constant 0.000000e+00 : f32
    %1352 = vector.broadcast %cst_224 : f32 to vector<16x128xf32>
    %1353 = arith.select %55, %1351, %1352 : vector<16x128xi1>, vector<16x128xf32>
    %c1_i32_225 = arith.constant 1 : i32
    %1354 = tpu.dynamic_rotate %1343 by %c1_i32_225 dim 1 : vector<16x128xf32>, i32 -> vector<16x128xf32>
    %cst_226 = arith.constant 0.000000e+00 : f32
    %1355 = vector.broadcast %cst_226 : f32 to vector<16x128xf32>
    %1356 = arith.select %51, %1354, %1355 : vector<16x128xi1>, vector<16x128xf32>
    %c127_i32_227 = arith.constant 127 : i32
    %1357 = tpu.dynamic_rotate %1343 by %c127_i32_227 dim 1 : vector<16x128xf32>, i32 -> vector<16x128xf32>
    %cst_228 = arith.constant 0.000000e+00 : f32
    %1358 = vector.broadcast %cst_228 : f32 to vector<16x128xf32>
    %1359 = arith.select %53, %1357, %1358 : vector<16x128xi1>, vector<16x128xf32>
    %c1_i32_229 = arith.constant 1 : i32
    %1360 = tpu.dynamic_rotate %1345 by %c1_i32_229 dim 1 : vector<16x128xf32>, i32 -> vector<16x128xf32>
    %cst_230 = arith.constant 0.000000e+00 : f32
    %1361 = vector.broadcast %cst_230 : f32 to vector<16x128xf32>
    %1362 = arith.select %56, %1360, %1361 : vector<16x128xi1>, vector<16x128xf32>
    %cst_231 = arith.constant 0.000000e+00 : f32
    %1363 = vector.broadcast %cst_231 : f32 to vector<16x128xf32>
    %1364 = arith.select %49, %1345, %1363 : vector<16x128xi1>, vector<16x128xf32>
    %c127_i32_232 = arith.constant 127 : i32
    %1365 = tpu.dynamic_rotate %1345 by %c127_i32_232 dim 1 : vector<16x128xf32>, i32 -> vector<16x128xf32>
    %cst_233 = arith.constant 0.000000e+00 : f32
    %1366 = vector.broadcast %cst_233 : f32 to vector<16x128xf32>
    %1367 = arith.select %57, %1365, %1366 : vector<16x128xi1>, vector<16x128xf32>
    %c5_234 = arith.constant 5 : index
    %1368 = memref.load %arg7[%c5_234] : memref<72xf32, #tpu.memory_space<smem>>
    %1369 = vector.broadcast %1368 : f32 to vector<16x128xf32>
    %1370 = arith.mulf %1369, %1348 : vector<16x128xf32>
    %1371 = arith.addf %1195, %1370 : vector<16x128xf32>
    %c13_235 = arith.constant 13 : index
    %1372 = memref.load %arg7[%c13_235] : memref<72xf32, #tpu.memory_space<smem>>
    %1373 = vector.broadcast %1372 : f32 to vector<16x128xf32>
    %1374 = arith.mulf %1373, %1350 : vector<16x128xf32>
    %1375 = arith.addf %1371, %1374 : vector<16x128xf32>
    %c21_236 = arith.constant 21 : index
    %1376 = memref.load %arg7[%c21_236] : memref<72xf32, #tpu.memory_space<smem>>
    %1377 = vector.broadcast %1376 : f32 to vector<16x128xf32>
    %1378 = arith.mulf %1377, %1353 : vector<16x128xf32>
    %1379 = arith.addf %1375, %1378 : vector<16x128xf32>
    %c29_237 = arith.constant 29 : index
    %1380 = memref.load %arg7[%c29_237] : memref<72xf32, #tpu.memory_space<smem>>
    %1381 = vector.broadcast %1380 : f32 to vector<16x128xf32>
    %1382 = arith.mulf %1381, %1356 : vector<16x128xf32>
    %1383 = arith.addf %1379, %1382 : vector<16x128xf32>
    %c37_238 = arith.constant 37 : index
    %1384 = memref.load %arg7[%c37_238] : memref<72xf32, #tpu.memory_space<smem>>
    %1385 = vector.broadcast %1384 : f32 to vector<16x128xf32>
    %1386 = arith.mulf %1385, %1343 : vector<16x128xf32>
    %1387 = arith.addf %1383, %1386 : vector<16x128xf32>
    %c45_239 = arith.constant 45 : index
    %1388 = memref.load %arg7[%c45_239] : memref<72xf32, #tpu.memory_space<smem>>
    %1389 = vector.broadcast %1388 : f32 to vector<16x128xf32>
    %1390 = arith.mulf %1389, %1359 : vector<16x128xf32>
    %1391 = arith.addf %1387, %1390 : vector<16x128xf32>
    %c53_240 = arith.constant 53 : index
    %1392 = memref.load %arg7[%c53_240] : memref<72xf32, #tpu.memory_space<smem>>
    %1393 = vector.broadcast %1392 : f32 to vector<16x128xf32>
    %1394 = arith.mulf %1393, %1362 : vector<16x128xf32>
    %1395 = arith.addf %1391, %1394 : vector<16x128xf32>
    %c61_241 = arith.constant 61 : index
    %1396 = memref.load %arg7[%c61_241] : memref<72xf32, #tpu.memory_space<smem>>
    %1397 = vector.broadcast %1396 : f32 to vector<16x128xf32>
    %1398 = arith.mulf %1397, %1364 : vector<16x128xf32>
    %1399 = arith.addf %1395, %1398 : vector<16x128xf32>
    %c69_242 = arith.constant 69 : index
    %1400 = memref.load %arg7[%c69_242] : memref<72xf32, #tpu.memory_space<smem>>
    %1401 = vector.broadcast %1400 : f32 to vector<16x128xf32>
    %1402 = arith.mulf %1401, %1367 : vector<16x128xf32>
    %1403 = arith.addf %1399, %1402 : vector<16x128xf32>
    %c6 = arith.constant 6 : index
    %1404 = memref.load %arg6[%c6] : memref<8xf32, #tpu.memory_space<smem>>
    %1405 = vector.broadcast %1404 : f32 to vector<16x128xf32>
    %c6_243 = arith.constant 6 : index
    %1406 = memref.load %arg5[%c6_243] : memref<288xf32, #tpu.memory_space<smem>>
    %1407 = vector.broadcast %1406 : f32 to vector<16x128xf32>
    %1408 = arith.mulf %1407, %62 : vector<16x128xf32>
    %1409 = arith.addf %1405, %1408 : vector<16x128xf32>
    %c14 = arith.constant 14 : index
    %1410 = memref.load %arg5[%c14] : memref<288xf32, #tpu.memory_space<smem>>
    %1411 = vector.broadcast %1410 : f32 to vector<16x128xf32>
    %1412 = arith.mulf %1411, %86 : vector<16x128xf32>
    %1413 = arith.addf %1409, %1412 : vector<16x128xf32>
    %c22 = arith.constant 22 : index
    %1414 = memref.load %arg5[%c22] : memref<288xf32, #tpu.memory_space<smem>>
    %1415 = vector.broadcast %1414 : f32 to vector<16x128xf32>
    %1416 = arith.mulf %1415, %110 : vector<16x128xf32>
    %1417 = arith.addf %1413, %1416 : vector<16x128xf32>
    %c30 = arith.constant 30 : index
    %1418 = memref.load %arg5[%c30] : memref<288xf32, #tpu.memory_space<smem>>
    %1419 = vector.broadcast %1418 : f32 to vector<16x128xf32>
    %1420 = arith.mulf %1419, %134 : vector<16x128xf32>
    %1421 = arith.addf %1417, %1420 : vector<16x128xf32>
    %c38 = arith.constant 38 : index
    %1422 = memref.load %arg5[%c38] : memref<288xf32, #tpu.memory_space<smem>>
    %1423 = vector.broadcast %1422 : f32 to vector<16x128xf32>
    %1424 = arith.mulf %1423, %64 : vector<16x128xf32>
    %1425 = arith.addf %1421, %1424 : vector<16x128xf32>
    %c46 = arith.constant 46 : index
    %1426 = memref.load %arg5[%c46] : memref<288xf32, #tpu.memory_space<smem>>
    %1427 = vector.broadcast %1426 : f32 to vector<16x128xf32>
    %1428 = arith.mulf %1427, %88 : vector<16x128xf32>
    %1429 = arith.addf %1425, %1428 : vector<16x128xf32>
    %c54 = arith.constant 54 : index
    %1430 = memref.load %arg5[%c54] : memref<288xf32, #tpu.memory_space<smem>>
    %1431 = vector.broadcast %1430 : f32 to vector<16x128xf32>
    %1432 = arith.mulf %1431, %112 : vector<16x128xf32>
    %1433 = arith.addf %1429, %1432 : vector<16x128xf32>
    %c62 = arith.constant 62 : index
    %1434 = memref.load %arg5[%c62] : memref<288xf32, #tpu.memory_space<smem>>
    %1435 = vector.broadcast %1434 : f32 to vector<16x128xf32>
    %1436 = arith.mulf %1435, %136 : vector<16x128xf32>
    %1437 = arith.addf %1433, %1436 : vector<16x128xf32>
    %c70 = arith.constant 70 : index
    %1438 = memref.load %arg5[%c70] : memref<288xf32, #tpu.memory_space<smem>>
    %1439 = vector.broadcast %1438 : f32 to vector<16x128xf32>
    %1440 = arith.mulf %1439, %67 : vector<16x128xf32>
    %1441 = arith.addf %1437, %1440 : vector<16x128xf32>
    %c78 = arith.constant 78 : index
    %1442 = memref.load %arg5[%c78] : memref<288xf32, #tpu.memory_space<smem>>
    %1443 = vector.broadcast %1442 : f32 to vector<16x128xf32>
    %1444 = arith.mulf %1443, %91 : vector<16x128xf32>
    %1445 = arith.addf %1441, %1444 : vector<16x128xf32>
    %c86 = arith.constant 86 : index
    %1446 = memref.load %arg5[%c86] : memref<288xf32, #tpu.memory_space<smem>>
    %1447 = vector.broadcast %1446 : f32 to vector<16x128xf32>
    %1448 = arith.mulf %1447, %115 : vector<16x128xf32>
    %1449 = arith.addf %1445, %1448 : vector<16x128xf32>
    %c94 = arith.constant 94 : index
    %1450 = memref.load %arg5[%c94] : memref<288xf32, #tpu.memory_space<smem>>
    %1451 = vector.broadcast %1450 : f32 to vector<16x128xf32>
    %1452 = arith.mulf %1451, %139 : vector<16x128xf32>
    %1453 = arith.addf %1449, %1452 : vector<16x128xf32>
    %c102 = arith.constant 102 : index
    %1454 = memref.load %arg5[%c102] : memref<288xf32, #tpu.memory_space<smem>>
    %1455 = vector.broadcast %1454 : f32 to vector<16x128xf32>
    %1456 = arith.mulf %1455, %70 : vector<16x128xf32>
    %1457 = arith.addf %1453, %1456 : vector<16x128xf32>
    %c110 = arith.constant 110 : index
    %1458 = memref.load %arg5[%c110] : memref<288xf32, #tpu.memory_space<smem>>
    %1459 = vector.broadcast %1458 : f32 to vector<16x128xf32>
    %1460 = arith.mulf %1459, %94 : vector<16x128xf32>
    %1461 = arith.addf %1457, %1460 : vector<16x128xf32>
    %c118 = arith.constant 118 : index
    %1462 = memref.load %arg5[%c118] : memref<288xf32, #tpu.memory_space<smem>>
    %1463 = vector.broadcast %1462 : f32 to vector<16x128xf32>
    %1464 = arith.mulf %1463, %118 : vector<16x128xf32>
    %1465 = arith.addf %1461, %1464 : vector<16x128xf32>
    %c126 = arith.constant 126 : index
    %1466 = memref.load %arg5[%c126] : memref<288xf32, #tpu.memory_space<smem>>
    %1467 = vector.broadcast %1466 : f32 to vector<16x128xf32>
    %1468 = arith.mulf %1467, %142 : vector<16x128xf32>
    %1469 = arith.addf %1465, %1468 : vector<16x128xf32>
    %c134 = arith.constant 134 : index
    %1470 = memref.load %arg5[%c134] : memref<288xf32, #tpu.memory_space<smem>>
    %1471 = vector.broadcast %1470 : f32 to vector<16x128xf32>
    %1472 = arith.mulf %1471, %19 : vector<16x128xf32>
    %1473 = arith.addf %1469, %1472 : vector<16x128xf32>
    %c142 = arith.constant 142 : index
    %1474 = memref.load %arg5[%c142] : memref<288xf32, #tpu.memory_space<smem>>
    %1475 = vector.broadcast %1474 : f32 to vector<16x128xf32>
    %1476 = arith.mulf %1475, %27 : vector<16x128xf32>
    %1477 = arith.addf %1473, %1476 : vector<16x128xf32>
    %c150 = arith.constant 150 : index
    %1478 = memref.load %arg5[%c150] : memref<288xf32, #tpu.memory_space<smem>>
    %1479 = vector.broadcast %1478 : f32 to vector<16x128xf32>
    %1480 = arith.mulf %1479, %35 : vector<16x128xf32>
    %1481 = arith.addf %1477, %1480 : vector<16x128xf32>
    %c158 = arith.constant 158 : index
    %1482 = memref.load %arg5[%c158] : memref<288xf32, #tpu.memory_space<smem>>
    %1483 = vector.broadcast %1482 : f32 to vector<16x128xf32>
    %1484 = arith.mulf %1483, %43 : vector<16x128xf32>
    %1485 = arith.addf %1481, %1484 : vector<16x128xf32>
    %c166 = arith.constant 166 : index
    %1486 = memref.load %arg5[%c166] : memref<288xf32, #tpu.memory_space<smem>>
    %1487 = vector.broadcast %1486 : f32 to vector<16x128xf32>
    %1488 = arith.mulf %1487, %73 : vector<16x128xf32>
    %1489 = arith.addf %1485, %1488 : vector<16x128xf32>
    %c174 = arith.constant 174 : index
    %1490 = memref.load %arg5[%c174] : memref<288xf32, #tpu.memory_space<smem>>
    %1491 = vector.broadcast %1490 : f32 to vector<16x128xf32>
    %1492 = arith.mulf %1491, %97 : vector<16x128xf32>
    %1493 = arith.addf %1489, %1492 : vector<16x128xf32>
    %c182 = arith.constant 182 : index
    %1494 = memref.load %arg5[%c182] : memref<288xf32, #tpu.memory_space<smem>>
    %1495 = vector.broadcast %1494 : f32 to vector<16x128xf32>
    %1496 = arith.mulf %1495, %121 : vector<16x128xf32>
    %1497 = arith.addf %1493, %1496 : vector<16x128xf32>
    %c190 = arith.constant 190 : index
    %1498 = memref.load %arg5[%c190] : memref<288xf32, #tpu.memory_space<smem>>
    %1499 = vector.broadcast %1498 : f32 to vector<16x128xf32>
    %1500 = arith.mulf %1499, %145 : vector<16x128xf32>
    %1501 = arith.addf %1497, %1500 : vector<16x128xf32>
    %c198 = arith.constant 198 : index
    %1502 = memref.load %arg5[%c198] : memref<288xf32, #tpu.memory_space<smem>>
    %1503 = vector.broadcast %1502 : f32 to vector<16x128xf32>
    %1504 = arith.mulf %1503, %76 : vector<16x128xf32>
    %1505 = arith.addf %1501, %1504 : vector<16x128xf32>
    %c206 = arith.constant 206 : index
    %1506 = memref.load %arg5[%c206] : memref<288xf32, #tpu.memory_space<smem>>
    %1507 = vector.broadcast %1506 : f32 to vector<16x128xf32>
    %1508 = arith.mulf %1507, %100 : vector<16x128xf32>
    %1509 = arith.addf %1505, %1508 : vector<16x128xf32>
    %c214 = arith.constant 214 : index
    %1510 = memref.load %arg5[%c214] : memref<288xf32, #tpu.memory_space<smem>>
    %1511 = vector.broadcast %1510 : f32 to vector<16x128xf32>
    %1512 = arith.mulf %1511, %124 : vector<16x128xf32>
    %1513 = arith.addf %1509, %1512 : vector<16x128xf32>
    %c222 = arith.constant 222 : index
    %1514 = memref.load %arg5[%c222] : memref<288xf32, #tpu.memory_space<smem>>
    %1515 = vector.broadcast %1514 : f32 to vector<16x128xf32>
    %1516 = arith.mulf %1515, %148 : vector<16x128xf32>
    %1517 = arith.addf %1513, %1516 : vector<16x128xf32>
    %c230 = arith.constant 230 : index
    %1518 = memref.load %arg5[%c230] : memref<288xf32, #tpu.memory_space<smem>>
    %1519 = vector.broadcast %1518 : f32 to vector<16x128xf32>
    %1520 = arith.mulf %1519, %78 : vector<16x128xf32>
    %1521 = arith.addf %1517, %1520 : vector<16x128xf32>
    %c238 = arith.constant 238 : index
    %1522 = memref.load %arg5[%c238] : memref<288xf32, #tpu.memory_space<smem>>
    %1523 = vector.broadcast %1522 : f32 to vector<16x128xf32>
    %1524 = arith.mulf %1523, %102 : vector<16x128xf32>
    %1525 = arith.addf %1521, %1524 : vector<16x128xf32>
    %c246 = arith.constant 246 : index
    %1526 = memref.load %arg5[%c246] : memref<288xf32, #tpu.memory_space<smem>>
    %1527 = vector.broadcast %1526 : f32 to vector<16x128xf32>
    %1528 = arith.mulf %1527, %126 : vector<16x128xf32>
    %1529 = arith.addf %1525, %1528 : vector<16x128xf32>
    %c254 = arith.constant 254 : index
    %1530 = memref.load %arg5[%c254] : memref<288xf32, #tpu.memory_space<smem>>
    %1531 = vector.broadcast %1530 : f32 to vector<16x128xf32>
    %1532 = arith.mulf %1531, %150 : vector<16x128xf32>
    %1533 = arith.addf %1529, %1532 : vector<16x128xf32>
    %c262 = arith.constant 262 : index
    %1534 = memref.load %arg5[%c262] : memref<288xf32, #tpu.memory_space<smem>>
    %1535 = vector.broadcast %1534 : f32 to vector<16x128xf32>
    %1536 = arith.mulf %1535, %81 : vector<16x128xf32>
    %1537 = arith.addf %1533, %1536 : vector<16x128xf32>
    %c270 = arith.constant 270 : index
    %1538 = memref.load %arg5[%c270] : memref<288xf32, #tpu.memory_space<smem>>
    %1539 = vector.broadcast %1538 : f32 to vector<16x128xf32>
    %1540 = arith.mulf %1539, %105 : vector<16x128xf32>
    %1541 = arith.addf %1537, %1540 : vector<16x128xf32>
    %c278 = arith.constant 278 : index
    %1542 = memref.load %arg5[%c278] : memref<288xf32, #tpu.memory_space<smem>>
    %1543 = vector.broadcast %1542 : f32 to vector<16x128xf32>
    %1544 = arith.mulf %1543, %129 : vector<16x128xf32>
    %1545 = arith.addf %1541, %1544 : vector<16x128xf32>
    %c286 = arith.constant 286 : index
    %1546 = memref.load %arg5[%c286] : memref<288xf32, #tpu.memory_space<smem>>
    %1547 = vector.broadcast %1546 : f32 to vector<16x128xf32>
    %1548 = arith.mulf %1547, %153 : vector<16x128xf32>
    %1549 = arith.addf %1545, %1548 : vector<16x128xf32>
    %cst_244 = arith.constant 0.000000e+00 : f32
    %1550 = vector.broadcast %cst_244 : f32 to vector<16x128xf32>
    %1551 = arith.maximumf %1549, %1550 : vector<16x128xf32>
    %c1_i32_245 = arith.constant 1 : i32
    %1552 = tpu.dynamic_rotate %1551 by %c1_i32_245 dim 0 : vector<16x128xf32>, i32 -> vector<16x128xf32>
    %c15_i32_246 = arith.constant 15 : i32
    %1553 = tpu.dynamic_rotate %1551 by %c15_i32_246 dim 0 : vector<16x128xf32>, i32 -> vector<16x128xf32>
    %c1_i32_247 = arith.constant 1 : i32
    %1554 = tpu.dynamic_rotate %1552 by %c1_i32_247 dim 1 : vector<16x128xf32>, i32 -> vector<16x128xf32>
    %cst_248 = arith.constant 0.000000e+00 : f32
    %1555 = vector.broadcast %cst_248 : f32 to vector<16x128xf32>
    %1556 = arith.select %54, %1554, %1555 : vector<16x128xi1>, vector<16x128xf32>
    %cst_249 = arith.constant 0.000000e+00 : f32
    %1557 = vector.broadcast %cst_249 : f32 to vector<16x128xf32>
    %1558 = arith.select %47, %1552, %1557 : vector<16x128xi1>, vector<16x128xf32>
    %c127_i32_250 = arith.constant 127 : i32
    %1559 = tpu.dynamic_rotate %1552 by %c127_i32_250 dim 1 : vector<16x128xf32>, i32 -> vector<16x128xf32>
    %cst_251 = arith.constant 0.000000e+00 : f32
    %1560 = vector.broadcast %cst_251 : f32 to vector<16x128xf32>
    %1561 = arith.select %55, %1559, %1560 : vector<16x128xi1>, vector<16x128xf32>
    %c1_i32_252 = arith.constant 1 : i32
    %1562 = tpu.dynamic_rotate %1551 by %c1_i32_252 dim 1 : vector<16x128xf32>, i32 -> vector<16x128xf32>
    %cst_253 = arith.constant 0.000000e+00 : f32
    %1563 = vector.broadcast %cst_253 : f32 to vector<16x128xf32>
    %1564 = arith.select %51, %1562, %1563 : vector<16x128xi1>, vector<16x128xf32>
    %c127_i32_254 = arith.constant 127 : i32
    %1565 = tpu.dynamic_rotate %1551 by %c127_i32_254 dim 1 : vector<16x128xf32>, i32 -> vector<16x128xf32>
    %cst_255 = arith.constant 0.000000e+00 : f32
    %1566 = vector.broadcast %cst_255 : f32 to vector<16x128xf32>
    %1567 = arith.select %53, %1565, %1566 : vector<16x128xi1>, vector<16x128xf32>
    %c1_i32_256 = arith.constant 1 : i32
    %1568 = tpu.dynamic_rotate %1553 by %c1_i32_256 dim 1 : vector<16x128xf32>, i32 -> vector<16x128xf32>
    %cst_257 = arith.constant 0.000000e+00 : f32
    %1569 = vector.broadcast %cst_257 : f32 to vector<16x128xf32>
    %1570 = arith.select %56, %1568, %1569 : vector<16x128xi1>, vector<16x128xf32>
    %cst_258 = arith.constant 0.000000e+00 : f32
    %1571 = vector.broadcast %cst_258 : f32 to vector<16x128xf32>
    %1572 = arith.select %49, %1553, %1571 : vector<16x128xi1>, vector<16x128xf32>
    %c127_i32_259 = arith.constant 127 : i32
    %1573 = tpu.dynamic_rotate %1553 by %c127_i32_259 dim 1 : vector<16x128xf32>, i32 -> vector<16x128xf32>
    %cst_260 = arith.constant 0.000000e+00 : f32
    %1574 = vector.broadcast %cst_260 : f32 to vector<16x128xf32>
    %1575 = arith.select %57, %1573, %1574 : vector<16x128xi1>, vector<16x128xf32>
    %c6_261 = arith.constant 6 : index
    %1576 = memref.load %arg7[%c6_261] : memref<72xf32, #tpu.memory_space<smem>>
    %1577 = vector.broadcast %1576 : f32 to vector<16x128xf32>
    %1578 = arith.mulf %1577, %1556 : vector<16x128xf32>
    %1579 = arith.addf %1403, %1578 : vector<16x128xf32>
    %c14_262 = arith.constant 14 : index
    %1580 = memref.load %arg7[%c14_262] : memref<72xf32, #tpu.memory_space<smem>>
    %1581 = vector.broadcast %1580 : f32 to vector<16x128xf32>
    %1582 = arith.mulf %1581, %1558 : vector<16x128xf32>
    %1583 = arith.addf %1579, %1582 : vector<16x128xf32>
    %c22_263 = arith.constant 22 : index
    %1584 = memref.load %arg7[%c22_263] : memref<72xf32, #tpu.memory_space<smem>>
    %1585 = vector.broadcast %1584 : f32 to vector<16x128xf32>
    %1586 = arith.mulf %1585, %1561 : vector<16x128xf32>
    %1587 = arith.addf %1583, %1586 : vector<16x128xf32>
    %c30_264 = arith.constant 30 : index
    %1588 = memref.load %arg7[%c30_264] : memref<72xf32, #tpu.memory_space<smem>>
    %1589 = vector.broadcast %1588 : f32 to vector<16x128xf32>
    %1590 = arith.mulf %1589, %1564 : vector<16x128xf32>
    %1591 = arith.addf %1587, %1590 : vector<16x128xf32>
    %c38_265 = arith.constant 38 : index
    %1592 = memref.load %arg7[%c38_265] : memref<72xf32, #tpu.memory_space<smem>>
    %1593 = vector.broadcast %1592 : f32 to vector<16x128xf32>
    %1594 = arith.mulf %1593, %1551 : vector<16x128xf32>
    %1595 = arith.addf %1591, %1594 : vector<16x128xf32>
    %c46_266 = arith.constant 46 : index
    %1596 = memref.load %arg7[%c46_266] : memref<72xf32, #tpu.memory_space<smem>>
    %1597 = vector.broadcast %1596 : f32 to vector<16x128xf32>
    %1598 = arith.mulf %1597, %1567 : vector<16x128xf32>
    %1599 = arith.addf %1595, %1598 : vector<16x128xf32>
    %c54_267 = arith.constant 54 : index
    %1600 = memref.load %arg7[%c54_267] : memref<72xf32, #tpu.memory_space<smem>>
    %1601 = vector.broadcast %1600 : f32 to vector<16x128xf32>
    %1602 = arith.mulf %1601, %1570 : vector<16x128xf32>
    %1603 = arith.addf %1599, %1602 : vector<16x128xf32>
    %c62_268 = arith.constant 62 : index
    %1604 = memref.load %arg7[%c62_268] : memref<72xf32, #tpu.memory_space<smem>>
    %1605 = vector.broadcast %1604 : f32 to vector<16x128xf32>
    %1606 = arith.mulf %1605, %1572 : vector<16x128xf32>
    %1607 = arith.addf %1603, %1606 : vector<16x128xf32>
    %c70_269 = arith.constant 70 : index
    %1608 = memref.load %arg7[%c70_269] : memref<72xf32, #tpu.memory_space<smem>>
    %1609 = vector.broadcast %1608 : f32 to vector<16x128xf32>
    %1610 = arith.mulf %1609, %1575 : vector<16x128xf32>
    %1611 = arith.addf %1607, %1610 : vector<16x128xf32>
    %c7 = arith.constant 7 : index
    %1612 = memref.load %arg6[%c7] : memref<8xf32, #tpu.memory_space<smem>>
    %1613 = vector.broadcast %1612 : f32 to vector<16x128xf32>
    %c7_270 = arith.constant 7 : index
    %1614 = memref.load %arg5[%c7_270] : memref<288xf32, #tpu.memory_space<smem>>
    %1615 = vector.broadcast %1614 : f32 to vector<16x128xf32>
    %1616 = arith.mulf %1615, %62 : vector<16x128xf32>
    %1617 = arith.addf %1613, %1616 : vector<16x128xf32>
    %c15 = arith.constant 15 : index
    %1618 = memref.load %arg5[%c15] : memref<288xf32, #tpu.memory_space<smem>>
    %1619 = vector.broadcast %1618 : f32 to vector<16x128xf32>
    %1620 = arith.mulf %1619, %86 : vector<16x128xf32>
    %1621 = arith.addf %1617, %1620 : vector<16x128xf32>
    %c23 = arith.constant 23 : index
    %1622 = memref.load %arg5[%c23] : memref<288xf32, #tpu.memory_space<smem>>
    %1623 = vector.broadcast %1622 : f32 to vector<16x128xf32>
    %1624 = arith.mulf %1623, %110 : vector<16x128xf32>
    %1625 = arith.addf %1621, %1624 : vector<16x128xf32>
    %c31 = arith.constant 31 : index
    %1626 = memref.load %arg5[%c31] : memref<288xf32, #tpu.memory_space<smem>>
    %1627 = vector.broadcast %1626 : f32 to vector<16x128xf32>
    %1628 = arith.mulf %1627, %134 : vector<16x128xf32>
    %1629 = arith.addf %1625, %1628 : vector<16x128xf32>
    %c39 = arith.constant 39 : index
    %1630 = memref.load %arg5[%c39] : memref<288xf32, #tpu.memory_space<smem>>
    %1631 = vector.broadcast %1630 : f32 to vector<16x128xf32>
    %1632 = arith.mulf %1631, %64 : vector<16x128xf32>
    %1633 = arith.addf %1629, %1632 : vector<16x128xf32>
    %c47 = arith.constant 47 : index
    %1634 = memref.load %arg5[%c47] : memref<288xf32, #tpu.memory_space<smem>>
    %1635 = vector.broadcast %1634 : f32 to vector<16x128xf32>
    %1636 = arith.mulf %1635, %88 : vector<16x128xf32>
    %1637 = arith.addf %1633, %1636 : vector<16x128xf32>
    %c55 = arith.constant 55 : index
    %1638 = memref.load %arg5[%c55] : memref<288xf32, #tpu.memory_space<smem>>
    %1639 = vector.broadcast %1638 : f32 to vector<16x128xf32>
    %1640 = arith.mulf %1639, %112 : vector<16x128xf32>
    %1641 = arith.addf %1637, %1640 : vector<16x128xf32>
    %c63 = arith.constant 63 : index
    %1642 = memref.load %arg5[%c63] : memref<288xf32, #tpu.memory_space<smem>>
    %1643 = vector.broadcast %1642 : f32 to vector<16x128xf32>
    %1644 = arith.mulf %1643, %136 : vector<16x128xf32>
    %1645 = arith.addf %1641, %1644 : vector<16x128xf32>
    %c71 = arith.constant 71 : index
    %1646 = memref.load %arg5[%c71] : memref<288xf32, #tpu.memory_space<smem>>
    %1647 = vector.broadcast %1646 : f32 to vector<16x128xf32>
    %1648 = arith.mulf %1647, %67 : vector<16x128xf32>
    %1649 = arith.addf %1645, %1648 : vector<16x128xf32>
    %c79 = arith.constant 79 : index
    %1650 = memref.load %arg5[%c79] : memref<288xf32, #tpu.memory_space<smem>>
    %1651 = vector.broadcast %1650 : f32 to vector<16x128xf32>
    %1652 = arith.mulf %1651, %91 : vector<16x128xf32>
    %1653 = arith.addf %1649, %1652 : vector<16x128xf32>
    %c87 = arith.constant 87 : index
    %1654 = memref.load %arg5[%c87] : memref<288xf32, #tpu.memory_space<smem>>
    %1655 = vector.broadcast %1654 : f32 to vector<16x128xf32>
    %1656 = arith.mulf %1655, %115 : vector<16x128xf32>
    %1657 = arith.addf %1653, %1656 : vector<16x128xf32>
    %c95 = arith.constant 95 : index
    %1658 = memref.load %arg5[%c95] : memref<288xf32, #tpu.memory_space<smem>>
    %1659 = vector.broadcast %1658 : f32 to vector<16x128xf32>
    %1660 = arith.mulf %1659, %139 : vector<16x128xf32>
    %1661 = arith.addf %1657, %1660 : vector<16x128xf32>
    %c103 = arith.constant 103 : index
    %1662 = memref.load %arg5[%c103] : memref<288xf32, #tpu.memory_space<smem>>
    %1663 = vector.broadcast %1662 : f32 to vector<16x128xf32>
    %1664 = arith.mulf %1663, %70 : vector<16x128xf32>
    %1665 = arith.addf %1661, %1664 : vector<16x128xf32>
    %c111 = arith.constant 111 : index
    %1666 = memref.load %arg5[%c111] : memref<288xf32, #tpu.memory_space<smem>>
    %1667 = vector.broadcast %1666 : f32 to vector<16x128xf32>
    %1668 = arith.mulf %1667, %94 : vector<16x128xf32>
    %1669 = arith.addf %1665, %1668 : vector<16x128xf32>
    %c119 = arith.constant 119 : index
    %1670 = memref.load %arg5[%c119] : memref<288xf32, #tpu.memory_space<smem>>
    %1671 = vector.broadcast %1670 : f32 to vector<16x128xf32>
    %1672 = arith.mulf %1671, %118 : vector<16x128xf32>
    %1673 = arith.addf %1669, %1672 : vector<16x128xf32>
    %c127 = arith.constant 127 : index
    %1674 = memref.load %arg5[%c127] : memref<288xf32, #tpu.memory_space<smem>>
    %1675 = vector.broadcast %1674 : f32 to vector<16x128xf32>
    %1676 = arith.mulf %1675, %142 : vector<16x128xf32>
    %1677 = arith.addf %1673, %1676 : vector<16x128xf32>
    %c135 = arith.constant 135 : index
    %1678 = memref.load %arg5[%c135] : memref<288xf32, #tpu.memory_space<smem>>
    %1679 = vector.broadcast %1678 : f32 to vector<16x128xf32>
    %1680 = arith.mulf %1679, %19 : vector<16x128xf32>
    %1681 = arith.addf %1677, %1680 : vector<16x128xf32>
    %c143 = arith.constant 143 : index
    %1682 = memref.load %arg5[%c143] : memref<288xf32, #tpu.memory_space<smem>>
    %1683 = vector.broadcast %1682 : f32 to vector<16x128xf32>
    %1684 = arith.mulf %1683, %27 : vector<16x128xf32>
    %1685 = arith.addf %1681, %1684 : vector<16x128xf32>
    %c151 = arith.constant 151 : index
    %1686 = memref.load %arg5[%c151] : memref<288xf32, #tpu.memory_space<smem>>
    %1687 = vector.broadcast %1686 : f32 to vector<16x128xf32>
    %1688 = arith.mulf %1687, %35 : vector<16x128xf32>
    %1689 = arith.addf %1685, %1688 : vector<16x128xf32>
    %c159 = arith.constant 159 : index
    %1690 = memref.load %arg5[%c159] : memref<288xf32, #tpu.memory_space<smem>>
    %1691 = vector.broadcast %1690 : f32 to vector<16x128xf32>
    %1692 = arith.mulf %1691, %43 : vector<16x128xf32>
    %1693 = arith.addf %1689, %1692 : vector<16x128xf32>
    %c167 = arith.constant 167 : index
    %1694 = memref.load %arg5[%c167] : memref<288xf32, #tpu.memory_space<smem>>
    %1695 = vector.broadcast %1694 : f32 to vector<16x128xf32>
    %1696 = arith.mulf %1695, %73 : vector<16x128xf32>
    %1697 = arith.addf %1693, %1696 : vector<16x128xf32>
    %c175 = arith.constant 175 : index
    %1698 = memref.load %arg5[%c175] : memref<288xf32, #tpu.memory_space<smem>>
    %1699 = vector.broadcast %1698 : f32 to vector<16x128xf32>
    %1700 = arith.mulf %1699, %97 : vector<16x128xf32>
    %1701 = arith.addf %1697, %1700 : vector<16x128xf32>
    %c183 = arith.constant 183 : index
    %1702 = memref.load %arg5[%c183] : memref<288xf32, #tpu.memory_space<smem>>
    %1703 = vector.broadcast %1702 : f32 to vector<16x128xf32>
    %1704 = arith.mulf %1703, %121 : vector<16x128xf32>
    %1705 = arith.addf %1701, %1704 : vector<16x128xf32>
    %c191 = arith.constant 191 : index
    %1706 = memref.load %arg5[%c191] : memref<288xf32, #tpu.memory_space<smem>>
    %1707 = vector.broadcast %1706 : f32 to vector<16x128xf32>
    %1708 = arith.mulf %1707, %145 : vector<16x128xf32>
    %1709 = arith.addf %1705, %1708 : vector<16x128xf32>
    %c199 = arith.constant 199 : index
    %1710 = memref.load %arg5[%c199] : memref<288xf32, #tpu.memory_space<smem>>
    %1711 = vector.broadcast %1710 : f32 to vector<16x128xf32>
    %1712 = arith.mulf %1711, %76 : vector<16x128xf32>
    %1713 = arith.addf %1709, %1712 : vector<16x128xf32>
    %c207 = arith.constant 207 : index
    %1714 = memref.load %arg5[%c207] : memref<288xf32, #tpu.memory_space<smem>>
    %1715 = vector.broadcast %1714 : f32 to vector<16x128xf32>
    %1716 = arith.mulf %1715, %100 : vector<16x128xf32>
    %1717 = arith.addf %1713, %1716 : vector<16x128xf32>
    %c215 = arith.constant 215 : index
    %1718 = memref.load %arg5[%c215] : memref<288xf32, #tpu.memory_space<smem>>
    %1719 = vector.broadcast %1718 : f32 to vector<16x128xf32>
    %1720 = arith.mulf %1719, %124 : vector<16x128xf32>
    %1721 = arith.addf %1717, %1720 : vector<16x128xf32>
    %c223 = arith.constant 223 : index
    %1722 = memref.load %arg5[%c223] : memref<288xf32, #tpu.memory_space<smem>>
    %1723 = vector.broadcast %1722 : f32 to vector<16x128xf32>
    %1724 = arith.mulf %1723, %148 : vector<16x128xf32>
    %1725 = arith.addf %1721, %1724 : vector<16x128xf32>
    %c231 = arith.constant 231 : index
    %1726 = memref.load %arg5[%c231] : memref<288xf32, #tpu.memory_space<smem>>
    %1727 = vector.broadcast %1726 : f32 to vector<16x128xf32>
    %1728 = arith.mulf %1727, %78 : vector<16x128xf32>
    %1729 = arith.addf %1725, %1728 : vector<16x128xf32>
    %c239 = arith.constant 239 : index
    %1730 = memref.load %arg5[%c239] : memref<288xf32, #tpu.memory_space<smem>>
    %1731 = vector.broadcast %1730 : f32 to vector<16x128xf32>
    %1732 = arith.mulf %1731, %102 : vector<16x128xf32>
    %1733 = arith.addf %1729, %1732 : vector<16x128xf32>
    %c247 = arith.constant 247 : index
    %1734 = memref.load %arg5[%c247] : memref<288xf32, #tpu.memory_space<smem>>
    %1735 = vector.broadcast %1734 : f32 to vector<16x128xf32>
    %1736 = arith.mulf %1735, %126 : vector<16x128xf32>
    %1737 = arith.addf %1733, %1736 : vector<16x128xf32>
    %c255 = arith.constant 255 : index
    %1738 = memref.load %arg5[%c255] : memref<288xf32, #tpu.memory_space<smem>>
    %1739 = vector.broadcast %1738 : f32 to vector<16x128xf32>
    %1740 = arith.mulf %1739, %150 : vector<16x128xf32>
    %1741 = arith.addf %1737, %1740 : vector<16x128xf32>
    %c263 = arith.constant 263 : index
    %1742 = memref.load %arg5[%c263] : memref<288xf32, #tpu.memory_space<smem>>
    %1743 = vector.broadcast %1742 : f32 to vector<16x128xf32>
    %1744 = arith.mulf %1743, %81 : vector<16x128xf32>
    %1745 = arith.addf %1741, %1744 : vector<16x128xf32>
    %c271 = arith.constant 271 : index
    %1746 = memref.load %arg5[%c271] : memref<288xf32, #tpu.memory_space<smem>>
    %1747 = vector.broadcast %1746 : f32 to vector<16x128xf32>
    %1748 = arith.mulf %1747, %105 : vector<16x128xf32>
    %1749 = arith.addf %1745, %1748 : vector<16x128xf32>
    %c279 = arith.constant 279 : index
    %1750 = memref.load %arg5[%c279] : memref<288xf32, #tpu.memory_space<smem>>
    %1751 = vector.broadcast %1750 : f32 to vector<16x128xf32>
    %1752 = arith.mulf %1751, %129 : vector<16x128xf32>
    %1753 = arith.addf %1749, %1752 : vector<16x128xf32>
    %c287 = arith.constant 287 : index
    %1754 = memref.load %arg5[%c287] : memref<288xf32, #tpu.memory_space<smem>>
    %1755 = vector.broadcast %1754 : f32 to vector<16x128xf32>
    %1756 = arith.mulf %1755, %153 : vector<16x128xf32>
    %1757 = arith.addf %1753, %1756 : vector<16x128xf32>
    %cst_271 = arith.constant 0.000000e+00 : f32
    %1758 = vector.broadcast %cst_271 : f32 to vector<16x128xf32>
    %1759 = arith.maximumf %1757, %1758 : vector<16x128xf32>
    %c1_i32_272 = arith.constant 1 : i32
    %1760 = tpu.dynamic_rotate %1759 by %c1_i32_272 dim 0 : vector<16x128xf32>, i32 -> vector<16x128xf32>
    %c15_i32_273 = arith.constant 15 : i32
    %1761 = tpu.dynamic_rotate %1759 by %c15_i32_273 dim 0 : vector<16x128xf32>, i32 -> vector<16x128xf32>
    %c1_i32_274 = arith.constant 1 : i32
    %1762 = tpu.dynamic_rotate %1760 by %c1_i32_274 dim 1 : vector<16x128xf32>, i32 -> vector<16x128xf32>
    %cst_275 = arith.constant 0.000000e+00 : f32
    %1763 = vector.broadcast %cst_275 : f32 to vector<16x128xf32>
    %1764 = arith.select %54, %1762, %1763 : vector<16x128xi1>, vector<16x128xf32>
    %cst_276 = arith.constant 0.000000e+00 : f32
    %1765 = vector.broadcast %cst_276 : f32 to vector<16x128xf32>
    %1766 = arith.select %47, %1760, %1765 : vector<16x128xi1>, vector<16x128xf32>
    %c127_i32_277 = arith.constant 127 : i32
    %1767 = tpu.dynamic_rotate %1760 by %c127_i32_277 dim 1 : vector<16x128xf32>, i32 -> vector<16x128xf32>
    %cst_278 = arith.constant 0.000000e+00 : f32
    %1768 = vector.broadcast %cst_278 : f32 to vector<16x128xf32>
    %1769 = arith.select %55, %1767, %1768 : vector<16x128xi1>, vector<16x128xf32>
    %c1_i32_279 = arith.constant 1 : i32
    %1770 = tpu.dynamic_rotate %1759 by %c1_i32_279 dim 1 : vector<16x128xf32>, i32 -> vector<16x128xf32>
    %cst_280 = arith.constant 0.000000e+00 : f32
    %1771 = vector.broadcast %cst_280 : f32 to vector<16x128xf32>
    %1772 = arith.select %51, %1770, %1771 : vector<16x128xi1>, vector<16x128xf32>
    %c127_i32_281 = arith.constant 127 : i32
    %1773 = tpu.dynamic_rotate %1759 by %c127_i32_281 dim 1 : vector<16x128xf32>, i32 -> vector<16x128xf32>
    %cst_282 = arith.constant 0.000000e+00 : f32
    %1774 = vector.broadcast %cst_282 : f32 to vector<16x128xf32>
    %1775 = arith.select %53, %1773, %1774 : vector<16x128xi1>, vector<16x128xf32>
    %c1_i32_283 = arith.constant 1 : i32
    %1776 = tpu.dynamic_rotate %1761 by %c1_i32_283 dim 1 : vector<16x128xf32>, i32 -> vector<16x128xf32>
    %cst_284 = arith.constant 0.000000e+00 : f32
    %1777 = vector.broadcast %cst_284 : f32 to vector<16x128xf32>
    %1778 = arith.select %56, %1776, %1777 : vector<16x128xi1>, vector<16x128xf32>
    %cst_285 = arith.constant 0.000000e+00 : f32
    %1779 = vector.broadcast %cst_285 : f32 to vector<16x128xf32>
    %1780 = arith.select %49, %1761, %1779 : vector<16x128xi1>, vector<16x128xf32>
    %c127_i32_286 = arith.constant 127 : i32
    %1781 = tpu.dynamic_rotate %1761 by %c127_i32_286 dim 1 : vector<16x128xf32>, i32 -> vector<16x128xf32>
    %cst_287 = arith.constant 0.000000e+00 : f32
    %1782 = vector.broadcast %cst_287 : f32 to vector<16x128xf32>
    %1783 = arith.select %57, %1781, %1782 : vector<16x128xi1>, vector<16x128xf32>
    %c7_288 = arith.constant 7 : index
    %1784 = memref.load %arg7[%c7_288] : memref<72xf32, #tpu.memory_space<smem>>
    %1785 = vector.broadcast %1784 : f32 to vector<16x128xf32>
    %1786 = arith.mulf %1785, %1764 : vector<16x128xf32>
    %1787 = arith.addf %1611, %1786 : vector<16x128xf32>
    %c15_289 = arith.constant 15 : index
    %1788 = memref.load %arg7[%c15_289] : memref<72xf32, #tpu.memory_space<smem>>
    %1789 = vector.broadcast %1788 : f32 to vector<16x128xf32>
    %1790 = arith.mulf %1789, %1766 : vector<16x128xf32>
    %1791 = arith.addf %1787, %1790 : vector<16x128xf32>
    %c23_290 = arith.constant 23 : index
    %1792 = memref.load %arg7[%c23_290] : memref<72xf32, #tpu.memory_space<smem>>
    %1793 = vector.broadcast %1792 : f32 to vector<16x128xf32>
    %1794 = arith.mulf %1793, %1769 : vector<16x128xf32>
    %1795 = arith.addf %1791, %1794 : vector<16x128xf32>
    %c31_291 = arith.constant 31 : index
    %1796 = memref.load %arg7[%c31_291] : memref<72xf32, #tpu.memory_space<smem>>
    %1797 = vector.broadcast %1796 : f32 to vector<16x128xf32>
    %1798 = arith.mulf %1797, %1772 : vector<16x128xf32>
    %1799 = arith.addf %1795, %1798 : vector<16x128xf32>
    %c39_292 = arith.constant 39 : index
    %1800 = memref.load %arg7[%c39_292] : memref<72xf32, #tpu.memory_space<smem>>
    %1801 = vector.broadcast %1800 : f32 to vector<16x128xf32>
    %1802 = arith.mulf %1801, %1759 : vector<16x128xf32>
    %1803 = arith.addf %1799, %1802 : vector<16x128xf32>
    %c47_293 = arith.constant 47 : index
    %1804 = memref.load %arg7[%c47_293] : memref<72xf32, #tpu.memory_space<smem>>
    %1805 = vector.broadcast %1804 : f32 to vector<16x128xf32>
    %1806 = arith.mulf %1805, %1775 : vector<16x128xf32>
    %1807 = arith.addf %1803, %1806 : vector<16x128xf32>
    %c55_294 = arith.constant 55 : index
    %1808 = memref.load %arg7[%c55_294] : memref<72xf32, #tpu.memory_space<smem>>
    %1809 = vector.broadcast %1808 : f32 to vector<16x128xf32>
    %1810 = arith.mulf %1809, %1778 : vector<16x128xf32>
    %1811 = arith.addf %1807, %1810 : vector<16x128xf32>
    %c63_295 = arith.constant 63 : index
    %1812 = memref.load %arg7[%c63_295] : memref<72xf32, #tpu.memory_space<smem>>
    %1813 = vector.broadcast %1812 : f32 to vector<16x128xf32>
    %1814 = arith.mulf %1813, %1780 : vector<16x128xf32>
    %1815 = arith.addf %1811, %1814 : vector<16x128xf32>
    %c71_296 = arith.constant 71 : index
    %1816 = memref.load %arg7[%c71_296] : memref<72xf32, #tpu.memory_space<smem>>
    %1817 = vector.broadcast %1816 : f32 to vector<16x128xf32>
    %1818 = arith.mulf %1817, %1783 : vector<16x128xf32>
    %1819 = arith.addf %1815, %1818 : vector<16x128xf32>
    %c0_297 = arith.constant 0 : index
    %c0_298 = arith.constant 0 : index
    %c0_299 = arith.constant 0 : index
    %1820 = vector.load %arg9[%c0_297, %c0_298, %c0_299] : memref<1x16x128xf32, #tpu.memory_space<vmem>>, vector<1x16x128xf32>
    %1821 = vector.shape_cast %1820 : vector<1x16x128xf32> to vector<16x128xf32>
    %1822 = vector.shape_cast %1819 : vector<16x128xf32> to vector<1x16x128xf32>
    tpu.vector_store %arg9[%c0_297, %c0_298, %c0_299], %1822 {strides = array<i32>} : memref<1x16x128xf32, #tpu.memory_space<vmem>>, vector<1x16x128xf32>,
    return
  }
  func.func @transform_0(%arg0: i32) -> (i32, i32, i32) {
    %c0_i32 = arith.constant 0 : i32
    %c0_i32_0 = arith.constant 0 : i32
    %c0_i32_1 = arith.constant 0 : i32
    return %arg0, %c0_i32, %c0_i32_0 : i32, i32, i32
  }
  func.func @transform_1(%arg0: i32) -> (i32, i32, i32) {
    %c0_i32 = arith.constant 0 : i32
    %c0_i32_0 = arith.constant 0 : i32
    %c0_i32_1 = arith.constant 0 : i32
    return %arg0, %c0_i32, %c0_i32_0 : i32, i32, i32
  }
  func.func @transform_2(%arg0: i32) -> i32 {
    %c0_i32 = arith.constant 0 : i32
    %c0_i32_0 = arith.constant 0 : i32
    return %c0_i32 : i32
  }
  func.func @transform_3(%arg0: i32) -> i32 {
    %c0_i32 = arith.constant 0 : i32
    %c0_i32_0 = arith.constant 0 : i32
    return %c0_i32 : i32
  }
  func.func @transform_4(%arg0: i32) -> i32 {
    %c0_i32 = arith.constant 0 : i32
    %c0_i32_0 = arith.constant 0 : i32
    return %c0_i32 : i32
  }
  func.func @transform_5(%arg0: i32) -> i32 {
    %c0_i32 = arith.constant 0 : i32
    %c0_i32_0 = arith.constant 0 : i32
    return %c0_i32 : i32
  }
  func.func @transform_6(%arg0: i32) -> i32 {
    %c0_i32 = arith.constant 0 : i32
    %c0_i32_0 = arith.constant 0 : i32
    return %c0_i32 : i32
  }
  func.func @transform_7(%arg0: i32) -> i32 {
    %c0_i32 = arith.constant 0 : i32
    %c0_i32_0 = arith.constant 0 : i32
    return %c0_i32 : i32
  }
  func.func @transform_8(%arg0: i32) -> (i32, i32, i32) {
    %c0_i32 = arith.constant 0 : i32
    %c0_i32_0 = arith.constant 0 : i32
    %c0_i32_1 = arith.constant 0 : i32
    return %arg0, %c0_i32, %c0_i32_0 : i32, i32, i32
  }
}

</mosaic_0001>

<llo_original>
// kernel: tpu_custom_call.1
$region0: #{tpu_custom_call.1}
  #allocation0 [shape = 'u32[]', space=smem, size = 0x4, offset = 0x4, fixed_abs, tag = 'smem constant byte address 0x4 - core index']
  #allocation1 [shape = 'u32[144,128]{1,0:T(1,128)}', space=vmem, size = 0x12000, scoped, tag = 'internal scratch']
  #allocation2 [shape = 'f32[1]{0:T(128)S(6)}', space=smem, size = 0x200, scoped, tag = 'scoped memory for tpu_custom_call.1']
  %s0 = inlined_call_operand.hbm [shape: f32[2,16,128], index: 0, kind: input, shape index: {}]
  %s1 = inlined_call_operand.hbm [shape: f32[2,16,128], index: 1, kind: input, shape index: {}]
  %s2 = inlined_call_operand.vmem [shape: f32[4], index: 2, kind: input, shape index: {}]
  %s3 = inlined_call_operand.vmem [shape: f32[4], index: 3, kind: input, shape index: {}]
  %s4 = inlined_call_operand.vmem [shape: f32[288], index: 4, kind: input, shape index: {}]
  %s5 = inlined_call_operand.vmem [shape: f32[8], index: 5, kind: input, shape index: {}]
  %s6 = inlined_call_operand.vmem [shape: f32[72], index: 6, kind: input, shape index: {}]
  %s7 = inlined_call_operand.<no memory space> [shape: f32[1], index: 7, kind: input, shape index: {}]
  %s8 = inlined_call_operand.hbm [shape: f32[2,16,128], index: 8, kind: output, shape index: {}]
  %s9 = sld [smem:[#allocation0]]
  $region93: #{tpu_custom_call.1} parent=0
    _
  %s11 = ssub.s32 1, %s9
  %s12 = scalar_select 0, %s11, %s9
  %13 = sst [smem:[#allocation2]] %s7
  $region1: #{tpu_custom_call.1} parent=0
    #allocation3 [shape = 'u8[16384]{0}', space=vmem, size = 0x4000, scoped, tag = 'input window, operand 0']
    #allocation4 [shape = 's32[2]{0}', space=sflag, size = 0x8, scoped, tag = 'scoped memory for tpu_custom_call.1']
    #allocation5 [shape = 's32[2]{0}', space=sflag, size = 0x8, scoped, tag = 'scoped memory for tpu_custom_call.1']
    #allocation6 [shape = 's32[2]{0}', space=sflag, size = 0x8, scoped, tag = 'scoped memory for tpu_custom_call.1']
    #allocation7 [shape = 'u8[16384]{0}', space=vmem, size = 0x4000, scoped, tag = 'input window, operand 1']
    #allocation8 [shape = 's32[2]{0}', space=sflag, size = 0x8, scoped, tag = 'scoped memory for tpu_custom_call.1']
    #allocation9 [shape = 'u8[512]{0}', space=smem, size = 0x200, scoped, tag = 'input window, operand 2, single buffered']
    #allocation10 [shape = 'u8[512]{0}', space=smem, size = 0x200, scoped, tag = 'input window, operand 3, single buffered']
    #allocation11 [shape = 's32[1]{0}', space=sflag, size = 0x4, scoped, tag = 'scoped memory for tpu_custom_call.1']
    #allocation12 [shape = 'u8[1536]{0}', space=smem, size = 0x600, scoped, tag = 'input window, operand 4, single buffered']
    #allocation13 [shape = 'u8[512]{0}', space=smem, size = 0x200, scoped, tag = 'input window, operand 5, single buffered']
    #allocation14 [shape = 's32[1]{0}', space=sflag, size = 0x4, scoped, tag = 'scoped memory for tpu_custom_call.1']
    #allocation15 [shape = 'u8[512]{0}', space=smem, size = 0x200, scoped, tag = 'input window, operand 6, single buffered']
    #allocation16 [shape = 'u8[16384]{0}', space=vmem, size = 0x4000, scoped, tag = 'output window, operand 0']
    %14 = vsyncpa [#allocation4], 0
    %s15 = scalar_lea.sflag [#allocation4], 1
    %16 = vsyncpa %s15, 0
    %17 = vsyncpa [#allocation8], 0
    %s18 = scalar_lea.sflag [#allocation8], 1
    %19 = vsyncpa %s18, 0
    %20 = vsyncpa [#allocation6], 0
    %21 = vsyncpa [#allocation11], 0
    %22 = vsyncpa [#allocation14], 0
    %23 = vsyncpa [#allocation5], 0
    %s24 = scalar_lea.sflag [#allocation5], 1
    %25 = vsyncpa %s24, 0
    loop: start=0, step=1, limit=4
    $region2: #{tpu_custom_call.1} parent=1 // loop_pre_header
      _
    $region3: #{tpu_custom_call.1} parent=1 // loop_header
      %s27 = sphi 0, %s31
      %p28 = scmp.ge.s32.totalorder %s27, 4
      %s37 = sphi 0, %s39
      %s40 = sphi 0, %s37
      %s41 = sphi 0, %s40
      %s57 = sphi 0, %s41
      %s63 = sphi 0, %s65
      %s66 = sphi 0, %s63
      %s67 = sphi 0, %s66
      %s83 = sphi 0, %s67
      %s87 = sphi 0, %s87
      %s89 = sphi 0, %s87
      %s90 = sphi 0, %s89
      %s104 = sphi 0, %s90
      %s108 = sphi 0, %s108
      %s110 = sphi 0, %s108
      %s111 = sphi 0, %s110
      %s125 = sphi 0, %s111
      %s129 = sphi 0, %s129
      %s131 = sphi 0, %s129
      %s132 = sphi 0, %s131
      %s146 = sphi 0, %s132
      %s150 = sphi 0, %s150
      %s152 = sphi 0, %s150
      %s153 = sphi 0, %s152
      %s167 = sphi 0, %s153
      %s171 = sphi 0, %s171
      %s173 = sphi 0, %s171
      %s174 = sphi 0, %s173
      %s188 = sphi 0, %s174
      %s192 = sphi 0, %s192
      %s194 = sphi 0, %s192
      %s195 = sphi 0, %s194
      %s209 = sphi 0, %s195
      %s215 = sphi 0, %s217
      %s218 = sphi 0, %s215
      %s219 = sphi 0, %s218
      %s235 = sphi 0, %s219
    $region4: #{tpu_custom_call.1} parent=1 // loop_header_branch
      %30 = sbr.rel (%p28) target = $region8
    $region5: #{tpu_custom_call.1} parent=1 // loop_body
      %s32 = ssub.s32 %s27, 1
      %s33 = ssub.s32 %s27, 2
      %s34 = sadd.s32 %s27, 1
      %s35 = ssub.s32 %s27, %s34
      %p36 = scmp.eq.s32.totalorder %s35, 0
      %s38 = sadd.s32 %s37, 1
      %s39 = scalar_select %p36, %s37, %s38
      %p42 = pneg %p36
      %p43 = scmp.eq.s32.totalorder %s27, 1
      %p44 = por %p42, %p43
      %p45 = scmp.ne.s32.totalorder %s37, %s40
      %p46 = scmp.eq.s32.totalorder %s27, 0
      %p47 = por %p45, %p46
      %p48 = scmp.ne.s32.totalorder %s37, %s40
      %p49 = scmp.eq.s32.totalorder %s32, 1
      %p50 = por %p48, %p49
      %p51 = scmp.ne.s32.totalorder %s40, %s41
      %p52 = scmp.eq.s32.totalorder %s32, 0
      %p53 = por %p51, %p52
      %p54 = scmp.ne.s32.totalorder %s40, %s41
      %p55 = scmp.eq.s32.totalorder %s33, 1
      %p56 = por %p54, %p55
      %p58 = scmp.ne.s32.totalorder %s41, %s57
      %p59 = scmp.eq.s32.totalorder %s33, 0
      %p60 = por %p58, %p59
      %s61 = ssub.s32 %s27, %s34
      %p62 = scmp.eq.s32.totalorder %s61, 0
      %s64 = sadd.s32 %s63, 1
      %s65 = scalar_select %p62, %s63, %s64
      %p68 = pneg %p62
      %p69 = scmp.eq.s32.totalorder %s27, 1
      %p70 = por %p68, %p69
      %p71 = scmp.ne.s32.totalorder %s63, %s66
      %p72 = scmp.eq.s32.totalorder %s27, 0
      %p73 = por %p71, %p72
      %p74 = scmp.ne.s32.totalorder %s63, %s66
      %p75 = scmp.eq.s32.totalorder %s32, 1
      %p76 = por %p74, %p75
      %p77 = scmp.ne.s32.totalorder %s66, %s67
      %p78 = scmp.eq.s32.totalorder %s32, 0
      %p79 = por %p77, %p78
      %p80 = scmp.ne.s32.totalorder %s66, %s67
      %p81 = scmp.eq.s32.totalorder %s33, 1
      %p82 = por %p80, %p81
      %p84 = scmp.ne.s32.totalorder %s67, %s83
      %p85 = scmp.eq.s32.totalorder %s33, 0
      %p86 = por %p84, %p85
      %s88 = sadd.s32 %s87, 1
      %p91 = scmp.eq.s32.totalorder %s27, 1
      %p92 = scmp.ne.s32.totalorder %s87, %s89
      %p93 = scmp.eq.s32.totalorder %s27, 0
      %p94 = por %p92, %p93
      %p95 = scmp.ne.s32.totalorder %s87, %s89
      %p96 = scmp.eq.s32.totalorder %s32, 1
      %p97 = por %p95, %p96
      %p98 = scmp.ne.s32.totalorder %s89, %s90
      %p99 = scmp.eq.s32.totalorder %s32, 0
      %p100 = por %p98, %p99
      %p101 = scmp.ne.s32.totalorder %s89, %s90
      %p102 = scmp.eq.s32.totalorder %s33, 1
      %p103 = por %p101, %p102
      %p105 = scmp.ne.s32.totalorder %s90, %s104
      %p106 = scmp.eq.s32.totalorder %s33, 0
      %p107 = por %p105, %p106
      %s109 = sadd.s32 %s108, 1
      %p112 = scmp.eq.s32.totalorder %s27, 1
      %p113 = scmp.ne.s32.totalorder %s108, %s110
      %p114 = scmp.eq.s32.totalorder %s27, 0
      %p115 = por %p113, %p114
      %p116 = scmp.ne.s32.totalorder %s108, %s110
      %p117 = scmp.eq.s32.totalorder %s32, 1
      %p118 = por %p116, %p117
      %p119 = scmp.ne.s32.totalorder %s110, %s111
      %p120 = scmp.eq.s32.totalorder %s32, 0
      %p121 = por %p119, %p120
      %p122 = scmp.ne.s32.totalorder %s110, %s111
      %p123 = scmp.eq.s32.totalorder %s33, 1
      %p124 = por %p122, %p123
      %p126 = scmp.ne.s32.totalorder %s111, %s125
      %p127 = scmp.eq.s32.totalorder %s33, 0
      %p128 = por %p126, %p127
      %s130 = sadd.s32 %s129, 1
      %p133 = scmp.eq.s32.totalorder %s27, 1
      %p134 = scmp.ne.s32.totalorder %s129, %s131
      %p135 = scmp.eq.s32.totalorder %s27, 0
      %p136 = por %p134, %p135
      %p137 = scmp.ne.s32.totalorder %s129, %s131
      %p138 = scmp.eq.s32.totalorder %s32, 1
      %p139 = por %p137, %p138
      %p140 = scmp.ne.s32.totalorder %s131, %s132
      %p141 = scmp.eq.s32.totalorder %s32, 0
      %p142 = por %p140, %p141
      %p143 = scmp.ne.s32.totalorder %s131, %s132
      %p144 = scmp.eq.s32.totalorder %s33, 1
      %p145 = por %p143, %p144
      %p147 = scmp.ne.s32.totalorder %s132, %s146
      %p148 = scmp.eq.s32.totalorder %s33, 0
      %p149 = por %p147, %p148
      %s151 = sadd.s32 %s150, 1
      %p154 = scmp.eq.s32.totalorder %s27, 1
      %p155 = scmp.ne.s32.totalorder %s150, %s152
      %p156 = scmp.eq.s32.totalorder %s27, 0
      %p157 = por %p155, %p156
      %p158 = scmp.ne.s32.totalorder %s150, %s152
      %p159 = scmp.eq.s32.totalorder %s32, 1
      %p160 = por %p158, %p159
      %p161 = scmp.ne.s32.totalorder %s152, %s153
      %p162 = scmp.eq.s32.totalorder %s32, 0
      %p163 = por %p161, %p162
      %p164 = scmp.ne.s32.totalorder %s152, %s153
      %p165 = scmp.eq.s32.totalorder %s33, 1
      %p166 = por %p164, %p165
      %p168 = scmp.ne.s32.totalorder %s153, %s167
      %p169 = scmp.eq.s32.totalorder %s33, 0
      %p170 = por %p168, %p169
      %s172 = sadd.s32 %s171, 1
      %p175 = scmp.eq.s32.totalorder %s27, 1
      %p176 = scmp.ne.s32.totalorder %s171, %s173
      %p177 = scmp.eq.s32.totalorder %s27, 0
      %p178 = por %p176, %p177
      %p179 = scmp.ne.s32.totalorder %s171, %s173
      %p180 = scmp.eq.s32.totalorder %s32, 1
      %p181 = por %p179, %p180
      %p182 = scmp.ne.s32.totalorder %s173, %s174
      %p183 = scmp.eq.s32.totalorder %s32, 0
      %p184 = por %p182, %p183
      %p185 = scmp.ne.s32.totalorder %s173, %s174
      %p186 = scmp.eq.s32.totalorder %s33, 1
      %p187 = por %p185, %p186
      %p189 = scmp.ne.s32.totalorder %s174, %s188
      %p190 = scmp.eq.s32.totalorder %s33, 0
      %p191 = por %p189, %p190
      %s193 = sadd.s32 %s192, 1
      %p196 = scmp.eq.s32.totalorder %s27, 1
      %p197 = scmp.ne.s32.totalorder %s192, %s194
      %p198 = scmp.eq.s32.totalorder %s27, 0
      %p199 = por %p197, %p198
      %p200 = scmp.ne.s32.totalorder %s192, %s194
      %p201 = scmp.eq.s32.totalorder %s32, 1
      %p202 = por %p200, %p201
      %p203 = scmp.ne.s32.totalorder %s194, %s195
      %p204 = scmp.eq.s32.totalorder %s32, 0
      %p205 = por %p203, %p204
      %p206 = scmp.ne.s32.totalorder %s194, %s195
      %p207 = scmp.eq.s32.totalorder %s33, 1
      %p208 = por %p206, %p207
      %p210 = scmp.ne.s32.totalorder %s195, %s209
      %p211 = scmp.eq.s32.totalorder %s33, 0
      %p212 = por %p210, %p211
      %s213 = ssub.s32 %s27, %s34
      %p214 = scmp.eq.s32.totalorder %s213, 0
      %s216 = sadd.s32 %s215, 1
      %s217 = scalar_select %p214, %s215, %s216
      %p220 = pneg %p214
      %p221 = scmp.eq.s32.totalorder %s27, 1
      %p222 = por %p220, %p221
      %p223 = scmp.ne.s32.totalorder %s215, %s218
      %p224 = scmp.eq.s32.totalorder %s27, 0
      %p225 = por %p223, %p224
      %p226 = scmp.ne.s32.totalorder %s215, %s218
      %p227 = scmp.eq.s32.totalorder %s32, 1
      %p228 = por %p226, %p227
      %p229 = scmp.ne.s32.totalorder %s218, %s219
      %p230 = scmp.eq.s32.totalorder %s32, 0
      %p231 = por %p229, %p230
      %p232 = scmp.ne.s32.totalorder %s218, %s219
      %p233 = scmp.eq.s32.totalorder %s33, 1
      %p234 = por %p232, %p233
      %p236 = scmp.ne.s32.totalorder %s219, %s235
      %p237 = scmp.eq.s32.totalorder %s33, 0
      %p238 = por %p236, %p237
      %p239 = scmp.le.s32.totalorder 1, %s27
      %p240 = scmp.lt.s32.totalorder %s27, 3
      %p241 = pnand %p239, %p240
      %p242 = pneg %p241
      // Predicated region
      $region9: #{tpu_custom_call.1} parent=5 // pred_check
        _
      $region10: #{tpu_custom_call.1} parent=5 // pred_check_branch
        %244 = sbr.rel (%p241) target = $region12
      $region11: #{tpu_custom_call.1} parent=5 // pred_region
        %s245 = ssub.s32 %s27, 1
        // Predicated region
        $region13: #{tpu_custom_call.1} parent=11 // pred_check
          %p246 = pneg %p100
        $region14: #{tpu_custom_call.1} parent=11 // pred_check_branch
          %248 = sbr.rel (%p246) target = $region16
        $region15: #{tpu_custom_call.1} parent=11 // pred_region
          %s250 = ssub.s32 16, 16
          %251 = vsyncadd [#allocation6], %s250
          %s253 = sshll.u32 %s2, 4
          %s254 = int_to_ptr.vmem [resolvable:$true] %s253
          %256 = dma.vmem_to_smem %s254, 16, [#allocation9], [#allocation6]
        $region16: #{tpu_custom_call.1} parent=11 // pred_fallthru
          _
        // Predicated region
        $region17: #{tpu_custom_call.1} parent=11 // pred_check
          %p257 = pneg %p121
        $region18: #{tpu_custom_call.1} parent=11 // pred_check_branch
          %259 = sbr.rel (%p257) target = $region20
        $region19: #{tpu_custom_call.1} parent=11 // pred_region
          %s261 = ssub.s32 16, 16
          %262 = vsyncadd [#allocation11], %s261
          %s264 = sshll.u32 %s3, 4
          %s265 = int_to_ptr.vmem [resolvable:$true] %s264
          %267 = dma.vmem_to_smem %s265, 16, [#allocation10], [#allocation11]
        $region20: #{tpu_custom_call.1} parent=11 // pred_fallthru
          _
        // Predicated region
        $region21: #{tpu_custom_call.1} parent=11 // pred_check
          %p268 = pneg %p142
        $region22: #{tpu_custom_call.1} parent=11 // pred_check_branch
          %270 = sbr.rel (%p268) target = $region24
        $region23: #{tpu_custom_call.1} parent=11 // pred_region
          %s272 = ssub.s32 48, 48
          %273 = vsyncadd [#allocation11], %s272
          %s275 = sshll.u32 %s4, 4
          %s276 = int_to_ptr.vmem [resolvable:$true] %s275
          %278 = dma.vmem_to_smem %s276, 48, [#allocation12], [#allocation11]
        $region24: #{tpu_custom_call.1} parent=11 // pred_fallthru
          _
        // Predicated region
        $region25: #{tpu_custom_call.1} parent=11 // pred_check
          %p279 = pneg %p163
        $region26: #{tpu_custom_call.1} parent=11 // pred_check_branch
          %281 = sbr.rel (%p279) target = $region28
        $region27: #{tpu_custom_call.1} parent=11 // pred_region
          %s283 = ssub.s32 16, 16
          %284 = vsyncadd [#allocation14], %s283
          %s286 = sshll.u32 %s5, 4
          %s287 = int_to_ptr.vmem [resolvable:$true] %s286
          %289 = dma.vmem_to_smem %s287, 16, [#allocation13], [#allocation14]
        $region28: #{tpu_custom_call.1} parent=11 // pred_fallthru
          _
        // Predicated region
        $region29: #{tpu_custom_call.1} parent=11 // pred_check
          %p290 = pneg %p184
        $region30: #{tpu_custom_call.1} parent=11 // pred_check_branch
          %292 = sbr.rel (%p290) target = $region32
        $region31: #{tpu_custom_call.1} parent=11 // pred_region
          %s294 = ssub.s32 16, 16
          %295 = vsyncadd [#allocation14], %s294
          %s297 = sshll.u32 %s6, 4
          %s298 = int_to_ptr.vmem [resolvable:$true] %s297
          %300 = dma.vmem_to_smem %s298, 16, [#allocation15], [#allocation14]
        $region32: #{tpu_custom_call.1} parent=11 // pred_fallthru
          _
        // Predicated region
        $region33: #{tpu_custom_call.1} parent=11 // pred_check
          %p301 = pneg %p205
        $region34: #{tpu_custom_call.1} parent=11 // pred_check_branch
          %303 = sbr.rel (%p301) target = $region36
        $region35: #{tpu_custom_call.1} parent=11 // pred_region
          _
        $region36: #{tpu_custom_call.1} parent=11 // pred_fallthru
          _
      $region12: #{tpu_custom_call.1} parent=5 // pred_fallthru
        _
      %p304 = scmp.lt.s32.totalorder %s27, 2
      // Predicated region
      $region37: #{tpu_custom_call.1} parent=5 // pred_check
        %p305 = pneg %p304
      $region38: #{tpu_custom_call.1} parent=5 // pred_check_branch
        %307 = sbr.rel (%p305) target = $region40
      $region39: #{tpu_custom_call.1} parent=5 // pred_region
        // Predicated region
        $region41: #{tpu_custom_call.1} parent=39 // pred_check
          %p308 = pneg %p47
        $region42: #{tpu_custom_call.1} parent=39 // pred_check_branch
          %310 = sbr.rel (%p308) target = $region44
        $region43: #{tpu_custom_call.1} parent=39 // pred_region
          %s311 = sand.u32 %s37, 1
          %s312 = scalar_lea.sflag [#allocation4], %s311
          %s313 = sand.u32 %s37, 1
          %s314 = smul.addr %s313, 16
          %s315 = scalar_lea.vmem [#allocation3], %s314
          %s317 = ssub.s32 256, 256
          %318 = vsyncadd %s312, %s317
          %s319 = smul.addr %s27, 2
          %s320 = smul.addr %s319, 128
          %s321 = scalar_lea.hbm %s0, %s320
          %s322 = sshll.u32 %s315, 4
          %s323 = int_to_ptr.vmem [resolvable:$true] %s322
          %328 = dma.hbm_to_vmem [thread:$0]  %s321, 256, %s323, %s312, 128, 128, 8
        $region44: #{tpu_custom_call.1} parent=39 // pred_fallthru
          _
        // Predicated region
        $region45: #{tpu_custom_call.1} parent=39 // pred_check
          %p329 = pneg %p73
        $region46: #{tpu_custom_call.1} parent=39 // pred_check_branch
          %331 = sbr.rel (%p329) target = $region48
        $region47: #{tpu_custom_call.1} parent=39 // pred_region
          %s332 = sand.u32 %s63, 1
          %s333 = scalar_lea.sflag [#allocation8], %s332
          %s334 = sand.u32 %s63, 1
          %s335 = smul.addr %s334, 16
          %s336 = scalar_lea.vmem [#allocation7], %s335
          %s338 = ssub.s32 256, 256
          %339 = vsyncadd %s333, %s338
          %s340 = smul.addr %s27, 2
          %s341 = smul.addr %s340, 128
          %s342 = scalar_lea.hbm %s1, %s341
          %s343 = sshll.u32 %s336, 4
          %s344 = int_to_ptr.vmem [resolvable:$true] %s343
          %349 = dma.hbm_to_vmem [thread:$0]  %s342, 256, %s344, %s333, 128, 128, 8
        $region48: #{tpu_custom_call.1} parent=39 // pred_fallthru
          _
      $region40: #{tpu_custom_call.1} parent=5 // pred_fallthru
        _
      %p350 = scmp.le.s32.totalorder 1, %s27
      %p351 = scmp.lt.s32.totalorder %s27, 3
      %p352 = pnand %p350, %p351
      %p353 = pneg %p352
      // Predicated region
      $region49: #{tpu_custom_call.1} parent=5 // pred_check
        _
      $region50: #{tpu_custom_call.1} parent=5 // pred_check_branch
        %355 = sbr.rel (%p352) target = $region52
      $region51: #{tpu_custom_call.1} parent=5 // pred_region
        %s356 = ssub.s32 %s27, 1
        %s357 = sand.u32 %s40, 1
        %s358 = scalar_lea.sflag [#allocation4], %s357
        %s359 = sand.u32 %s40, 1
        %s360 = smul.addr %s359, 16
        %s361 = scalar_lea.vmem [#allocation3], %s360
        // Predicated region
        $region53: #{tpu_custom_call.1} parent=51 // pred_check
          %p362 = pneg %p53
        $region54: #{tpu_custom_call.1} parent=51 // pred_check_branch
          %364 = sbr.rel (%p362) target = $region56
        $region55: #{tpu_custom_call.1} parent=51 // pred_region
          %365 = dma.done %s358, 256
        $region56: #{tpu_custom_call.1} parent=51 // pred_fallthru
          _
        %s366 = sand.u32 %s66, 1
        %s367 = scalar_lea.sflag [#allocation8], %s366
        %s368 = sand.u32 %s66, 1
        %s369 = smul.addr %s368, 16
        %s370 = scalar_lea.vmem [#allocation7], %s369
        // Predicated region
        $region57: #{tpu_custom_call.1} parent=51 // pred_check
          %p371 = pneg %p79
        $region58: #{tpu_custom_call.1} parent=51 // pred_check_branch
          %373 = sbr.rel (%p371) target = $region60
        $region59: #{tpu_custom_call.1} parent=51 // pred_region
          %374 = dma.done %s367, 256
        $region60: #{tpu_custom_call.1} parent=51 // pred_fallthru
          _
        // Predicated region
        $region61: #{tpu_custom_call.1} parent=51 // pred_check
          %p375 = pneg %p100
        $region62: #{tpu_custom_call.1} parent=51 // pred_check_branch
          %377 = sbr.rel (%p375) target = $region64
        $region63: #{tpu_custom_call.1} parent=51 // pred_region
          %378 = dma.done [#allocation6], 16
        $region64: #{tpu_custom_call.1} parent=51 // pred_fallthru
          _
        // Predicated region
        $region65: #{tpu_custom_call.1} parent=51 // pred_check
          %p379 = pneg %p121
        $region66: #{tpu_custom_call.1} parent=51 // pred_check_branch
          %381 = sbr.rel (%p379) target = $region68
        $region67: #{tpu_custom_call.1} parent=51 // pred_region
          %382 = dma.done [#allocation11], 16
        $region68: #{tpu_custom_call.1} parent=51 // pred_fallthru
          _
        // Predicated region
        $region69: #{tpu_custom_call.1} parent=51 // pred_check
          %p383 = pneg %p142
        $region70: #{tpu_custom_call.1} parent=51 // pred_check_branch
          %385 = sbr.rel (%p383) target = $region72
        $region71: #{tpu_custom_call.1} parent=51 // pred_region
          %386 = dma.done [#allocation11], 48
        $region72: #{tpu_custom_call.1} parent=51 // pred_fallthru
          _
        // Predicated region
        $region73: #{tpu_custom_call.1} parent=51 // pred_check
          %p387 = pneg %p163
        $region74: #{tpu_custom_call.1} parent=51 // pred_check_branch
          %389 = sbr.rel (%p387) target = $region76
        $region75: #{tpu_custom_call.1} parent=51 // pred_region
          %390 = dma.done [#allocation14], 16
        $region76: #{tpu_custom_call.1} parent=51 // pred_fallthru
          _
        // Predicated region
        $region77: #{tpu_custom_call.1} parent=51 // pred_check
          %p391 = pneg %p184
        $region78: #{tpu_custom_call.1} parent=51 // pred_check_branch
          %393 = sbr.rel (%p391) target = $region80
        $region79: #{tpu_custom_call.1} parent=51 // pred_region
          %394 = dma.done [#allocation14], 16
        $region80: #{tpu_custom_call.1} parent=51 // pred_fallthru
          _
        %395 = sfence
        %s396 = sand.u32 %s40, 1
        %s397 = scalar_lea.sflag [#allocation4], %s396
        %s398 = sand.u32 %s40, 1
        %s399 = smul.addr %s398, 16
        %s400 = scalar_lea.vmem [#allocation3], %s399
        %p401 = pneg %p53
        %p402 = pneg %p50
        %s403 = sand.u32 %s66, 1
        %s404 = scalar_lea.sflag [#allocation8], %s403
        %s405 = sand.u32 %s66, 1
        %s406 = smul.addr %s405, 16
        %s407 = scalar_lea.vmem [#allocation7], %s406
        %p408 = pneg %p79
        %p409 = pneg %p76
        %p410 = pneg %p100
        %p411 = pneg %p97
        %p412 = pneg %p121
        %p413 = pneg %p118
        %p414 = pneg %p142
        %p415 = pneg %p139
        %p416 = pneg %p163
        %p417 = pneg %p160
        %p418 = pneg %p184
        %p419 = pneg %p181
        %p420 = pneg %p205
        %p421 = pneg %p202
        %p422 = pneg %p231
        %p423 = pneg %p228
        %s424 = sand.u32 %s218, 1
        %s425 = scalar_lea.sflag [#allocation5], %s424
        %s426 = sand.u32 %s218, 1
        %s427 = smul.addr %s426, 16
        %s428 = scalar_lea.vmem [#allocation16], %s427
        %v429 = vld [vmem:[%s361] sm:$0xff]
        %v430 = vld [vmem:[%s361 + $0x8] sm:$0xff]
        %v431 = vld [vmem:[%s370] sm:$0xff]
        %v432 = vld [vmem:[%s370 + $0x8] sm:$0xff]
        %v433 = vmul.f32 %v431, 6.2831855
        %v434 = vmul.f32 %v432, 6.2831855
        %v435 = vmul.f32 %v429, 0.5
        %v436 = vmul.f32 %v430, 0.5
        %v437 = vand.u32 2147483647, %v433
        %vm438 = vcmp.le.f32.partialorder %v437, 0.7853982
        %vm439 = vcmp.lt.s32.totalorder %v433, 0
        %v440 = vand.u32 %v433, 2139095040
        %v441 = vshrl.u32 %v440, 23
        %v442 = vsub.s32 %v441, 127
        %v443 = vand.u32 2147483647, %v433
        %v444 = vand.u32 %v443, 8388607
        %v445 = vor.u32 %v444, 8388608
        %v446 = vsub.s32 0, %v445
        %v447 = vadd.s32 %v442, 1
        %vm448 = vcmp.gt.s32.totalorder %v447, 0
        %v449 = vsel %vm448, %v447, 0
        %v450 = vshrl.u32 %v449, 5
        %v451 = vand.u32 %v449, 31
        %v452 = vsub.s32 32, %v451
        %v453 = vshrl.u32 683565275, %v452
        %v454 = vshll.u32 683565275, %v451
        %v455 = vshrl.u32 2475754826, %v452
        %v456 = vor.u32 %v454, %v455
        %v457 = vshll.u32 2475754826, %v451
        %v458 = vshrl.u32 2131351028, %v452
        %v459 = vor.u32 %v457, %v458
        %v460 = vshll.u32 2131351028, %v451
        %v461 = vshrl.u32 2102212464, %v452
        %v462 = vor.u32 %v460, %v461
        %v463 = vshll.u32 2102212464, %v451
        %v464 = vshrl.u32 920167782, %v452
        %v465 = vor.u32 %v463, %v464
        %v466 = vshll.u32 920167782, %v451
        %v467 = vshrl.u32 1326507024, %v452
        %v468 = vor.u32 %v466, %v467
        %vm469 = vcmp.lt.s32.totalorder %v450, 1
        %vm470 = vcmp.lt.s32.totalorder %v450, 2
        %vm471 = vcmp.lt.s32.totalorder %v450, 3
        %vm472 = vcmp.lt.s32.totalorder %v450, 4
        %v473 = vsel %vm469, %v453, %v456
        %v474 = vsel %vm472, %v462, 2102212464
        %v475 = vsel %vm471, %v459, %v474
        %v476 = vsel %vm470, %v473, %v475
        %v477 = vsel %vm469, %v456, %v459
        %v478 = vsel %vm472, %v465, 920167782
        %v479 = vsel %vm471, %v462, %v478
        %v480 = vsel %vm470, %v477, %v479
        %v481 = vsel %vm469, %v459, %v462
        %v482 = vsel %vm472, %v468, 1326507024
        %v483 = vsel %vm471, %v465, %v482
        %v484 = vsel %vm470, %v481, %v483
        %v485 = vshll.u32 %v445, 8
        %v486 = vmul.u32.u64.compose %v485, %v484
        %v487 = vextract.low.u32 %v486
        %v488 = vextract.high.u32 %v486
        %v489 = vmul.u32.u64.compose %v485, %v480
        %v490 = vextract.low.u32 %v489
        %v491 = vextract.high.u32 %v489
        %v492 = vmul.u32 %v485, %v476
        %v493 = vadd.s32 %v488, %v490
        %vm494 = vc.u32 %v488, %v490
        %v495 = vadd.s32 %v491, 1
        %v496 = vsel %vm494, %v495, %v491
        %v497 = vadd.s32 %v492, %v496
        %v498 = vadd.s32 %v497, 536870912
        %v499 = vshrl.u32 %v498, 30
        %v500 = vshll.u32 %v499, 30
        %v501 = vsub.s32 %v497, %v500
        %vm502 = vcmp.lt.s32.totalorder %v501, 0
        %v503 = vsub.s32 0, %v501
        %v504 = vsel %vm502, %v503, %v501
        %v505 = vclz %v504
        %v506 = vsub.s32 %v505, 2
        %vm507 = vcmp.gt.s32.totalorder 0, %v506
        %v508 = vsel %vm507, 0, %v506
        %v509 = vsub.s32 32, %v508
        %v510 = vshll.u32 %v501, %v508
        %v511 = vshrl.u32 %v493, %v509
        %v512 = vor.u32 %v510, %v511
        %v513 = vsub.s32 4294967266, %v508
        %v514 = vadd.s32 %v513, 127
        %v515 = vshll.u32 %v514, 23
        %v516 = vor.u32 4788187, %v515
        %v517 = vand.u32 2147483647, %v516
        %v519 = vcvt.s32.f32 %v512
        %v520 = vmul.f32 %v519, %v517
        %v521 = vxor.u32 %v520, 2147483648
        %v522 = vsel %vm439, %v521, %v520
        %v523 = vsub.s32 4, %v499
        %v524 = vsel %vm439, %v523, %v499
        %v525 = vsel %vm438, %v433, %v522
        %v526 = vsel %vm438, 0, %v524
        %v527 = vcosq.f32.pop %v525
        %v528 = vsinq.f32.pop %v525
        %vm529 = vweird.f32 %v433
        %v530 = vand.u32 %v526, 3
        %vm531 = vcmp.lt.s32.totalorder %v530, 2
        %vm532 = vcmp.eq.s32.totalorder %v530, 0
        %v533 = vxor.u32 %v528, 2147483648
        %v534 = vsel %vm532, %v527, %v533
        %vm535 = vcmp.eq.s32.totalorder %v530, 2
        %v536 = vxor.u32 %v527, 2147483648
        %v537 = vsel %vm535, %v536, %v528
        %v538 = vsel %vm531, %v534, %v537
        %v539 = vsel %vm529, nan, %v538
        %v540 = vand.u32 2147483647, %v434
        %vm541 = vcmp.le.f32.partialorder %v540, 0.7853982
        %vm542 = vcmp.lt.s32.totalorder %v434, 0
        %v543 = vand.u32 %v434, 2139095040
        %v544 = vshrl.u32 %v543, 23
        %v545 = vsub.s32 %v544, 127
        %v546 = vand.u32 2147483647, %v434
        %v547 = vand.u32 %v546, 8388607
        %v548 = vor.u32 %v547, 8388608
        %v549 = vsub.s32 0, %v548
        %v550 = vadd.s32 %v545, 1
        %vm551 = vcmp.gt.s32.totalorder %v550, 0
        %v552 = vsel %vm551, %v550, 0
        %v553 = vshrl.u32 %v552, 5
        %v554 = vand.u32 %v552, 31
        %v555 = vsub.s32 32, %v554
        %v556 = vshrl.u32 683565275, %v555
        %v557 = vshll.u32 683565275, %v554
        %v558 = vshrl.u32 2475754826, %v555
        %v559 = vor.u32 %v557, %v558
        %v560 = vshll.u32 2475754826, %v554
        %v561 = vshrl.u32 2131351028, %v555
        %v562 = vor.u32 %v560, %v561
        %v563 = vshll.u32 2131351028, %v554
        %v564 = vshrl.u32 2102212464, %v555
        %v565 = vor.u32 %v563, %v564
        %v566 = vshll.u32 2102212464, %v554
        %v567 = vshrl.u32 920167782, %v555
        %v568 = vor.u32 %v566, %v567
        %v569 = vshll.u32 920167782, %v554
        %v570 = vshrl.u32 1326507024, %v555
        %v571 = vor.u32 %v569, %v570
        %vm572 = vcmp.lt.s32.totalorder %v553, 1
        %vm573 = vcmp.lt.s32.totalorder %v553, 2
        %vm574 = vcmp.lt.s32.totalorder %v553, 3
        %vm575 = vcmp.lt.s32.totalorder %v553, 4
        %v576 = vsel %vm572, %v556, %v559
        %v577 = vsel %vm575, %v565, 2102212464
        %v578 = vsel %vm574, %v562, %v577
        %v579 = vsel %vm573, %v576, %v578
        %v580 = vsel %vm572, %v559, %v562
        %v581 = vsel %vm575, %v568, 920167782
        %v582 = vsel %vm574, %v565, %v581
        %v583 = vsel %vm573, %v580, %v582
        %v584 = vsel %vm572, %v562, %v565
        %v585 = vsel %vm575, %v571, 1326507024
        %v586 = vsel %vm574, %v568, %v585
        %v587 = vsel %vm573, %v584, %v586
        %v588 = vshll.u32 %v548, 8
        %v589 = vmul.u32.u64.compose %v588, %v587
        %v590 = vextract.low.u32 %v589
        %v591 = vextract.high.u32 %v589
        %v592 = vmul.u32.u64.compose %v588, %v583
        %v593 = vextract.low.u32 %v592
        %v594 = vextract.high.u32 %v592
        %v595 = vmul.u32 %v588, %v579
        %v596 = vadd.s32 %v591, %v593
        %vm597 = vc.u32 %v591, %v593
        %v598 = vadd.s32 %v594, 1
        %v599 = vsel %vm597, %v598, %v594
        %v600 = vadd.s32 %v595, %v599
        %v601 = vadd.s32 %v600, 536870912
        %v602 = vshrl.u32 %v601, 30
        %v603 = vshll.u32 %v602, 30
        %v604 = vsub.s32 %v600, %v603
        %vm605 = vcmp.lt.s32.totalorder %v604, 0
        %v606 = vsub.s32 0, %v604
        %v607 = vsel %vm605, %v606, %v604
        %v608 = vclz %v607
        %v609 = vsub.s32 %v608, 2
        %vm610 = vcmp.gt.s32.totalorder 0, %v609
        %v611 = vsel %vm610, 0, %v609
        %v612 = vsub.s32 32, %v611
        %v613 = vshll.u32 %v604, %v611
        %v614 = vshrl.u32 %v596, %v612
        %v615 = vor.u32 %v613, %v614
        %v616 = vsub.s32 4294967266, %v611
        %v617 = vadd.s32 %v616, 127
        %v618 = vshll.u32 %v617, 23
        %v619 = vor.u32 4788187, %v618
        %v620 = vand.u32 2147483647, %v619
        %v622 = vcvt.s32.f32 %v615
        %v623 = vmul.f32 %v622, %v620
        %v624 = vxor.u32 %v623, 2147483648
        %v625 = vsel %vm542, %v624, %v623
        %v626 = vsub.s32 4, %v602
        %v627 = vsel %vm542, %v626, %v602
        %v628 = vsel %vm541, %v434, %v625
        %v629 = vsel %vm541, 0, %v627
        %v630 = vcosq.f32.pop %v628
        %v631 = vsinq.f32.pop %v628
        %vm632 = vweird.f32 %v434
        %v633 = vand.u32 %v629, 3
        %vm634 = vcmp.lt.s32.totalorder %v633, 2
        %vm635 = vcmp.eq.s32.totalorder %v633, 0
        %v636 = vxor.u32 %v631, 2147483648
        %v637 = vsel %vm635, %v630, %v636
        %vm638 = vcmp.eq.s32.totalorder %v633, 2
        %v639 = vxor.u32 %v630, 2147483648
        %v640 = vsel %vm638, %v639, %v631
        %v641 = vsel %vm634, %v637, %v640
        %v642 = vsel %vm632, nan, %v641
        %v643 = vmul.f32 %v435, %v539
        %v644 = vmul.f32 %v436, %v642
        %v645 = vand.u32 2147483647, %v433
        %vm646 = vcmp.le.f32.partialorder %v645, 0.7853982
        %vm647 = vcmp.lt.s32.totalorder %v433, 0
        %v648 = vand.u32 %v433, 2139095040
        %v649 = vshrl.u32 %v648, 23
        %v650 = vsub.s32 %v649, 127
        %v651 = vand.u32 2147483647, %v433
        %v652 = vand.u32 %v651, 8388607
        %v653 = vor.u32 %v652, 8388608
        %v654 = vsub.s32 0, %v653
        %v655 = vadd.s32 %v650, 1
        %vm656 = vcmp.gt.s32.totalorder %v655, 0
        %v657 = vsel %vm656, %v655, 0
        %v658 = vshrl.u32 %v657, 5
        %v659 = vand.u32 %v657, 31
        %v660 = vsub.s32 32, %v659
        %v661 = vshrl.u32 683565275, %v660
        %v662 = vshll.u32 683565275, %v659
        %v663 = vshrl.u32 2475754826, %v660
        %v664 = vor.u32 %v662, %v663
        %v665 = vshll.u32 2475754826, %v659
        %v666 = vshrl.u32 2131351028, %v660
        %v667 = vor.u32 %v665, %v666
        %v668 = vshll.u32 2131351028, %v659
        %v669 = vshrl.u32 2102212464, %v660
        %v670 = vor.u32 %v668, %v669
        %v671 = vshll.u32 2102212464, %v659
        %v672 = vshrl.u32 920167782, %v660
        %v673 = vor.u32 %v671, %v672
        %v674 = vshll.u32 920167782, %v659
        %v675 = vshrl.u32 1326507024, %v660
        %v676 = vor.u32 %v674, %v675
        %vm677 = vcmp.lt.s32.totalorder %v658, 1
        %vm678 = vcmp.lt.s32.totalorder %v658, 2
        %vm679 = vcmp.lt.s32.totalorder %v658, 3
        %vm680 = vcmp.lt.s32.totalorder %v658, 4
        %v681 = vsel %vm677, %v661, %v664
        %v682 = vsel %vm680, %v670, 2102212464
        %v683 = vsel %vm679, %v667, %v682
        %v684 = vsel %vm678, %v681, %v683
        %v685 = vsel %vm677, %v664, %v667
        %v686 = vsel %vm680, %v673, 920167782
        %v687 = vsel %vm679, %v670, %v686
        %v688 = vsel %vm678, %v685, %v687
        %v689 = vsel %vm677, %v667, %v670
        %v690 = vsel %vm680, %v676, 1326507024
        %v691 = vsel %vm679, %v673, %v690
        %v692 = vsel %vm678, %v689, %v691
        %v693 = vshll.u32 %v653, 8
        %v694 = vmul.u32.u64.compose %v693, %v692
        %v695 = vextract.low.u32 %v694
        %v696 = vextract.high.u32 %v694
        %v697 = vmul.u32.u64.compose %v693, %v688
        %v698 = vextract.low.u32 %v697
        %v699 = vextract.high.u32 %v697
        %v700 = vmul.u32 %v693, %v684
        %v701 = vadd.s32 %v696, %v698
        %vm702 = vc.u32 %v696, %v698
        %v703 = vadd.s32 %v699, 1
        %v704 = vsel %vm702, %v703, %v699
        %v705 = vadd.s32 %v700, %v704
        %v706 = vadd.s32 %v705, 536870912
        %v707 = vshrl.u32 %v706, 30
        %v708 = vshll.u32 %v707, 30
        %v709 = vsub.s32 %v705, %v708
        %vm710 = vcmp.lt.s32.totalorder %v709, 0
        %v711 = vsub.s32 0, %v709
        %v712 = vsel %vm710, %v711, %v709
        %v713 = vclz %v712
        %v714 = vsub.s32 %v713, 2
        %vm715 = vcmp.gt.s32.totalorder 0, %v714
        %v716 = vsel %vm715, 0, %v714
        %v717 = vsub.s32 32, %v716
        %v718 = vshll.u32 %v709, %v716
        %v719 = vshrl.u32 %v701, %v717
        %v720 = vor.u32 %v718, %v719
        %v721 = vsub.s32 4294967266, %v716
        %v722 = vadd.s32 %v721, 127
        %v723 = vshll.u32 %v722, 23
        %v724 = vor.u32 4788187, %v723
        %v725 = vand.u32 2147483647, %v724
        %v727 = vcvt.s32.f32 %v720
        %v728 = vmul.f32 %v727, %v725
        %v729 = vxor.u32 %v728, 2147483648
        %v730 = vsel %vm647, %v729, %v728
        %v731 = vsub.s32 4, %v707
        %v732 = vsel %vm647, %v731, %v707
        %v733 = vsel %vm646, %v433, %v730
        %v734 = vsel %vm646, 0, %v732
        %v735 = vcosq.f32.pop %v733
        %v736 = vsinq.f32.pop %v733
        %vm737 = vweird.f32 %v433
        %v738 = vadd.s32 %v734, 3
        %v739 = vand.u32 %v738, 3
        %vm740 = vcmp.lt.s32.totalorder %v739, 2
        %vm741 = vcmp.eq.s32.totalorder %v739, 0
        %v742 = vxor.u32 %v736, 2147483648
        %v743 = vsel %vm741, %v735, %v742
        %vm744 = vcmp.eq.s32.totalorder %v739, 2
        %v745 = vxor.u32 %v735, 2147483648
        %v746 = vsel %vm744, %v745, %v736
        %v747 = vsel %vm740, %v743, %v746
        %v748 = vsel %vm737, nan, %v747
        %v749 = vand.u32 2147483647, %v434
        %vm750 = vcmp.le.f32.partialorder %v749, 0.7853982
        %vm751 = vcmp.lt.s32.totalorder %v434, 0
        %v752 = vand.u32 %v434, 2139095040
        %v753 = vshrl.u32 %v752, 23
        %v754 = vsub.s32 %v753, 127
        %v755 = vand.u32 2147483647, %v434
        %v756 = vand.u32 %v755, 8388607
        %v757 = vor.u32 %v756, 8388608
        %v758 = vsub.s32 0, %v757
        %v759 = vadd.s32 %v754, 1
        %vm760 = vcmp.gt.s32.totalorder %v759, 0
        %v761 = vsel %vm760, %v759, 0
        %v762 = vshrl.u32 %v761, 5
        %v763 = vand.u32 %v761, 31
        %v764 = vsub.s32 32, %v763
        %v765 = vshrl.u32 683565275, %v764
        %v766 = vshll.u32 683565275, %v763
        %v767 = vshrl.u32 2475754826, %v764
        %v768 = vor.u32 %v766, %v767
        %v769 = vshll.u32 2475754826, %v763
        %v770 = vshrl.u32 2131351028, %v764
        %v771 = vor.u32 %v769, %v770
        %v772 = vshll.u32 2131351028, %v763
        %v773 = vshrl.u32 2102212464, %v764
        %v774 = vor.u32 %v772, %v773
        %v775 = vshll.u32 2102212464, %v763
        %v776 = vshrl.u32 920167782, %v764
        %v777 = vor.u32 %v775, %v776
        %v778 = vshll.u32 920167782, %v763
        %v779 = vshrl.u32 1326507024, %v764
        %v780 = vor.u32 %v778, %v779
        %vm781 = vcmp.lt.s32.totalorder %v762, 1
        %vm782 = vcmp.lt.s32.totalorder %v762, 2
        %vm783 = vcmp.lt.s32.totalorder %v762, 3
        %vm784 = vcmp.lt.s32.totalorder %v762, 4
        %v785 = vsel %vm781, %v765, %v768
        %v786 = vsel %vm784, %v774, 2102212464
        %v787 = vsel %vm783, %v771, %v786
        %v788 = vsel %vm782, %v785, %v787
        %v789 = vsel %vm781, %v768, %v771
        %v790 = vsel %vm784, %v777, 920167782
        %v791 = vsel %vm783, %v774, %v790
        %v792 = vsel %vm782, %v789, %v791
        %v793 = vsel %vm781, %v771, %v774
        %v794 = vsel %vm784, %v780, 1326507024
        %v795 = vsel %vm783, %v777, %v794
        %v796 = vsel %vm782, %v793, %v795
        %v797 = vshll.u32 %v757, 8
        %v798 = vmul.u32.u64.compose %v797, %v796
        %v799 = vextract.low.u32 %v798
        %v800 = vextract.high.u32 %v798
        %v801 = vmul.u32.u64.compose %v797, %v792
        %v802 = vextract.low.u32 %v801
        %v803 = vextract.high.u32 %v801
        %v804 = vmul.u32 %v797, %v788
        %v805 = vadd.s32 %v800, %v802
        %vm806 = vc.u32 %v800, %v802
        %v807 = vadd.s32 %v803, 1
        %v808 = vsel %vm806, %v807, %v803
        %v809 = vadd.s32 %v804, %v808
        %v810 = vadd.s32 %v809, 536870912
        %v811 = vshrl.u32 %v810, 30
        %v812 = vshll.u32 %v811, 30
        %v813 = vsub.s32 %v809, %v812
        %vm814 = vcmp.lt.s32.totalorder %v813, 0
        %v815 = vsub.s32 0, %v813
        %v816 = vsel %vm814, %v815, %v813
        %v817 = vclz %v816
        %v818 = vsub.s32 %v817, 2
        %vm819 = vcmp.gt.s32.totalorder 0, %v818
        %v820 = vsel %vm819, 0, %v818
        %v821 = vsub.s32 32, %v820
        %v822 = vshll.u32 %v813, %v820
        %v823 = vshrl.u32 %v805, %v821
        %v824 = vor.u32 %v822, %v823
        %v825 = vsub.s32 4294967266, %v820
        %v826 = vadd.s32 %v825, 127
        %v827 = vshll.u32 %v826, 23
        %v828 = vor.u32 4788187, %v827
        %v829 = vand.u32 2147483647, %v828
        %v831 = vcvt.s32.f32 %v824
        %v832 = vmul.f32 %v831, %v829
        %v833 = vxor.u32 %v832, 2147483648
        %v834 = vsel %vm751, %v833, %v832
        %v835 = vsub.s32 4, %v811
        %v836 = vsel %vm751, %v835, %v811
        %v837 = vsel %vm750, %v434, %v834
        %v838 = vsel %vm750, 0, %v836
        %v839 = vcosq.f32.pop %v837
        %v840 = vsinq.f32.pop %v837
        %vm841 = vweird.f32 %v434
        %v842 = vadd.s32 %v838, 3
        %v843 = vand.u32 %v842, 3
        %vm844 = vcmp.lt.s32.totalorder %v843, 2
        %vm845 = vcmp.eq.s32.totalorder %v843, 0
        %v846 = vxor.u32 %v840, 2147483648
        %v847 = vsel %vm845, %v839, %v846
        %vm848 = vcmp.eq.s32.totalorder %v843, 2
        %v849 = vxor.u32 %v839, 2147483648
        %v850 = vsel %vm848, %v849, %v840
        %v851 = vsel %vm844, %v847, %v850
        %v852 = vsel %vm841, nan, %v851
        %v853 = vmul.f32 %v435, %v748
        %v854 = vmul.f32 %v436, %v852
        %s855 = sld [smem:[#allocation9]]
        %v856 = vstv %s855
        %v857 = vmul.f32 %v856, %v643
        %v858 = vmul.f32 %v856, %v644
        %v859 = vadd.f32 %v435, %v857
        %v860 = vadd.f32 %v436, %v858
        %s861 = sld [smem:[#allocation10]]
        %v862 = vstv %s861
        %v863 = vmul.f32 %v862, %v853
        %v864 = vmul.f32 %v862, %v854
        %v865 = vsub.f32 %v859, %v863
        %v866 = vsub.f32 %v860, %v864
        %s867 = sld [smem:[#allocation9 + $0x1]]
        %v868 = vstv %s867
        %v869 = vmul.f32 %v868, %v643
        %v870 = vmul.f32 %v868, %v644
        %v871 = vadd.f32 %v435, %v869
        %v872 = vadd.f32 %v436, %v870
        %s873 = sld [smem:[#allocation10 + $0x1]]
        %v874 = vstv %s873
        %v875 = vmul.f32 %v874, %v853
        %v876 = vmul.f32 %v874, %v854
        %v877 = vsub.f32 %v871, %v875
        %v878 = vsub.f32 %v872, %v876
        %s879 = sld [smem:[#allocation9 + $0x2]]
        %v880 = vstv %s879
        %v881 = vmul.f32 %v880, %v643
        %v882 = vmul.f32 %v880, %v644
        %v883 = vadd.f32 %v435, %v881
        %v884 = vadd.f32 %v436, %v882
        %s885 = sld [smem:[#allocation10 + $0x2]]
        %v886 = vstv %s885
        %v887 = vmul.f32 %v886, %v853
        %v888 = vmul.f32 %v886, %v854
        %v889 = vsub.f32 %v883, %v887
        %v890 = vsub.f32 %v884, %v888
        %s891 = sld [smem:[#allocation9 + $0x3]]
        %v892 = vstv %s891
        %v893 = vmul.f32 %v892, %v643
        %v894 = vmul.f32 %v892, %v644
        %v895 = vadd.f32 %v435, %v893
        %v896 = vadd.f32 %v436, %v894
        %s897 = sld [smem:[#allocation10 + $0x3]]
        %v898 = vstv %s897
        %v899 = vmul.f32 %v898, %v853
        %v900 = vmul.f32 %v898, %v854
        %v901 = vsub.f32 %v895, %v899
        %v902 = vsub.f32 %v896, %v900
        %v903 = vlaneseq
        %v904 = vshrl.u32 %v903, 7
        %v905 = vadd.s32 %v904, 8
        %v906 = vlaneseq
        %v907 = vand.u32 %v906, 127
        %vm908 = vcmp.ge.s32.totalorder %v904, 1
        %vm909 = vcmp.ge.s32.totalorder %v905, 1
        %vm910 = vcmp.lt.s32.totalorder %v904, 15
        %vm911 = vcmp.lt.s32.totalorder %v905, 15
        %vm912 = vcmp.ge.s32.totalorder %v907, 1
        %vm913 = vcmp.lt.s32.totalorder %v907, 127
        %vm914 = vmand %vm908, %vm912
        %vm915 = vmand %vm909, %vm912
        %vm916 = vmand %vm908, %vm913
        %vm917 = vmand %vm909, %vm913
        %vm918 = vmand %vm910, %vm912
        %vm919 = vmand %vm911, %vm912
        %vm920 = vmand %vm910, %vm913
        %vm921 = vmand %vm911, %vm913
        %v922 = vrot.slane %v865, 7
        %v923 = vrot.slane %v866, 7
        %vm924 = vcmp.lt.s32.totalorder %v904, 1
        %v925 = vsel %vm924, %v922, %v923
        %v926 = vsel %vm924, %v923, %v922
        %v927 = vrot.slane %v865, 1
        %v928 = vrot.slane %v866, 1
        %vm929 = vcmp.lt.s32.totalorder %v904, 7
        %v930 = vsel %vm929, %v927, %v928
        %v931 = vsel %vm929, %v928, %v927
        %932 = vrot.lane.b32.xlu0 %v926, 1
        %v933 = vpop.permute.xlu0 %932
        %934 = vrot.lane.b32.xlu0 %v925, 1
        %v935 = vpop.permute.xlu0 %934
        %v936 = vsel %vm914, %v933, 0.0
        %v937 = vsel %vm915, %v935, 0.0
        %v938 = vsel %vm908, %v926, 0.0
        %v939 = vsel %vm909, %v925, 0.0
        %940 = vrot.lane.b32.xlu0 %v926, 127
        %v941 = vpop.permute.xlu0 %940
        %942 = vrot.lane.b32.xlu0 %v925, 127
        %v943 = vpop.permute.xlu0 %942
        %v944 = vsel %vm916, %v941, 0.0
        %v945 = vsel %vm917, %v943, 0.0
        %946 = vrot.lane.b32.xlu0 %v865, 1
        %v947 = vpop.permute.xlu0 %946
        %948 = vrot.lane.b32.xlu0 %v866, 1
        %v949 = vpop.permute.xlu0 %948
        %v950 = vsel %vm912, %v947, 0.0
        %v951 = vsel %vm912, %v949, 0.0
        %952 = vrot.lane.b32.xlu0 %v865, 127
        %v953 = vpop.permute.xlu0 %952
        %954 = vrot.lane.b32.xlu0 %v866, 127
        %v955 = vpop.permute.xlu0 %954
        %v956 = vsel %vm913, %v953, 0.0
        %v957 = vsel %vm913, %v955, 0.0
        %958 = vrot.lane.b32.xlu0 %v930, 1
        %v959 = vpop.permute.xlu0 %958
        %960 = vrot.lane.b32.xlu0 %v931, 1
        %v961 = vpop.permute.xlu0 %960
        %v962 = vsel %vm918, %v959, 0.0
        %v963 = vsel %vm919, %v961, 0.0
        %v964 = vsel %vm910, %v930, 0.0
        %v965 = vsel %vm911, %v931, 0.0
        %966 = vrot.lane.b32.xlu0 %v930, 127
        %v967 = vpop.permute.xlu0 %966
        %968 = vrot.lane.b32.xlu0 %v931, 127
        %v969 = vpop.permute.xlu0 %968
        %v970 = vsel %vm920, %v967, 0.0
        %v971 = vsel %vm921, %v969, 0.0
        %v972 = vrot.slane %v877, 7
        %v973 = vrot.slane %v878, 7
        %v974 = vsel %vm924, %v972, %v973
        %v975 = vsel %vm924, %v973, %v972
        %v976 = vrot.slane %v877, 1
        %v977 = vrot.slane %v878, 1
        %v978 = vsel %vm929, %v976, %v977
        %v979 = vsel %vm929, %v977, %v976
        %980 = vrot.lane.b32.xlu0 %v975, 1
        %v981 = vpop.permute.xlu0 %980
        %982 = vrot.lane.b32.xlu0 %v974, 1
        %v983 = vpop.permute.xlu0 %982
        %v984 = vsel %vm914, %v981, 0.0
        %v985 = vsel %vm915, %v983, 0.0
        %v986 = vsel %vm908, %v975, 0.0
        %v987 = vsel %vm909, %v974, 0.0
        %988 = vrot.lane.b32.xlu0 %v975, 127
        %v989 = vpop.permute.xlu0 %988
        %990 = vrot.lane.b32.xlu0 %v974, 127
        %v991 = vpop.permute.xlu0 %990
        %v992 = vsel %vm916, %v989, 0.0
        %v993 = vsel %vm917, %v991, 0.0
        %994 = vrot.lane.b32.xlu0 %v877, 1
        %v995 = vpop.permute.xlu0 %994
        %996 = vrot.lane.b32.xlu0 %v878, 1
        %v997 = vpop.permute.xlu0 %996
        %v998 = vsel %vm912, %v995, 0.0
        %v999 = vsel %vm912, %v997, 0.0
        %1000 = vrot.lane.b32.xlu0 %v877, 127
        %v1001 = vpop.permute.xlu0 %1000
        %1002 = vrot.lane.b32.xlu0 %v878, 127
        %v1003 = vpop.permute.xlu0 %1002
        %v1004 = vsel %vm913, %v1001, 0.0
        %v1005 = vsel %vm913, %v1003, 0.0
        %1006 = vrot.lane.b32.xlu0 %v978, 1
        %v1007 = vpop.permute.xlu0 %1006
        %1008 = vrot.lane.b32.xlu0 %v979, 1
        %v1009 = vpop.permute.xlu0 %1008
        %v1010 = vsel %vm918, %v1007, 0.0
        %v1011 = vsel %vm919, %v1009, 0.0
        %v1012 = vsel %vm910, %v978, 0.0
        %v1013 = vsel %vm911, %v979, 0.0
        %1014 = vrot.lane.b32.xlu0 %v978, 127
        %v1015 = vpop.permute.xlu0 %1014
        %1016 = vrot.lane.b32.xlu0 %v979, 127
        %v1017 = vpop.permute.xlu0 %1016
        %v1018 = vsel %vm920, %v1015, 0.0
        %v1019 = vsel %vm921, %v1017, 0.0
        %v1020 = vrot.slane %v889, 7
        %v1021 = vrot.slane %v890, 7
        %v1022 = vsel %vm924, %v1020, %v1021
        %v1023 = vsel %vm924, %v1021, %v1020
        %v1024 = vrot.slane %v889, 1
        %v1025 = vrot.slane %v890, 1
        %v1026 = vsel %vm929, %v1024, %v1025
        %v1027 = vsel %vm929, %v1025, %v1024
        %1028 = vrot.lane.b32.xlu0 %v1023, 1
        %v1029 = vpop.permute.xlu0 %1028
        %1030 = vrot.lane.b32.xlu0 %v1022, 1
        %v1031 = vpop.permute.xlu0 %1030
        %v1032 = vsel %vm914, %v1029, 0.0
        %v1033 = vsel %vm915, %v1031, 0.0
        %v1034 = vsel %vm908, %v1023, 0.0
        %v1035 = vsel %vm909, %v1022, 0.0
        %1036 = vrot.lane.b32.xlu0 %v1023, 127
        %v1037 = vpop.permute.xlu0 %1036
        %1038 = vrot.lane.b32.xlu0 %v1022, 127
        %v1039 = vpop.permute.xlu0 %1038
        %v1040 = vsel %vm916, %v1037, 0.0
        %v1041 = vsel %vm917, %v1039, 0.0
        %1042 = vrot.lane.b32.xlu0 %v889, 1
        %v1043 = vpop.permute.xlu0 %1042
        %1044 = vrot.lane.b32.xlu0 %v890, 1
        %v1045 = vpop.permute.xlu0 %1044
        %v1046 = vsel %vm912, %v1043, 0.0
        %v1047 = vsel %vm912, %v1045, 0.0
        %1048 = vrot.lane.b32.xlu0 %v889, 127
        %v1049 = vpop.permute.xlu0 %1048
        %1050 = vrot.lane.b32.xlu0 %v890, 127
        %v1051 = vpop.permute.xlu0 %1050
        %v1052 = vsel %vm913, %v1049, 0.0
        %v1053 = vsel %vm913, %v1051, 0.0
        %1054 = vrot.lane.b32.xlu0 %v1026, 1
        %v1055 = vpop.permute.xlu0 %1054
        %1056 = vrot.lane.b32.xlu0 %v1027, 1
        %v1057 = vpop.permute.xlu0 %1056
        %v1058 = vsel %vm918, %v1055, 0.0
        %v1059 = vsel %vm919, %v1057, 0.0
        %v1060 = vsel %vm910, %v1026, 0.0
        %v1061 = vsel %vm911, %v1027, 0.0
        %1062 = vrot.lane.b32.xlu0 %v1026, 127
        %v1063 = vpop.permute.xlu0 %1062
        %1064 = vrot.lane.b32.xlu0 %v1027, 127
        %v1065 = vpop.permute.xlu0 %1064
        %v1066 = vsel %vm920, %v1063, 0.0
        %v1067 = vsel %vm921, %v1065, 0.0
        %v1068 = vrot.slane %v901, 7
        %v1069 = vrot.slane %v902, 7
        %v1070 = vsel %vm924, %v1068, %v1069
        %v1071 = vsel %vm924, %v1069, %v1068
        %v1072 = vrot.slane %v901, 1
        %v1073 = vrot.slane %v902, 1
        %v1074 = vsel %vm929, %v1072, %v1073
        %v1075 = vsel %vm929, %v1073, %v1072
        %1076 = vrot.lane.b32.xlu0 %v1071, 1
        %v1077 = vpop.permute.xlu0 %1076
        %1078 = vrot.lane.b32.xlu0 %v1070, 1
        %v1079 = vpop.permute.xlu0 %1078
        %v1080 = vsel %vm914, %v1077, 0.0
        %v1081 = vsel %vm915, %v1079, 0.0
        %v1082 = vsel %vm908, %v1071, 0.0
        %v1083 = vsel %vm909, %v1070, 0.0
        %1084 = vrot.lane.b32.xlu0 %v1071, 127
        %v1085 = vpop.permute.xlu0 %1084
        %1086 = vrot.lane.b32.xlu0 %v1070, 127
        %v1087 = vpop.permute.xlu0 %1086
        %v1088 = vsel %vm916, %v1085, 0.0
        %v1089 = vsel %vm917, %v1087, 0.0
        %1090 = vrot.lane.b32.xlu0 %v901, 1
        %v1091 = vpop.permute.xlu0 %1090
        %1092 = vrot.lane.b32.xlu0 %v902, 1
        %v1093 = vpop.permute.xlu0 %1092
        %v1094 = vsel %vm912, %v1091, 0.0
        %v1095 = vsel %vm912, %v1093, 0.0
        %1096 = vrot.lane.b32.xlu0 %v901, 127
        %v1097 = vpop.permute.xlu0 %1096
        %1098 = vrot.lane.b32.xlu0 %v902, 127
        %v1099 = vpop.permute.xlu0 %1098
        %v1100 = vsel %vm913, %v1097, 0.0
        %v1101 = vsel %vm913, %v1099, 0.0
        %1102 = vrot.lane.b32.xlu0 %v1074, 1
        %v1103 = vpop.permute.xlu0 %1102
        %1104 = vrot.lane.b32.xlu0 %v1075, 1
        %v1105 = vpop.permute.xlu0 %1104
        %v1106 = vsel %vm918, %v1103, 0.0
        %v1107 = vsel %vm919, %v1105, 0.0
        %v1108 = vsel %vm910, %v1074, 0.0
        %v1109 = vsel %vm911, %v1075, 0.0
        %1110 = vrot.lane.b32.xlu0 %v1074, 127
        %v1111 = vpop.permute.xlu0 %1110
        %1112 = vrot.lane.b32.xlu0 %v1075, 127
        %v1113 = vpop.permute.xlu0 %1112
        %v1114 = vsel %vm920, %v1111, 0.0
        %v1115 = vsel %vm921, %v1113, 0.0
        %s1116 = sld [smem:[#allocation2]]
        %v1117 = vstv %s1116
        %s1118 = sld [smem:[#allocation13]]
        %v1119 = vstv %s1118
        %s1120 = sld [smem:[#allocation12]]
        %v1121 = vstv %s1120
        %v1122 = vmul.f32 %v1121, %v936
        %v1123 = vmul.f32 %v1121, %v937
        %v1124 = vadd.f32 %v1119, %v1122
        %v1125 = vadd.f32 %v1119, %v1123
        %s1126 = sld [smem:[#allocation12 + $0x8]]
        %v1127 = vstv %s1126
        %v1128 = vmul.f32 %v1127, %v984
        %v1129 = vmul.f32 %v1127, %v985
        %v1130 = vadd.f32 %v1124, %v1128
        %v1131 = vadd.f32 %v1125, %v1129
        %s1132 = sld [smem:[#allocation12 + $0x10]]
        %v1133 = vstv %s1132
        %v1134 = vmul.f32 %v1133, %v1032
        %v1135 = vmul.f32 %v1133, %v1033
        %v1136 = vadd.f32 %v1130, %v1134
        %v1137 = vadd.f32 %v1131, %v1135
        %s1138 = sld [smem:[#allocation12 + $0x18]]
        %v1139 = vstv %s1138
        %v1140 = vmul.f32 %v1139, %v1080
        %v1141 = vmul.f32 %v1139, %v1081
        %v1142 = vadd.f32 %v1136, %v1140
        %v1143 = vadd.f32 %v1137, %v1141
        %s1144 = sld [smem:[#allocation12 + $0x20]]
        %v1145 = vstv %s1144
        %v1146 = vmul.f32 %v1145, %v938
        %v1147 = vmul.f32 %v1145, %v939
        %v1148 = vadd.f32 %v1142, %v1146
        %v1149 = vadd.f32 %v1143, %v1147
        %s1150 = sld [smem:[#allocation12 + $0x28]]
        %v1151 = vstv %s1150
        %v1152 = vmul.f32 %v1151, %v986
        %v1153 = vmul.f32 %v1151, %v987
        %v1154 = vadd.f32 %v1148, %v1152
        %v1155 = vadd.f32 %v1149, %v1153
        %s1156 = sld [smem:[#allocation12 + $0x30]]
        %v1157 = vstv %s1156
        %v1158 = vmul.f32 %v1157, %v1034
        %v1159 = vmul.f32 %v1157, %v1035
        %v1160 = vadd.f32 %v1154, %v1158
        %v1161 = vadd.f32 %v1155, %v1159
        %s1162 = sld [smem:[#allocation12 + $0x38]]
        %v1163 = vstv %s1162
        %v1164 = vmul.f32 %v1163, %v1082
        %v1165 = vmul.f32 %v1163, %v1083
        %v1166 = vadd.f32 %v1160, %v1164
        %v1167 = vadd.f32 %v1161, %v1165
        %s1168 = sld [smem:[#allocation12 + $0x40]]
        %v1169 = vstv %s1168
        %v1170 = vmul.f32 %v1169, %v944
        %v1171 = vmul.f32 %v1169, %v945
        %v1172 = vadd.f32 %v1166, %v1170
        %v1173 = vadd.f32 %v1167, %v1171
        %s1174 = sld [smem:[#allocation12 + $0x48]]
        %v1175 = vstv %s1174
        %v1176 = vmul.f32 %v1175, %v992
        %v1177 = vmul.f32 %v1175, %v993
        %v1178 = vadd.f32 %v1172, %v1176
        %v1179 = vadd.f32 %v1173, %v1177
        %s1180 = sld [smem:[#allocation12 + $0x50]]
        %v1181 = vstv %s1180
        %v1182 = vmul.f32 %v1181, %v1040
        %v1183 = vmul.f32 %v1181, %v1041
        %v1184 = vadd.f32 %v1178, %v1182
        %v1185 = vadd.f32 %v1179, %v1183
        %s1186 = sld [smem:[#allocation12 + $0x58]]
        %v1187 = vstv %s1186
        %v1188 = vmul.f32 %v1187, %v1088
        %v1189 = vmul.f32 %v1187, %v1089
        %v1190 = vadd.f32 %v1184, %v1188
        %v1191 = vadd.f32 %v1185, %v1189
        %s1192 = sld [smem:[#allocation12 + $0x60]]
        %v1193 = vstv %s1192
        %v1194 = vmul.f32 %v1193, %v950
        %v1195 = vmul.f32 %v1193, %v951
        %v1196 = vadd.f32 %v1190, %v1194
        %v1197 = vadd.f32 %v1191, %v1195
        %s1198 = sld [smem:[#allocation12 + $0x68]]
        %v1199 = vstv %s1198
        %v1200 = vmul.f32 %v1199, %v998
        %v1201 = vmul.f32 %v1199, %v999
        %v1202 = vadd.f32 %v1196, %v1200
        %v1203 = vadd.f32 %v1197, %v1201
        %s1204 = sld [smem:[#allocation12 + $0x70]]
        %v1205 = vstv %s1204
        %v1206 = vmul.f32 %v1205, %v1046
        %v1207 = vmul.f32 %v1205, %v1047
        %v1208 = vadd.f32 %v1202, %v1206
        %v1209 = vadd.f32 %v1203, %v1207
        %s1210 = sld [smem:[#allocation12 + $0x78]]
        %v1211 = vstv %s1210
        %v1212 = vmul.f32 %v1211, %v1094
        %v1213 = vmul.f32 %v1211, %v1095
        %v1214 = vadd.f32 %v1208, %v1212
        %v1215 = vadd.f32 %v1209, %v1213
        %s1216 = sld [smem:[#allocation12 + $0x80]]
        %v1217 = vstv %s1216
        %v1218 = vmul.f32 %v1217, %v865
        %v1219 = vmul.f32 %v1217, %v866
        %v1220 = vadd.f32 %v1214, %v1218
        %v1221 = vadd.f32 %v1215, %v1219
        %s1222 = sld [smem:[#allocation12 + $0x88]]
        %v1223 = vstv %s1222
        %v1224 = vmul.f32 %v1223, %v877
        %v1225 = vmul.f32 %v1223, %v878
        %v1226 = vadd.f32 %v1220, %v1224
        %v1227 = vadd.f32 %v1221, %v1225
        %s1228 = sld [smem:[#allocation12 + $0x90]]
        %v1229 = vstv %s1228
        %v1230 = vmul.f32 %v1229, %v889
        %v1231 = vmul.f32 %v1229, %v890
        %v1232 = vadd.f32 %v1226, %v1230
        %v1233 = vadd.f32 %v1227, %v1231
        %s1234 = sld [smem:[#allocation12 + $0x98]]
        %v1235 = vstv %s1234
        %v1236 = vmul.f32 %v1235, %v901
        %v1237 = vmul.f32 %v1235, %v902
        %v1238 = vadd.f32 %v1232, %v1236
        %v1239 = vadd.f32 %v1233, %v1237
        %s1240 = sld [smem:[#allocation12 + $0xa0]]
        %v1241 = vstv %s1240
        %v1242 = vmul.f32 %v1241, %v956
        %v1243 = vmul.f32 %v1241, %v957
        %v1244 = vadd.f32 %v1238, %v1242
        %v1245 = vadd.f32 %v1239, %v1243
        %s1246 = sld [smem:[#allocation12 + $0xa8]]
        %v1247 = vstv %s1246
        %v1248 = vmul.f32 %v1247, %v1004
        %v1249 = vmul.f32 %v1247, %v1005
        %v1250 = vadd.f32 %v1244, %v1248
        %v1251 = vadd.f32 %v1245, %v1249
        %s1252 = sld [smem:[#allocation12 + $0xb0]]
        %v1253 = vstv %s1252
        %v1254 = vmul.f32 %v1253, %v1052
        %v1255 = vmul.f32 %v1253, %v1053
        %v1256 = vadd.f32 %v1250, %v1254
        %v1257 = vadd.f32 %v1251, %v1255
        %s1258 = sld [smem:[#allocation12 + $0xb8]]
        %v1259 = vstv %s1258
        %v1260 = vmul.f32 %v1259, %v1100
        %v1261 = vmul.f32 %v1259, %v1101
        %v1262 = vadd.f32 %v1256, %v1260
        %v1263 = vadd.f32 %v1257, %v1261
        %s1264 = sld [smem:[#allocation12 + $0xc0]]
        %v1265 = vstv %s1264
        %v1266 = vmul.f32 %v1265, %v962
        %v1267 = vmul.f32 %v1265, %v963
        %v1268 = vadd.f32 %v1262, %v1266
        %v1269 = vadd.f32 %v1263, %v1267
        %s1270 = sld [smem:[#allocation12 + $0xc8]]
        %v1271 = vstv %s1270
        %v1272 = vmul.f32 %v1271, %v1010
        %v1273 = vmul.f32 %v1271, %v1011
        %v1274 = vadd.f32 %v1268, %v1272
        %v1275 = vadd.f32 %v1269, %v1273
        %s1276 = sld [smem:[#allocation12 + $0xd0]]
        %v1277 = vstv %s1276
        %v1278 = vmul.f32 %v1277, %v1058
        %v1279 = vmul.f32 %v1277, %v1059
        %v1280 = vadd.f32 %v1274, %v1278
        %v1281 = vadd.f32 %v1275, %v1279
        %s1282 = sld [smem:[#allocation12 + $0xd8]]
        %v1283 = vstv %s1282
        %v1284 = vmul.f32 %v1283, %v1106
        %v1285 = vmul.f32 %v1283, %v1107
        %v1286 = vadd.f32 %v1280, %v1284
        %v1287 = vadd.f32 %v1281, %v1285
        %s1288 = sld [smem:[#allocation12 + $0xe0]]
        %v1289 = vstv %s1288
        %v1290 = vmul.f32 %v1289, %v964
        %v1291 = vmul.f32 %v1289, %v965
        %v1292 = vadd.f32 %v1286, %v1290
        %v1293 = vadd.f32 %v1287, %v1291
        %s1294 = sld [smem:[#allocation12 + $0xe8]]
        %v1295 = vstv %s1294
        %v1296 = vmul.f32 %v1295, %v1012
        %v1297 = vmul.f32 %v1295, %v1013
        %v1298 = vadd.f32 %v1292, %v1296
        %v1299 = vadd.f32 %v1293, %v1297
        %s1300 = sld [smem:[#allocation12 + $0xf0]]
        %v1301 = vstv %s1300
        %v1302 = vmul.f32 %v1301, %v1060
        %v1303 = vmul.f32 %v1301, %v1061
        %v1304 = vadd.f32 %v1298, %v1302
        %v1305 = vadd.f32 %v1299, %v1303
        %s1306 = sld [smem:[#allocation12 + $0xf8]]
        %v1307 = vstv %s1306
        %v1308 = vmul.f32 %v1307, %v1108
        %v1309 = vmul.f32 %v1307, %v1109
        %v1310 = vadd.f32 %v1304, %v1308
        %v1311 = vadd.f32 %v1305, %v1309
        %s1312 = sld [smem:[#allocation12 + $0x100]]
        %v1313 = vstv %s1312
        %v1314 = vmul.f32 %v1313, %v970
        %v1315 = vmul.f32 %v1313, %v971
        %v1316 = vadd.f32 %v1310, %v1314
        %v1317 = vadd.f32 %v1311, %v1315
        %s1318 = sld [smem:[#allocation12 + $0x108]]
        %v1319 = vstv %s1318
        %v1320 = vmul.f32 %v1319, %v1018
        %v1321 = vmul.f32 %v1319, %v1019
        %v1322 = vadd.f32 %v1316, %v1320
        %v1323 = vadd.f32 %v1317, %v1321
        %s1324 = sld [smem:[#allocation12 + $0x110]]
        %v1325 = vstv %s1324
        %v1326 = vmul.f32 %v1325, %v1066
        %v1327 = vmul.f32 %v1325, %v1067
        %v1328 = vadd.f32 %v1322, %v1326
        %v1329 = vadd.f32 %v1323, %v1327
        %s1330 = sld [smem:[#allocation12 + $0x118]]
        %v1331 = vstv %s1330
        %v1332 = vmul.f32 %v1331, %v1114
        %v1333 = vmul.f32 %v1331, %v1115
        %v1334 = vadd.f32 %v1328, %v1332
        %v1335 = vadd.f32 %v1329, %v1333
        %v1336 = vmax.f32 %v1334, 0.0
        %v1337 = vmax.f32 %v1335, 0.0
        %v1338 = vrot.slane %v1336, 7
        %v1339 = vrot.slane %v1337, 7
        %v1340 = vsel %vm924, %v1338, %v1339
        %v1341 = vsel %vm924, %v1339, %v1338
        %v1342 = vrot.slane %v1336, 1
        %v1343 = vrot.slane %v1337, 1
        %v1344 = vsel %vm929, %v1342, %v1343
        %v1345 = vsel %vm929, %v1343, %v1342
        %1346 = vrot.lane.b32.xlu0 %v1341, 1
        %v1347 = vpop.permute.xlu0 %1346
        %1348 = vrot.lane.b32.xlu0 %v1340, 1
        %v1349 = vpop.permute.xlu0 %1348
        %v1350 = vsel %vm914, %v1347, 0.0
        %v1351 = vsel %vm915, %v1349, 0.0
        %v1352 = vsel %vm908, %v1341, 0.0
        %v1353 = vsel %vm909, %v1340, 0.0
        %1354 = vrot.lane.b32.xlu0 %v1341, 127
        %v1355 = vpop.permute.xlu0 %1354
        %1356 = vrot.lane.b32.xlu0 %v1340, 127
        %v1357 = vpop.permute.xlu0 %1356
        %v1358 = vsel %vm916, %v1355, 0.0
        %v1359 = vsel %vm917, %v1357, 0.0
        %1360 = vrot.lane.b32.xlu0 %v1336, 1
        %v1361 = vpop.permute.xlu0 %1360
        %1362 = vrot.lane.b32.xlu0 %v1337, 1
        %v1363 = vpop.permute.xlu0 %1362
        %v1364 = vsel %vm912, %v1361, 0.0
        %v1365 = vsel %vm912, %v1363, 0.0
        %1366 = vrot.lane.b32.xlu0 %v1336, 127
        %v1367 = vpop.permute.xlu0 %1366
        %1368 = vrot.lane.b32.xlu0 %v1337, 127
        %v1369 = vpop.permute.xlu0 %1368
        %v1370 = vsel %vm913, %v1367, 0.0
        %v1371 = vsel %vm913, %v1369, 0.0
        %1372 = vrot.lane.b32.xlu0 %v1344, 1
        %v1373 = vpop.permute.xlu0 %1372
        %1374 = vrot.lane.b32.xlu0 %v1345, 1
        %v1375 = vpop.permute.xlu0 %1374
        %v1376 = vsel %vm918, %v1373, 0.0
        %v1377 = vsel %vm919, %v1375, 0.0
        %v1378 = vsel %vm910, %v1344, 0.0
        %v1379 = vsel %vm911, %v1345, 0.0
        %1380 = vrot.lane.b32.xlu0 %v1344, 127
        %v1381 = vpop.permute.xlu0 %1380
        %1382 = vrot.lane.b32.xlu0 %v1345, 127
        %v1383 = vpop.permute.xlu0 %1382
        %v1384 = vsel %vm920, %v1381, 0.0
        %v1385 = vsel %vm921, %v1383, 0.0
        %s1386 = sld [smem:[#allocation15]]
        %v1387 = vstv %s1386
        %v1388 = vmul.f32 %v1387, %v1350
        %v1389 = vmul.f32 %v1387, %v1351
        %v1390 = vadd.f32 %v1117, %v1388
        %v1391 = vadd.f32 %v1117, %v1389
        %s1392 = sld [smem:[#allocation15 + $0x8]]
        %v1393 = vstv %s1392
        %v1394 = vmul.f32 %v1393, %v1352
        %v1395 = vmul.f32 %v1393, %v1353
        %v1396 = vadd.f32 %v1390, %v1394
        %v1397 = vadd.f32 %v1391, %v1395
        %s1398 = sld [smem:[#allocation15 + $0x10]]
        %v1399 = vstv %s1398
        %v1400 = vmul.f32 %v1399, %v1358
        %v1401 = vmul.f32 %v1399, %v1359
        %v1402 = vadd.f32 %v1396, %v1400
        %v1403 = vadd.f32 %v1397, %v1401
        %s1404 = sld [smem:[#allocation15 + $0x18]]
        %v1405 = vstv %s1404
        %v1406 = vmul.f32 %v1405, %v1364
        %v1407 = vmul.f32 %v1405, %v1365
        %v1408 = vadd.f32 %v1402, %v1406
        %v1409 = vadd.f32 %v1403, %v1407
        %s1410 = sld [smem:[#allocation15 + $0x20]]
        %v1411 = vstv %s1410
        %v1412 = vmul.f32 %v1411, %v1336
        %v1413 = vmul.f32 %v1411, %v1337
        %v1414 = vadd.f32 %v1408, %v1412
        %v1415 = vadd.f32 %v1409, %v1413
        %s1416 = sld [smem:[#allocation15 + $0x28]]
        %v1417 = vstv %s1416
        %v1418 = vmul.f32 %v1417, %v1370
        %v1419 = vmul.f32 %v1417, %v1371
        %v1420 = vadd.f32 %v1414, %v1418
        %v1421 = vadd.f32 %v1415, %v1419
        %s1422 = sld [smem:[#allocation15 + $0x30]]
        %v1423 = vstv %s1422
        %v1424 = vmul.f32 %v1423, %v1376
        %v1425 = vmul.f32 %v1423, %v1377
        %v1426 = vadd.f32 %v1420, %v1424
        %v1427 = vadd.f32 %v1421, %v1425
        %s1428 = sld [smem:[#allocation15 + $0x38]]
        %v1429 = vstv %s1428
        %v1430 = vmul.f32 %v1429, %v1378
        %v1431 = vmul.f32 %v1429, %v1379
        %v1432 = vadd.f32 %v1426, %v1430
        %v1433 = vadd.f32 %v1427, %v1431
        %s1434 = sld [smem:[#allocation15 + $0x40]]
        %v1435 = vstv %s1434
        %v1436 = vmul.f32 %v1435, %v1384
        %v1437 = vmul.f32 %v1435, %v1385
        %v1438 = vadd.f32 %v1432, %v1436
        %v1439 = vadd.f32 %v1433, %v1437
        %s1440 = sld [smem:[#allocation13 + $0x1]]
        %v1441 = vstv %s1440
        %s1442 = sld [smem:[#allocation12 + $0x1]]
        %v1443 = vstv %s1442
        %v1444 = vmul.f32 %v1443, %v936
        %v1445 = vmul.f32 %v1443, %v937
        %v1446 = vadd.f32 %v1441, %v1444
        %v1447 = vadd.f32 %v1441, %v1445
        %s1448 = sld [smem:[#allocation12 + $0x9]]
        %v1449 = vstv %s1448
        %v1450 = vmul.f32 %v1449, %v984
        %v1451 = vmul.f32 %v1449, %v985
        %v1452 = vadd.f32 %v1446, %v1450
        %v1453 = vadd.f32 %v1447, %v1451
        %s1454 = sld [smem:[#allocation12 + $0x11]]
        %v1455 = vstv %s1454
        %v1456 = vmul.f32 %v1455, %v1032
        %v1457 = vmul.f32 %v1455, %v1033
        %v1458 = vadd.f32 %v1452, %v1456
        %v1459 = vadd.f32 %v1453, %v1457
        %s1460 = sld [smem:[#allocation12 + $0x19]]
        %v1461 = vstv %s1460
        %v1462 = vmul.f32 %v1461, %v1080
        %v1463 = vmul.f32 %v1461, %v1081
        %v1464 = vadd.f32 %v1458, %v1462
        %v1465 = vadd.f32 %v1459, %v1463
        %s1466 = sld [smem:[#allocation12 + $0x21]]
        %v1467 = vstv %s1466
        %v1468 = vmul.f32 %v1467, %v938
        %v1469 = vmul.f32 %v1467, %v939
        %v1470 = vadd.f32 %v1464, %v1468
        %v1471 = vadd.f32 %v1465, %v1469
        %s1472 = sld [smem:[#allocation12 + $0x29]]
        %v1473 = vstv %s1472
        %v1474 = vmul.f32 %v1473, %v986
        %v1475 = vmul.f32 %v1473, %v987
        %v1476 = vadd.f32 %v1470, %v1474
        %v1477 = vadd.f32 %v1471, %v1475
        %s1478 = sld [smem:[#allocation12 + $0x31]]
        %v1479 = vstv %s1478
        %v1480 = vmul.f32 %v1479, %v1034
        %v1481 = vmul.f32 %v1479, %v1035
        %v1482 = vadd.f32 %v1476, %v1480
        %v1483 = vadd.f32 %v1477, %v1481
        %s1484 = sld [smem:[#allocation12 + $0x39]]
        %v1485 = vstv %s1484
        %v1486 = vmul.f32 %v1485, %v1082
        %v1487 = vmul.f32 %v1485, %v1083
        %v1488 = vadd.f32 %v1482, %v1486
        %v1489 = vadd.f32 %v1483, %v1487
        %s1490 = sld [smem:[#allocation12 + $0x41]]
        %v1491 = vstv %s1490
        %v1492 = vmul.f32 %v1491, %v944
        %v1493 = vmul.f32 %v1491, %v945
        %v1494 = vadd.f32 %v1488, %v1492
        %v1495 = vadd.f32 %v1489, %v1493
        %s1496 = sld [smem:[#allocation12 + $0x49]]
        %v1497 = vstv %s1496
        %v1498 = vmul.f32 %v1497, %v992
        %v1499 = vmul.f32 %v1497, %v993
        %v1500 = vadd.f32 %v1494, %v1498
        %v1501 = vadd.f32 %v1495, %v1499
        %s1502 = sld [smem:[#allocation12 + $0x51]]
        %v1503 = vstv %s1502
        %v1504 = vmul.f32 %v1503, %v1040
        %v1505 = vmul.f32 %v1503, %v1041
        %v1506 = vadd.f32 %v1500, %v1504
        %v1507 = vadd.f32 %v1501, %v1505
        %s1508 = sld [smem:[#allocation12 + $0x59]]
        %v1509 = vstv %s1508
        %v1510 = vmul.f32 %v1509, %v1088
        %v1511 = vmul.f32 %v1509, %v1089
        %v1512 = vadd.f32 %v1506, %v1510
        %v1513 = vadd.f32 %v1507, %v1511
        %s1514 = sld [smem:[#allocation12 + $0x61]]
        %v1515 = vstv %s1514
        %v1516 = vmul.f32 %v1515, %v950
        %v1517 = vmul.f32 %v1515, %v951
        %v1518 = vadd.f32 %v1512, %v1516
        %v1519 = vadd.f32 %v1513, %v1517
        %s1520 = sld [smem:[#allocation12 + $0x69]]
        %v1521 = vstv %s1520
        %v1522 = vmul.f32 %v1521, %v998
        %v1523 = vmul.f32 %v1521, %v999
        %v1524 = vadd.f32 %v1518, %v1522
        %v1525 = vadd.f32 %v1519, %v1523
        %s1526 = sld [smem:[#allocation12 + $0x71]]
        %v1527 = vstv %s1526
        %v1528 = vmul.f32 %v1527, %v1046
        %v1529 = vmul.f32 %v1527, %v1047
        %v1530 = vadd.f32 %v1524, %v1528
        %v1531 = vadd.f32 %v1525, %v1529
        %s1532 = sld [smem:[#allocation12 + $0x79]]
        %v1533 = vstv %s1532
        %v1534 = vmul.f32 %v1533, %v1094
        %v1535 = vmul.f32 %v1533, %v1095
        %v1536 = vadd.f32 %v1530, %v1534
        %v1537 = vadd.f32 %v1531, %v1535
        %s1538 = sld [smem:[#allocation12 + $0x81]]
        %v1539 = vstv %s1538
        %v1540 = vmul.f32 %v1539, %v865
        %v1541 = vmul.f32 %v1539, %v866
        %v1542 = vadd.f32 %v1536, %v1540
        %v1543 = vadd.f32 %v1537, %v1541
        %s1544 = sld [smem:[#allocation12 + $0x89]]
        %v1545 = vstv %s1544
        %v1546 = vmul.f32 %v1545, %v877
        %v1547 = vmul.f32 %v1545, %v878
        %v1548 = vadd.f32 %v1542, %v1546
        %v1549 = vadd.f32 %v1543, %v1547
        %s1550 = sld [smem:[#allocation12 + $0x91]]
        %v1551 = vstv %s1550
        %v1552 = vmul.f32 %v1551, %v889
        %v1553 = vmul.f32 %v1551, %v890
        %v1554 = vadd.f32 %v1548, %v1552
        %v1555 = vadd.f32 %v1549, %v1553
        %s1556 = sld [smem:[#allocation12 + $0x99]]
        %v1557 = vstv %s1556
        %v1558 = vmul.f32 %v1557, %v901
        %v1559 = vmul.f32 %v1557, %v902
        %v1560 = vadd.f32 %v1554, %v1558
        %v1561 = vadd.f32 %v1555, %v1559
        %s1562 = sld [smem:[#allocation12 + $0xa1]]
        %v1563 = vstv %s1562
        %v1564 = vmul.f32 %v1563, %v956
        %v1565 = vmul.f32 %v1563, %v957
        %v1566 = vadd.f32 %v1560, %v1564
        %v1567 = vadd.f32 %v1561, %v1565
        %s1568 = sld [smem:[#allocation12 + $0xa9]]
        %v1569 = vstv %s1568
        %v1570 = vmul.f32 %v1569, %v1004
        %v1571 = vmul.f32 %v1569, %v1005
        %v1572 = vadd.f32 %v1566, %v1570
        %v1573 = vadd.f32 %v1567, %v1571
        %s1574 = sld [smem:[#allocation12 + $0xb1]]
        %v1575 = vstv %s1574
        %v1576 = vmul.f32 %v1575, %v1052
        %v1577 = vmul.f32 %v1575, %v1053
        %v1578 = vadd.f32 %v1572, %v1576
        %v1579 = vadd.f32 %v1573, %v1577
        %s1580 = sld [smem:[#allocation12 + $0xb9]]
        %v1581 = vstv %s1580
        %v1582 = vmul.f32 %v1581, %v1100
        %v1583 = vmul.f32 %v1581, %v1101
        %v1584 = vadd.f32 %v1578, %v1582
        %v1585 = vadd.f32 %v1579, %v1583
        %s1586 = sld [smem:[#allocation12 + $0xc1]]
        %v1587 = vstv %s1586
        %v1588 = vmul.f32 %v1587, %v962
        %v1589 = vmul.f32 %v1587, %v963
        %v1590 = vadd.f32 %v1584, %v1588
        %v1591 = vadd.f32 %v1585, %v1589
        %s1592 = sld [smem:[#allocation12 + $0xc9]]
        %v1593 = vstv %s1592
        %v1594 = vmul.f32 %v1593, %v1010
        %v1595 = vmul.f32 %v1593, %v1011
        %v1596 = vadd.f32 %v1590, %v1594
        %v1597 = vadd.f32 %v1591, %v1595
        %s1598 = sld [smem:[#allocation12 + $0xd1]]
        %v1599 = vstv %s1598
        %v1600 = vmul.f32 %v1599, %v1058
        %v1601 = vmul.f32 %v1599, %v1059
        %v1602 = vadd.f32 %v1596, %v1600
        %v1603 = vadd.f32 %v1597, %v1601
        %s1604 = sld [smem:[#allocation12 + $0xd9]]
        %v1605 = vstv %s1604
        %v1606 = vmul.f32 %v1605, %v1106
        %v1607 = vmul.f32 %v1605, %v1107
        %v1608 = vadd.f32 %v1602, %v1606
        %v1609 = vadd.f32 %v1603, %v1607
        %s1610 = sld [smem:[#allocation12 + $0xe1]]
        %v1611 = vstv %s1610
        %v1612 = vmul.f32 %v1611, %v964
        %v1613 = vmul.f32 %v1611, %v965
        %v1614 = vadd.f32 %v1608, %v1612
        %v1615 = vadd.f32 %v1609, %v1613
        %s1616 = sld [smem:[#allocation12 + $0xe9]]
        %v1617 = vstv %s1616
        %v1618 = vmul.f32 %v1617, %v1012
        %v1619 = vmul.f32 %v1617, %v1013
        %v1620 = vadd.f32 %v1614, %v1618
        %v1621 = vadd.f32 %v1615, %v1619
        %s1622 = sld [smem:[#allocation12 + $0xf1]]
        %v1623 = vstv %s1622
        %v1624 = vmul.f32 %v1623, %v1060
        %v1625 = vmul.f32 %v1623, %v1061
        %v1626 = vadd.f32 %v1620, %v1624
        %v1627 = vadd.f32 %v1621, %v1625
        %s1628 = sld [smem:[#allocation12 + $0xf9]]
        %v1629 = vstv %s1628
        %v1630 = vmul.f32 %v1629, %v1108
        %v1631 = vmul.f32 %v1629, %v1109
        %v1632 = vadd.f32 %v1626, %v1630
        %v1633 = vadd.f32 %v1627, %v1631
        %s1634 = sld [smem:[#allocation12 + $0x101]]
        %v1635 = vstv %s1634
        %v1636 = vmul.f32 %v1635, %v970
        %v1637 = vmul.f32 %v1635, %v971
        %v1638 = vadd.f32 %v1632, %v1636
        %v1639 = vadd.f32 %v1633, %v1637
        %s1640 = sld [smem:[#allocation12 + $0x109]]
        %v1641 = vstv %s1640
        %v1642 = vmul.f32 %v1641, %v1018
        %v1643 = vmul.f32 %v1641, %v1019
        %v1644 = vadd.f32 %v1638, %v1642
        %v1645 = vadd.f32 %v1639, %v1643
        %s1646 = sld [smem:[#allocation12 + $0x111]]
        %v1647 = vstv %s1646
        %v1648 = vmul.f32 %v1647, %v1066
        %v1649 = vmul.f32 %v1647, %v1067
        %v1650 = vadd.f32 %v1644, %v1648
        %v1651 = vadd.f32 %v1645, %v1649
        %s1652 = sld [smem:[#allocation12 + $0x119]]
        %v1653 = vstv %s1652
        %v1654 = vmul.f32 %v1653, %v1114
        %v1655 = vmul.f32 %v1653, %v1115
        %v1656 = vadd.f32 %v1650, %v1654
        %v1657 = vadd.f32 %v1651, %v1655
        %v1658 = vmax.f32 %v1656, 0.0
        %v1659 = vmax.f32 %v1657, 0.0
        %v1660 = vrot.slane %v1658, 7
        %v1661 = vrot.slane %v1659, 7
        %v1662 = vsel %vm924, %v1660, %v1661
        %v1663 = vsel %vm924, %v1661, %v1660
        %v1664 = vrot.slane %v1658, 1
        %v1665 = vrot.slane %v1659, 1
        %v1666 = vsel %vm929, %v1664, %v1665
        %v1667 = vsel %vm929, %v1665, %v1664
        %1668 = vrot.lane.b32.xlu0 %v1663, 1
        %v1669 = vpop.permute.xlu0 %1668
        %1670 = vrot.lane.b32.xlu0 %v1662, 1
        %v1671 = vpop.permute.xlu0 %1670
        %v1672 = vsel %vm914, %v1669, 0.0
        %v1673 = vsel %vm915, %v1671, 0.0
        %v1674 = vsel %vm908, %v1663, 0.0
        %v1675 = vsel %vm909, %v1662, 0.0
        %1676 = vrot.lane.b32.xlu0 %v1663, 127
        %v1677 = vpop.permute.xlu0 %1676
        %1678 = vrot.lane.b32.xlu0 %v1662, 127
        %v1679 = vpop.permute.xlu0 %1678
        %v1680 = vsel %vm916, %v1677, 0.0
        %v1681 = vsel %vm917, %v1679, 0.0
        %1682 = vrot.lane.b32.xlu0 %v1658, 1
        %v1683 = vpop.permute.xlu0 %1682
        %1684 = vrot.lane.b32.xlu0 %v1659, 1
        %v1685 = vpop.permute.xlu0 %1684
        %v1686 = vsel %vm912, %v1683, 0.0
        %v1687 = vsel %vm912, %v1685, 0.0
        %1688 = vrot.lane.b32.xlu0 %v1658, 127
        %v1689 = vpop.permute.xlu0 %1688
        %1690 = vrot.lane.b32.xlu0 %v1659, 127
        %v1691 = vpop.permute.xlu0 %1690
        %v1692 = vsel %vm913, %v1689, 0.0
        %v1693 = vsel %vm913, %v1691, 0.0
        %1694 = vrot.lane.b32.xlu0 %v1666, 1
        %v1695 = vpop.permute.xlu0 %1694
        %1696 = vrot.lane.b32.xlu0 %v1667, 1
        %v1697 = vpop.permute.xlu0 %1696
        %v1698 = vsel %vm918, %v1695, 0.0
        %v1699 = vsel %vm919, %v1697, 0.0
        %v1700 = vsel %vm910, %v1666, 0.0
        %v1701 = vsel %vm911, %v1667, 0.0
        %1702 = vrot.lane.b32.xlu0 %v1666, 127
        %v1703 = vpop.permute.xlu0 %1702
        %1704 = vrot.lane.b32.xlu0 %v1667, 127
        %v1705 = vpop.permute.xlu0 %1704
        %v1706 = vsel %vm920, %v1703, 0.0
        %v1707 = vsel %vm921, %v1705, 0.0
        %s1708 = sld [smem:[#allocation15 + $0x1]]
        %v1709 = vstv %s1708
        %v1710 = vmul.f32 %v1709, %v1672
        %v1711 = vmul.f32 %v1709, %v1673
        %v1712 = vadd.f32 %v1438, %v1710
        %v1713 = vadd.f32 %v1439, %v1711
        %s1714 = sld [smem:[#allocation15 + $0x9]]
        %v1715 = vstv %s1714
        %v1716 = vmul.f32 %v1715, %v1674
        %v1717 = vmul.f32 %v1715, %v1675
        %v1718 = vadd.f32 %v1712, %v1716
        %v1719 = vadd.f32 %v1713, %v1717
        %s1720 = sld [smem:[#allocation15 + $0x11]]
        %v1721 = vstv %s1720
        %v1722 = vmul.f32 %v1721, %v1680
        %v1723 = vmul.f32 %v1721, %v1681
        %v1724 = vadd.f32 %v1718, %v1722
        %v1725 = vadd.f32 %v1719, %v1723
        %s1726 = sld [smem:[#allocation15 + $0x19]]
        %v1727 = vstv %s1726
        %v1728 = vmul.f32 %v1727, %v1686
        %v1729 = vmul.f32 %v1727, %v1687
        %v1730 = vadd.f32 %v1724, %v1728
        %v1731 = vadd.f32 %v1725, %v1729
        %s1732 = sld [smem:[#allocation15 + $0x21]]
        %v1733 = vstv %s1732
        %v1734 = vmul.f32 %v1733, %v1658
        %v1735 = vmul.f32 %v1733, %v1659
        %v1736 = vadd.f32 %v1730, %v1734
        %v1737 = vadd.f32 %v1731, %v1735
        %s1738 = sld [smem:[#allocation15 + $0x29]]
        %v1739 = vstv %s1738
        %v1740 = vmul.f32 %v1739, %v1692
        %v1741 = vmul.f32 %v1739, %v1693
        %v1742 = vadd.f32 %v1736, %v1740
        %v1743 = vadd.f32 %v1737, %v1741
        %s1744 = sld [smem:[#allocation15 + $0x31]]
        %v1745 = vstv %s1744
        %v1746 = vmul.f32 %v1745, %v1698
        %v1747 = vmul.f32 %v1745, %v1699
        %v1748 = vadd.f32 %v1742, %v1746
        %v1749 = vadd.f32 %v1743, %v1747
        %s1750 = sld [smem:[#allocation15 + $0x39]]
        %v1751 = vstv %s1750
        %v1752 = vmul.f32 %v1751, %v1700
        %v1753 = vmul.f32 %v1751, %v1701
        %v1754 = vadd.f32 %v1748, %v1752
        %v1755 = vadd.f32 %v1749, %v1753
        %s1756 = sld [smem:[#allocation15 + $0x41]]
        %v1757 = vstv %s1756
        %v1758 = vmul.f32 %v1757, %v1706
        %v1759 = vmul.f32 %v1757, %v1707
        %v1760 = vadd.f32 %v1754, %v1758
        %v1761 = vadd.f32 %v1755, %v1759
        %s1762 = sld [smem:[#allocation13 + $0x2]]
        %v1763 = vstv %s1762
        %s1764 = sld [smem:[#allocation12 + $0x2]]
        %v1765 = vstv %s1764
        %v1766 = vmul.f32 %v1765, %v936
        %v1767 = vmul.f32 %v1765, %v937
        %v1768 = vadd.f32 %v1763, %v1766
        %v1769 = vadd.f32 %v1763, %v1767
        %s1770 = sld [smem:[#allocation12 + $0xa]]
        %v1771 = vstv %s1770
        %v1772 = vmul.f32 %v1771, %v984
        %v1773 = vmul.f32 %v1771, %v985
        %v1774 = vadd.f32 %v1768, %v1772
        %v1775 = vadd.f32 %v1769, %v1773
        %s1776 = sld [smem:[#allocation12 + $0x12]]
        %v1777 = vstv %s1776
        %v1778 = vmul.f32 %v1777, %v1032
        %v1779 = vmul.f32 %v1777, %v1033
        %v1780 = vadd.f32 %v1774, %v1778
        %v1781 = vadd.f32 %v1775, %v1779
        %s1782 = sld [smem:[#allocation12 + $0x1a]]
        %v1783 = vstv %s1782
        %v1784 = vmul.f32 %v1783, %v1080
        %v1785 = vmul.f32 %v1783, %v1081
        %v1786 = vadd.f32 %v1780, %v1784
        %v1787 = vadd.f32 %v1781, %v1785
        %s1788 = sld [smem:[#allocation12 + $0x22]]
        %v1789 = vstv %s1788
        %v1790 = vmul.f32 %v1789, %v938
        %v1791 = vmul.f32 %v1789, %v939
        %v1792 = vadd.f32 %v1786, %v1790
        %v1793 = vadd.f32 %v1787, %v1791
        %s1794 = sld [smem:[#allocation12 + $0x2a]]
        %v1795 = vstv %s1794
        %v1796 = vmul.f32 %v1795, %v986
        %v1797 = vmul.f32 %v1795, %v987
        %v1798 = vadd.f32 %v1792, %v1796
        %v1799 = vadd.f32 %v1793, %v1797
        %s1800 = sld [smem:[#allocation12 + $0x32]]
        %v1801 = vstv %s1800
        %v1802 = vmul.f32 %v1801, %v1034
        %v1803 = vmul.f32 %v1801, %v1035
        %v1804 = vadd.f32 %v1798, %v1802
        %v1805 = vadd.f32 %v1799, %v1803
        %s1806 = sld [smem:[#allocation12 + $0x3a]]
        %v1807 = vstv %s1806
        %v1808 = vmul.f32 %v1807, %v1082
        %v1809 = vmul.f32 %v1807, %v1083
        %v1810 = vadd.f32 %v1804, %v1808
        %v1811 = vadd.f32 %v1805, %v1809
        %s1812 = sld [smem:[#allocation12 + $0x42]]
        %v1813 = vstv %s1812
        %v1814 = vmul.f32 %v1813, %v944
        %v1815 = vmul.f32 %v1813, %v945
        %v1816 = vadd.f32 %v1810, %v1814
        %v1817 = vadd.f32 %v1811, %v1815
        %s1818 = sld [smem:[#allocation12 + $0x4a]]
        %v1819 = vstv %s1818
        %v1820 = vmul.f32 %v1819, %v992
        %v1821 = vmul.f32 %v1819, %v993
        %v1822 = vadd.f32 %v1816, %v1820
        %v1823 = vadd.f32 %v1817, %v1821
        %s1824 = sld [smem:[#allocation12 + $0x52]]
        %v1825 = vstv %s1824
        %v1826 = vmul.f32 %v1825, %v1040
        %v1827 = vmul.f32 %v1825, %v1041
        %v1828 = vadd.f32 %v1822, %v1826
        %v1829 = vadd.f32 %v1823, %v1827
        %s1830 = sld [smem:[#allocation12 + $0x5a]]
        %v1831 = vstv %s1830
        %v1832 = vmul.f32 %v1831, %v1088
        %v1833 = vmul.f32 %v1831, %v1089
        %v1834 = vadd.f32 %v1828, %v1832
        %v1835 = vadd.f32 %v1829, %v1833
        %s1836 = sld [smem:[#allocation12 + $0x62]]
        %v1837 = vstv %s1836
        %v1838 = vmul.f32 %v1837, %v950
        %v1839 = vmul.f32 %v1837, %v951
        %v1840 = vadd.f32 %v1834, %v1838
        %v1841 = vadd.f32 %v1835, %v1839
        %s1842 = sld [smem:[#allocation12 + $0x6a]]
        %v1843 = vstv %s1842
        %v1844 = vmul.f32 %v1843, %v998
        %v1845 = vmul.f32 %v1843, %v999
        %v1846 = vadd.f32 %v1840, %v1844
        %v1847 = vadd.f32 %v1841, %v1845
        %s1848 = sld [smem:[#allocation12 + $0x72]]
        %v1849 = vstv %s1848
        %v1850 = vmul.f32 %v1849, %v1046
        %v1851 = vmul.f32 %v1849, %v1047
        %v1852 = vadd.f32 %v1846, %v1850
        %v1853 = vadd.f32 %v1847, %v1851
        %s1854 = sld [smem:[#allocation12 + $0x7a]]
        %v1855 = vstv %s1854
        %v1856 = vmul.f32 %v1855, %v1094
        %v1857 = vmul.f32 %v1855, %v1095
        %v1858 = vadd.f32 %v1852, %v1856
        %v1859 = vadd.f32 %v1853, %v1857
        %s1860 = sld [smem:[#allocation12 + $0x82]]
        %v1861 = vstv %s1860
        %v1862 = vmul.f32 %v1861, %v865
        %v1863 = vmul.f32 %v1861, %v866
        %v1864 = vadd.f32 %v1858, %v1862
        %v1865 = vadd.f32 %v1859, %v1863
        %s1866 = sld [smem:[#allocation12 + $0x8a]]
        %v1867 = vstv %s1866
        %v1868 = vmul.f32 %v1867, %v877
        %v1869 = vmul.f32 %v1867, %v878
        %v1870 = vadd.f32 %v1864, %v1868
        %v1871 = vadd.f32 %v1865, %v1869
        %s1872 = sld [smem:[#allocation12 + $0x92]]
        %v1873 = vstv %s1872
        %v1874 = vmul.f32 %v1873, %v889
        %v1875 = vmul.f32 %v1873, %v890
        %v1876 = vadd.f32 %v1870, %v1874
        %v1877 = vadd.f32 %v1871, %v1875
        %s1878 = sld [smem:[#allocation12 + $0x9a]]
        %v1879 = vstv %s1878
        %v1880 = vmul.f32 %v1879, %v901
        %v1881 = vmul.f32 %v1879, %v902
        %v1882 = vadd.f32 %v1876, %v1880
        %v1883 = vadd.f32 %v1877, %v1881
        %s1884 = sld [smem:[#allocation12 + $0xa2]]
        %v1885 = vstv %s1884
        %v1886 = vmul.f32 %v1885, %v956
        %v1887 = vmul.f32 %v1885, %v957
        %v1888 = vadd.f32 %v1882, %v1886
        %v1889 = vadd.f32 %v1883, %v1887
        %s1890 = sld [smem:[#allocation12 + $0xaa]]
        %v1891 = vstv %s1890
        %v1892 = vmul.f32 %v1891, %v1004
        %v1893 = vmul.f32 %v1891, %v1005
        %v1894 = vadd.f32 %v1888, %v1892
        %v1895 = vadd.f32 %v1889, %v1893
        %s1896 = sld [smem:[#allocation12 + $0xb2]]
        %v1897 = vstv %s1896
        %v1898 = vmul.f32 %v1897, %v1052
        %v1899 = vmul.f32 %v1897, %v1053
        %v1900 = vadd.f32 %v1894, %v1898
        %v1901 = vadd.f32 %v1895, %v1899
        %s1902 = sld [smem:[#allocation12 + $0xba]]
        %v1903 = vstv %s1902
        %v1904 = vmul.f32 %v1903, %v1100
        %v1905 = vmul.f32 %v1903, %v1101
        %v1906 = vadd.f32 %v1900, %v1904
        %v1907 = vadd.f32 %v1901, %v1905
        %s1908 = sld [smem:[#allocation12 + $0xc2]]
        %v1909 = vstv %s1908
        %v1910 = vmul.f32 %v1909, %v962
        %v1911 = vmul.f32 %v1909, %v963
        %v1912 = vadd.f32 %v1906, %v1910
        %v1913 = vadd.f32 %v1907, %v1911
        %s1914 = sld [smem:[#allocation12 + $0xca]]
        %v1915 = vstv %s1914
        %v1916 = vmul.f32 %v1915, %v1010
        %v1917 = vmul.f32 %v1915, %v1011
        %v1918 = vadd.f32 %v1912, %v1916
        %v1919 = vadd.f32 %v1913, %v1917
        %s1920 = sld [smem:[#allocation12 + $0xd2]]
        %v1921 = vstv %s1920
        %v1922 = vmul.f32 %v1921, %v1058
        %v1923 = vmul.f32 %v1921, %v1059
        %v1924 = vadd.f32 %v1918, %v1922
        %v1925 = vadd.f32 %v1919, %v1923
        %s1926 = sld [smem:[#allocation12 + $0xda]]
        %v1927 = vstv %s1926
        %v1928 = vmul.f32 %v1927, %v1106
        %v1929 = vmul.f32 %v1927, %v1107
        %v1930 = vadd.f32 %v1924, %v1928
        %v1931 = vadd.f32 %v1925, %v1929
        %s1932 = sld [smem:[#allocation12 + $0xe2]]
        %v1933 = vstv %s1932
        %v1934 = vmul.f32 %v1933, %v964
        %v1935 = vmul.f32 %v1933, %v965
        %v1936 = vadd.f32 %v1930, %v1934
        %v1937 = vadd.f32 %v1931, %v1935
        %s1938 = sld [smem:[#allocation12 + $0xea]]
        %v1939 = vstv %s1938
        %v1940 = vmul.f32 %v1939, %v1012
        %v1941 = vmul.f32 %v1939, %v1013
        %v1942 = vadd.f32 %v1936, %v1940
        %v1943 = vadd.f32 %v1937, %v1941
        %s1944 = sld [smem:[#allocation12 + $0xf2]]
        %v1945 = vstv %s1944
        %v1946 = vmul.f32 %v1945, %v1060
        %v1947 = vmul.f32 %v1945, %v1061
        %v1948 = vadd.f32 %v1942, %v1946
        %v1949 = vadd.f32 %v1943, %v1947
        %s1950 = sld [smem:[#allocation12 + $0xfa]]
        %v1951 = vstv %s1950
        %v1952 = vmul.f32 %v1951, %v1108
        %v1953 = vmul.f32 %v1951, %v1109
        %v1954 = vadd.f32 %v1948, %v1952
        %v1955 = vadd.f32 %v1949, %v1953
        %s1956 = sld [smem:[#allocation12 + $0x102]]
        %v1957 = vstv %s1956
        %v1958 = vmul.f32 %v1957, %v970
        %v1959 = vmul.f32 %v1957, %v971
        %v1960 = vadd.f32 %v1954, %v1958
        %v1961 = vadd.f32 %v1955, %v1959
        %s1962 = sld [smem:[#allocation12 + $0x10a]]
        %v1963 = vstv %s1962
        %v1964 = vmul.f32 %v1963, %v1018
        %v1965 = vmul.f32 %v1963, %v1019
        %v1966 = vadd.f32 %v1960, %v1964
        %v1967 = vadd.f32 %v1961, %v1965
        %s1968 = sld [smem:[#allocation12 + $0x112]]
        %v1969 = vstv %s1968
        %v1970 = vmul.f32 %v1969, %v1066
        %v1971 = vmul.f32 %v1969, %v1067
        %v1972 = vadd.f32 %v1966, %v1970
        %v1973 = vadd.f32 %v1967, %v1971
        %s1974 = sld [smem:[#allocation12 + $0x11a]]
        %v1975 = vstv %s1974
        %v1976 = vmul.f32 %v1975, %v1114
        %v1977 = vmul.f32 %v1975, %v1115
        %v1978 = vadd.f32 %v1972, %v1976
        %v1979 = vadd.f32 %v1973, %v1977
        %v1980 = vmax.f32 %v1978, 0.0
        %v1981 = vmax.f32 %v1979, 0.0
        %v1982 = vrot.slane %v1980, 7
        %v1983 = vrot.slane %v1981, 7
        %v1984 = vsel %vm924, %v1982, %v1983
        %v1985 = vsel %vm924, %v1983, %v1982
        %v1986 = vrot.slane %v1980, 1
        %v1987 = vrot.slane %v1981, 1
        %v1988 = vsel %vm929, %v1986, %v1987
        %v1989 = vsel %vm929, %v1987, %v1986
        %1990 = vrot.lane.b32.xlu0 %v1985, 1
        %v1991 = vpop.permute.xlu0 %1990
        %1992 = vrot.lane.b32.xlu0 %v1984, 1
        %v1993 = vpop.permute.xlu0 %1992
        %v1994 = vsel %vm914, %v1991, 0.0
        %v1995 = vsel %vm915, %v1993, 0.0
        %v1996 = vsel %vm908, %v1985, 0.0
        %v1997 = vsel %vm909, %v1984, 0.0
        %1998 = vrot.lane.b32.xlu0 %v1985, 127
        %v1999 = vpop.permute.xlu0 %1998
        %2000 = vrot.lane.b32.xlu0 %v1984, 127
        %v2001 = vpop.permute.xlu0 %2000
        %v2002 = vsel %vm916, %v1999, 0.0
        %v2003 = vsel %vm917, %v2001, 0.0
        %2004 = vrot.lane.b32.xlu0 %v1980, 1
        %v2005 = vpop.permute.xlu0 %2004
        %2006 = vrot.lane.b32.xlu0 %v1981, 1
        %v2007 = vpop.permute.xlu0 %2006
        %v2008 = vsel %vm912, %v2005, 0.0
        %v2009 = vsel %vm912, %v2007, 0.0
        %2010 = vrot.lane.b32.xlu0 %v1980, 127
        %v2011 = vpop.permute.xlu0 %2010
        %2012 = vrot.lane.b32.xlu0 %v1981, 127
        %v2013 = vpop.permute.xlu0 %2012
        %v2014 = vsel %vm913, %v2011, 0.0
        %v2015 = vsel %vm913, %v2013, 0.0
        %2016 = vrot.lane.b32.xlu0 %v1988, 1
        %v2017 = vpop.permute.xlu0 %2016
        %2018 = vrot.lane.b32.xlu0 %v1989, 1
        %v2019 = vpop.permute.xlu0 %2018
        %v2020 = vsel %vm918, %v2017, 0.0
        %v2021 = vsel %vm919, %v2019, 0.0
        %v2022 = vsel %vm910, %v1988, 0.0
        %v2023 = vsel %vm911, %v1989, 0.0
        %2024 = vrot.lane.b32.xlu0 %v1988, 127
        %v2025 = vpop.permute.xlu0 %2024
        %2026 = vrot.lane.b32.xlu0 %v1989, 127
        %v2027 = vpop.permute.xlu0 %2026
        %v2028 = vsel %vm920, %v2025, 0.0
        %v2029 = vsel %vm921, %v2027, 0.0
        %s2030 = sld [smem:[#allocation15 + $0x2]]
        %v2031 = vstv %s2030
        %v2032 = vmul.f32 %v2031, %v1994
        %v2033 = vmul.f32 %v2031, %v1995
        %v2034 = vadd.f32 %v1760, %v2032
        %v2035 = vadd.f32 %v1761, %v2033
        %s2036 = sld [smem:[#allocation15 + $0xa]]
        %v2037 = vstv %s2036
        %v2038 = vmul.f32 %v2037, %v1996
        %v2039 = vmul.f32 %v2037, %v1997
        %v2040 = vadd.f32 %v2034, %v2038
        %v2041 = vadd.f32 %v2035, %v2039
        %s2042 = sld [smem:[#allocation15 + $0x12]]
        %v2043 = vstv %s2042
        %v2044 = vmul.f32 %v2043, %v2002
        %v2045 = vmul.f32 %v2043, %v2003
        %v2046 = vadd.f32 %v2040, %v2044
        %v2047 = vadd.f32 %v2041, %v2045
        %s2048 = sld [smem:[#allocation15 + $0x1a]]
        %v2049 = vstv %s2048
        %v2050 = vmul.f32 %v2049, %v2008
        %v2051 = vmul.f32 %v2049, %v2009
        %v2052 = vadd.f32 %v2046, %v2050
        %v2053 = vadd.f32 %v2047, %v2051
        %s2054 = sld [smem:[#allocation15 + $0x22]]
        %v2055 = vstv %s2054
        %v2056 = vmul.f32 %v2055, %v1980
        %v2057 = vmul.f32 %v2055, %v1981
        %v2058 = vadd.f32 %v2052, %v2056
        %v2059 = vadd.f32 %v2053, %v2057
        %s2060 = sld [smem:[#allocation15 + $0x2a]]
        %v2061 = vstv %s2060
        %v2062 = vmul.f32 %v2061, %v2014
        %v2063 = vmul.f32 %v2061, %v2015
        %v2064 = vadd.f32 %v2058, %v2062
        %v2065 = vadd.f32 %v2059, %v2063
        %s2066 = sld [smem:[#allocation15 + $0x32]]
        %v2067 = vstv %s2066
        %v2068 = vmul.f32 %v2067, %v2020
        %v2069 = vmul.f32 %v2067, %v2021
        %v2070 = vadd.f32 %v2064, %v2068
        %v2071 = vadd.f32 %v2065, %v2069
        %s2072 = sld [smem:[#allocation15 + $0x3a]]
        %v2073 = vstv %s2072
        %v2074 = vmul.f32 %v2073, %v2022
        %v2075 = vmul.f32 %v2073, %v2023
        %v2076 = vadd.f32 %v2070, %v2074
        %v2077 = vadd.f32 %v2071, %v2075
        %s2078 = sld [smem:[#allocation15 + $0x42]]
        %v2079 = vstv %s2078
        %v2080 = vmul.f32 %v2079, %v2028
        %v2081 = vmul.f32 %v2079, %v2029
        %v2082 = vadd.f32 %v2076, %v2080
        %v2083 = vadd.f32 %v2077, %v2081
        %s2084 = sld [smem:[#allocation13 + $0x3]]
        %v2085 = vstv %s2084
        %s2086 = sld [smem:[#allocation12 + $0x3]]
        %v2087 = vstv %s2086
        %v2088 = vmul.f32 %v2087, %v936
        %v2089 = vmul.f32 %v2087, %v937
        %v2090 = vadd.f32 %v2085, %v2088
        %v2091 = vadd.f32 %v2085, %v2089
        %s2092 = sld [smem:[#allocation12 + $0xb]]
        %v2093 = vstv %s2092
        %v2094 = vmul.f32 %v2093, %v984
        %v2095 = vmul.f32 %v2093, %v985
        %v2096 = vadd.f32 %v2090, %v2094
        %v2097 = vadd.f32 %v2091, %v2095
        %s2098 = sld [smem:[#allocation12 + $0x13]]
        %v2099 = vstv %s2098
        %v2100 = vmul.f32 %v2099, %v1032
        %v2101 = vmul.f32 %v2099, %v1033
        %v2102 = vadd.f32 %v2096, %v2100
        %v2103 = vadd.f32 %v2097, %v2101
        %s2104 = sld [smem:[#allocation12 + $0x1b]]
        %v2105 = vstv %s2104
        %v2106 = vmul.f32 %v2105, %v1080
        %v2107 = vmul.f32 %v2105, %v1081
        %v2108 = vadd.f32 %v2102, %v2106
        %v2109 = vadd.f32 %v2103, %v2107
        %s2110 = sld [smem:[#allocation12 + $0x23]]
        %v2111 = vstv %s2110
        %v2112 = vmul.f32 %v2111, %v938
        %v2113 = vmul.f32 %v2111, %v939
        %v2114 = vadd.f32 %v2108, %v2112
        %v2115 = vadd.f32 %v2109, %v2113
        %s2116 = sld [smem:[#allocation12 + $0x2b]]
        %v2117 = vstv %s2116
        %v2118 = vmul.f32 %v2117, %v986
        %v2119 = vmul.f32 %v2117, %v987
        %v2120 = vadd.f32 %v2114, %v2118
        %v2121 = vadd.f32 %v2115, %v2119
        %s2122 = sld [smem:[#allocation12 + $0x33]]
        %v2123 = vstv %s2122
        %v2124 = vmul.f32 %v2123, %v1034
        %v2125 = vmul.f32 %v2123, %v1035
        %v2126 = vadd.f32 %v2120, %v2124
        %v2127 = vadd.f32 %v2121, %v2125
        %s2128 = sld [smem:[#allocation12 + $0x3b]]
        %v2129 = vstv %s2128
        %v2130 = vmul.f32 %v2129, %v1082
        %v2131 = vmul.f32 %v2129, %v1083
        %v2132 = vadd.f32 %v2126, %v2130
        %v2133 = vadd.f32 %v2127, %v2131
        %s2134 = sld [smem:[#allocation12 + $0x43]]
        %v2135 = vstv %s2134
        %v2136 = vmul.f32 %v2135, %v944
        %v2137 = vmul.f32 %v2135, %v945
        %v2138 = vadd.f32 %v2132, %v2136
        %v2139 = vadd.f32 %v2133, %v2137
        %s2140 = sld [smem:[#allocation12 + $0x4b]]
        %v2141 = vstv %s2140
        %v2142 = vmul.f32 %v2141, %v992
        %v2143 = vmul.f32 %v2141, %v993
        %v2144 = vadd.f32 %v2138, %v2142
        %v2145 = vadd.f32 %v2139, %v2143
        %s2146 = sld [smem:[#allocation12 + $0x53]]
        %v2147 = vstv %s2146
        %v2148 = vmul.f32 %v2147, %v1040
        %v2149 = vmul.f32 %v2147, %v1041
        %v2150 = vadd.f32 %v2144, %v2148
        %v2151 = vadd.f32 %v2145, %v2149
        %s2152 = sld [smem:[#allocation12 + $0x5b]]
        %v2153 = vstv %s2152
        %v2154 = vmul.f32 %v2153, %v1088
        %v2155 = vmul.f32 %v2153, %v1089
        %v2156 = vadd.f32 %v2150, %v2154
        %v2157 = vadd.f32 %v2151, %v2155
        %s2158 = sld [smem:[#allocation12 + $0x63]]
        %v2159 = vstv %s2158
        %v2160 = vmul.f32 %v2159, %v950
        %v2161 = vmul.f32 %v2159, %v951
        %v2162 = vadd.f32 %v2156, %v2160
        %v2163 = vadd.f32 %v2157, %v2161
        %s2164 = sld [smem:[#allocation12 + $0x6b]]
        %v2165 = vstv %s2164
        %v2166 = vmul.f32 %v2165, %v998
        %v2167 = vmul.f32 %v2165, %v999
        %v2168 = vadd.f32 %v2162, %v2166
        %v2169 = vadd.f32 %v2163, %v2167
        %s2170 = sld [smem:[#allocation12 + $0x73]]
        %v2171 = vstv %s2170
        %v2172 = vmul.f32 %v2171, %v1046
        %v2173 = vmul.f32 %v2171, %v1047
        %v2174 = vadd.f32 %v2168, %v2172
        %v2175 = vadd.f32 %v2169, %v2173
        %s2176 = sld [smem:[#allocation12 + $0x7b]]
        %v2177 = vstv %s2176
        %v2178 = vmul.f32 %v2177, %v1094
        %v2179 = vmul.f32 %v2177, %v1095
        %v2180 = vadd.f32 %v2174, %v2178
        %v2181 = vadd.f32 %v2175, %v2179
        %s2182 = sld [smem:[#allocation12 + $0x83]]
        %v2183 = vstv %s2182
        %v2184 = vmul.f32 %v2183, %v865
        %v2185 = vmul.f32 %v2183, %v866
        %v2186 = vadd.f32 %v2180, %v2184
        %v2187 = vadd.f32 %v2181, %v2185
        %s2188 = sld [smem:[#allocation12 + $0x8b]]
        %v2189 = vstv %s2188
        %v2190 = vmul.f32 %v2189, %v877
        %v2191 = vmul.f32 %v2189, %v878
        %v2192 = vadd.f32 %v2186, %v2190
        %v2193 = vadd.f32 %v2187, %v2191
        %s2194 = sld [smem:[#allocation12 + $0x93]]
        %v2195 = vstv %s2194
        %v2196 = vmul.f32 %v2195, %v889
        %v2197 = vmul.f32 %v2195, %v890
        %v2198 = vadd.f32 %v2192, %v2196
        %v2199 = vadd.f32 %v2193, %v2197
        %s2200 = sld [smem:[#allocation12 + $0x9b]]
        %v2201 = vstv %s2200
        %v2202 = vmul.f32 %v2201, %v901
        %v2203 = vmul.f32 %v2201, %v902
        %v2204 = vadd.f32 %v2198, %v2202
        %v2205 = vadd.f32 %v2199, %v2203
        %s2206 = sld [smem:[#allocation12 + $0xa3]]
        %v2207 = vstv %s2206
        %v2208 = vmul.f32 %v2207, %v956
        %v2209 = vmul.f32 %v2207, %v957
        %v2210 = vadd.f32 %v2204, %v2208
        %v2211 = vadd.f32 %v2205, %v2209
        %s2212 = sld [smem:[#allocation12 + $0xab]]
        %v2213 = vstv %s2212
        %v2214 = vmul.f32 %v2213, %v1004
        %v2215 = vmul.f32 %v2213, %v1005
        %v2216 = vadd.f32 %v2210, %v2214
        %v2217 = vadd.f32 %v2211, %v2215
        %s2218 = sld [smem:[#allocation12 + $0xb3]]
        %v2219 = vstv %s2218
        %v2220 = vmul.f32 %v2219, %v1052
        %v2221 = vmul.f32 %v2219, %v1053
        %v2222 = vadd.f32 %v2216, %v2220
        %v2223 = vadd.f32 %v2217, %v2221
        %s2224 = sld [smem:[#allocation12 + $0xbb]]
        %v2225 = vstv %s2224
        %v2226 = vmul.f32 %v2225, %v1100
        %v2227 = vmul.f32 %v2225, %v1101
        %v2228 = vadd.f32 %v2222, %v2226
        %v2229 = vadd.f32 %v2223, %v2227
        %s2230 = sld [smem:[#allocation12 + $0xc3]]
        %v2231 = vstv %s2230
        %v2232 = vmul.f32 %v2231, %v962
        %v2233 = vmul.f32 %v2231, %v963
        %v2234 = vadd.f32 %v2228, %v2232
        %v2235 = vadd.f32 %v2229, %v2233
        %s2236 = sld [smem:[#allocation12 + $0xcb]]
        %v2237 = vstv %s2236
        %v2238 = vmul.f32 %v2237, %v1010
        %v2239 = vmul.f32 %v2237, %v1011
        %v2240 = vadd.f32 %v2234, %v2238
        %v2241 = vadd.f32 %v2235, %v2239
        %s2242 = sld [smem:[#allocation12 + $0xd3]]
        %v2243 = vstv %s2242
        %v2244 = vmul.f32 %v2243, %v1058
        %v2245 = vmul.f32 %v2243, %v1059
        %v2246 = vadd.f32 %v2240, %v2244
        %v2247 = vadd.f32 %v2241, %v2245
        %s2248 = sld [smem:[#allocation12 + $0xdb]]
        %v2249 = vstv %s2248
        %v2250 = vmul.f32 %v2249, %v1106
        %v2251 = vmul.f32 %v2249, %v1107
        %v2252 = vadd.f32 %v2246, %v2250
        %v2253 = vadd.f32 %v2247, %v2251
        %s2254 = sld [smem:[#allocation12 + $0xe3]]
        %v2255 = vstv %s2254
        %v2256 = vmul.f32 %v2255, %v964
        %v2257 = vmul.f32 %v2255, %v965
        %v2258 = vadd.f32 %v2252, %v2256
        %v2259 = vadd.f32 %v2253, %v2257
        %s2260 = sld [smem:[#allocation12 + $0xeb]]
        %v2261 = vstv %s2260
        %v2262 = vmul.f32 %v2261, %v1012
        %v2263 = vmul.f32 %v2261, %v1013
        %v2264 = vadd.f32 %v2258, %v2262
        %v2265 = vadd.f32 %v2259, %v2263
        %s2266 = sld [smem:[#allocation12 + $0xf3]]
        %v2267 = vstv %s2266
        %v2268 = vmul.f32 %v2267, %v1060
        %v2269 = vmul.f32 %v2267, %v1061
        %v2270 = vadd.f32 %v2264, %v2268
        %v2271 = vadd.f32 %v2265, %v2269
        %s2272 = sld [smem:[#allocation12 + $0xfb]]
        %v2273 = vstv %s2272
        %v2274 = vmul.f32 %v2273, %v1108
        %v2275 = vmul.f32 %v2273, %v1109
        %v2276 = vadd.f32 %v2270, %v2274
        %v2277 = vadd.f32 %v2271, %v2275
        %s2278 = sld [smem:[#allocation12 + $0x103]]
        %v2279 = vstv %s2278
        %v2280 = vmul.f32 %v2279, %v970
        %v2281 = vmul.f32 %v2279, %v971
        %v2282 = vadd.f32 %v2276, %v2280
        %v2283 = vadd.f32 %v2277, %v2281
        %s2284 = sld [smem:[#allocation12 + $0x10b]]
        %v2285 = vstv %s2284
        %v2286 = vmul.f32 %v2285, %v1018
        %v2287 = vmul.f32 %v2285, %v1019
        %v2288 = vadd.f32 %v2282, %v2286
        %v2289 = vadd.f32 %v2283, %v2287
        %s2290 = sld [smem:[#allocation12 + $0x113]]
        %v2291 = vstv %s2290
        %v2292 = vmul.f32 %v2291, %v1066
        %v2293 = vmul.f32 %v2291, %v1067
        %v2294 = vadd.f32 %v2288, %v2292
        %v2295 = vadd.f32 %v2289, %v2293
        %s2296 = sld [smem:[#allocation12 + $0x11b]]
        %v2297 = vstv %s2296
        %v2298 = vmul.f32 %v2297, %v1114
        %v2299 = vmul.f32 %v2297, %v1115
        %v2300 = vadd.f32 %v2294, %v2298
        %v2301 = vadd.f32 %v2295, %v2299
        %v2302 = vmax.f32 %v2300, 0.0
        %v2303 = vmax.f32 %v2301, 0.0
        %v2304 = vrot.slane %v2302, 7
        %v2305 = vrot.slane %v2303, 7
        %v2306 = vsel %vm924, %v2304, %v2305
        %v2307 = vsel %vm924, %v2305, %v2304
        %v2308 = vrot.slane %v2302, 1
        %v2309 = vrot.slane %v2303, 1
        %v2310 = vsel %vm929, %v2308, %v2309
        %v2311 = vsel %vm929, %v2309, %v2308
        %2312 = vrot.lane.b32.xlu0 %v2307, 1
        %v2313 = vpop.permute.xlu0 %2312
        %2314 = vrot.lane.b32.xlu0 %v2306, 1
        %v2315 = vpop.permute.xlu0 %2314
        %v2316 = vsel %vm914, %v2313, 0.0
        %v2317 = vsel %vm915, %v2315, 0.0
        %v2318 = vsel %vm908, %v2307, 0.0
        %v2319 = vsel %vm909, %v2306, 0.0
        %2320 = vrot.lane.b32.xlu0 %v2307, 127
        %v2321 = vpop.permute.xlu0 %2320
        %2322 = vrot.lane.b32.xlu0 %v2306, 127
        %v2323 = vpop.permute.xlu0 %2322
        %v2324 = vsel %vm916, %v2321, 0.0
        %v2325 = vsel %vm917, %v2323, 0.0
        %2326 = vrot.lane.b32.xlu0 %v2302, 1
        %v2327 = vpop.permute.xlu0 %2326
        %2328 = vrot.lane.b32.xlu0 %v2303, 1
        %v2329 = vpop.permute.xlu0 %2328
        %v2330 = vsel %vm912, %v2327, 0.0
        %v2331 = vsel %vm912, %v2329, 0.0
        %2332 = vrot.lane.b32.xlu0 %v2302, 127
        %v2333 = vpop.permute.xlu0 %2332
        %2334 = vrot.lane.b32.xlu0 %v2303, 127
        %v2335 = vpop.permute.xlu0 %2334
        %v2336 = vsel %vm913, %v2333, 0.0
        %v2337 = vsel %vm913, %v2335, 0.0
        %2338 = vrot.lane.b32.xlu0 %v2310, 1
        %v2339 = vpop.permute.xlu0 %2338
        %2340 = vrot.lane.b32.xlu0 %v2311, 1
        %v2341 = vpop.permute.xlu0 %2340
        %v2342 = vsel %vm918, %v2339, 0.0
        %v2343 = vsel %vm919, %v2341, 0.0
        %v2344 = vsel %vm910, %v2310, 0.0
        %v2345 = vsel %vm911, %v2311, 0.0
        %2346 = vrot.lane.b32.xlu0 %v2310, 127
        %v2347 = vpop.permute.xlu0 %2346
        %2348 = vrot.lane.b32.xlu0 %v2311, 127
        %v2349 = vpop.permute.xlu0 %2348
        %v2350 = vsel %vm920, %v2347, 0.0
        %v2351 = vsel %vm921, %v2349, 0.0
        %s2352 = sld [smem:[#allocation15 + $0x3]]
        %v2353 = vstv %s2352
        %v2354 = vmul.f32 %v2353, %v2316
        %v2355 = vmul.f32 %v2353, %v2317
        %v2356 = vadd.f32 %v2082, %v2354
        %v2357 = vadd.f32 %v2083, %v2355
        %s2358 = sld [smem:[#allocation15 + $0xb]]
        %v2359 = vstv %s2358
        %v2360 = vmul.f32 %v2359, %v2318
        %v2361 = vmul.f32 %v2359, %v2319
        %v2362 = vadd.f32 %v2356, %v2360
        %v2363 = vadd.f32 %v2357, %v2361
        %s2364 = sld [smem:[#allocation15 + $0x13]]
        %v2365 = vstv %s2364
        %v2366 = vmul.f32 %v2365, %v2324
        %v2367 = vmul.f32 %v2365, %v2325
        %v2368 = vadd.f32 %v2362, %v2366
        %v2369 = vadd.f32 %v2363, %v2367
        %s2370 = sld [smem:[#allocation15 + $0x1b]]
        %v2371 = vstv %s2370
        %v2372 = vmul.f32 %v2371, %v2330
        %v2373 = vmul.f32 %v2371, %v2331
        %v2374 = vadd.f32 %v2368, %v2372
        %v2375 = vadd.f32 %v2369, %v2373
        %s2376 = sld [smem:[#allocation15 + $0x23]]
        %v2377 = vstv %s2376
        %v2378 = vmul.f32 %v2377, %v2302
        %v2379 = vmul.f32 %v2377, %v2303
        %v2380 = vadd.f32 %v2374, %v2378
        %v2381 = vadd.f32 %v2375, %v2379
        %s2382 = sld [smem:[#allocation15 + $0x2b]]
        %v2383 = vstv %s2382
        %v2384 = vmul.f32 %v2383, %v2336
        %v2385 = vmul.f32 %v2383, %v2337
        %v2386 = vadd.f32 %v2380, %v2384
        %v2387 = vadd.f32 %v2381, %v2385
        %s2388 = sld [smem:[#allocation15 + $0x33]]
        %v2389 = vstv %s2388
        %v2390 = vmul.f32 %v2389, %v2342
        %v2391 = vmul.f32 %v2389, %v2343
        %v2392 = vadd.f32 %v2386, %v2390
        %v2393 = vadd.f32 %v2387, %v2391
        %s2394 = sld [smem:[#allocation15 + $0x3b]]
        %v2395 = vstv %s2394
        %v2396 = vmul.f32 %v2395, %v2344
        %v2397 = vmul.f32 %v2395, %v2345
        %v2398 = vadd.f32 %v2392, %v2396
        %v2399 = vadd.f32 %v2393, %v2397
        %s2400 = sld [smem:[#allocation15 + $0x43]]
        %v2401 = vstv %s2400
        %v2402 = vmul.f32 %v2401, %v2350
        %v2403 = vmul.f32 %v2401, %v2351
        %v2404 = vadd.f32 %v2398, %v2402
        %v2405 = vadd.f32 %v2399, %v2403
        %s2406 = sld [smem:[#allocation13 + $0x4]]
        %v2407 = vstv %s2406
        %s2408 = sld [smem:[#allocation12 + $0x4]]
        %v2409 = vstv %s2408
        %v2410 = vmul.f32 %v2409, %v936
        %v2411 = vmul.f32 %v2409, %v937
        %v2412 = vadd.f32 %v2407, %v2410
        %v2413 = vadd.f32 %v2407, %v2411
        %s2414 = sld [smem:[#allocation12 + $0xc]]
        %v2415 = vstv %s2414
        %v2416 = vmul.f32 %v2415, %v984
        %v2417 = vmul.f32 %v2415, %v985
        %v2418 = vadd.f32 %v2412, %v2416
        %v2419 = vadd.f32 %v2413, %v2417
        %s2420 = sld [smem:[#allocation12 + $0x14]]
        %v2421 = vstv %s2420
        %v2422 = vmul.f32 %v2421, %v1032
        %v2423 = vmul.f32 %v2421, %v1033
        %v2424 = vadd.f32 %v2418, %v2422
        %v2425 = vadd.f32 %v2419, %v2423
        %s2426 = sld [smem:[#allocation12 + $0x1c]]
        %v2427 = vstv %s2426
        %v2428 = vmul.f32 %v2427, %v1080
        %v2429 = vmul.f32 %v2427, %v1081
        %v2430 = vadd.f32 %v2424, %v2428
        %v2431 = vadd.f32 %v2425, %v2429
        %s2432 = sld [smem:[#allocation12 + $0x24]]
        %v2433 = vstv %s2432
        %v2434 = vmul.f32 %v2433, %v938
        %v2435 = vmul.f32 %v2433, %v939
        %v2436 = vadd.f32 %v2430, %v2434
        %v2437 = vadd.f32 %v2431, %v2435
        %s2438 = sld [smem:[#allocation12 + $0x2c]]
        %v2439 = vstv %s2438
        %v2440 = vmul.f32 %v2439, %v986
        %v2441 = vmul.f32 %v2439, %v987
        %v2442 = vadd.f32 %v2436, %v2440
        %v2443 = vadd.f32 %v2437, %v2441
        %s2444 = sld [smem:[#allocation12 + $0x34]]
        %v2445 = vstv %s2444
        %v2446 = vmul.f32 %v2445, %v1034
        %v2447 = vmul.f32 %v2445, %v1035
        %v2448 = vadd.f32 %v2442, %v2446
        %v2449 = vadd.f32 %v2443, %v2447
        %s2450 = sld [smem:[#allocation12 + $0x3c]]
        %v2451 = vstv %s2450
        %v2452 = vmul.f32 %v2451, %v1082
        %v2453 = vmul.f32 %v2451, %v1083
        %v2454 = vadd.f32 %v2448, %v2452
        %v2455 = vadd.f32 %v2449, %v2453
        %s2456 = sld [smem:[#allocation12 + $0x44]]
        %v2457 = vstv %s2456
        %v2458 = vmul.f32 %v2457, %v944
        %v2459 = vmul.f32 %v2457, %v945
        %v2460 = vadd.f32 %v2454, %v2458
        %v2461 = vadd.f32 %v2455, %v2459
        %s2462 = sld [smem:[#allocation12 + $0x4c]]
        %v2463 = vstv %s2462
        %v2464 = vmul.f32 %v2463, %v992
        %v2465 = vmul.f32 %v2463, %v993
        %v2466 = vadd.f32 %v2460, %v2464
        %v2467 = vadd.f32 %v2461, %v2465
        %s2468 = sld [smem:[#allocation12 + $0x54]]
        %v2469 = vstv %s2468
        %v2470 = vmul.f32 %v2469, %v1040
        %v2471 = vmul.f32 %v2469, %v1041
        %v2472 = vadd.f32 %v2466, %v2470
        %v2473 = vadd.f32 %v2467, %v2471
        %s2474 = sld [smem:[#allocation12 + $0x5c]]
        %v2475 = vstv %s2474
        %v2476 = vmul.f32 %v2475, %v1088
        %v2477 = vmul.f32 %v2475, %v1089
        %v2478 = vadd.f32 %v2472, %v2476
        %v2479 = vadd.f32 %v2473, %v2477
        %s2480 = sld [smem:[#allocation12 + $0x64]]
        %v2481 = vstv %s2480
        %v2482 = vmul.f32 %v2481, %v950
        %v2483 = vmul.f32 %v2481, %v951
        %v2484 = vadd.f32 %v2478, %v2482
        %v2485 = vadd.f32 %v2479, %v2483
        %s2486 = sld [smem:[#allocation12 + $0x6c]]
        %v2487 = vstv %s2486
        %v2488 = vmul.f32 %v2487, %v998
        %v2489 = vmul.f32 %v2487, %v999
        %v2490 = vadd.f32 %v2484, %v2488
        %v2491 = vadd.f32 %v2485, %v2489
        %s2492 = sld [smem:[#allocation12 + $0x74]]
        %v2493 = vstv %s2492
        %v2494 = vmul.f32 %v2493, %v1046
        %v2495 = vmul.f32 %v2493, %v1047
        %v2496 = vadd.f32 %v2490, %v2494
        %v2497 = vadd.f32 %v2491, %v2495
        %s2498 = sld [smem:[#allocation12 + $0x7c]]
        %v2499 = vstv %s2498
        %v2500 = vmul.f32 %v2499, %v1094
        %v2501 = vmul.f32 %v2499, %v1095
        %v2502 = vadd.f32 %v2496, %v2500
        %v2503 = vadd.f32 %v2497, %v2501
        %s2504 = sld [smem:[#allocation12 + $0x84]]
        %v2505 = vstv %s2504
        %v2506 = vmul.f32 %v2505, %v865
        %v2507 = vmul.f32 %v2505, %v866
        %v2508 = vadd.f32 %v2502, %v2506
        %v2509 = vadd.f32 %v2503, %v2507
        %s2510 = sld [smem:[#allocation12 + $0x8c]]
        %v2511 = vstv %s2510
        %v2512 = vmul.f32 %v2511, %v877
        %v2513 = vmul.f32 %v2511, %v878
        %v2514 = vadd.f32 %v2508, %v2512
        %v2515 = vadd.f32 %v2509, %v2513
        %s2516 = sld [smem:[#allocation12 + $0x94]]
        %v2517 = vstv %s2516
        %v2518 = vmul.f32 %v2517, %v889
        %v2519 = vmul.f32 %v2517, %v890
        %v2520 = vadd.f32 %v2514, %v2518
        %v2521 = vadd.f32 %v2515, %v2519
        %s2522 = sld [smem:[#allocation12 + $0x9c]]
        %v2523 = vstv %s2522
        %v2524 = vmul.f32 %v2523, %v901
        %v2525 = vmul.f32 %v2523, %v902
        %v2526 = vadd.f32 %v2520, %v2524
        %v2527 = vadd.f32 %v2521, %v2525
        %s2528 = sld [smem:[#allocation12 + $0xa4]]
        %v2529 = vstv %s2528
        %v2530 = vmul.f32 %v2529, %v956
        %v2531 = vmul.f32 %v2529, %v957
        %v2532 = vadd.f32 %v2526, %v2530
        %v2533 = vadd.f32 %v2527, %v2531
        %s2534 = sld [smem:[#allocation12 + $0xac]]
        %v2535 = vstv %s2534
        %v2536 = vmul.f32 %v2535, %v1004
        %v2537 = vmul.f32 %v2535, %v1005
        %v2538 = vadd.f32 %v2532, %v2536
        %v2539 = vadd.f32 %v2533, %v2537
        %s2540 = sld [smem:[#allocation12 + $0xb4]]
        %v2541 = vstv %s2540
        %v2542 = vmul.f32 %v2541, %v1052
        %v2543 = vmul.f32 %v2541, %v1053
        %v2544 = vadd.f32 %v2538, %v2542
        %v2545 = vadd.f32 %v2539, %v2543
        %s2546 = sld [smem:[#allocation12 + $0xbc]]
        %v2547 = vstv %s2546
        %v2548 = vmul.f32 %v2547, %v1100
        %v2549 = vmul.f32 %v2547, %v1101
        %v2550 = vadd.f32 %v2544, %v2548
        %v2551 = vadd.f32 %v2545, %v2549
        %s2552 = sld [smem:[#allocation12 + $0xc4]]
        %v2553 = vstv %s2552
        %v2554 = vmul.f32 %v2553, %v962
        %v2555 = vmul.f32 %v2553, %v963
        %v2556 = vadd.f32 %v2550, %v2554
        %v2557 = vadd.f32 %v2551, %v2555
        %s2558 = sld [smem:[#allocation12 + $0xcc]]
        %v2559 = vstv %s2558
        %v2560 = vmul.f32 %v2559, %v1010
        %v2561 = vmul.f32 %v2559, %v1011
        %v2562 = vadd.f32 %v2556, %v2560
        %v2563 = vadd.f32 %v2557, %v2561
        %s2564 = sld [smem:[#allocation12 + $0xd4]]
        %v2565 = vstv %s2564
        %v2566 = vmul.f32 %v2565, %v1058
        %v2567 = vmul.f32 %v2565, %v1059
        %v2568 = vadd.f32 %v2562, %v2566
        %v2569 = vadd.f32 %v2563, %v2567
        %s2570 = sld [smem:[#allocation12 + $0xdc]]
        %v2571 = vstv %s2570
        %v2572 = vmul.f32 %v2571, %v1106
        %v2573 = vmul.f32 %v2571, %v1107
        %v2574 = vadd.f32 %v2568, %v2572
        %v2575 = vadd.f32 %v2569, %v2573
        %s2576 = sld [smem:[#allocation12 + $0xe4]]
        %v2577 = vstv %s2576
        %v2578 = vmul.f32 %v2577, %v964
        %v2579 = vmul.f32 %v2577, %v965
        %v2580 = vadd.f32 %v2574, %v2578
        %v2581 = vadd.f32 %v2575, %v2579
        %s2582 = sld [smem:[#allocation12 + $0xec]]
        %v2583 = vstv %s2582
        %v2584 = vmul.f32 %v2583, %v1012
        %v2585 = vmul.f32 %v2583, %v1013
        %v2586 = vadd.f32 %v2580, %v2584
        %v2587 = vadd.f32 %v2581, %v2585
        %s2588 = sld [smem:[#allocation12 + $0xf4]]
        %v2589 = vstv %s2588
        %v2590 = vmul.f32 %v2589, %v1060
        %v2591 = vmul.f32 %v2589, %v1061
        %v2592 = vadd.f32 %v2586, %v2590
        %v2593 = vadd.f32 %v2587, %v2591
        %s2594 = sld [smem:[#allocation12 + $0xfc]]
        %v2595 = vstv %s2594
        %v2596 = vmul.f32 %v2595, %v1108
        %v2597 = vmul.f32 %v2595, %v1109
        %v2598 = vadd.f32 %v2592, %v2596
        %v2599 = vadd.f32 %v2593, %v2597
        %s2600 = sld [smem:[#allocation12 + $0x104]]
        %v2601 = vstv %s2600
        %v2602 = vmul.f32 %v2601, %v970
        %v2603 = vmul.f32 %v2601, %v971
        %v2604 = vadd.f32 %v2598, %v2602
        %v2605 = vadd.f32 %v2599, %v2603
        %s2606 = sld [smem:[#allocation12 + $0x10c]]
        %v2607 = vstv %s2606
        %v2608 = vmul.f32 %v2607, %v1018
        %v2609 = vmul.f32 %v2607, %v1019
        %v2610 = vadd.f32 %v2604, %v2608
        %v2611 = vadd.f32 %v2605, %v2609
        %s2612 = sld [smem:[#allocation12 + $0x114]]
        %v2613 = vstv %s2612
        %v2614 = vmul.f32 %v2613, %v1066
        %v2615 = vmul.f32 %v2613, %v1067
        %v2616 = vadd.f32 %v2610, %v2614
        %v2617 = vadd.f32 %v2611, %v2615
        %s2618 = sld [smem:[#allocation12 + $0x11c]]
        %v2619 = vstv %s2618
        %v2620 = vmul.f32 %v2619, %v1114
        %v2621 = vmul.f32 %v2619, %v1115
        %v2622 = vadd.f32 %v2616, %v2620
        %v2623 = vadd.f32 %v2617, %v2621
        %v2624 = vmax.f32 %v2622, 0.0
        %v2625 = vmax.f32 %v2623, 0.0
        %v2626 = vrot.slane %v2624, 7
        %v2627 = vrot.slane %v2625, 7
        %v2628 = vsel %vm924, %v2626, %v2627
        %v2629 = vsel %vm924, %v2627, %v2626
        %v2630 = vrot.slane %v2624, 1
        %v2631 = vrot.slane %v2625, 1
        %v2632 = vsel %vm929, %v2630, %v2631
        %v2633 = vsel %vm929, %v2631, %v2630
        %2634 = vrot.lane.b32.xlu0 %v2629, 1
        %v2635 = vpop.permute.xlu0 %2634
        %2636 = vrot.lane.b32.xlu0 %v2628, 1
        %v2637 = vpop.permute.xlu0 %2636
        %v2638 = vsel %vm914, %v2635, 0.0
        %v2639 = vsel %vm915, %v2637, 0.0
        %v2640 = vsel %vm908, %v2629, 0.0
        %v2641 = vsel %vm909, %v2628, 0.0
        %2642 = vrot.lane.b32.xlu0 %v2629, 127
        %v2643 = vpop.permute.xlu0 %2642
        %2644 = vrot.lane.b32.xlu0 %v2628, 127
        %v2645 = vpop.permute.xlu0 %2644
        %v2646 = vsel %vm916, %v2643, 0.0
        %v2647 = vsel %vm917, %v2645, 0.0
        %2648 = vrot.lane.b32.xlu0 %v2624, 1
        %v2649 = vpop.permute.xlu0 %2648
        %2650 = vrot.lane.b32.xlu0 %v2625, 1
        %v2651 = vpop.permute.xlu0 %2650
        %v2652 = vsel %vm912, %v2649, 0.0
        %v2653 = vsel %vm912, %v2651, 0.0
        %2654 = vrot.lane.b32.xlu0 %v2624, 127
        %v2655 = vpop.permute.xlu0 %2654
        %2656 = vrot.lane.b32.xlu0 %v2625, 127
        %v2657 = vpop.permute.xlu0 %2656
        %v2658 = vsel %vm913, %v2655, 0.0
        %v2659 = vsel %vm913, %v2657, 0.0
        %2660 = vrot.lane.b32.xlu0 %v2632, 1
        %v2661 = vpop.permute.xlu0 %2660
        %2662 = vrot.lane.b32.xlu0 %v2633, 1
        %v2663 = vpop.permute.xlu0 %2662
        %v2664 = vsel %vm918, %v2661, 0.0
        %v2665 = vsel %vm919, %v2663, 0.0
        %v2666 = vsel %vm910, %v2632, 0.0
        %v2667 = vsel %vm911, %v2633, 0.0
        %2668 = vrot.lane.b32.xlu0 %v2632, 127
        %v2669 = vpop.permute.xlu0 %2668
        %2670 = vrot.lane.b32.xlu0 %v2633, 127
        %v2671 = vpop.permute.xlu0 %2670
        %v2672 = vsel %vm920, %v2669, 0.0
        %v2673 = vsel %vm921, %v2671, 0.0
        %s2674 = sld [smem:[#allocation15 + $0x4]]
        %v2675 = vstv %s2674
        %v2676 = vmul.f32 %v2675, %v2638
        %v2677 = vmul.f32 %v2675, %v2639
        %v2678 = vadd.f32 %v2404, %v2676
        %v2679 = vadd.f32 %v2405, %v2677
        %s2680 = sld [smem:[#allocation15 + $0xc]]
        %v2681 = vstv %s2680
        %v2682 = vmul.f32 %v2681, %v2640
        %v2683 = vmul.f32 %v2681, %v2641
        %v2684 = vadd.f32 %v2678, %v2682
        %v2685 = vadd.f32 %v2679, %v2683
        %s2686 = sld [smem:[#allocation15 + $0x14]]
        %v2687 = vstv %s2686
        %v2688 = vmul.f32 %v2687, %v2646
        %v2689 = vmul.f32 %v2687, %v2647
        %v2690 = vadd.f32 %v2684, %v2688
        %v2691 = vadd.f32 %v2685, %v2689
        %s2692 = sld [smem:[#allocation15 + $0x1c]]
        %v2693 = vstv %s2692
        %v2694 = vmul.f32 %v2693, %v2652
        %v2695 = vmul.f32 %v2693, %v2653
        %v2696 = vadd.f32 %v2690, %v2694
        %v2697 = vadd.f32 %v2691, %v2695
        %s2698 = sld [smem:[#allocation15 + $0x24]]
        %v2699 = vstv %s2698
        %v2700 = vmul.f32 %v2699, %v2624
        %v2701 = vmul.f32 %v2699, %v2625
        %v2702 = vadd.f32 %v2696, %v2700
        %v2703 = vadd.f32 %v2697, %v2701
        %s2704 = sld [smem:[#allocation15 + $0x2c]]
        %v2705 = vstv %s2704
        %v2706 = vmul.f32 %v2705, %v2658
        %v2707 = vmul.f32 %v2705, %v2659
        %v2708 = vadd.f32 %v2702, %v2706
        %v2709 = vadd.f32 %v2703, %v2707
        %s2710 = sld [smem:[#allocation15 + $0x34]]
        %v2711 = vstv %s2710
        %v2712 = vmul.f32 %v2711, %v2664
        %v2713 = vmul.f32 %v2711, %v2665
        %v2714 = vadd.f32 %v2708, %v2712
        %v2715 = vadd.f32 %v2709, %v2713
        %s2716 = sld [smem:[#allocation15 + $0x3c]]
        %v2717 = vstv %s2716
        %v2718 = vmul.f32 %v2717, %v2666
        %v2719 = vmul.f32 %v2717, %v2667
        %v2720 = vadd.f32 %v2714, %v2718
        %v2721 = vadd.f32 %v2715, %v2719
        %s2722 = sld [smem:[#allocation15 + $0x44]]
        %v2723 = vstv %s2722
        %v2724 = vmul.f32 %v2723, %v2672
        %v2725 = vmul.f32 %v2723, %v2673
        %v2726 = vadd.f32 %v2720, %v2724
        %v2727 = vadd.f32 %v2721, %v2725
        %s2728 = sld [smem:[#allocation13 + $0x5]]
        %v2729 = vstv %s2728
        %s2730 = sld [smem:[#allocation12 + $0x5]]
        %v2731 = vstv %s2730
        %v2732 = vmul.f32 %v2731, %v936
        %v2733 = vmul.f32 %v2731, %v937
        %v2734 = vadd.f32 %v2729, %v2732
        %v2735 = vadd.f32 %v2729, %v2733
        %s2736 = sld [smem:[#allocation12 + $0xd]]
        %v2737 = vstv %s2736
        %v2738 = vmul.f32 %v2737, %v984
        %v2739 = vmul.f32 %v2737, %v985
        %v2740 = vadd.f32 %v2734, %v2738
        %v2741 = vadd.f32 %v2735, %v2739
        %s2742 = sld [smem:[#allocation12 + $0x15]]
        %v2743 = vstv %s2742
        %v2744 = vmul.f32 %v2743, %v1032
        %v2745 = vmul.f32 %v2743, %v1033
        %v2746 = vadd.f32 %v2740, %v2744
        %v2747 = vadd.f32 %v2741, %v2745
        %s2748 = sld [smem:[#allocation12 + $0x1d]]
        %v2749 = vstv %s2748
        %v2750 = vmul.f32 %v2749, %v1080
        %v2751 = vmul.f32 %v2749, %v1081
        %v2752 = vadd.f32 %v2746, %v2750
        %v2753 = vadd.f32 %v2747, %v2751
        %s2754 = sld [smem:[#allocation12 + $0x25]]
        %v2755 = vstv %s2754
        %v2756 = vmul.f32 %v2755, %v938
        %v2757 = vmul.f32 %v2755, %v939
        %v2758 = vadd.f32 %v2752, %v2756
        %v2759 = vadd.f32 %v2753, %v2757
        %s2760 = sld [smem:[#allocation12 + $0x2d]]
        %v2761 = vstv %s2760
        %v2762 = vmul.f32 %v2761, %v986
        %v2763 = vmul.f32 %v2761, %v987
        %v2764 = vadd.f32 %v2758, %v2762
        %v2765 = vadd.f32 %v2759, %v2763
        %s2766 = sld [smem:[#allocation12 + $0x35]]
        %v2767 = vstv %s2766
        %v2768 = vmul.f32 %v2767, %v1034
        %v2769 = vmul.f32 %v2767, %v1035
        %v2770 = vadd.f32 %v2764, %v2768
        %v2771 = vadd.f32 %v2765, %v2769
        %s2772 = sld [smem:[#allocation12 + $0x3d]]
        %v2773 = vstv %s2772
        %v2774 = vmul.f32 %v2773, %v1082
        %v2775 = vmul.f32 %v2773, %v1083
        %v2776 = vadd.f32 %v2770, %v2774
        %v2777 = vadd.f32 %v2771, %v2775
        %s2778 = sld [smem:[#allocation12 + $0x45]]
        %v2779 = vstv %s2778
        %v2780 = vmul.f32 %v2779, %v944
        %v2781 = vmul.f32 %v2779, %v945
        %v2782 = vadd.f32 %v2776, %v2780
        %v2783 = vadd.f32 %v2777, %v2781
        %s2784 = sld [smem:[#allocation12 + $0x4d]]
        %v2785 = vstv %s2784
        %v2786 = vmul.f32 %v2785, %v992
        %v2787 = vmul.f32 %v2785, %v993
        %v2788 = vadd.f32 %v2782, %v2786
        %v2789 = vadd.f32 %v2783, %v2787
        %s2790 = sld [smem:[#allocation12 + $0x55]]
        %v2791 = vstv %s2790
        %v2792 = vmul.f32 %v2791, %v1040
        %v2793 = vmul.f32 %v2791, %v1041
        %v2794 = vadd.f32 %v2788, %v2792
        %v2795 = vadd.f32 %v2789, %v2793
        %s2796 = sld [smem:[#allocation12 + $0x5d]]
        %v2797 = vstv %s2796
        %v2798 = vmul.f32 %v2797, %v1088
        %v2799 = vmul.f32 %v2797, %v1089
        %v2800 = vadd.f32 %v2794, %v2798
        %v2801 = vadd.f32 %v2795, %v2799
        %s2802 = sld [smem:[#allocation12 + $0x65]]
        %v2803 = vstv %s2802
        %v2804 = vmul.f32 %v2803, %v950
        %v2805 = vmul.f32 %v2803, %v951
        %v2806 = vadd.f32 %v2800, %v2804
        %v2807 = vadd.f32 %v2801, %v2805
        %s2808 = sld [smem:[#allocation12 + $0x6d]]
        %v2809 = vstv %s2808
        %v2810 = vmul.f32 %v2809, %v998
        %v2811 = vmul.f32 %v2809, %v999
        %v2812 = vadd.f32 %v2806, %v2810
        %v2813 = vadd.f32 %v2807, %v2811
        %s2814 = sld [smem:[#allocation12 + $0x75]]
        %v2815 = vstv %s2814
        %v2816 = vmul.f32 %v2815, %v1046
        %v2817 = vmul.f32 %v2815, %v1047
        %v2818 = vadd.f32 %v2812, %v2816
        %v2819 = vadd.f32 %v2813, %v2817
        %s2820 = sld [smem:[#allocation12 + $0x7d]]
        %v2821 = vstv %s2820
        %v2822 = vmul.f32 %v2821, %v1094
        %v2823 = vmul.f32 %v2821, %v1095
        %v2824 = vadd.f32 %v2818, %v2822
        %v2825 = vadd.f32 %v2819, %v2823
        %s2826 = sld [smem:[#allocation12 + $0x85]]
        %v2827 = vstv %s2826
        %v2828 = vmul.f32 %v2827, %v865
        %v2829 = vmul.f32 %v2827, %v866
        %v2830 = vadd.f32 %v2824, %v2828
        %v2831 = vadd.f32 %v2825, %v2829
        %s2832 = sld [smem:[#allocation12 + $0x8d]]
        %v2833 = vstv %s2832
        %v2834 = vmul.f32 %v2833, %v877
        %v2835 = vmul.f32 %v2833, %v878
        %v2836 = vadd.f32 %v2830, %v2834
        %v2837 = vadd.f32 %v2831, %v2835
        %s2838 = sld [smem:[#allocation12 + $0x95]]
        %v2839 = vstv %s2838
        %v2840 = vmul.f32 %v2839, %v889
        %v2841 = vmul.f32 %v2839, %v890
        %v2842 = vadd.f32 %v2836, %v2840
        %v2843 = vadd.f32 %v2837, %v2841
        %s2844 = sld [smem:[#allocation12 + $0x9d]]
        %v2845 = vstv %s2844
        %v2846 = vmul.f32 %v2845, %v901
        %v2847 = vmul.f32 %v2845, %v902
        %v2848 = vadd.f32 %v2842, %v2846
        %v2849 = vadd.f32 %v2843, %v2847
        %s2850 = sld [smem:[#allocation12 + $0xa5]]
        %v2851 = vstv %s2850
        %v2852 = vmul.f32 %v2851, %v956
        %v2853 = vmul.f32 %v2851, %v957
        %v2854 = vadd.f32 %v2848, %v2852
        %v2855 = vadd.f32 %v2849, %v2853
        %s2856 = sld [smem:[#allocation12 + $0xad]]
        %v2857 = vstv %s2856
        %v2858 = vmul.f32 %v2857, %v1004
        %v2859 = vmul.f32 %v2857, %v1005
        %v2860 = vadd.f32 %v2854, %v2858
        %v2861 = vadd.f32 %v2855, %v2859
        %s2862 = sld [smem:[#allocation12 + $0xb5]]
        %v2863 = vstv %s2862
        %v2864 = vmul.f32 %v2863, %v1052
        %v2865 = vmul.f32 %v2863, %v1053
        %v2866 = vadd.f32 %v2860, %v2864
        %v2867 = vadd.f32 %v2861, %v2865
        %s2868 = sld [smem:[#allocation12 + $0xbd]]
        %v2869 = vstv %s2868
        %v2870 = vmul.f32 %v2869, %v1100
        %v2871 = vmul.f32 %v2869, %v1101
        %v2872 = vadd.f32 %v2866, %v2870
        %v2873 = vadd.f32 %v2867, %v2871
        %s2874 = sld [smem:[#allocation12 + $0xc5]]
        %v2875 = vstv %s2874
        %v2876 = vmul.f32 %v2875, %v962
        %v2877 = vmul.f32 %v2875, %v963
        %v2878 = vadd.f32 %v2872, %v2876
        %v2879 = vadd.f32 %v2873, %v2877
        %s2880 = sld [smem:[#allocation12 + $0xcd]]
        %v2881 = vstv %s2880
        %v2882 = vmul.f32 %v2881, %v1010
        %v2883 = vmul.f32 %v2881, %v1011
        %v2884 = vadd.f32 %v2878, %v2882
        %v2885 = vadd.f32 %v2879, %v2883
        %s2886 = sld [smem:[#allocation12 + $0xd5]]
        %v2887 = vstv %s2886
        %v2888 = vmul.f32 %v2887, %v1058
        %v2889 = vmul.f32 %v2887, %v1059
        %v2890 = vadd.f32 %v2884, %v2888
        %v2891 = vadd.f32 %v2885, %v2889
        %s2892 = sld [smem:[#allocation12 + $0xdd]]
        %v2893 = vstv %s2892
        %v2894 = vmul.f32 %v2893, %v1106
        %v2895 = vmul.f32 %v2893, %v1107
        %v2896 = vadd.f32 %v2890, %v2894
        %v2897 = vadd.f32 %v2891, %v2895
        %s2898 = sld [smem:[#allocation12 + $0xe5]]
        %v2899 = vstv %s2898
        %v2900 = vmul.f32 %v2899, %v964
        %v2901 = vmul.f32 %v2899, %v965
        %v2902 = vadd.f32 %v2896, %v2900
        %v2903 = vadd.f32 %v2897, %v2901
        %s2904 = sld [smem:[#allocation12 + $0xed]]
        %v2905 = vstv %s2904
        %v2906 = vmul.f32 %v2905, %v1012
        %v2907 = vmul.f32 %v2905, %v1013
        %v2908 = vadd.f32 %v2902, %v2906
        %v2909 = vadd.f32 %v2903, %v2907
        %s2910 = sld [smem:[#allocation12 + $0xf5]]
        %v2911 = vstv %s2910
        %v2912 = vmul.f32 %v2911, %v1060
        %v2913 = vmul.f32 %v2911, %v1061
        %v2914 = vadd.f32 %v2908, %v2912
        %v2915 = vadd.f32 %v2909, %v2913
        %s2916 = sld [smem:[#allocation12 + $0xfd]]
        %v2917 = vstv %s2916
        %v2918 = vmul.f32 %v2917, %v1108
        %v2919 = vmul.f32 %v2917, %v1109
        %v2920 = vadd.f32 %v2914, %v2918
        %v2921 = vadd.f32 %v2915, %v2919
        %s2922 = sld [smem:[#allocation12 + $0x105]]
        %v2923 = vstv %s2922
        %v2924 = vmul.f32 %v2923, %v970
        %v2925 = vmul.f32 %v2923, %v971
        %v2926 = vadd.f32 %v2920, %v2924
        %v2927 = vadd.f32 %v2921, %v2925
        %s2928 = sld [smem:[#allocation12 + $0x10d]]
        %v2929 = vstv %s2928
        %v2930 = vmul.f32 %v2929, %v1018
        %v2931 = vmul.f32 %v2929, %v1019
        %v2932 = vadd.f32 %v2926, %v2930
        %v2933 = vadd.f32 %v2927, %v2931
        %s2934 = sld [smem:[#allocation12 + $0x115]]
        %v2935 = vstv %s2934
        %v2936 = vmul.f32 %v2935, %v1066
        %v2937 = vmul.f32 %v2935, %v1067
        %v2938 = vadd.f32 %v2932, %v2936
        %v2939 = vadd.f32 %v2933, %v2937
        %s2940 = sld [smem:[#allocation12 + $0x11d]]
        %v2941 = vstv %s2940
        %v2942 = vmul.f32 %v2941, %v1114
        %v2943 = vmul.f32 %v2941, %v1115
        %v2944 = vadd.f32 %v2938, %v2942
        %v2945 = vadd.f32 %v2939, %v2943
        %v2946 = vmax.f32 %v2944, 0.0
        %v2947 = vmax.f32 %v2945, 0.0
        %v2948 = vrot.slane %v2946, 7
        %v2949 = vrot.slane %v2947, 7
        %v2950 = vsel %vm924, %v2948, %v2949
        %v2951 = vsel %vm924, %v2949, %v2948
        %v2952 = vrot.slane %v2946, 1
        %v2953 = vrot.slane %v2947, 1
        %v2954 = vsel %vm929, %v2952, %v2953
        %v2955 = vsel %vm929, %v2953, %v2952
        %2956 = vrot.lane.b32.xlu0 %v2951, 1
        %v2957 = vpop.permute.xlu0 %2956
        %2958 = vrot.lane.b32.xlu0 %v2950, 1
        %v2959 = vpop.permute.xlu0 %2958
        %v2960 = vsel %vm914, %v2957, 0.0
        %v2961 = vsel %vm915, %v2959, 0.0
        %v2962 = vsel %vm908, %v2951, 0.0
        %v2963 = vsel %vm909, %v2950, 0.0
        %2964 = vrot.lane.b32.xlu0 %v2951, 127
        %v2965 = vpop.permute.xlu0 %2964
        %2966 = vrot.lane.b32.xlu0 %v2950, 127
        %v2967 = vpop.permute.xlu0 %2966
        %v2968 = vsel %vm916, %v2965, 0.0
        %v2969 = vsel %vm917, %v2967, 0.0
        %2970 = vrot.lane.b32.xlu0 %v2946, 1
        %v2971 = vpop.permute.xlu0 %2970
        %2972 = vrot.lane.b32.xlu0 %v2947, 1
        %v2973 = vpop.permute.xlu0 %2972
        %v2974 = vsel %vm912, %v2971, 0.0
        %v2975 = vsel %vm912, %v2973, 0.0
        %2976 = vrot.lane.b32.xlu0 %v2946, 127
        %v2977 = vpop.permute.xlu0 %2976
        %2978 = vrot.lane.b32.xlu0 %v2947, 127
        %v2979 = vpop.permute.xlu0 %2978
        %v2980 = vsel %vm913, %v2977, 0.0
        %v2981 = vsel %vm913, %v2979, 0.0
        %2982 = vrot.lane.b32.xlu0 %v2954, 1
        %v2983 = vpop.permute.xlu0 %2982
        %2984 = vrot.lane.b32.xlu0 %v2955, 1
        %v2985 = vpop.permute.xlu0 %2984
        %v2986 = vsel %vm918, %v2983, 0.0
        %v2987 = vsel %vm919, %v2985, 0.0
        %v2988 = vsel %vm910, %v2954, 0.0
        %v2989 = vsel %vm911, %v2955, 0.0
        %2990 = vrot.lane.b32.xlu0 %v2954, 127
        %v2991 = vpop.permute.xlu0 %2990
        %2992 = vrot.lane.b32.xlu0 %v2955, 127
        %v2993 = vpop.permute.xlu0 %2992
        %v2994 = vsel %vm920, %v2991, 0.0
        %v2995 = vsel %vm921, %v2993, 0.0
        %s2996 = sld [smem:[#allocation15 + $0x5]]
        %v2997 = vstv %s2996
        %v2998 = vmul.f32 %v2997, %v2960
        %v2999 = vmul.f32 %v2997, %v2961
        %v3000 = vadd.f32 %v2726, %v2998
        %v3001 = vadd.f32 %v2727, %v2999
        %s3002 = sld [smem:[#allocation15 + $0xd]]
        %v3003 = vstv %s3002
        %v3004 = vmul.f32 %v3003, %v2962
        %v3005 = vmul.f32 %v3003, %v2963
        %v3006 = vadd.f32 %v3000, %v3004
        %v3007 = vadd.f32 %v3001, %v3005
        %s3008 = sld [smem:[#allocation15 + $0x15]]
        %v3009 = vstv %s3008
        %v3010 = vmul.f32 %v3009, %v2968
        %v3011 = vmul.f32 %v3009, %v2969
        %v3012 = vadd.f32 %v3006, %v3010
        %v3013 = vadd.f32 %v3007, %v3011
        %s3014 = sld [smem:[#allocation15 + $0x1d]]
        %v3015 = vstv %s3014
        %v3016 = vmul.f32 %v3015, %v2974
        %v3017 = vmul.f32 %v3015, %v2975
        %v3018 = vadd.f32 %v3012, %v3016
        %v3019 = vadd.f32 %v3013, %v3017
        %s3020 = sld [smem:[#allocation15 + $0x25]]
        %v3021 = vstv %s3020
        %v3022 = vmul.f32 %v3021, %v2946
        %v3023 = vmul.f32 %v3021, %v2947
        %v3024 = vadd.f32 %v3018, %v3022
        %v3025 = vadd.f32 %v3019, %v3023
        %s3026 = sld [smem:[#allocation15 + $0x2d]]
        %v3027 = vstv %s3026
        %v3028 = vmul.f32 %v3027, %v2980
        %v3029 = vmul.f32 %v3027, %v2981
        %v3030 = vadd.f32 %v3024, %v3028
        %v3031 = vadd.f32 %v3025, %v3029
        %s3032 = sld [smem:[#allocation15 + $0x35]]
        %v3033 = vstv %s3032
        %v3034 = vmul.f32 %v3033, %v2986
        %v3035 = vmul.f32 %v3033, %v2987
        %v3036 = vadd.f32 %v3030, %v3034
        %v3037 = vadd.f32 %v3031, %v3035
        %s3038 = sld [smem:[#allocation15 + $0x3d]]
        %v3039 = vstv %s3038
        %v3040 = vmul.f32 %v3039, %v2988
        %v3041 = vmul.f32 %v3039, %v2989
        %v3042 = vadd.f32 %v3036, %v3040
        %v3043 = vadd.f32 %v3037, %v3041
        %s3044 = sld [smem:[#allocation15 + $0x45]]
        %v3045 = vstv %s3044
        %v3046 = vmul.f32 %v3045, %v2994
        %v3047 = vmul.f32 %v3045, %v2995
        %v3048 = vadd.f32 %v3042, %v3046
        %v3049 = vadd.f32 %v3043, %v3047
        %s3050 = sld [smem:[#allocation13 + $0x6]]
        %v3051 = vstv %s3050
        %s3052 = sld [smem:[#allocation12 + $0x6]]
        %v3053 = vstv %s3052
        %v3054 = vmul.f32 %v3053, %v936
        %v3055 = vmul.f32 %v3053, %v937
        %v3056 = vadd.f32 %v3051, %v3054
        %v3057 = vadd.f32 %v3051, %v3055
        %s3058 = sld [smem:[#allocation12 + $0xe]]
        %v3059 = vstv %s3058
        %v3060 = vmul.f32 %v3059, %v984
        %v3061 = vmul.f32 %v3059, %v985
        %v3062 = vadd.f32 %v3056, %v3060
        %v3063 = vadd.f32 %v3057, %v3061
        %s3064 = sld [smem:[#allocation12 + $0x16]]
        %v3065 = vstv %s3064
        %v3066 = vmul.f32 %v3065, %v1032
        %v3067 = vmul.f32 %v3065, %v1033
        %v3068 = vadd.f32 %v3062, %v3066
        %v3069 = vadd.f32 %v3063, %v3067
        %s3070 = sld [smem:[#allocation12 + $0x1e]]
        %v3071 = vstv %s3070
        %v3072 = vmul.f32 %v3071, %v1080
        %v3073 = vmul.f32 %v3071, %v1081
        %v3074 = vadd.f32 %v3068, %v3072
        %v3075 = vadd.f32 %v3069, %v3073
        %s3076 = sld [smem:[#allocation12 + $0x26]]
        %v3077 = vstv %s3076
        %v3078 = vmul.f32 %v3077, %v938
        %v3079 = vmul.f32 %v3077, %v939
        %v3080 = vadd.f32 %v3074, %v3078
        %v3081 = vadd.f32 %v3075, %v3079
        %s3082 = sld [smem:[#allocation12 + $0x2e]]
        %v3083 = vstv %s3082
        %v3084 = vmul.f32 %v3083, %v986
        %v3085 = vmul.f32 %v3083, %v987
        %v3086 = vadd.f32 %v3080, %v3084
        %v3087 = vadd.f32 %v3081, %v3085
        %s3088 = sld [smem:[#allocation12 + $0x36]]
        %v3089 = vstv %s3088
        %v3090 = vmul.f32 %v3089, %v1034
        %v3091 = vmul.f32 %v3089, %v1035
        %v3092 = vadd.f32 %v3086, %v3090
        %v3093 = vadd.f32 %v3087, %v3091
        %s3094 = sld [smem:[#allocation12 + $0x3e]]
        %v3095 = vstv %s3094
        %v3096 = vmul.f32 %v3095, %v1082
        %v3097 = vmul.f32 %v3095, %v1083
        %v3098 = vadd.f32 %v3092, %v3096
        %v3099 = vadd.f32 %v3093, %v3097
        %s3100 = sld [smem:[#allocation12 + $0x46]]
        %v3101 = vstv %s3100
        %v3102 = vmul.f32 %v3101, %v944
        %v3103 = vmul.f32 %v3101, %v945
        %v3104 = vadd.f32 %v3098, %v3102
        %v3105 = vadd.f32 %v3099, %v3103
        %s3106 = sld [smem:[#allocation12 + $0x4e]]
        %v3107 = vstv %s3106
        %v3108 = vmul.f32 %v3107, %v992
        %v3109 = vmul.f32 %v3107, %v993
        %v3110 = vadd.f32 %v3104, %v3108
        %v3111 = vadd.f32 %v3105, %v3109
        %s3112 = sld [smem:[#allocation12 + $0x56]]
        %v3113 = vstv %s3112
        %v3114 = vmul.f32 %v3113, %v1040
        %v3115 = vmul.f32 %v3113, %v1041
        %v3116 = vadd.f32 %v3110, %v3114
        %v3117 = vadd.f32 %v3111, %v3115
        %s3118 = sld [smem:[#allocation12 + $0x5e]]
        %v3119 = vstv %s3118
        %v3120 = vmul.f32 %v3119, %v1088
        %v3121 = vmul.f32 %v3119, %v1089
        %v3122 = vadd.f32 %v3116, %v3120
        %v3123 = vadd.f32 %v3117, %v3121
        %s3124 = sld [smem:[#allocation12 + $0x66]]
        %v3125 = vstv %s3124
        %v3126 = vmul.f32 %v3125, %v950
        %v3127 = vmul.f32 %v3125, %v951
        %v3128 = vadd.f32 %v3122, %v3126
        %v3129 = vadd.f32 %v3123, %v3127
        %s3130 = sld [smem:[#allocation12 + $0x6e]]
        %v3131 = vstv %s3130
        %v3132 = vmul.f32 %v3131, %v998
        %v3133 = vmul.f32 %v3131, %v999
        %v3134 = vadd.f32 %v3128, %v3132
        %v3135 = vadd.f32 %v3129, %v3133
        %s3136 = sld [smem:[#allocation12 + $0x76]]
        %v3137 = vstv %s3136
        %v3138 = vmul.f32 %v3137, %v1046
        %v3139 = vmul.f32 %v3137, %v1047
        %v3140 = vadd.f32 %v3134, %v3138
        %v3141 = vadd.f32 %v3135, %v3139
        %s3142 = sld [smem:[#allocation12 + $0x7e]]
        %v3143 = vstv %s3142
        %v3144 = vmul.f32 %v3143, %v1094
        %v3145 = vmul.f32 %v3143, %v1095
        %v3146 = vadd.f32 %v3140, %v3144
        %v3147 = vadd.f32 %v3141, %v3145
        %s3148 = sld [smem:[#allocation12 + $0x86]]
        %v3149 = vstv %s3148
        %v3150 = vmul.f32 %v3149, %v865
        %v3151 = vmul.f32 %v3149, %v866
        %v3152 = vadd.f32 %v3146, %v3150
        %v3153 = vadd.f32 %v3147, %v3151
        %s3154 = sld [smem:[#allocation12 + $0x8e]]
        %v3155 = vstv %s3154
        %v3156 = vmul.f32 %v3155, %v877
        %v3157 = vmul.f32 %v3155, %v878
        %v3158 = vadd.f32 %v3152, %v3156
        %v3159 = vadd.f32 %v3153, %v3157
        %s3160 = sld [smem:[#allocation12 + $0x96]]
        %v3161 = vstv %s3160
        %v3162 = vmul.f32 %v3161, %v889
        %v3163 = vmul.f32 %v3161, %v890
        %v3164 = vadd.f32 %v3158, %v3162
        %v3165 = vadd.f32 %v3159, %v3163
        %s3166 = sld [smem:[#allocation12 + $0x9e]]
        %v3167 = vstv %s3166
        %v3168 = vmul.f32 %v3167, %v901
        %v3169 = vmul.f32 %v3167, %v902
        %v3170 = vadd.f32 %v3164, %v3168
        %v3171 = vadd.f32 %v3165, %v3169
        %s3172 = sld [smem:[#allocation12 + $0xa6]]
        %v3173 = vstv %s3172
        %v3174 = vmul.f32 %v3173, %v956
        %v3175 = vmul.f32 %v3173, %v957
        %v3176 = vadd.f32 %v3170, %v3174
        %v3177 = vadd.f32 %v3171, %v3175
        %s3178 = sld [smem:[#allocation12 + $0xae]]
        %v3179 = vstv %s3178
        %v3180 = vmul.f32 %v3179, %v1004
        %v3181 = vmul.f32 %v3179, %v1005
        %v3182 = vadd.f32 %v3176, %v3180
        %v3183 = vadd.f32 %v3177, %v3181
        %s3184 = sld [smem:[#allocation12 + $0xb6]]
        %v3185 = vstv %s3184
        %v3186 = vmul.f32 %v3185, %v1052
        %v3187 = vmul.f32 %v3185, %v1053
        %v3188 = vadd.f32 %v3182, %v3186
        %v3189 = vadd.f32 %v3183, %v3187
        %s3190 = sld [smem:[#allocation12 + $0xbe]]
        %v3191 = vstv %s3190
        %v3192 = vmul.f32 %v3191, %v1100
        %v3193 = vmul.f32 %v3191, %v1101
        %v3194 = vadd.f32 %v3188, %v3192
        %v3195 = vadd.f32 %v3189, %v3193
        %s3196 = sld [smem:[#allocation12 + $0xc6]]
        %v3197 = vstv %s3196
        %v3198 = vmul.f32 %v3197, %v962
        %v3199 = vmul.f32 %v3197, %v963
        %v3200 = vadd.f32 %v3194, %v3198
        %v3201 = vadd.f32 %v3195, %v3199
        %s3202 = sld [smem:[#allocation12 + $0xce]]
        %v3203 = vstv %s3202
        %v3204 = vmul.f32 %v3203, %v1010
        %v3205 = vmul.f32 %v3203, %v1011
        %v3206 = vadd.f32 %v3200, %v3204
        %v3207 = vadd.f32 %v3201, %v3205
        %s3208 = sld [smem:[#allocation12 + $0xd6]]
        %v3209 = vstv %s3208
        %v3210 = vmul.f32 %v3209, %v1058
        %v3211 = vmul.f32 %v3209, %v1059
        %v3212 = vadd.f32 %v3206, %v3210
        %v3213 = vadd.f32 %v3207, %v3211
        %s3214 = sld [smem:[#allocation12 + $0xde]]
        %v3215 = vstv %s3214
        %v3216 = vmul.f32 %v3215, %v1106
        %v3217 = vmul.f32 %v3215, %v1107
        %v3218 = vadd.f32 %v3212, %v3216
        %v3219 = vadd.f32 %v3213, %v3217
        %s3220 = sld [smem:[#allocation12 + $0xe6]]
        %v3221 = vstv %s3220
        %v3222 = vmul.f32 %v3221, %v964
        %v3223 = vmul.f32 %v3221, %v965
        %v3224 = vadd.f32 %v3218, %v3222
        %v3225 = vadd.f32 %v3219, %v3223
        %s3226 = sld [smem:[#allocation12 + $0xee]]
        %v3227 = vstv %s3226
        %v3228 = vmul.f32 %v3227, %v1012
        %v3229 = vmul.f32 %v3227, %v1013
        %v3230 = vadd.f32 %v3224, %v3228
        %v3231 = vadd.f32 %v3225, %v3229
        %s3232 = sld [smem:[#allocation12 + $0xf6]]
        %v3233 = vstv %s3232
        %v3234 = vmul.f32 %v3233, %v1060
        %v3235 = vmul.f32 %v3233, %v1061
        %v3236 = vadd.f32 %v3230, %v3234
        %v3237 = vadd.f32 %v3231, %v3235
        %s3238 = sld [smem:[#allocation12 + $0xfe]]
        %v3239 = vstv %s3238
        %v3240 = vmul.f32 %v3239, %v1108
        %v3241 = vmul.f32 %v3239, %v1109
        %v3242 = vadd.f32 %v3236, %v3240
        %v3243 = vadd.f32 %v3237, %v3241
        %s3244 = sld [smem:[#allocation12 + $0x106]]
        %v3245 = vstv %s3244
        %v3246 = vmul.f32 %v3245, %v970
        %v3247 = vmul.f32 %v3245, %v971
        %v3248 = vadd.f32 %v3242, %v3246
        %v3249 = vadd.f32 %v3243, %v3247
        %s3250 = sld [smem:[#allocation12 + $0x10e]]
        %v3251 = vstv %s3250
        %v3252 = vmul.f32 %v3251, %v1018
        %v3253 = vmul.f32 %v3251, %v1019
        %v3254 = vadd.f32 %v3248, %v3252
        %v3255 = vadd.f32 %v3249, %v3253
        %s3256 = sld [smem:[#allocation12 + $0x116]]
        %v3257 = vstv %s3256
        %v3258 = vmul.f32 %v3257, %v1066
        %v3259 = vmul.f32 %v3257, %v1067
        %v3260 = vadd.f32 %v3254, %v3258
        %v3261 = vadd.f32 %v3255, %v3259
        %s3262 = sld [smem:[#allocation12 + $0x11e]]
        %v3263 = vstv %s3262
        %v3264 = vmul.f32 %v3263, %v1114
        %v3265 = vmul.f32 %v3263, %v1115
        %v3266 = vadd.f32 %v3260, %v3264
        %v3267 = vadd.f32 %v3261, %v3265
        %v3268 = vmax.f32 %v3266, 0.0
        %v3269 = vmax.f32 %v3267, 0.0
        %v3270 = vrot.slane %v3268, 7
        %v3271 = vrot.slane %v3269, 7
        %v3272 = vsel %vm924, %v3270, %v3271
        %v3273 = vsel %vm924, %v3271, %v3270
        %v3274 = vrot.slane %v3268, 1
        %v3275 = vrot.slane %v3269, 1
        %v3276 = vsel %vm929, %v3274, %v3275
        %v3277 = vsel %vm929, %v3275, %v3274
        %3278 = vrot.lane.b32.xlu0 %v3273, 1
        %v3279 = vpop.permute.xlu0 %3278
        %3280 = vrot.lane.b32.xlu0 %v3272, 1
        %v3281 = vpop.permute.xlu0 %3280
        %v3282 = vsel %vm914, %v3279, 0.0
        %v3283 = vsel %vm915, %v3281, 0.0
        %v3284 = vsel %vm908, %v3273, 0.0
        %v3285 = vsel %vm909, %v3272, 0.0
        %3286 = vrot.lane.b32.xlu0 %v3273, 127
        %v3287 = vpop.permute.xlu0 %3286
        %3288 = vrot.lane.b32.xlu0 %v3272, 127
        %v3289 = vpop.permute.xlu0 %3288
        %v3290 = vsel %vm916, %v3287, 0.0
        %v3291 = vsel %vm917, %v3289, 0.0
        %3292 = vrot.lane.b32.xlu0 %v3268, 1
        %v3293 = vpop.permute.xlu0 %3292
        %3294 = vrot.lane.b32.xlu0 %v3269, 1
        %v3295 = vpop.permute.xlu0 %3294
        %v3296 = vsel %vm912, %v3293, 0.0
        %v3297 = vsel %vm912, %v3295, 0.0
        %3298 = vrot.lane.b32.xlu0 %v3268, 127
        %v3299 = vpop.permute.xlu0 %3298
        %3300 = vrot.lane.b32.xlu0 %v3269, 127
        %v3301 = vpop.permute.xlu0 %3300
        %v3302 = vsel %vm913, %v3299, 0.0
        %v3303 = vsel %vm913, %v3301, 0.0
        %3304 = vrot.lane.b32.xlu0 %v3276, 1
        %v3305 = vpop.permute.xlu0 %3304
        %3306 = vrot.lane.b32.xlu0 %v3277, 1
        %v3307 = vpop.permute.xlu0 %3306
        %v3308 = vsel %vm918, %v3305, 0.0
        %v3309 = vsel %vm919, %v3307, 0.0
        %v3310 = vsel %vm910, %v3276, 0.0
        %v3311 = vsel %vm911, %v3277, 0.0
        %3312 = vrot.lane.b32.xlu0 %v3276, 127
        %v3313 = vpop.permute.xlu0 %3312
        %3314 = vrot.lane.b32.xlu0 %v3277, 127
        %v3315 = vpop.permute.xlu0 %3314
        %v3316 = vsel %vm920, %v3313, 0.0
        %v3317 = vsel %vm921, %v3315, 0.0
        %s3318 = sld [smem:[#allocation15 + $0x6]]
        %v3319 = vstv %s3318
        %v3320 = vmul.f32 %v3319, %v3282
        %v3321 = vmul.f32 %v3319, %v3283
        %v3322 = vadd.f32 %v3048, %v3320
        %v3323 = vadd.f32 %v3049, %v3321
        %s3324 = sld [smem:[#allocation15 + $0xe]]
        %v3325 = vstv %s3324
        %v3326 = vmul.f32 %v3325, %v3284
        %v3327 = vmul.f32 %v3325, %v3285
        %v3328 = vadd.f32 %v3322, %v3326
        %v3329 = vadd.f32 %v3323, %v3327
        %s3330 = sld [smem:[#allocation15 + $0x16]]
        %v3331 = vstv %s3330
        %v3332 = vmul.f32 %v3331, %v3290
        %v3333 = vmul.f32 %v3331, %v3291
        %v3334 = vadd.f32 %v3328, %v3332
        %v3335 = vadd.f32 %v3329, %v3333
        %s3336 = sld [smem:[#allocation15 + $0x1e]]
        %v3337 = vstv %s3336
        %v3338 = vmul.f32 %v3337, %v3296
        %v3339 = vmul.f32 %v3337, %v3297
        %v3340 = vadd.f32 %v3334, %v3338
        %v3341 = vadd.f32 %v3335, %v3339
        %s3342 = sld [smem:[#allocation15 + $0x26]]
        %v3343 = vstv %s3342
        %v3344 = vmul.f32 %v3343, %v3268
        %v3345 = vmul.f32 %v3343, %v3269
        %v3346 = vadd.f32 %v3340, %v3344
        %v3347 = vadd.f32 %v3341, %v3345
        %s3348 = sld [smem:[#allocation15 + $0x2e]]
        %v3349 = vstv %s3348
        %v3350 = vmul.f32 %v3349, %v3302
        %v3351 = vmul.f32 %v3349, %v3303
        %v3352 = vadd.f32 %v3346, %v3350
        %v3353 = vadd.f32 %v3347, %v3351
        %s3354 = sld [smem:[#allocation15 + $0x36]]
        %v3355 = vstv %s3354
        %v3356 = vmul.f32 %v3355, %v3308
        %v3357 = vmul.f32 %v3355, %v3309
        %v3358 = vadd.f32 %v3352, %v3356
        %v3359 = vadd.f32 %v3353, %v3357
        %s3360 = sld [smem:[#allocation15 + $0x3e]]
        %v3361 = vstv %s3360
        %v3362 = vmul.f32 %v3361, %v3310
        %v3363 = vmul.f32 %v3361, %v3311
        %v3364 = vadd.f32 %v3358, %v3362
        %v3365 = vadd.f32 %v3359, %v3363
        %s3366 = sld [smem:[#allocation15 + $0x46]]
        %v3367 = vstv %s3366
        %v3368 = vmul.f32 %v3367, %v3316
        %v3369 = vmul.f32 %v3367, %v3317
        %v3370 = vadd.f32 %v3364, %v3368
        %v3371 = vadd.f32 %v3365, %v3369
        %s3372 = sld [smem:[#allocation13 + $0x7]]
        %v3373 = vstv %s3372
        %s3374 = sld [smem:[#allocation12 + $0x7]]
        %v3375 = vstv %s3374
        %v3376 = vmul.f32 %v3375, %v936
        %v3377 = vmul.f32 %v3375, %v937
        %v3378 = vadd.f32 %v3373, %v3376
        %v3379 = vadd.f32 %v3373, %v3377
        %s3380 = sld [smem:[#allocation12 + $0xf]]
        %v3381 = vstv %s3380
        %v3382 = vmul.f32 %v3381, %v984
        %v3383 = vmul.f32 %v3381, %v985
        %v3384 = vadd.f32 %v3378, %v3382
        %v3385 = vadd.f32 %v3379, %v3383
        %s3386 = sld [smem:[#allocation12 + $0x17]]
        %v3387 = vstv %s3386
        %v3388 = vmul.f32 %v3387, %v1032
        %v3389 = vmul.f32 %v3387, %v1033
        %v3390 = vadd.f32 %v3384, %v3388
        %v3391 = vadd.f32 %v3385, %v3389
        %s3392 = sld [smem:[#allocation12 + $0x1f]]
        %v3393 = vstv %s3392
        %v3394 = vmul.f32 %v3393, %v1080
        %v3395 = vmul.f32 %v3393, %v1081
        %v3396 = vadd.f32 %v3390, %v3394
        %v3397 = vadd.f32 %v3391, %v3395
        %s3398 = sld [smem:[#allocation12 + $0x27]]
        %v3399 = vstv %s3398
        %v3400 = vmul.f32 %v3399, %v938
        %v3401 = vmul.f32 %v3399, %v939
        %v3402 = vadd.f32 %v3396, %v3400
        %v3403 = vadd.f32 %v3397, %v3401
        %s3404 = sld [smem:[#allocation12 + $0x2f]]
        %v3405 = vstv %s3404
        %v3406 = vmul.f32 %v3405, %v986
        %v3407 = vmul.f32 %v3405, %v987
        %v3408 = vadd.f32 %v3402, %v3406
        %v3409 = vadd.f32 %v3403, %v3407
        %s3410 = sld [smem:[#allocation12 + $0x37]]
        %v3411 = vstv %s3410
        %v3412 = vmul.f32 %v3411, %v1034
        %v3413 = vmul.f32 %v3411, %v1035
        %v3414 = vadd.f32 %v3408, %v3412
        %v3415 = vadd.f32 %v3409, %v3413
        %s3416 = sld [smem:[#allocation12 + $0x3f]]
        %v3417 = vstv %s3416
        %v3418 = vmul.f32 %v3417, %v1082
        %v3419 = vmul.f32 %v3417, %v1083
        %v3420 = vadd.f32 %v3414, %v3418
        %v3421 = vadd.f32 %v3415, %v3419
        %s3422 = sld [smem:[#allocation12 + $0x47]]
        %v3423 = vstv %s3422
        %v3424 = vmul.f32 %v3423, %v944
        %v3425 = vmul.f32 %v3423, %v945
        %v3426 = vadd.f32 %v3420, %v3424
        %v3427 = vadd.f32 %v3421, %v3425
        %s3428 = sld [smem:[#allocation12 + $0x4f]]
        %v3429 = vstv %s3428
        %v3430 = vmul.f32 %v3429, %v992
        %v3431 = vmul.f32 %v3429, %v993
        %v3432 = vadd.f32 %v3426, %v3430
        %v3433 = vadd.f32 %v3427, %v3431
        %s3434 = sld [smem:[#allocation12 + $0x57]]
        %v3435 = vstv %s3434
        %v3436 = vmul.f32 %v3435, %v1040
        %v3437 = vmul.f32 %v3435, %v1041
        %v3438 = vadd.f32 %v3432, %v3436
        %v3439 = vadd.f32 %v3433, %v3437
        %s3440 = sld [smem:[#allocation12 + $0x5f]]
        %v3441 = vstv %s3440
        %v3442 = vmul.f32 %v3441, %v1088
        %v3443 = vmul.f32 %v3441, %v1089
        %v3444 = vadd.f32 %v3438, %v3442
        %v3445 = vadd.f32 %v3439, %v3443
        %s3446 = sld [smem:[#allocation12 + $0x67]]
        %v3447 = vstv %s3446
        %v3448 = vmul.f32 %v3447, %v950
        %v3449 = vmul.f32 %v3447, %v951
        %v3450 = vadd.f32 %v3444, %v3448
        %v3451 = vadd.f32 %v3445, %v3449
        %s3452 = sld [smem:[#allocation12 + $0x6f]]
        %v3453 = vstv %s3452
        %v3454 = vmul.f32 %v3453, %v998
        %v3455 = vmul.f32 %v3453, %v999
        %v3456 = vadd.f32 %v3450, %v3454
        %v3457 = vadd.f32 %v3451, %v3455
        %s3458 = sld [smem:[#allocation12 + $0x77]]
        %v3459 = vstv %s3458
        %v3460 = vmul.f32 %v3459, %v1046
        %v3461 = vmul.f32 %v3459, %v1047
        %v3462 = vadd.f32 %v3456, %v3460
        %v3463 = vadd.f32 %v3457, %v3461
        %s3464 = sld [smem:[#allocation12 + $0x7f]]
        %v3465 = vstv %s3464
        %v3466 = vmul.f32 %v3465, %v1094
        %v3467 = vmul.f32 %v3465, %v1095
        %v3468 = vadd.f32 %v3462, %v3466
        %v3469 = vadd.f32 %v3463, %v3467
        %s3470 = sld [smem:[#allocation12 + $0x87]]
        %v3471 = vstv %s3470
        %v3472 = vmul.f32 %v3471, %v865
        %v3473 = vmul.f32 %v3471, %v866
        %v3474 = vadd.f32 %v3468, %v3472
        %v3475 = vadd.f32 %v3469, %v3473
        %s3476 = sld [smem:[#allocation12 + $0x8f]]
        %v3477 = vstv %s3476
        %v3478 = vmul.f32 %v3477, %v877
        %v3479 = vmul.f32 %v3477, %v878
        %v3480 = vadd.f32 %v3474, %v3478
        %v3481 = vadd.f32 %v3475, %v3479
        %s3482 = sld [smem:[#allocation12 + $0x97]]
        %v3483 = vstv %s3482
        %v3484 = vmul.f32 %v3483, %v889
        %v3485 = vmul.f32 %v3483, %v890
        %v3486 = vadd.f32 %v3480, %v3484
        %v3487 = vadd.f32 %v3481, %v3485
        %s3488 = sld [smem:[#allocation12 + $0x9f]]
        %v3489 = vstv %s3488
        %v3490 = vmul.f32 %v3489, %v901
        %v3491 = vmul.f32 %v3489, %v902
        %v3492 = vadd.f32 %v3486, %v3490
        %v3493 = vadd.f32 %v3487, %v3491
        %s3494 = sld [smem:[#allocation12 + $0xa7]]
        %v3495 = vstv %s3494
        %v3496 = vmul.f32 %v3495, %v956
        %v3497 = vmul.f32 %v3495, %v957
        %v3498 = vadd.f32 %v3492, %v3496
        %v3499 = vadd.f32 %v3493, %v3497
        %s3500 = sld [smem:[#allocation12 + $0xaf]]
        %v3501 = vstv %s3500
        %v3502 = vmul.f32 %v3501, %v1004
        %v3503 = vmul.f32 %v3501, %v1005
        %v3504 = vadd.f32 %v3498, %v3502
        %v3505 = vadd.f32 %v3499, %v3503
        %s3506 = sld [smem:[#allocation12 + $0xb7]]
        %v3507 = vstv %s3506
        %v3508 = vmul.f32 %v3507, %v1052
        %v3509 = vmul.f32 %v3507, %v1053
        %v3510 = vadd.f32 %v3504, %v3508
        %v3511 = vadd.f32 %v3505, %v3509
        %s3512 = sld [smem:[#allocation12 + $0xbf]]
        %v3513 = vstv %s3512
        %v3514 = vmul.f32 %v3513, %v1100
        %v3515 = vmul.f32 %v3513, %v1101
        %v3516 = vadd.f32 %v3510, %v3514
        %v3517 = vadd.f32 %v3511, %v3515
        %s3518 = sld [smem:[#allocation12 + $0xc7]]
        %v3519 = vstv %s3518
        %v3520 = vmul.f32 %v3519, %v962
        %v3521 = vmul.f32 %v3519, %v963
        %v3522 = vadd.f32 %v3516, %v3520
        %v3523 = vadd.f32 %v3517, %v3521
        %s3524 = sld [smem:[#allocation12 + $0xcf]]
        %v3525 = vstv %s3524
        %v3526 = vmul.f32 %v3525, %v1010
        %v3527 = vmul.f32 %v3525, %v1011
        %v3528 = vadd.f32 %v3522, %v3526
        %v3529 = vadd.f32 %v3523, %v3527
        %s3530 = sld [smem:[#allocation12 + $0xd7]]
        %v3531 = vstv %s3530
        %v3532 = vmul.f32 %v3531, %v1058
        %v3533 = vmul.f32 %v3531, %v1059
        %v3534 = vadd.f32 %v3528, %v3532
        %v3535 = vadd.f32 %v3529, %v3533
        %s3536 = sld [smem:[#allocation12 + $0xdf]]
        %v3537 = vstv %s3536
        %v3538 = vmul.f32 %v3537, %v1106
        %v3539 = vmul.f32 %v3537, %v1107
        %v3540 = vadd.f32 %v3534, %v3538
        %v3541 = vadd.f32 %v3535, %v3539
        %s3542 = sld [smem:[#allocation12 + $0xe7]]
        %v3543 = vstv %s3542
        %v3544 = vmul.f32 %v3543, %v964
        %v3545 = vmul.f32 %v3543, %v965
        %v3546 = vadd.f32 %v3540, %v3544
        %v3547 = vadd.f32 %v3541, %v3545
        %s3548 = sld [smem:[#allocation12 + $0xef]]
        %v3549 = vstv %s3548
        %v3550 = vmul.f32 %v3549, %v1012
        %v3551 = vmul.f32 %v3549, %v1013
        %v3552 = vadd.f32 %v3546, %v3550
        %v3553 = vadd.f32 %v3547, %v3551
        %s3554 = sld [smem:[#allocation12 + $0xf7]]
        %v3555 = vstv %s3554
        %v3556 = vmul.f32 %v3555, %v1060
        %v3557 = vmul.f32 %v3555, %v1061
        %v3558 = vadd.f32 %v3552, %v3556
        %v3559 = vadd.f32 %v3553, %v3557
        %s3560 = sld [smem:[#allocation12 + $0xff]]
        %v3561 = vstv %s3560
        %v3562 = vmul.f32 %v3561, %v1108
        %v3563 = vmul.f32 %v3561, %v1109
        %v3564 = vadd.f32 %v3558, %v3562
        %v3565 = vadd.f32 %v3559, %v3563
        %s3566 = sld [smem:[#allocation12 + $0x107]]
        %v3567 = vstv %s3566
        %v3568 = vmul.f32 %v3567, %v970
        %v3569 = vmul.f32 %v3567, %v971
        %v3570 = vadd.f32 %v3564, %v3568
        %v3571 = vadd.f32 %v3565, %v3569
        %s3572 = sld [smem:[#allocation12 + $0x10f]]
        %v3573 = vstv %s3572
        %v3574 = vmul.f32 %v3573, %v1018
        %v3575 = vmul.f32 %v3573, %v1019
        %v3576 = vadd.f32 %v3570, %v3574
        %v3577 = vadd.f32 %v3571, %v3575
        %s3578 = sld [smem:[#allocation12 + $0x117]]
        %v3579 = vstv %s3578
        %v3580 = vmul.f32 %v3579, %v1066
        %v3581 = vmul.f32 %v3579, %v1067
        %v3582 = vadd.f32 %v3576, %v3580
        %v3583 = vadd.f32 %v3577, %v3581
        %s3584 = sld [smem:[#allocation12 + $0x11f]]
        %v3585 = vstv %s3584
        %v3586 = vmul.f32 %v3585, %v1114
        %v3587 = vmul.f32 %v3585, %v1115
        %v3588 = vadd.f32 %v3582, %v3586
        %v3589 = vadd.f32 %v3583, %v3587
        %v3590 = vmax.f32 %v3588, 0.0
        %v3591 = vmax.f32 %v3589, 0.0
        %v3592 = vrot.slane %v3590, 7
        %v3593 = vrot.slane %v3591, 7
        %v3594 = vsel %vm924, %v3592, %v3593
        %v3595 = vsel %vm924, %v3593, %v3592
        %v3596 = vrot.slane %v3590, 1
        %v3597 = vrot.slane %v3591, 1
        %v3598 = vsel %vm929, %v3596, %v3597
        %v3599 = vsel %vm929, %v3597, %v3596
        %3600 = vrot.lane.b32.xlu0 %v3595, 1
        %v3601 = vpop.permute.xlu0 %3600
        %3602 = vrot.lane.b32.xlu0 %v3594, 1
        %v3603 = vpop.permute.xlu0 %3602
        %v3604 = vsel %vm914, %v3601, 0.0
        %v3605 = vsel %vm915, %v3603, 0.0
        %v3606 = vsel %vm908, %v3595, 0.0
        %v3607 = vsel %vm909, %v3594, 0.0
        %3608 = vrot.lane.b32.xlu0 %v3595, 127
        %v3609 = vpop.permute.xlu0 %3608
        %3610 = vrot.lane.b32.xlu0 %v3594, 127
        %v3611 = vpop.permute.xlu0 %3610
        %v3612 = vsel %vm916, %v3609, 0.0
        %v3613 = vsel %vm917, %v3611, 0.0
        %3614 = vrot.lane.b32.xlu0 %v3590, 1
        %v3615 = vpop.permute.xlu0 %3614
        %3616 = vrot.lane.b32.xlu0 %v3591, 1
        %v3617 = vpop.permute.xlu0 %3616
        %v3618 = vsel %vm912, %v3615, 0.0
        %v3619 = vsel %vm912, %v3617, 0.0
        %3620 = vrot.lane.b32.xlu0 %v3590, 127
        %v3621 = vpop.permute.xlu0 %3620
        %3622 = vrot.lane.b32.xlu0 %v3591, 127
        %v3623 = vpop.permute.xlu0 %3622
        %v3624 = vsel %vm913, %v3621, 0.0
        %v3625 = vsel %vm913, %v3623, 0.0
        %3626 = vrot.lane.b32.xlu0 %v3598, 1
        %v3627 = vpop.permute.xlu0 %3626
        %3628 = vrot.lane.b32.xlu0 %v3599, 1
        %v3629 = vpop.permute.xlu0 %3628
        %v3630 = vsel %vm918, %v3627, 0.0
        %v3631 = vsel %vm919, %v3629, 0.0
        %v3632 = vsel %vm910, %v3598, 0.0
        %v3633 = vsel %vm911, %v3599, 0.0
        %3634 = vrot.lane.b32.xlu0 %v3598, 127
        %v3635 = vpop.permute.xlu0 %3634
        %3636 = vrot.lane.b32.xlu0 %v3599, 127
        %v3637 = vpop.permute.xlu0 %3636
        %v3638 = vsel %vm920, %v3635, 0.0
        %v3639 = vsel %vm921, %v3637, 0.0
        %s3640 = sld [smem:[#allocation15 + $0x7]]
        %v3641 = vstv %s3640
        %v3642 = vmul.f32 %v3641, %v3604
        %v3643 = vmul.f32 %v3641, %v3605
        %v3644 = vadd.f32 %v3370, %v3642
        %v3645 = vadd.f32 %v3371, %v3643
        %s3646 = sld [smem:[#allocation15 + $0xf]]
        %v3647 = vstv %s3646
        %v3648 = vmul.f32 %v3647, %v3606
        %v3649 = vmul.f32 %v3647, %v3607
        %v3650 = vadd.f32 %v3644, %v3648
        %v3651 = vadd.f32 %v3645, %v3649
        %s3652 = sld [smem:[#allocation15 + $0x17]]
        %v3653 = vstv %s3652
        %v3654 = vmul.f32 %v3653, %v3612
        %v3655 = vmul.f32 %v3653, %v3613
        %v3656 = vadd.f32 %v3650, %v3654
        %v3657 = vadd.f32 %v3651, %v3655
        %s3658 = sld [smem:[#allocation15 + $0x1f]]
        %v3659 = vstv %s3658
        %v3660 = vmul.f32 %v3659, %v3618
        %v3661 = vmul.f32 %v3659, %v3619
        %v3662 = vadd.f32 %v3656, %v3660
        %v3663 = vadd.f32 %v3657, %v3661
        %s3664 = sld [smem:[#allocation15 + $0x27]]
        %v3665 = vstv %s3664
        %v3666 = vmul.f32 %v3665, %v3590
        %v3667 = vmul.f32 %v3665, %v3591
        %v3668 = vadd.f32 %v3662, %v3666
        %v3669 = vadd.f32 %v3663, %v3667
        %s3670 = sld [smem:[#allocation15 + $0x2f]]
        %v3671 = vstv %s3670
        %v3672 = vmul.f32 %v3671, %v3624
        %v3673 = vmul.f32 %v3671, %v3625
        %v3674 = vadd.f32 %v3668, %v3672
        %v3675 = vadd.f32 %v3669, %v3673
        %s3676 = sld [smem:[#allocation15 + $0x37]]
        %v3677 = vstv %s3676
        %v3678 = vmul.f32 %v3677, %v3630
        %v3679 = vmul.f32 %v3677, %v3631
        %v3680 = vadd.f32 %v3674, %v3678
        %v3681 = vadd.f32 %v3675, %v3679
        %s3682 = sld [smem:[#allocation15 + $0x3f]]
        %v3683 = vstv %s3682
        %v3684 = vmul.f32 %v3683, %v3632
        %v3685 = vmul.f32 %v3683, %v3633
        %v3686 = vadd.f32 %v3680, %v3684
        %v3687 = vadd.f32 %v3681, %v3685
        %s3688 = sld [smem:[#allocation15 + $0x47]]
        %v3689 = vstv %s3688
        %v3690 = vmul.f32 %v3689, %v3638
        %v3691 = vmul.f32 %v3689, %v3639
        %v3692 = vadd.f32 %v3686, %v3690
        %v3693 = vadd.f32 %v3687, %v3691
        %3694 = vst [vmem:[%s428] sm:$0xff] %v3692
        %3695 = vst [vmem:[%s428 + $0x8] sm:$0xff] %v3693
        %s3696 = sand.u32 %s218, 1
        %s3697 = scalar_lea.sflag [#allocation5], %s3696
        %s3698 = sand.u32 %s218, 1
        %s3699 = smul.addr %s3698, 16
        %s3700 = scalar_lea.vmem [#allocation16], %s3699
        // Predicated region
        $region81: #{tpu_custom_call.1} parent=51 // pred_check
          %p3701 = pneg %p228
        $region82: #{tpu_custom_call.1} parent=51 // pred_check_branch
          %3703 = sbr.rel (%p3701) target = $region84
        $region83: #{tpu_custom_call.1} parent=51 // pred_region
          %s3705 = ssub.s32 256, 256
          %3706 = vsyncadd %s3697, %s3705
          %s3707 = smul.addr %s32, 2
          %s3708 = smul.addr %s3707, 128
          %s3709 = scalar_lea.hbm %s8, %s3708
          %s3710 = sshll.u32 %s3700, 4
          %s3711 = int_to_ptr.vmem [resolvable:$true] %s3710
          %3716 = dma.vmem_to_hbm [thread:$0]  %s3711, 256, %s3709, %s3697, 128, 128, 8
        $region84: #{tpu_custom_call.1} parent=51 // pred_fallthru
          _
      $region52: #{tpu_custom_call.1} parent=5 // pred_fallthru
        _
      %p3717 = scmp.le.s32.totalorder 2, %s27
      // Predicated region
      $region85: #{tpu_custom_call.1} parent=5 // pred_check
        %p3718 = pneg %p3717
      $region86: #{tpu_custom_call.1} parent=5 // pred_check_branch
        %3720 = sbr.rel (%p3718) target = $region88
      $region87: #{tpu_custom_call.1} parent=5 // pred_region
        %s3721 = ssub.s32 %s27, 2
        // Predicated region
        $region89: #{tpu_custom_call.1} parent=87 // pred_check
          %p3722 = pneg %p234
        $region90: #{tpu_custom_call.1} parent=87 // pred_check_branch
          %3724 = sbr.rel (%p3722) target = $region92
        $region91: #{tpu_custom_call.1} parent=87 // pred_region
          %s3725 = sand.u32 %s219, 1
          %s3726 = scalar_lea.sflag [#allocation5], %s3725
          %s3727 = sand.u32 %s219, 1
          %s3728 = smul.addr %s3727, 16
          %s3729 = scalar_lea.vmem [#allocation16], %s3728
          %3730 = dma.done %s3726, 256
        $region92: #{tpu_custom_call.1} parent=87 // pred_fallthru
          _
      $region88: #{tpu_custom_call.1} parent=5 // pred_fallthru
        _
    $region6: #{tpu_custom_call.1} parent=1 // loop_footer
      %s31 = sadd.s32 1, %s27
    $region7: #{tpu_custom_call.1} parent=1 // loop_footer_branch
      %26 = sbr.rel target = $region3
    $region8: #{tpu_custom_call.1} parent=1 // loop_exit
      _
    %3731 = vsyncpa [#allocation4], 1
    %s3732 = scalar_lea.sflag [#allocation4], 1
    %3733 = vsyncpa %s3732, 1
    %3734 = vsyncpa [#allocation8], 1
    %s3735 = scalar_lea.sflag [#allocation8], 1
    %3736 = vsyncpa %s3735, 1
    %3737 = vsyncpa [#allocation5], 1
    %s3738 = scalar_lea.sflag [#allocation5], 1
    %3739 = vsyncpa %s3738, 1
    %3740 = vsyncpa [#allocation6], 1
    %s3741 = scalar_lea.sflag [#allocation6], 1
    %3742 = vsyncpa %s3741, 1
    %3743 = vsyncpa [#allocation11], 1
    %3744 = vsyncpa [#allocation14], 1

</llo_original>
